<compile_context>
chip_gen: v7x
topology: tpu7x:2x2x1
jax: 0.10.0
libtpu: 0.0.40
codegen_flags: <defaults>
</compile_context>

<pallas_src>
import functools

import jax
import jax.numpy as jnp
from jax.experimental import pallas as pl
from jax.experimental.pallas import tpu as pltpu


_LANE = 128  # TPU lane width: fc2's n_actions output is padded to this


def _round_up(v, m):
    return ((v + m - 1) // m) * m


def _device_config():
    """Per-generation knobs (review items 3/4): gate on physical VMEM size."""
    vmem_bytes = 64 << 20
    try:
        info = pltpu.get_tpu_info()
        vmem_bytes = getattr(info, "vmem_capacity_bytes", vmem_bytes) or vmem_bytes
    except Exception:
        pass
    if vmem_bytes >= (100 << 20):
        # v5e / v6e class parts: 128 MiB VMEM -> bigger tiles, higher cap.
        return {"vmem_limit": 64 << 20, "imgs_per_block": 16, "fc_tile_m": 512}
    # v7x: only 64 MiB physical VMEM -> stay conservative.
    return {"vmem_limit": 32 << 20, "imgs_per_block": 8, "fc_tile_m": 256}


# ---------------------------------------------------------------------------
# Kernel 1: stride-1 k x k conv + bias + ReLU on a block of G images.
# Patch extraction (k*k static slices), lane concat and the matmul all happen
# in VMEM -- no im2col matrix is ever written to HBM.
# ---------------------------------------------------------------------------
def _conv_s1_kernel(x_ref, w_ref, b_ref, o_ref, *, k, oh, ow):
    g = x_ref.shape[0]
    kk_cs = w_ref.shape[0]
    # Column order: patch-major (di, dj), then input channel -- matches the
    # row order produced by prepare_params().
    patches = [x_ref[:, di:di + oh, dj:dj + ow, :]
               for di in range(k) for dj in range(k)]
    p = jnp.concatenate(patches, axis=-1)            # (G, OH, OW, k*k*Cs)
    p = p.reshape(g * oh * ow, kk_cs)                # trivial: OW % 8 == 0
    y = jnp.dot(p, w_ref[...], preferred_element_type=jnp.float32)
    y = jnp.maximum(y + b_ref[...], 0.0)
    o_ref[...] = y.reshape(g, oh, ow, -1).astype(o_ref.dtype)


def conv_s1(x, w, b, *, k, oh, ow, imgs_per_block, vmem_limit):
    """x: (Ng, Hs, Ws, Cs) bf16; w: (k*k*Cs, Cout) bf16; b: (1, Cout) f32."""
    ng, hs, ws, cs = x.shape
    kk_cs, cout = w.shape
    assert kk_cs == k * k * cs
    assert hs >= oh + k - 1 and ws >= ow + k - 1 and ow % 8 == 0
    assert ng % imgs_per_block == 0
    g = imgs_per_block

    kernel = functools.partial(_conv_s1_kernel, k=k, oh=oh, ow=ow)
    return pl.pallas_call(
        kernel,
        out_shape=jax.ShapeDtypeStruct((ng, oh, ow, cout), jnp.bfloat16),
        grid_spec=pltpu.PrefetchScalarGridSpec(
            num_scalar_prefetch=0,
            grid=(ng // g,),
            in_specs=[
                pl.BlockSpec((g, hs, ws, cs), lambda i: (i, 0, 0, 0)),
                # Constant index_map: weights/bias DMA'd once, then revisited.
                pl.BlockSpec((kk_cs, cout), lambda i: (0, 0)),
                pl.BlockSpec((1, cout), lambda i: (0, 0)),
            ],
            out_specs=pl.BlockSpec((g, oh, ow, cout), lambda i: (i, 0, 0, 0)),
        ),
        compiler_params=pltpu.CompilerParams(
            dimension_semantics=("parallel",),
            vmem_limit_bytes=vmem_limit,
        ),
    )(x, w, b)


# ---------------------------------------------------------------------------
# Kernel 2: fused FC head  q = relu(x @ W1 + b1) @ W2 + b2,  grid = (M tiles,)
# fw1m (3136x512 bf16, 3.2 MB) has a constant index_map -> fetched once.
# TODO(synk): on v7x, add a second parallel grid axis (split fc1's 512 columns
# and sum the fc2 partials outside) so both TensorCores work at batch <= tm.
# ---------------------------------------------------------------------------
def _fc_head_kernel(x_ref, w1_ref, b1_ref, w2_ref, b2_ref, o_ref):
    h = jnp.dot(x_ref[...], w1_ref[...], preferred_element_type=jnp.float32)
    h = jnp.maximum(h + b1_ref[...], 0.0)
    q = jnp.dot(h.astype(w2_ref.dtype), w2_ref[...],
                preferred_element_type=jnp.float32)
    o_ref[...] = q + b2_ref[...]


def fc_head(x, w1, b1, w2, b2, *, fc_tile_m, vmem_limit):
    m, k1 = x.shape
    _, hdim = w1.shape
    _, no = w2.shape
    tm = min(fc_tile_m, _round_up(m, 8))
    mp = _round_up(m, tm)
    if mp != m:
        x = jnp.pad(x, ((0, mp - m), (0, 0)))

    out = pl.pallas_call(
        _fc_head_kernel,
        out_shape=jax.ShapeDtypeStruct((mp, no), jnp.float32),
        grid_spec=pltpu.PrefetchScalarGridSpec(
            num_scalar_prefetch=0,
            grid=(mp // tm,),
            in_specs=[
                pl.BlockSpec((tm, k1), lambda i: (i, 0)),
                pl.BlockSpec((k1, hdim), lambda i: (0, 0)),
                pl.BlockSpec((1, hdim), lambda i: (0, 0)),
                pl.BlockSpec((hdim, no), lambda i: (0, 0)),
                pl.BlockSpec((1, no), lambda i: (0, 0)),
            ],
            out_specs=pl.BlockSpec((tm, no), lambda i: (i, 0)),
        ),
        compiler_params=pltpu.CompilerParams(
            dimension_semantics=("parallel",),
            vmem_limit_bytes=vmem_limit,
        ),
    )(x, w1, b1, w2, b2)
    return out[:m] if mp != m else out


# ---------------------------------------------------------------------------
# DCQN forward
# ---------------------------------------------------------------------------
def dcqn_forward(x_nchw, pp, *, n_actions, cfg):
    n = x_nchw.shape[0]
    g = min(n, cfg["imgs_per_block"])
    ng = _round_up(n, g)
    conv_kw = dict(imgs_per_block=g, vmem_limit=cfg["vmem_limit"])

    # NCHW -> NHWC, bf16, space-to-depth(4): (N,84,84,4) -> (N,21,21,64);
    # pad batch to Ng and width 21 -> 25 (so conv1 can emit 24 = 8k columns).
    x = jnp.transpose(x_nchw, (0, 2, 3, 1)).astype(jnp.bfloat16)
    x = x.reshape(n, 21, 4, 21, 4, 4).transpose(0, 1, 3, 2, 4, 5)
    x = x.reshape(n, 21, 21, 64)
    x = jnp.pad(x, ((0, ng - n), (0, 0), (0, 4), (0, 0)))       # (Ng,21,25,64)

    # conv1 as a 2x2 stride-1 conv over the s2d(4) input.
    y1 = conv_s1(x, pp["w1m"], pp["b1"], k=2, oh=20, ow=24, **conv_kw)

    # space-to-depth(2) for conv2 (valid 20x20 region; garbage cols ride along,
    # never read by valid outputs); pad width 12 -> 17 for a 16-column output.
    y1 = y1.reshape(ng, 10, 2, 12, 2, 32).transpose(0, 1, 3, 2, 4, 5)
    y1 = y1.reshape(ng, 10, 12, 128)
    y1 = jnp.pad(y1, ((0, 0), (0, 0), (0, 5), (0, 0)))          # (Ng,10,17,128)

    y2 = conv_s1(y1, pp["w2m"], pp["b2"], k=2, oh=9, ow=16, **conv_kw)   # (Ng,9,16,64)
    y3 = conv_s1(y2, pp["w3m"], pp["b3"], k=3, oh=7, ow=8, **conv_kw)    # (Ng,7,8,64)

    # Drop the padded column; NHWC flatten matches fw1m's row permutation.
    # TODO(synk): optionally fuse conv3 into the fc head to skip this tiny
    # (Ng,7,7,64) HBM round trip and one launch.
    flat = y3[:, :, :7, :].reshape(ng, 3136)
    q_pad = fc_head(flat, pp["fw1m"], pp["fb1"], pp["fw2m"], pp["fb2"],
                    fc_tile_m=cfg["fc_tile_m"], vmem_limit=cfg["vmem_limit"])
    return q_pad[:n, :n_actions]


# ---------------------------------------------------------------------------
# Parameters: PyTorch-layout init, then a one-time repack (outside the forward)
# ---------------------------------------------------------------------------
def init_params(key, n_actions):
    ks = jax.random.split(key, 10)

    def u(k, shape, fan_in):
        bound = 1.0 / (fan_in ** 0.5)
        return jax.random.uniform(k, shape, jnp.float32, -bound, bound)

    return {
        "w1": u(ks[0], (32, 4, 8, 8), 4 * 8 * 8),
        "b1": u(ks[1], (32,), 4 * 8 * 8),
        "w2": u(ks[2], (64, 32, 4, 4), 32 * 4 * 4),
        "b2": u(ks[3], (64,), 32 * 4 * 4),
        "w3": u(ks[4], (64, 64, 3, 3), 64 * 3 * 3),
        "b3": u(ks[5], (64,), 64 * 3 * 3),
        "fw1": u(ks[6], (512, 3136), 3136),
        "fb1": u(ks[7], (512,), 3136),
        "fw2": u(ks[8], (n_actions, 512), 512),
        "fb2": u(ks[9], (n_actions,), 512),
    }


def prepare_params(p):
    """One-time weight repack / bf16 cast, hoisted out of the forward path."""
    bf16, f32 = jnp.bfloat16, jnp.float32
    n_actions = p["fw2"].shape[0]
    assert n_actions <= _LANE

    def s2d_conv_w(w, block):
        # (Cout, Cin, kh, kw) with kh = block*di + ri, kw = block*dj + rj
        # -> rows ordered (di, dj, ri, rj, cin), matching the kernel's
        #    patch-major concat over the space-to-depth packed channels.
        cout, cin, kh, kw = w.shape
        kb = kh // block
        wr = w.reshape(cout, cin, kb, block, kb, block)
        wm = jnp.transpose(wr, (2, 4, 3, 5, 1, 0))
        return wm.reshape(kb * kb * block * block * cin, cout).astype(bf16)

    w1m = s2d_conv_w(p["w1"], 4)                       # (256, 32)
    w2m = s2d_conv_w(p["w2"], 2)                       # (512, 64)
    # conv3: plain 3x3 stride-1, rows ordered (kh, kw, cin).
    w3m = jnp.transpose(p["w3"], (2, 3, 1, 0)).reshape(576, 64).astype(bf16)

    # Fold torch's NCHW flatten (c*49 + h*7 + w) into a row permutation so the
    # NHWC conv3 output (h*448 + w*64 + c) feeds fc1 with a plain reshape.
    fw1m = jnp.transpose(p["fw1"].reshape(512, 64, 7, 7), (2, 3, 1, 0))
    fw1m = fw1m.reshape(3136, 512).astype(bf16)
    fw2m = jnp.pad(p["fw2"].T, ((0, 0), (0, _LANE - n_actions))).astype(bf16)

    def b2d(b):
        return b.reshape(1, -1).astype(f32)

    return {
        "w1m": w1m, "b1": b2d(p["b1"]),
        "w2m": w2m, "b2": b2d(p["b2"]),
        "w3m": w3m, "b3": b2d(p["b3"]),
        "fw1m": fw1m, "fb1": b2d(p["fb1"]),
        "fw2m": fw2m,
        "fb2": jnp.pad(p["fb2"], (0, _LANE - n_actions)).reshape(1, _LANE).astype(f32),
    }


# ---------------------------------------------------------------------------
# Pure-JAX f32 reference (guards the weight-repacking permutations).
# ---------------------------------------------------------------------------
def _ref_forward(x, p):
    def conv(z, w, b, s):
        y = jax.lax.conv_general_dilated(
            z, w, window_strides=(s, s), padding="VALID",
            dimension_numbers=("NCHW", "OIHW", "NCHW"))
        return jax.nn.relu(y + b[None, :, None, None])

    y = conv(x, p["w1"], p["b1"], 4)
    y = conv(y, p["w2"], p["b2"], 2)
    y = conv(y, p["w3"], p["b3"], 1)
    f = y.reshape(y.shape[0], -1)
    h = jax.nn.relu(f @ p["fw1"].T + p["fb1"])
    return h @ p["fw2"].T + p["fb2"]


if __name__ == "__main__":
    key = jax.random.PRNGKey(0)
    k_param, k_x = jax.random.split(key)

    n_actions = 6
    raw = init_params(k_param, n_actions)
    pp = prepare_params(raw)              # one-time repack, outside the forward
    cfg = _device_config()

    # Input spatial size is fixed at 84x84 by fc1's in_features = 3136 (64*7*7).
    x = jax.random.normal(k_x, (2, 4, 84, 84), dtype=jnp.float32)

    fwd = jax.jit(functools.partial(dcqn_forward, n_actions=n_actions, cfg=cfg))
    q = jax.block_until_ready(fwd(x, pp))

    assert q.shape == (2, n_actions), q.shape
    assert q.dtype == jnp.float32

    q_ref = _ref_forward(x, raw)
    err = float(jnp.max(jnp.abs(q - q_ref)))
    assert err < 5e-2, f"mismatch vs f32 reference: max abs err = {err}"

    print("KERNEL_OK")
</pallas_src>

<mosaic_0001>
module attributes {stable_mosaic.version = 11 : i64} {
  func.func @_conv_s1_kernel(%arg0: i32, %arg1: memref<2x21x25x64xbf16, #tpu.memory_space<vmem>>, %arg2: memref<256x32xbf16, #tpu.memory_space<vmem>>, %arg3: memref<1x32xf32, #tpu.memory_space<vmem>>, %arg4: memref<2x20x24x32xbf16, #tpu.memory_space<vmem>>) attributes {dimension_semantics = [#tpu.dimension_semantics<parallel>], iteration_bounds = array<i64: 1>, scalar_prefetch = 0 : i64, scratch_operands = 0 : i64, tpu.core_type = #tpu.core_type<tc>, window_params = [{transform_indices = @transform_0, window_bounds = array<i64: 2, 21, 25, 64>}, {pipeline_mode = #tpu.pipeline_mode<synchronous>, transform_indices = @transform_1, window_bounds = array<i64: 256, 32>}, {pipeline_mode = #tpu.pipeline_mode<synchronous>, transform_indices = @transform_2, window_bounds = array<i64: 1, 32>}, {transform_indices = @transform_3, window_bounds = array<i64: 2, 20, 24, 32>}]} {
    %c0 = arith.constant 0 : index
    %c0_0 = arith.constant 0 : index
    %c0_1 = arith.constant 0 : index
    %c0_2 = arith.constant 0 : index
    %0 = vector.load %arg1[%c0, %c0_0, %c0_1, %c0_2] : memref<2x21x25x64xbf16, #tpu.memory_space<vmem>>, vector<2x20x24x64xbf16>
    %c0_3 = arith.constant 0 : index
    %c0_4 = arith.constant 0 : index
    %c1 = arith.constant 1 : index
    %c0_5 = arith.constant 0 : index
    %1 = vector.load %arg1[%c0_3, %c0_4, %c1, %c0_5] : memref<2x21x25x64xbf16, #tpu.memory_space<vmem>>, vector<2x20x24x64xbf16>
    %c0_6 = arith.constant 0 : index
    %c1_7 = arith.constant 1 : index
    %c0_8 = arith.constant 0 : index
    %c0_9 = arith.constant 0 : index
    %2 = vector.load %arg1[%c0_6, %c1_7, %c0_8, %c0_9] : memref<2x21x25x64xbf16, #tpu.memory_space<vmem>>, vector<2x20x24x64xbf16>
    %c0_10 = arith.constant 0 : index
    %c1_11 = arith.constant 1 : index
    %c1_12 = arith.constant 1 : index
    %c0_13 = arith.constant 0 : index
    %3 = vector.load %arg1[%c0_10, %c1_11, %c1_12, %c0_13] : memref<2x21x25x64xbf16, #tpu.memory_space<vmem>>, vector<2x20x24x64xbf16>
    %4 = tpu.concatenate %0, %1, %2, %3 in 3 : vector<2x20x24x64xbf16>, vector<2x20x24x64xbf16>, vector<2x20x24x64xbf16>, vector<2x20x24x64xbf16> -> vector<2x20x24x256xbf16>
    %5 = vector.shape_cast %4 : vector<2x20x24x256xbf16> to vector<960x256xbf16>
    %c0_14 = arith.constant 0 : index
    %c0_15 = arith.constant 0 : index
    %6 = vector.load %arg2[%c0_14, %c0_15] : memref<256x32xbf16, #tpu.memory_space<vmem>>, vector<256x32xbf16>
    %cst = arith.constant dense<0.000000e+00> : vector<960x32xf32>
    %7 = tpu.matmul %5, %6, %cst {dimension_numbers = #tpu.dot_dimension_numbers<[1], [0], [0], [1], [0, 0, 1, 1], [], []>} : vector<960x256xbf16>, vector<256x32xbf16>, vector<960x32xf32> -> vector<960x32xf32>
    %c0_16 = arith.constant 0 : index
    %c0_17 = arith.constant 0 : index
    %8 = vector.load %arg3[%c0_16, %c0_17] : memref<1x32xf32, #tpu.memory_space<vmem>>, vector<1x32xf32>
    %9 = vector.broadcast %8 : vector<1x32xf32> to vector<960x32xf32>
    %10 = arith.addf %7, %9 : vector<960x32xf32>
    %cst_18 = arith.constant 0.000000e+00 : f32
    %11 = vector.broadcast %cst_18 : f32 to vector<960x32xf32>
    %12 = arith.maximumf %10, %11 : vector<960x32xf32>
    %13 = vector.shape_cast %12 : vector<960x32xf32> to vector<2x20x24x32xf32>
    %14 = arith.truncf %13 : vector<2x20x24x32xf32> to vector<2x20x24x32xbf16>
    %c0_19 = arith.constant 0 : index
    %c0_20 = arith.constant 0 : index
    %c0_21 = arith.constant 0 : index
    %c0_22 = arith.constant 0 : index
    %15 = vector.load %arg4[%c0_19, %c0_20, %c0_21, %c0_22] : memref<2x20x24x32xbf16, #tpu.memory_space<vmem>>, vector<2x20x24x32xbf16>
    tpu.vector_store %arg4[%c0_19, %c0_20, %c0_21, %c0_22], %14 {strides = array<i32>} : memref<2x20x24x32xbf16, #tpu.memory_space<vmem>>, vector<2x20x24x32xbf16>,
    return
  }
  func.func @transform_0(%arg0: i32) -> (i32, i32, i32, i32) {
    %c0_i32 = arith.constant 0 : i32
    %c0_i32_0 = arith.constant 0 : i32
    %c0_i32_1 = arith.constant 0 : i32
    %c0_i32_2 = arith.constant 0 : i32
    return %arg0, %c0_i32, %c0_i32_0, %c0_i32_1 : i32, i32, i32, i32
  }
  func.func @transform_1(%arg0: i32) -> (i32, i32) {
    %c0_i32 = arith.constant 0 : i32
    %c0_i32_0 = arith.constant 0 : i32
    %c0_i32_1 = arith.constant 0 : i32
    return %c0_i32, %c0_i32_0 : i32, i32
  }
  func.func @transform_2(%arg0: i32) -> (i32, i32) {
    %c0_i32 = arith.constant 0 : i32
    %c0_i32_0 = arith.constant 0 : i32
    %c0_i32_1 = arith.constant 0 : i32
    return %c0_i32, %c0_i32_0 : i32, i32
  }
  func.func @transform_3(%arg0: i32) -> (i32, i32, i32, i32) {
    %c0_i32 = arith.constant 0 : i32
    %c0_i32_0 = arith.constant 0 : i32
    %c0_i32_1 = arith.constant 0 : i32
    %c0_i32_2 = arith.constant 0 : i32
    return %arg0, %c0_i32, %c0_i32_0, %c0_i32_1 : i32, i32, i32, i32
  }
}

module attributes {stable_mosaic.version = 11 : i64} {
  func.func @_conv_s1_kernel(%arg0: i32, %arg1: memref<2x10x17x128xbf16, #tpu.memory_space<vmem>>, %arg2: memref<512x64xbf16, #tpu.memory_space<vmem>>, %arg3: memref<1x64xf32, #tpu.memory_space<vmem>>, %arg4: memref<2x9x16x64xbf16, #tpu.memory_space<vmem>>) attributes {dimension_semantics = [#tpu.dimension_semantics<parallel>], iteration_bounds = array<i64: 1>, scalar_prefetch = 0 : i64, scratch_operands = 0 : i64, tpu.core_type = #tpu.core_type<tc>, window_params = [{transform_indices = @transform_0, window_bounds = array<i64: 2, 10, 17, 128>}, {pipeline_mode = #tpu.pipeline_mode<synchronous>, transform_indices = @transform_1, window_bounds = array<i64: 512, 64>}, {pipeline_mode = #tpu.pipeline_mode<synchronous>, transform_indices = @transform_2, window_bounds = array<i64: 1, 64>}, {transform_indices = @transform_3, window_bounds = array<i64: 2, 9, 16, 64>}]} {
    %c0 = arith.constant 0 : index
    %c0_0 = arith.constant 0 : index
    %c0_1 = arith.constant 0 : index
    %c0_2 = arith.constant 0 : index
    %0 = vector.load %arg1[%c0, %c0_0, %c0_1, %c0_2] : memref<2x10x17x128xbf16, #tpu.memory_space<vmem>>, vector<2x9x16x128xbf16>
    %c0_3 = arith.constant 0 : index
    %c0_4 = arith.constant 0 : index
    %c1 = arith.constant 1 : index
    %c0_5 = arith.constant 0 : index
    %1 = vector.load %arg1[%c0_3, %c0_4, %c1, %c0_5] : memref<2x10x17x128xbf16, #tpu.memory_space<vmem>>, vector<2x9x16x128xbf16>
    %c0_6 = arith.constant 0 : index
    %c1_7 = arith.constant 1 : index
    %c0_8 = arith.constant 0 : index
    %c0_9 = arith.constant 0 : index
    %2 = vector.load %arg1[%c0_6, %c1_7, %c0_8, %c0_9] : memref<2x10x17x128xbf16, #tpu.memory_space<vmem>>, vector<2x9x16x128xbf16>
    %c0_10 = arith.constant 0 : index
    %c1_11 = arith.constant 1 : index
    %c1_12 = arith.constant 1 : index
    %c0_13 = arith.constant 0 : index
    %3 = vector.load %arg1[%c0_10, %c1_11, %c1_12, %c0_13] : memref<2x10x17x128xbf16, #tpu.memory_space<vmem>>, vector<2x9x16x128xbf16>
    %4 = tpu.concatenate %0, %1, %2, %3 in 3 : vector<2x9x16x128xbf16>, vector<2x9x16x128xbf16>, vector<2x9x16x128xbf16>, vector<2x9x16x128xbf16> -> vector<2x9x16x512xbf16>
    %5 = vector.shape_cast %4 : vector<2x9x16x512xbf16> to vector<288x512xbf16>
    %c0_14 = arith.constant 0 : index
    %c0_15 = arith.constant 0 : index
    %6 = vector.load %arg2[%c0_14, %c0_15] : memref<512x64xbf16, #tpu.memory_space<vmem>>, vector<512x64xbf16>
    %cst = arith.constant dense<0.000000e+00> : vector<288x64xf32>
    %7 = tpu.matmul %5, %6, %cst {dimension_numbers = #tpu.dot_dimension_numbers<[1], [0], [0], [1], [0, 0, 1, 1], [], []>} : vector<288x512xbf16>, vector<512x64xbf16>, vector<288x64xf32> -> vector<288x64xf32>
    %c0_16 = arith.constant 0 : index
    %c0_17 = arith.constant 0 : index
    %8 = vector.load %arg3[%c0_16, %c0_17] : memref<1x64xf32, #tpu.memory_space<vmem>>, vector<1x64xf32>
    %9 = vector.broadcast %8 : vector<1x64xf32> to vector<288x64xf32>
    %10 = arith.addf %7, %9 : vector<288x64xf32>
    %cst_18 = arith.constant 0.000000e+00 : f32
    %11 = vector.broadcast %cst_18 : f32 to vector<288x64xf32>
    %12 = arith.maximumf %10, %11 : vector<288x64xf32>
    %13 = vector.shape_cast %12 : vector<288x64xf32> to vector<2x9x16x64xf32>
    %14 = arith.truncf %13 : vector<2x9x16x64xf32> to vector<2x9x16x64xbf16>
    %c0_19 = arith.constant 0 : index
    %c0_20 = arith.constant 0 : index
    %c0_21 = arith.constant 0 : index
    %c0_22 = arith.constant 0 : index
    %15 = vector.load %arg4[%c0_19, %c0_20, %c0_21, %c0_22] : memref<2x9x16x64xbf16, #tpu.memory_space<vmem>>, vector<2x9x16x64xbf16>
    tpu.vector_store %arg4[%c0_19, %c0_20, %c0_21, %c0_22], %14 {strides = array<i32>} : memref<2x9x16x64xbf16, #tpu.memory_space<vmem>>, vector<2x9x16x64xbf16>,
    return
  }
  func.func @transform_0(%arg0: i32) -> (i32, i32, i32, i32) {
    %c0_i32 = arith.constant 0 : i32
    %c0_i32_0 = arith.constant 0 : i32
    %c0_i32_1 = arith.constant 0 : i32
    %c0_i32_2 = arith.constant 0 : i32
    return %arg0, %c0_i32, %c0_i32_0, %c0_i32_1 : i32, i32, i32, i32
  }
  func.func @transform_1(%arg0: i32) -> (i32, i32) {
    %c0_i32 = arith.constant 0 : i32
    %c0_i32_0 = arith.constant 0 : i32
    %c0_i32_1 = arith.constant 0 : i32
    return %c0_i32, %c0_i32_0 : i32, i32
  }
  func.func @transform_2(%arg0: i32) -> (i32, i32) {
    %c0_i32 = arith.constant 0 : i32
    %c0_i32_0 = arith.constant 0 : i32
    %c0_i32_1 = arith.constant 0 : i32
    return %c0_i32, %c0_i32_0 : i32, i32
  }
  func.func @transform_3(%arg0: i32) -> (i32, i32, i32, i32) {
    %c0_i32 = arith.constant 0 : i32
    %c0_i32_0 = arith.constant 0 : i32
    %c0_i32_1 = arith.constant 0 : i32
    %c0_i32_2 = arith.constant 0 : i32
    return %arg0, %c0_i32, %c0_i32_0, %c0_i32_1 : i32, i32, i32, i32
  }
}

module attributes {stable_mosaic.version = 11 : i64} {
  func.func @_conv_s1_kernel(%arg0: i32, %arg1: memref<2x9x16x64xbf16, #tpu.memory_space<vmem>>, %arg2: memref<576x64xbf16, #tpu.memory_space<vmem>>, %arg3: memref<1x64xf32, #tpu.memory_space<vmem>>, %arg4: memref<2x7x8x64xbf16, #tpu.memory_space<vmem>>) attributes {dimension_semantics = [#tpu.dimension_semantics<parallel>], iteration_bounds = array<i64: 1>, scalar_prefetch = 0 : i64, scratch_operands = 0 : i64, tpu.core_type = #tpu.core_type<tc>, window_params = [{transform_indices = @transform_0, window_bounds = array<i64: 2, 9, 16, 64>}, {pipeline_mode = #tpu.pipeline_mode<synchronous>, transform_indices = @transform_1, window_bounds = array<i64: 576, 64>}, {pipeline_mode = #tpu.pipeline_mode<synchronous>, transform_indices = @transform_2, window_bounds = array<i64: 1, 64>}, {transform_indices = @transform_3, window_bounds = array<i64: 2, 7, 8, 64>}]} {
    %c0 = arith.constant 0 : index
    %c0_0 = arith.constant 0 : index
    %c0_1 = arith.constant 0 : index
    %c0_2 = arith.constant 0 : index
    %0 = vector.load %arg1[%c0, %c0_0, %c0_1, %c0_2] : memref<2x9x16x64xbf16, #tpu.memory_space<vmem>>, vector<2x7x8x64xbf16>
    %c0_3 = arith.constant 0 : index
    %c0_4 = arith.constant 0 : index
    %c1 = arith.constant 1 : index
    %c0_5 = arith.constant 0 : index
    %1 = vector.load %arg1[%c0_3, %c0_4, %c1, %c0_5] : memref<2x9x16x64xbf16, #tpu.memory_space<vmem>>, vector<2x7x8x64xbf16>
    %c0_6 = arith.constant 0 : index
    %c0_7 = arith.constant 0 : index
    %c2 = arith.constant 2 : index
    %c0_8 = arith.constant 0 : index
    %2 = vector.load %arg1[%c0_6, %c0_7, %c2, %c0_8] : memref<2x9x16x64xbf16, #tpu.memory_space<vmem>>, vector<2x7x8x64xbf16>
    %c0_9 = arith.constant 0 : index
    %c1_10 = arith.constant 1 : index
    %c0_11 = arith.constant 0 : index
    %c0_12 = arith.constant 0 : index
    %3 = vector.load %arg1[%c0_9, %c1_10, %c0_11, %c0_12] : memref<2x9x16x64xbf16, #tpu.memory_space<vmem>>, vector<2x7x8x64xbf16>
    %c0_13 = arith.constant 0 : index
    %c1_14 = arith.constant 1 : index
    %c1_15 = arith.constant 1 : index
    %c0_16 = arith.constant 0 : index
    %4 = vector.load %arg1[%c0_13, %c1_14, %c1_15, %c0_16] : memref<2x9x16x64xbf16, #tpu.memory_space<vmem>>, vector<2x7x8x64xbf16>
    %c0_17 = arith.constant 0 : index
    %c1_18 = arith.constant 1 : index
    %c2_19 = arith.constant 2 : index
    %c0_20 = arith.constant 0 : index
    %5 = vector.load %arg1[%c0_17, %c1_18, %c2_19, %c0_20] : memref<2x9x16x64xbf16, #tpu.memory_space<vmem>>, vector<2x7x8x64xbf16>
    %c0_21 = arith.constant 0 : index
    %c2_22 = arith.constant 2 : index
    %c0_23 = arith.constant 0 : index
    %c0_24 = arith.constant 0 : index
    %6 = vector.load %arg1[%c0_21, %c2_22, %c0_23, %c0_24] : memref<2x9x16x64xbf16, #tpu.memory_space<vmem>>, vector<2x7x8x64xbf16>
    %c0_25 = arith.constant 0 : index
    %c2_26 = arith.constant 2 : index
    %c1_27 = arith.constant 1 : index
    %c0_28 = arith.constant 0 : index
    %7 = vector.load %arg1[%c0_25, %c2_26, %c1_27, %c0_28] : memref<2x9x16x64xbf16, #tpu.memory_space<vmem>>, vector<2x7x8x64xbf16>
    %c0_29 = arith.constant 0 : index
    %c2_30 = arith.constant 2 : index
    %c2_31 = arith.constant 2 : index
    %c0_32 = arith.constant 0 : index
    %8 = vector.load %arg1[%c0_29, %c2_30, %c2_31, %c0_32] : memref<2x9x16x64xbf16, #tpu.memory_space<vmem>>, vector<2x7x8x64xbf16>
    %9 = tpu.concatenate %0, %1, %2, %3, %4, %5, %6, %7, %8 in 3 : vector<2x7x8x64xbf16>, vector<2x7x8x64xbf16>, vector<2x7x8x64xbf16>, vector<2x7x8x64xbf16>, vector<2x7x8x64xbf16>, vector<2x7x8x64xbf16>, vector<2x7x8x64xbf16>, vector<2x7x8x64xbf16>, vector<2x7x8x64xbf16> -> vector<2x7x8x576xbf16>
    %10 = vector.shape_cast %9 : vector<2x7x8x576xbf16> to vector<112x576xbf16>
    %c0_33 = arith.constant 0 : index
    %c0_34 = arith.constant 0 : index
    %11 = vector.load %arg2[%c0_33, %c0_34] : memref<576x64xbf16, #tpu.memory_space<vmem>>, vector<576x64xbf16>
    %cst = arith.constant dense<0.000000e+00> : vector<112x64xf32>
    %12 = tpu.matmul %10, %11, %cst {dimension_numbers = #tpu.dot_dimension_numbers<[1], [0], [0], [1], [0, 0, 1, 1], [], []>} : vector<112x576xbf16>, vector<576x64xbf16>, vector<112x64xf32> -> vector<112x64xf32>
    %c0_35 = arith.constant 0 : index
    %c0_36 = arith.constant 0 : index
    %13 = vector.load %arg3[%c0_35, %c0_36] : memref<1x64xf32, #tpu.memory_space<vmem>>, vector<1x64xf32>
    %14 = vector.broadcast %13 : vector<1x64xf32> to vector<112x64xf32>
    %15 = arith.addf %12, %14 : vector<112x64xf32>
    %cst_37 = arith.constant 0.000000e+00 : f32
    %16 = vector.broadcast %cst_37 : f32 to vector<112x64xf32>
    %17 = arith.maximumf %15, %16 : vector<112x64xf32>
    %18 = vector.shape_cast %17 : vector<112x64xf32> to vector<2x7x8x64xf32>
    %19 = arith.truncf %18 : vector<2x7x8x64xf32> to vector<2x7x8x64xbf16>
    %c0_38 = arith.constant 0 : index
    %c0_39 = arith.constant 0 : index
    %c0_40 = arith.constant 0 : index
    %c0_41 = arith.constant 0 : index
    %20 = vector.load %arg4[%c0_38, %c0_39, %c0_40, %c0_41] : memref<2x7x8x64xbf16, #tpu.memory_space<vmem>>, vector<2x7x8x64xbf16>
    tpu.vector_store %arg4[%c0_38, %c0_39, %c0_40, %c0_41], %19 {strides = array<i32>} : memref<2x7x8x64xbf16, #tpu.memory_space<vmem>>, vector<2x7x8x64xbf16>,
    return
  }
  func.func @transform_0(%arg0: i32) -> (i32, i32, i32, i32) {
    %c0_i32 = arith.constant 0 : i32
    %c0_i32_0 = arith.constant 0 : i32
    %c0_i32_1 = arith.constant 0 : i32
    %c0_i32_2 = arith.constant 0 : i32
    return %arg0, %c0_i32, %c0_i32_0, %c0_i32_1 : i32, i32, i32, i32
  }
  func.func @transform_1(%arg0: i32) -> (i32, i32) {
    %c0_i32 = arith.constant 0 : i32
    %c0_i32_0 = arith.constant 0 : i32
    %c0_i32_1 = arith.constant 0 : i32
    return %c0_i32, %c0_i32_0 : i32, i32
  }
  func.func @transform_2(%arg0: i32) -> (i32, i32) {
    %c0_i32 = arith.constant 0 : i32
    %c0_i32_0 = arith.constant 0 : i32
    %c0_i32_1 = arith.constant 0 : i32
    return %c0_i32, %c0_i32_0 : i32, i32
  }
  func.func @transform_3(%arg0: i32) -> (i32, i32, i32, i32) {
    %c0_i32 = arith.constant 0 : i32
    %c0_i32_0 = arith.constant 0 : i32
    %c0_i32_1 = arith.constant 0 : i32
    %c0_i32_2 = arith.constant 0 : i32
    return %arg0, %c0_i32, %c0_i32_0, %c0_i32_1 : i32, i32, i32, i32
  }
}

module attributes {stable_mosaic.version = 11 : i64} {
  func.func @_fc_head_kernel(%arg0: i32, %arg1: memref<8x3136xbf16, #tpu.memory_space<vmem>>, %arg2: memref<3136x512xbf16, #tpu.memory_space<vmem>>, %arg3: memref<1x512xf32, #tpu.memory_space<vmem>>, %arg4: memref<512x128xbf16, #tpu.memory_space<vmem>>, %arg5: memref<1x128xf32, #tpu.memory_space<vmem>>, %arg6: memref<8x128xf32, #tpu.memory_space<vmem>>) attributes {dimension_semantics = [#tpu.dimension_semantics<parallel>], iteration_bounds = array<i64: 1>, scalar_prefetch = 0 : i64, scratch_operands = 0 : i64, tpu.core_type = #tpu.core_type<tc>, window_params = [{transform_indices = @transform_0, window_bounds = array<i64: 8, 3136>}, {pipeline_mode = #tpu.pipeline_mode<synchronous>, transform_indices = @transform_1, window_bounds = array<i64: 3136, 512>}, {pipeline_mode = #tpu.pipeline_mode<synchronous>, transform_indices = @transform_2, window_bounds = array<i64: 1, 512>}, {pipeline_mode = #tpu.pipeline_mode<synchronous>, transform_indices = @transform_3, window_bounds = array<i64: 512, 128>}, {pipeline_mode = #tpu.pipeline_mode<synchronous>, transform_indices = @transform_4, window_bounds = array<i64: 1, 128>}, {transform_indices = @transform_5, window_bounds = array<i64: 8, 128>}]} {
    %c0 = arith.constant 0 : index
    %c0_0 = arith.constant 0 : index
    %0 = vector.load %arg1[%c0, %c0_0] : memref<8x3136xbf16, #tpu.memory_space<vmem>>, vector<8x3136xbf16>
    %c0_1 = arith.constant 0 : index
    %c0_2 = arith.constant 0 : index
    %1 = vector.load %arg2[%c0_1, %c0_2] : memref<3136x512xbf16, #tpu.memory_space<vmem>>, vector<3136x512xbf16>
    %cst = arith.constant dense<0.000000e+00> : vector<8x512xf32>
    %2 = tpu.matmul %0, %1, %cst {dimension_numbers = #tpu.dot_dimension_numbers<[1], [0], [0], [1], [0, 0, 1, 1], [], []>} : vector<8x3136xbf16>, vector<3136x512xbf16>, vector<8x512xf32> -> vector<8x512xf32>
    %c0_3 = arith.constant 0 : index
    %c0_4 = arith.constant 0 : index
    %3 = vector.load %arg3[%c0_3, %c0_4] : memref<1x512xf32, #tpu.memory_space<vmem>>, vector<1x512xf32>
    %4 = vector.broadcast %3 : vector<1x512xf32> to vector<8x512xf32>
    %5 = arith.addf %2, %4 : vector<8x512xf32>
    %cst_5 = arith.constant 0.000000e+00 : f32
    %6 = vector.broadcast %cst_5 : f32 to vector<8x512xf32>
    %7 = arith.maximumf %5, %6 : vector<8x512xf32>
    %8 = arith.truncf %7 : vector<8x512xf32> to vector<8x512xbf16>
    %c0_6 = arith.constant 0 : index
    %c0_7 = arith.constant 0 : index
    %9 = vector.load %arg4[%c0_6, %c0_7] : memref<512x128xbf16, #tpu.memory_space<vmem>>, vector<512x128xbf16>
    %cst_8 = arith.constant dense<0.000000e+00> : vector<8x128xf32>
    %10 = tpu.matmul %8, %9, %cst_8 {dimension_numbers = #tpu.dot_dimension_numbers<[1], [0], [0], [1], [0, 0, 1, 1], [], []>} : vector<8x512xbf16>, vector<512x128xbf16>, vector<8x128xf32> -> vector<8x128xf32>
    %c0_9 = arith.constant 0 : index
    %c0_10 = arith.constant 0 : index
    %11 = vector.load %arg5[%c0_9, %c0_10] : memref<1x128xf32, #tpu.memory_space<vmem>>, vector<1x128xf32>
    %12 = vector.broadcast %11 : vector<1x128xf32> to vector<8x128xf32>
    %13 = arith.addf %10, %12 : vector<8x128xf32>
    %c0_11 = arith.constant 0 : index
    %c0_12 = arith.constant 0 : index
    %14 = vector.load %arg6[%c0_11, %c0_12] : memref<8x128xf32, #tpu.memory_space<vmem>>, vector<8x128xf32>
    tpu.vector_store %arg6[%c0_11, %c0_12], %13 {strides = array<i32>} : memref<8x128xf32, #tpu.memory_space<vmem>>, vector<8x128xf32>,
    return
  }
  func.func @transform_0(%arg0: i32) -> (i32, i32) {
    %c0_i32 = arith.constant 0 : i32
    %c0_i32_0 = arith.constant 0 : i32
    return %arg0, %c0_i32 : i32, i32
  }
  func.func @transform_1(%arg0: i32) -> (i32, i32) {
    %c0_i32 = arith.constant 0 : i32
    %c0_i32_0 = arith.constant 0 : i32
    %c0_i32_1 = arith.constant 0 : i32
    return %c0_i32, %c0_i32_0 : i32, i32
  }
  func.func @transform_2(%arg0: i32) -> (i32, i32) {
    %c0_i32 = arith.constant 0 : i32
    %c0_i32_0 = arith.constant 0 : i32
    %c0_i32_1 = arith.constant 0 : i32
    return %c0_i32, %c0_i32_0 : i32, i32
  }
  func.func @transform_3(%arg0: i32) -> (i32, i32) {
    %c0_i32 = arith.constant 0 : i32
    %c0_i32_0 = arith.constant 0 : i32
    %c0_i32_1 = arith.constant 0 : i32
    return %c0_i32, %c0_i32_0 : i32, i32
  }
  func.func @transform_4(%arg0: i32) -> (i32, i32) {
    %c0_i32 = arith.constant 0 : i32
    %c0_i32_0 = arith.constant 0 : i32
    %c0_i32_1 = arith.constant 0 : i32
    return %c0_i32, %c0_i32_0 : i32, i32
  }
  func.func @transform_5(%arg0: i32) -> (i32, i32) {
    %c0_i32 = arith.constant 0 : i32
    %c0_i32_0 = arith.constant 0 : i32
    return %arg0, %c0_i32 : i32, i32
  }
}

</mosaic_0001>

<llo_original>
// kernel: dcqn_forward.4
$region0: #{dcqn_forward.4}
  #allocation0 [shape = 'u32[]', space=smem, size = 0x4, offset = 0x4, fixed_abs, tag = 'smem constant byte address 0x4 - core index']
  #allocation1 [shape = 'u32[144,128]{1,0:T(1,128)}', space=vmem, size = 0x12000, scoped, tag = 'internal scratch']
  %s0 = inlined_call_operand.vmem [shape: bf16[2,21,25,64], index: 0, kind: input, shape index: {}]
  %s1 = inlined_call_operand.vmem [shape: bf16[256,32], index: 1, kind: input, shape index: {}]
  %s2 = inlined_call_operand.vmem [shape: f32[1,32], index: 2, kind: input, shape index: {}]
  %s3 = inlined_call_operand.vmem [shape: bf16[2,20,24,32], index: 3, kind: output, shape index: {}]
  %s4 = sld [smem:[#allocation0]]
  $region22: #{dcqn_forward.4} parent=0
    _
  %s6 = ssub.s32 1, %s4
  %s7 = scalar_select 0, %s6, %s4
  // Predicated region
  $region2: #{dcqn_forward.4} parent=0 // pred_check
    _
  $region3: #{dcqn_forward.4} parent=0 // pred_check_branch
    %9 = sbr.rel (0) target = $region5
  $region4: #{dcqn_forward.4} parent=0 // pred_region
    _
  $region5: #{dcqn_forward.4} parent=0 // pred_fallthru
    _
  // Predicated region
  $region6: #{dcqn_forward.4} parent=0 // pred_check
    _
  $region7: #{dcqn_forward.4} parent=0 // pred_check_branch
    %11 = sbr.rel (0) target = $region9
  $region8: #{dcqn_forward.4} parent=0 // pred_region
    _
  $region9: #{dcqn_forward.4} parent=0 // pred_fallthru
    _
  // Predicated region
  $region10: #{dcqn_forward.4} parent=0 // pred_check
    _
  $region11: #{dcqn_forward.4} parent=0 // pred_check_branch
    %13 = sbr.rel (0) target = $region13
  $region12: #{dcqn_forward.4} parent=0 // pred_region
    _
  $region13: #{dcqn_forward.4} parent=0 // pred_fallthru
    _
  %v15 = vld [vmem:[%s0] sm:$0xf]
  %v16 = vld [vmem:[%s0 + $0x4] sm:$0xf]
  %v17 = vld [vmem:[%s0 + $0x8] sm:$0xf]
  %v18 = vld [vmem:[%s0 + $0x10] sm:$0xf]
  %v19 = vld [vmem:[%s0 + $0x14] sm:$0xf]
  %v20 = vld [vmem:[%s0 + $0x18] sm:$0xf]
  %v21 = vld [vmem:[%s0 + $0x20] sm:$0xf]
  %v22 = vld [vmem:[%s0 + $0x24] sm:$0xf]
  %v23 = vld [vmem:[%s0 + $0x28] sm:$0xf]
  %v24 = vld [vmem:[%s0 + $0x30] sm:$0xf]
  %v25 = vld [vmem:[%s0 + $0x34] sm:$0xf]
  %v26 = vld [vmem:[%s0 + $0x38] sm:$0xf]
  %v27 = vld [vmem:[%s0 + $0x40] sm:$0xf]
  %v28 = vld [vmem:[%s0 + $0x44] sm:$0xf]
  %v29 = vld [vmem:[%s0 + $0x48] sm:$0xf]
  %v30 = vld [vmem:[%s0 + $0x50] sm:$0xf]
  %v31 = vld [vmem:[%s0 + $0x54] sm:$0xf]
  %v32 = vld [vmem:[%s0 + $0x58] sm:$0xf]
  %v33 = vld [vmem:[%s0 + $0x60] sm:$0xf]
  %v34 = vld [vmem:[%s0 + $0x64] sm:$0xf]
  %v35 = vld [vmem:[%s0 + $0x68] sm:$0xf]
  %v36 = vld [vmem:[%s0 + $0x70] sm:$0xf]
  %v37 = vld [vmem:[%s0 + $0x74] sm:$0xf]
  %v38 = vld [vmem:[%s0 + $0x78] sm:$0xf]
  %v39 = vld [vmem:[%s0 + $0x80] sm:$0xf]
  %v40 = vld [vmem:[%s0 + $0x84] sm:$0xf]
  %v41 = vld [vmem:[%s0 + $0x88] sm:$0xf]
  %v42 = vld [vmem:[%s0 + $0x90] sm:$0xf]
  %v43 = vld [vmem:[%s0 + $0x94] sm:$0xf]
  %v44 = vld [vmem:[%s0 + $0x98] sm:$0xf]
  %v45 = vld [vmem:[%s0 + $0xa0] sm:$0xf]
  %v46 = vld [vmem:[%s0 + $0xa4] sm:$0xf]
  %v47 = vld [vmem:[%s0 + $0xa8] sm:$0xf]
  %v48 = vld [vmem:[%s0 + $0xb0] sm:$0xf]
  %v49 = vld [vmem:[%s0 + $0xb4] sm:$0xf]
  %v50 = vld [vmem:[%s0 + $0xb8] sm:$0xf]
  %v51 = vld [vmem:[%s0 + $0xc0] sm:$0xf]
  %v52 = vld [vmem:[%s0 + $0xc4] sm:$0xf]
  %v53 = vld [vmem:[%s0 + $0xc8] sm:$0xf]
  %v54 = vld [vmem:[%s0 + $0xd0] sm:$0xf]
  %v55 = vld [vmem:[%s0 + $0xd4] sm:$0xf]
  %v56 = vld [vmem:[%s0 + $0xd8] sm:$0xf]
  %v57 = vld [vmem:[%s0 + $0xe0] sm:$0xf]
  %v58 = vld [vmem:[%s0 + $0xe4] sm:$0xf]
  %v59 = vld [vmem:[%s0 + $0xe8] sm:$0xf]
  %v60 = vld [vmem:[%s0 + $0xf0] sm:$0xf]
  %v61 = vld [vmem:[%s0 + $0xf4] sm:$0xf]
  %v62 = vld [vmem:[%s0 + $0xf8] sm:$0xf]
  %v63 = vld [vmem:[%s0 + $0x100] sm:$0xf]
  %v64 = vld [vmem:[%s0 + $0x104] sm:$0xf]
  %v65 = vld [vmem:[%s0 + $0x108] sm:$0xf]
  %v66 = vld [vmem:[%s0 + $0x110] sm:$0xf]
  %v67 = vld [vmem:[%s0 + $0x114] sm:$0xf]
  %v68 = vld [vmem:[%s0 + $0x118] sm:$0xf]
  %v69 = vld [vmem:[%s0 + $0x120] sm:$0xf]
  %v70 = vld [vmem:[%s0 + $0x124] sm:$0xf]
  %v71 = vld [vmem:[%s0 + $0x128] sm:$0xf]
  %v72 = vld [vmem:[%s0 + $0x130] sm:$0xf]
  %v73 = vld [vmem:[%s0 + $0x134] sm:$0xf]
  %v74 = vld [vmem:[%s0 + $0x138] sm:$0xf]
  %v75 = vld [vmem:[%s0 + $0x150] sm:$0xf]
  %v76 = vld [vmem:[%s0 + $0x154] sm:$0xf]
  %v77 = vld [vmem:[%s0 + $0x158] sm:$0xf]
  %v78 = vld [vmem:[%s0 + $0x160] sm:$0xf]
  %v79 = vld [vmem:[%s0 + $0x164] sm:$0xf]
  %v80 = vld [vmem:[%s0 + $0x168] sm:$0xf]
  %v81 = vld [vmem:[%s0 + $0x170] sm:$0xf]
  %v82 = vld [vmem:[%s0 + $0x174] sm:$0xf]
  %v83 = vld [vmem:[%s0 + $0x178] sm:$0xf]
  %v84 = vld [vmem:[%s0 + $0x180] sm:$0xf]
  %v85 = vld [vmem:[%s0 + $0x184] sm:$0xf]
  %v86 = vld [vmem:[%s0 + $0x188] sm:$0xf]
  %v87 = vld [vmem:[%s0 + $0x190] sm:$0xf]
  %v88 = vld [vmem:[%s0 + $0x194] sm:$0xf]
  %v89 = vld [vmem:[%s0 + $0x198] sm:$0xf]
  %v90 = vld [vmem:[%s0 + $0x1a0] sm:$0xf]
  %v91 = vld [vmem:[%s0 + $0x1a4] sm:$0xf]
  %v92 = vld [vmem:[%s0 + $0x1a8] sm:$0xf]
  %v93 = vld [vmem:[%s0 + $0x1b0] sm:$0xf]
  %v94 = vld [vmem:[%s0 + $0x1b4] sm:$0xf]
  %v95 = vld [vmem:[%s0 + $0x1b8] sm:$0xf]
  %v96 = vld [vmem:[%s0 + $0x1c0] sm:$0xf]
  %v97 = vld [vmem:[%s0 + $0x1c4] sm:$0xf]
  %v98 = vld [vmem:[%s0 + $0x1c8] sm:$0xf]
  %v99 = vld [vmem:[%s0 + $0x1d0] sm:$0xf]
  %v100 = vld [vmem:[%s0 + $0x1d4] sm:$0xf]
  %v101 = vld [vmem:[%s0 + $0x1d8] sm:$0xf]
  %v102 = vld [vmem:[%s0 + $0x1e0] sm:$0xf]
  %v103 = vld [vmem:[%s0 + $0x1e4] sm:$0xf]
  %v104 = vld [vmem:[%s0 + $0x1e8] sm:$0xf]
  %v105 = vld [vmem:[%s0 + $0x1f0] sm:$0xf]
  %v106 = vld [vmem:[%s0 + $0x1f4] sm:$0xf]
  %v107 = vld [vmem:[%s0 + $0x1f8] sm:$0xf]
  %v108 = vld [vmem:[%s0 + $0x200] sm:$0xf]
  %v109 = vld [vmem:[%s0 + $0x204] sm:$0xf]
  %v110 = vld [vmem:[%s0 + $0x208] sm:$0xf]
  %v111 = vld [vmem:[%s0 + $0x210] sm:$0xf]
  %v112 = vld [vmem:[%s0 + $0x214] sm:$0xf]
  %v113 = vld [vmem:[%s0 + $0x218] sm:$0xf]
  %v114 = vld [vmem:[%s0 + $0x220] sm:$0xf]
  %v115 = vld [vmem:[%s0 + $0x224] sm:$0xf]
  %v116 = vld [vmem:[%s0 + $0x228] sm:$0xf]
  %v117 = vld [vmem:[%s0 + $0x230] sm:$0xf]
  %v118 = vld [vmem:[%s0 + $0x234] sm:$0xf]
  %v119 = vld [vmem:[%s0 + $0x238] sm:$0xf]
  %v120 = vld [vmem:[%s0 + $0x240] sm:$0xf]
  %v121 = vld [vmem:[%s0 + $0x244] sm:$0xf]
  %v122 = vld [vmem:[%s0 + $0x248] sm:$0xf]
  %v123 = vld [vmem:[%s0 + $0x250] sm:$0xf]
  %v124 = vld [vmem:[%s0 + $0x254] sm:$0xf]
  %v125 = vld [vmem:[%s0 + $0x258] sm:$0xf]
  %v126 = vld [vmem:[%s0 + $0x260] sm:$0xf]
  %v127 = vld [vmem:[%s0 + $0x264] sm:$0xf]
  %v128 = vld [vmem:[%s0 + $0x268] sm:$0xf]
  %v129 = vld [vmem:[%s0 + $0x270] sm:$0xf]
  %v130 = vld [vmem:[%s0 + $0x274] sm:$0xf]
  %v131 = vld [vmem:[%s0 + $0x278] sm:$0xf]
  %v132 = vld [vmem:[%s0 + $0x280] sm:$0xf]
  %v133 = vld [vmem:[%s0 + $0x284] sm:$0xf]
  %v134 = vld [vmem:[%s0 + $0x288] sm:$0xf]
  %v135 = vld [vmem:[%s0 + $0xc] sm:$0x1]
  %v136 = vld [vmem:[%s0 + $0x1c] sm:$0x1]
  %v137 = vld [vmem:[%s0 + $0x2c] sm:$0x1]
  %v138 = vld [vmem:[%s0 + $0x3c] sm:$0x1]
  %v139 = vld [vmem:[%s0 + $0x4c] sm:$0x1]
  %v140 = vld [vmem:[%s0 + $0x5c] sm:$0x1]
  %v141 = vld [vmem:[%s0 + $0x6c] sm:$0x1]
  %v142 = vld [vmem:[%s0 + $0x7c] sm:$0x1]
  %v143 = vld [vmem:[%s0 + $0x8c] sm:$0x1]
  %v144 = vld [vmem:[%s0 + $0x9c] sm:$0x1]
  %v145 = vld [vmem:[%s0 + $0xac] sm:$0x1]
  %v146 = vld [vmem:[%s0 + $0xbc] sm:$0x1]
  %v147 = vld [vmem:[%s0 + $0xcc] sm:$0x1]
  %v148 = vld [vmem:[%s0 + $0xdc] sm:$0x1]
  %v149 = vld [vmem:[%s0 + $0xec] sm:$0x1]
  %v150 = vld [vmem:[%s0 + $0xfc] sm:$0x1]
  %v151 = vld [vmem:[%s0 + $0x10c] sm:$0x1]
  %v152 = vld [vmem:[%s0 + $0x11c] sm:$0x1]
  %v153 = vld [vmem:[%s0 + $0x12c] sm:$0x1]
  %v154 = vld [vmem:[%s0 + $0x13c] sm:$0x1]
  %v155 = vld [vmem:[%s0 + $0x15c] sm:$0x1]
  %v156 = vld [vmem:[%s0 + $0x16c] sm:$0x1]
  %v157 = vld [vmem:[%s0 + $0x17c] sm:$0x1]
  %v158 = vld [vmem:[%s0 + $0x18c] sm:$0x1]
  %v159 = vld [vmem:[%s0 + $0x19c] sm:$0x1]
  %v160 = vld [vmem:[%s0 + $0x1ac] sm:$0x1]
  %v161 = vld [vmem:[%s0 + $0x1bc] sm:$0x1]
  %v162 = vld [vmem:[%s0 + $0x1cc] sm:$0x1]
  %v163 = vld [vmem:[%s0 + $0x1dc] sm:$0x1]
  %v164 = vld [vmem:[%s0 + $0x1ec] sm:$0x1]
  %v165 = vld [vmem:[%s0 + $0x1fc] sm:$0x1]
  %v166 = vld [vmem:[%s0 + $0x20c] sm:$0x1]
  %v167 = vld [vmem:[%s0 + $0x21c] sm:$0x1]
  %v168 = vld [vmem:[%s0 + $0x22c] sm:$0x1]
  %v169 = vld [vmem:[%s0 + $0x23c] sm:$0x1]
  %v170 = vld [vmem:[%s0 + $0x24c] sm:$0x1]
  %v171 = vld [vmem:[%s0 + $0x25c] sm:$0x1]
  %v172 = vld [vmem:[%s0 + $0x26c] sm:$0x1]
  %v173 = vld [vmem:[%s0 + $0x27c] sm:$0x1]
  %v174 = vld [vmem:[%s0 + $0x28c] sm:$0x1]
  %s175 = scalar_lea.vmem %s0, 16
  %v176 = vld [vmem:[%s175] sm:$0xf]
  %v177 = vld [vmem:[%s175 + $0x4] sm:$0xf]
  %v178 = vld [vmem:[%s175 + $0x8] sm:$0xf]
  %v179 = vld [vmem:[%s175 + $0x10] sm:$0xf]
  %v180 = vld [vmem:[%s175 + $0x14] sm:$0xf]
  %v181 = vld [vmem:[%s175 + $0x18] sm:$0xf]
  %v182 = vld [vmem:[%s175 + $0x20] sm:$0xf]
  %v183 = vld [vmem:[%s175 + $0x24] sm:$0xf]
  %v184 = vld [vmem:[%s175 + $0x28] sm:$0xf]
  %v185 = vld [vmem:[%s175 + $0x30] sm:$0xf]
  %v186 = vld [vmem:[%s175 + $0x34] sm:$0xf]
  %v187 = vld [vmem:[%s175 + $0x38] sm:$0xf]
  %v188 = vld [vmem:[%s175 + $0x40] sm:$0xf]
  %v189 = vld [vmem:[%s175 + $0x44] sm:$0xf]
  %v190 = vld [vmem:[%s175 + $0x48] sm:$0xf]
  %v191 = vld [vmem:[%s175 + $0x50] sm:$0xf]
  %v192 = vld [vmem:[%s175 + $0x54] sm:$0xf]
  %v193 = vld [vmem:[%s175 + $0x58] sm:$0xf]
  %v194 = vld [vmem:[%s175 + $0x60] sm:$0xf]
  %v195 = vld [vmem:[%s175 + $0x64] sm:$0xf]
  %v196 = vld [vmem:[%s175 + $0x68] sm:$0xf]
  %v197 = vld [vmem:[%s175 + $0x70] sm:$0xf]
  %v198 = vld [vmem:[%s175 + $0x74] sm:$0xf]
  %v199 = vld [vmem:[%s175 + $0x78] sm:$0xf]
  %v200 = vld [vmem:[%s175 + $0x80] sm:$0xf]
  %v201 = vld [vmem:[%s175 + $0x84] sm:$0xf]
  %v202 = vld [vmem:[%s175 + $0x88] sm:$0xf]
  %v203 = vld [vmem:[%s175 + $0x90] sm:$0xf]
  %v204 = vld [vmem:[%s175 + $0x94] sm:$0xf]
  %v205 = vld [vmem:[%s175 + $0x98] sm:$0xf]
  %v206 = vld [vmem:[%s175 + $0xa0] sm:$0xf]
  %v207 = vld [vmem:[%s175 + $0xa4] sm:$0xf]
  %v208 = vld [vmem:[%s175 + $0xa8] sm:$0xf]
  %v209 = vld [vmem:[%s175 + $0xb0] sm:$0xf]
  %v210 = vld [vmem:[%s175 + $0xb4] sm:$0xf]
  %v211 = vld [vmem:[%s175 + $0xb8] sm:$0xf]
  %v212 = vld [vmem:[%s175 + $0xc0] sm:$0xf]
  %v213 = vld [vmem:[%s175 + $0xc4] sm:$0xf]
  %v214 = vld [vmem:[%s175 + $0xc8] sm:$0xf]
  %v215 = vld [vmem:[%s175 + $0xd0] sm:$0xf]
  %v216 = vld [vmem:[%s175 + $0xd4] sm:$0xf]
  %v217 = vld [vmem:[%s175 + $0xd8] sm:$0xf]
  %v218 = vld [vmem:[%s175 + $0xe0] sm:$0xf]
  %v219 = vld [vmem:[%s175 + $0xe4] sm:$0xf]
  %v220 = vld [vmem:[%s175 + $0xe8] sm:$0xf]
  %v221 = vld [vmem:[%s175 + $0xf0] sm:$0xf]
  %v222 = vld [vmem:[%s175 + $0xf4] sm:$0xf]
  %v223 = vld [vmem:[%s175 + $0xf8] sm:$0xf]
  %v224 = vld [vmem:[%s175 + $0x100] sm:$0xf]
  %v225 = vld [vmem:[%s175 + $0x104] sm:$0xf]
  %v226 = vld [vmem:[%s175 + $0x108] sm:$0xf]
  %v227 = vld [vmem:[%s175 + $0x110] sm:$0xf]
  %v228 = vld [vmem:[%s175 + $0x114] sm:$0xf]
  %v229 = vld [vmem:[%s175 + $0x118] sm:$0xf]
  %v230 = vld [vmem:[%s175 + $0x120] sm:$0xf]
  %v231 = vld [vmem:[%s175 + $0x124] sm:$0xf]
  %v232 = vld [vmem:[%s175 + $0x128] sm:$0xf]
  %v233 = vld [vmem:[%s175 + $0x130] sm:$0xf]
  %v234 = vld [vmem:[%s175 + $0x134] sm:$0xf]
  %v235 = vld [vmem:[%s175 + $0x138] sm:$0xf]
  %v236 = vld [vmem:[%s175 + $0x150] sm:$0xf]
  %v237 = vld [vmem:[%s175 + $0x154] sm:$0xf]
  %v238 = vld [vmem:[%s175 + $0x158] sm:$0xf]
  %v239 = vld [vmem:[%s175 + $0x160] sm:$0xf]
  %v240 = vld [vmem:[%s175 + $0x164] sm:$0xf]
  %v241 = vld [vmem:[%s175 + $0x168] sm:$0xf]
  %v242 = vld [vmem:[%s175 + $0x170] sm:$0xf]
  %v243 = vld [vmem:[%s175 + $0x174] sm:$0xf]
  %v244 = vld [vmem:[%s175 + $0x178] sm:$0xf]
  %v245 = vld [vmem:[%s175 + $0x180] sm:$0xf]
  %v246 = vld [vmem:[%s175 + $0x184] sm:$0xf]
  %v247 = vld [vmem:[%s175 + $0x188] sm:$0xf]
  %v248 = vld [vmem:[%s175 + $0x190] sm:$0xf]
  %v249 = vld [vmem:[%s175 + $0x194] sm:$0xf]
  %v250 = vld [vmem:[%s175 + $0x198] sm:$0xf]
  %v251 = vld [vmem:[%s175 + $0x1a0] sm:$0xf]
  %v252 = vld [vmem:[%s175 + $0x1a4] sm:$0xf]
  %v253 = vld [vmem:[%s175 + $0x1a8] sm:$0xf]
  %v254 = vld [vmem:[%s175 + $0x1b0] sm:$0xf]
  %v255 = vld [vmem:[%s175 + $0x1b4] sm:$0xf]
  %v256 = vld [vmem:[%s175 + $0x1b8] sm:$0xf]
  %v257 = vld [vmem:[%s175 + $0x1c0] sm:$0xf]
  %v258 = vld [vmem:[%s175 + $0x1c4] sm:$0xf]
  %v259 = vld [vmem:[%s175 + $0x1c8] sm:$0xf]
  %v260 = vld [vmem:[%s175 + $0x1d0] sm:$0xf]
  %v261 = vld [vmem:[%s175 + $0x1d4] sm:$0xf]
  %v262 = vld [vmem:[%s175 + $0x1d8] sm:$0xf]
  %v263 = vld [vmem:[%s175 + $0x1e0] sm:$0xf]
  %v264 = vld [vmem:[%s175 + $0x1e4] sm:$0xf]
  %v265 = vld [vmem:[%s175 + $0x1e8] sm:$0xf]
  %v266 = vld [vmem:[%s175 + $0x1f0] sm:$0xf]
  %v267 = vld [vmem:[%s175 + $0x1f4] sm:$0xf]
  %v268 = vld [vmem:[%s175 + $0x1f8] sm:$0xf]
  %v269 = vld [vmem:[%s175 + $0x200] sm:$0xf]
  %v270 = vld [vmem:[%s175 + $0x204] sm:$0xf]
  %v271 = vld [vmem:[%s175 + $0x208] sm:$0xf]
  %v272 = vld [vmem:[%s175 + $0x210] sm:$0xf]
  %v273 = vld [vmem:[%s175 + $0x214] sm:$0xf]
  %v274 = vld [vmem:[%s175 + $0x218] sm:$0xf]
  %v275 = vld [vmem:[%s175 + $0x220] sm:$0xf]
  %v276 = vld [vmem:[%s175 + $0x224] sm:$0xf]
  %v277 = vld [vmem:[%s175 + $0x228] sm:$0xf]
  %v278 = vld [vmem:[%s175 + $0x230] sm:$0xf]
  %v279 = vld [vmem:[%s175 + $0x234] sm:$0xf]
  %v280 = vld [vmem:[%s175 + $0x238] sm:$0xf]
  %v281 = vld [vmem:[%s175 + $0x240] sm:$0xf]
  %v282 = vld [vmem:[%s175 + $0x244] sm:$0xf]
  %v283 = vld [vmem:[%s175 + $0x248] sm:$0xf]
  %v284 = vld [vmem:[%s175 + $0x250] sm:$0xf]
  %v285 = vld [vmem:[%s175 + $0x254] sm:$0xf]
  %v286 = vld [vmem:[%s175 + $0x258] sm:$0xf]
  %v287 = vld [vmem:[%s175 + $0x260] sm:$0xf]
  %v288 = vld [vmem:[%s175 + $0x264] sm:$0xf]
  %v289 = vld [vmem:[%s175 + $0x268] sm:$0xf]
  %v290 = vld [vmem:[%s175 + $0x270] sm:$0xf]
  %v291 = vld [vmem:[%s175 + $0x274] sm:$0xf]
  %v292 = vld [vmem:[%s175 + $0x278] sm:$0xf]
  %v293 = vld [vmem:[%s175 + $0x280] sm:$0xf]
  %v294 = vld [vmem:[%s175 + $0x284] sm:$0xf]
  %v295 = vld [vmem:[%s175 + $0x288] sm:$0xf]
  %v296 = vld [vmem:[%s175 + $0xc] sm:$0x1]
  %v297 = vld [vmem:[%s175 + $0x1c] sm:$0x1]
  %v298 = vld [vmem:[%s175 + $0x2c] sm:$0x1]
  %v299 = vld [vmem:[%s175 + $0x3c] sm:$0x1]
  %v300 = vld [vmem:[%s175 + $0x4c] sm:$0x1]
  %v301 = vld [vmem:[%s175 + $0x5c] sm:$0x1]
  %v302 = vld [vmem:[%s175 + $0x6c] sm:$0x1]
  %v303 = vld [vmem:[%s175 + $0x7c] sm:$0x1]
  %v304 = vld [vmem:[%s175 + $0x8c] sm:$0x1]
  %v305 = vld [vmem:[%s175 + $0x9c] sm:$0x1]
  %v306 = vld [vmem:[%s175 + $0xac] sm:$0x1]
  %v307 = vld [vmem:[%s175 + $0xbc] sm:$0x1]
  %v308 = vld [vmem:[%s175 + $0xcc] sm:$0x1]
  %v309 = vld [vmem:[%s175 + $0xdc] sm:$0x1]
  %v310 = vld [vmem:[%s175 + $0xec] sm:$0x1]
  %v311 = vld [vmem:[%s175 + $0xfc] sm:$0x1]
  %v312 = vld [vmem:[%s175 + $0x10c] sm:$0x1]
  %v313 = vld [vmem:[%s175 + $0x11c] sm:$0x1]
  %v314 = vld [vmem:[%s175 + $0x12c] sm:$0x1]
  %v315 = vld [vmem:[%s175 + $0x13c] sm:$0x1]
  %v316 = vld [vmem:[%s175 + $0x15c] sm:$0x1]
  %v317 = vld [vmem:[%s175 + $0x16c] sm:$0x1]
  %v318 = vld [vmem:[%s175 + $0x17c] sm:$0x1]
  %v319 = vld [vmem:[%s175 + $0x18c] sm:$0x1]
  %v320 = vld [vmem:[%s175 + $0x19c] sm:$0x1]
  %v321 = vld [vmem:[%s175 + $0x1ac] sm:$0x1]
  %v322 = vld [vmem:[%s175 + $0x1bc] sm:$0x1]
  %v323 = vld [vmem:[%s175 + $0x1cc] sm:$0x1]
  %v324 = vld [vmem:[%s175 + $0x1dc] sm:$0x1]
  %v325 = vld [vmem:[%s175 + $0x1ec] sm:$0x1]
  %v326 = vld [vmem:[%s175 + $0x1fc] sm:$0x1]
  %v327 = vld [vmem:[%s175 + $0x20c] sm:$0x1]
  %v328 = vld [vmem:[%s175 + $0x21c] sm:$0x1]
  %v329 = vld [vmem:[%s175 + $0x22c] sm:$0x1]
  %v330 = vld [vmem:[%s175 + $0x23c] sm:$0x1]
  %v331 = vld [vmem:[%s175 + $0x24c] sm:$0x1]
  %v332 = vld [vmem:[%s175 + $0x25c] sm:$0x1]
  %v333 = vld [vmem:[%s175 + $0x26c] sm:$0x1]
  %v334 = vld [vmem:[%s175 + $0x27c] sm:$0x1]
  %v335 = vld [vmem:[%s175 + $0x28c] sm:$0x1]
  %v456 = vunpack.c.l.b16 %v15
  %v457 = vunpack.c.l.b16 %v16
  %v458 = vunpack.c.l.b16 %v17
  %v459 = vunpack.c.l.b16 %v18
  %v460 = vunpack.c.l.b16 %v19
  %v461 = vunpack.c.l.b16 %v20
  %v462 = vunpack.c.l.b16 %v21
  %v463 = vunpack.c.l.b16 %v22
  %v464 = vunpack.c.l.b16 %v23
  %v465 = vunpack.c.l.b16 %v24
  %v466 = vunpack.c.l.b16 %v25
  %v467 = vunpack.c.l.b16 %v26
  %v468 = vunpack.c.l.b16 %v27
  %v469 = vunpack.c.l.b16 %v28
  %v470 = vunpack.c.l.b16 %v29
  %v471 = vunpack.c.l.b16 %v30
  %v472 = vunpack.c.l.b16 %v31
  %v473 = vunpack.c.l.b16 %v32
  %v474 = vunpack.c.l.b16 %v33
  %v475 = vunpack.c.l.b16 %v34
  %v476 = vunpack.c.l.b16 %v35
  %v477 = vunpack.c.l.b16 %v36
  %v478 = vunpack.c.l.b16 %v37
  %v479 = vunpack.c.l.b16 %v38
  %v480 = vunpack.c.l.b16 %v39
  %v481 = vunpack.c.l.b16 %v40
  %v482 = vunpack.c.l.b16 %v41
  %v483 = vunpack.c.l.b16 %v42
  %v484 = vunpack.c.l.b16 %v43
  %v485 = vunpack.c.l.b16 %v44
  %v486 = vunpack.c.l.b16 %v45
  %v487 = vunpack.c.l.b16 %v46
  %v488 = vunpack.c.l.b16 %v47
  %v489 = vunpack.c.l.b16 %v48
  %v490 = vunpack.c.l.b16 %v49
  %v491 = vunpack.c.l.b16 %v50
  %v492 = vunpack.c.l.b16 %v51
  %v493 = vunpack.c.l.b16 %v52
  %v494 = vunpack.c.l.b16 %v53
  %v495 = vunpack.c.l.b16 %v54
  %v496 = vunpack.c.l.b16 %v55
  %v497 = vunpack.c.l.b16 %v56
  %v498 = vunpack.c.l.b16 %v57
  %v499 = vunpack.c.l.b16 %v58
  %v500 = vunpack.c.l.b16 %v59
  %v501 = vunpack.c.l.b16 %v60
  %v502 = vunpack.c.l.b16 %v61
  %v503 = vunpack.c.l.b16 %v62
  %v504 = vunpack.c.l.b16 %v63
  %v505 = vunpack.c.l.b16 %v64
  %v506 = vunpack.c.l.b16 %v65
  %v507 = vunpack.c.l.b16 %v66
  %v508 = vunpack.c.l.b16 %v67
  %v509 = vunpack.c.l.b16 %v68
  %v510 = vunpack.c.l.b16 %v69
  %v511 = vunpack.c.l.b16 %v70
  %v512 = vunpack.c.l.b16 %v71
  %v513 = vunpack.c.l.b16 %v72
  %v514 = vunpack.c.l.b16 %v73
  %v515 = vunpack.c.l.b16 %v74
  %v516 = vunpack.c.l.b16 %v75
  %v517 = vunpack.c.l.b16 %v76
  %v518 = vunpack.c.l.b16 %v77
  %v519 = vunpack.c.l.b16 %v78
  %v520 = vunpack.c.l.b16 %v79
  %v521 = vunpack.c.l.b16 %v80
  %v522 = vunpack.c.l.b16 %v81
  %v523 = vunpack.c.l.b16 %v82
  %v524 = vunpack.c.l.b16 %v83
  %v525 = vunpack.c.l.b16 %v84
  %v526 = vunpack.c.l.b16 %v85
  %v527 = vunpack.c.l.b16 %v86
  %v528 = vunpack.c.l.b16 %v87
  %v529 = vunpack.c.l.b16 %v88
  %v530 = vunpack.c.l.b16 %v89
  %v531 = vunpack.c.l.b16 %v90
  %v532 = vunpack.c.l.b16 %v91
  %v533 = vunpack.c.l.b16 %v92
  %v534 = vunpack.c.l.b16 %v93
  %v535 = vunpack.c.l.b16 %v94
  %v536 = vunpack.c.l.b16 %v95
  %v537 = vunpack.c.l.b16 %v96
  %v538 = vunpack.c.l.b16 %v97
  %v539 = vunpack.c.l.b16 %v98
  %v540 = vunpack.c.l.b16 %v99
  %v541 = vunpack.c.l.b16 %v100
  %v542 = vunpack.c.l.b16 %v101
  %v543 = vunpack.c.l.b16 %v102
  %v544 = vunpack.c.l.b16 %v103
  %v545 = vunpack.c.l.b16 %v104
  %v546 = vunpack.c.l.b16 %v105
  %v547 = vunpack.c.l.b16 %v106
  %v548 = vunpack.c.l.b16 %v107
  %v549 = vunpack.c.l.b16 %v108
  %v550 = vunpack.c.l.b16 %v109
  %v551 = vunpack.c.l.b16 %v110
  %v552 = vunpack.c.l.b16 %v111
  %v553 = vunpack.c.l.b16 %v112
  %v554 = vunpack.c.l.b16 %v113
  %v555 = vunpack.c.l.b16 %v114
  %v556 = vunpack.c.l.b16 %v115
  %v557 = vunpack.c.l.b16 %v116
  %v558 = vunpack.c.l.b16 %v117
  %v559 = vunpack.c.l.b16 %v118
  %v560 = vunpack.c.l.b16 %v119
  %v561 = vunpack.c.l.b16 %v120
  %v562 = vunpack.c.l.b16 %v121
  %v563 = vunpack.c.l.b16 %v122
  %v564 = vunpack.c.l.b16 %v123
  %v565 = vunpack.c.l.b16 %v124
  %v566 = vunpack.c.l.b16 %v125
  %v567 = vunpack.c.l.b16 %v126
  %v568 = vunpack.c.l.b16 %v127
  %v569 = vunpack.c.l.b16 %v128
  %v570 = vunpack.c.l.b16 %v129
  %v571 = vunpack.c.l.b16 %v130
  %v572 = vunpack.c.l.b16 %v131
  %v573 = vunpack.c.l.b16 %v132
  %v574 = vunpack.c.l.b16 %v133
  %v575 = vunpack.c.l.b16 %v134
  %v576 = vpack.c.b16 %v457, %v456
  %v577 = vpack.c.b16 %v458, %v458
  %v578 = vpack.c.b16 %v460, %v459
  %v579 = vpack.c.b16 %v461, %v461
  %v580 = vpack.c.b16 %v463, %v462
  %v581 = vpack.c.b16 %v464, %v464
  %v582 = vpack.c.b16 %v466, %v465
  %v583 = vpack.c.b16 %v467, %v467
  %v584 = vpack.c.b16 %v469, %v468
  %v585 = vpack.c.b16 %v470, %v470
  %v586 = vpack.c.b16 %v472, %v471
  %v587 = vpack.c.b16 %v473, %v473
  %v588 = vpack.c.b16 %v475, %v474
  %v589 = vpack.c.b16 %v476, %v476
  %v590 = vpack.c.b16 %v478, %v477
  %v591 = vpack.c.b16 %v479, %v479
  %v592 = vpack.c.b16 %v481, %v480
  %v593 = vpack.c.b16 %v482, %v482
  %v594 = vpack.c.b16 %v484, %v483
  %v595 = vpack.c.b16 %v485, %v485
  %v596 = vpack.c.b16 %v487, %v486
  %v597 = vpack.c.b16 %v488, %v488
  %v598 = vpack.c.b16 %v490, %v489
  %v599 = vpack.c.b16 %v491, %v491
  %v600 = vpack.c.b16 %v493, %v492
  %v601 = vpack.c.b16 %v494, %v494
  %v602 = vpack.c.b16 %v496, %v495
  %v603 = vpack.c.b16 %v497, %v497
  %v604 = vpack.c.b16 %v499, %v498
  %v605 = vpack.c.b16 %v500, %v500
  %v606 = vpack.c.b16 %v502, %v501
  %v607 = vpack.c.b16 %v503, %v503
  %v608 = vpack.c.b16 %v505, %v504
  %v609 = vpack.c.b16 %v506, %v506
  %v610 = vpack.c.b16 %v508, %v507
  %v611 = vpack.c.b16 %v509, %v509
  %v612 = vpack.c.b16 %v511, %v510
  %v613 = vpack.c.b16 %v512, %v512
  %v614 = vpack.c.b16 %v514, %v513
  %v615 = vpack.c.b16 %v515, %v515
  %v616 = vpack.c.b16 %v517, %v516
  %v617 = vpack.c.b16 %v518, %v518
  %v618 = vpack.c.b16 %v520, %v519
  %v619 = vpack.c.b16 %v521, %v521
  %v620 = vpack.c.b16 %v523, %v522
  %v621 = vpack.c.b16 %v524, %v524
  %v622 = vpack.c.b16 %v526, %v525
  %v623 = vpack.c.b16 %v527, %v527
  %v624 = vpack.c.b16 %v529, %v528
  %v625 = vpack.c.b16 %v530, %v530
  %v626 = vpack.c.b16 %v532, %v531
  %v627 = vpack.c.b16 %v533, %v533
  %v628 = vpack.c.b16 %v535, %v534
  %v629 = vpack.c.b16 %v536, %v536
  %v630 = vpack.c.b16 %v538, %v537
  %v631 = vpack.c.b16 %v539, %v539
  %v632 = vpack.c.b16 %v541, %v540
  %v633 = vpack.c.b16 %v542, %v542
  %v634 = vpack.c.b16 %v544, %v543
  %v635 = vpack.c.b16 %v545, %v545
  %v636 = vpack.c.b16 %v547, %v546
  %v637 = vpack.c.b16 %v548, %v548
  %v638 = vpack.c.b16 %v550, %v549
  %v639 = vpack.c.b16 %v551, %v551
  %v640 = vpack.c.b16 %v553, %v552
  %v641 = vpack.c.b16 %v554, %v554
  %v642 = vpack.c.b16 %v556, %v555
  %v643 = vpack.c.b16 %v557, %v557
  %v644 = vpack.c.b16 %v559, %v558
  %v645 = vpack.c.b16 %v560, %v560
  %v646 = vpack.c.b16 %v562, %v561
  %v647 = vpack.c.b16 %v563, %v563
  %v648 = vpack.c.b16 %v565, %v564
  %v649 = vpack.c.b16 %v566, %v566
  %v650 = vpack.c.b16 %v568, %v567
  %v651 = vpack.c.b16 %v569, %v569
  %v652 = vpack.c.b16 %v571, %v570
  %v653 = vpack.c.b16 %v572, %v572
  %v654 = vpack.c.b16 %v574, %v573
  %v655 = vpack.c.b16 %v575, %v575
  %v696 = vunpack.c.l.b16 %v135
  %v697 = vunpack.c.l.b16 %v136
  %v698 = vunpack.c.l.b16 %v137
  %v699 = vunpack.c.l.b16 %v138
  %v700 = vunpack.c.l.b16 %v139
  %v701 = vunpack.c.l.b16 %v140
  %v702 = vunpack.c.l.b16 %v141
  %v703 = vunpack.c.l.b16 %v142
  %v704 = vunpack.c.l.b16 %v143
  %v705 = vunpack.c.l.b16 %v144
  %v706 = vunpack.c.l.b16 %v145
  %v707 = vunpack.c.l.b16 %v146
  %v708 = vunpack.c.l.b16 %v147
  %v709 = vunpack.c.l.b16 %v148
  %v710 = vunpack.c.l.b16 %v149
  %v711 = vunpack.c.l.b16 %v150
  %v712 = vunpack.c.l.b16 %v151
  %v713 = vunpack.c.l.b16 %v152
  %v714 = vunpack.c.l.b16 %v153
  %v715 = vunpack.c.l.b16 %v154
  %v716 = vunpack.c.l.b16 %v155
  %v717 = vunpack.c.l.b16 %v156
  %v718 = vunpack.c.l.b16 %v157
  %v719 = vunpack.c.l.b16 %v158
  %v720 = vunpack.c.l.b16 %v159
  %v721 = vunpack.c.l.b16 %v160
  %v722 = vunpack.c.l.b16 %v161
  %v723 = vunpack.c.l.b16 %v162
  %v724 = vunpack.c.l.b16 %v163
  %v725 = vunpack.c.l.b16 %v164
  %v726 = vunpack.c.l.b16 %v165
  %v727 = vunpack.c.l.b16 %v166
  %v728 = vunpack.c.l.b16 %v167
  %v729 = vunpack.c.l.b16 %v168
  %v730 = vunpack.c.l.b16 %v169
  %v731 = vunpack.c.l.b16 %v170
  %v732 = vunpack.c.l.b16 %v171
  %v733 = vunpack.c.l.b16 %v172
  %v734 = vunpack.c.l.b16 %v173
  %v735 = vunpack.c.l.b16 %v174
  %v736 = vpack.c.b16 %v696, %v458
  %v737 = vpack.c.b16 %v697, %v461
  %v738 = vpack.c.b16 %v698, %v464
  %v739 = vpack.c.b16 %v699, %v467
  %v740 = vpack.c.b16 %v700, %v470
  %v741 = vpack.c.b16 %v701, %v473
  %v742 = vpack.c.b16 %v702, %v476
  %v743 = vpack.c.b16 %v703, %v479
  %v744 = vpack.c.b16 %v704, %v482
  %v745 = vpack.c.b16 %v705, %v485
  %v746 = vpack.c.b16 %v706, %v488
  %v747 = vpack.c.b16 %v707, %v491
  %v748 = vpack.c.b16 %v708, %v494
  %v749 = vpack.c.b16 %v709, %v497
  %v750 = vpack.c.b16 %v710, %v500
  %v751 = vpack.c.b16 %v711, %v503
  %v752 = vpack.c.b16 %v712, %v506
  %v753 = vpack.c.b16 %v713, %v509
  %v754 = vpack.c.b16 %v714, %v512
  %v755 = vpack.c.b16 %v715, %v515
  %v756 = vpack.c.b16 %v716, %v518
  %v757 = vpack.c.b16 %v717, %v521
  %v758 = vpack.c.b16 %v718, %v524
  %v759 = vpack.c.b16 %v719, %v527
  %v760 = vpack.c.b16 %v720, %v530
  %v761 = vpack.c.b16 %v721, %v533
  %v762 = vpack.c.b16 %v722, %v536
  %v763 = vpack.c.b16 %v723, %v539
  %v764 = vpack.c.b16 %v724, %v542
  %v765 = vpack.c.b16 %v725, %v545
  %v766 = vpack.c.b16 %v726, %v548
  %v767 = vpack.c.b16 %v727, %v551
  %v768 = vpack.c.b16 %v728, %v554
  %v769 = vpack.c.b16 %v729, %v557
  %v770 = vpack.c.b16 %v730, %v560
  %v771 = vpack.c.b16 %v731, %v563
  %v772 = vpack.c.b16 %v732, %v566
  %v773 = vpack.c.b16 %v733, %v569
  %v774 = vpack.c.b16 %v734, %v572
  %v775 = vpack.c.b16 %v735, %v575
  %vm776 = vsmask.f32 7424
  %v778 = vshrl.u32 %v576, 16
  %v780 = vshll.u32 %v576, 16
  %v782 = vrot.slane %v780, 1
  %v783 = vor.u32 %v778, %v782
  %v785 = vshll.u32 %v736, 16
  %v787 = vrot.slane %v785, 1
  %v788 = vsel %vm776, %v783, %v787
  %v789 = vshrl.u32 %v736, 16
  %v791 = vor.u32 %v789, %v787
  %v793 = vshrl.u32 %v578, 16
  %v795 = vshll.u32 %v578, 16
  %v797 = vrot.slane %v795, 1
  %v798 = vor.u32 %v793, %v797
  %v800 = vshll.u32 %v737, 16
  %v802 = vrot.slane %v800, 1
  %v803 = vsel %vm776, %v798, %v802
  %v804 = vshrl.u32 %v737, 16
  %v806 = vor.u32 %v804, %v802
  %v808 = vshrl.u32 %v580, 16
  %v810 = vshll.u32 %v580, 16
  %v812 = vrot.slane %v810, 1
  %v813 = vor.u32 %v808, %v812
  %v815 = vshll.u32 %v738, 16
  %v817 = vrot.slane %v815, 1
  %v818 = vsel %vm776, %v813, %v817
  %v819 = vshrl.u32 %v738, 16
  %v821 = vor.u32 %v819, %v817
  %v823 = vshrl.u32 %v582, 16
  %v825 = vshll.u32 %v582, 16
  %v827 = vrot.slane %v825, 1
  %v828 = vor.u32 %v823, %v827
  %v830 = vshll.u32 %v739, 16
  %v832 = vrot.slane %v830, 1
  %v833 = vsel %vm776, %v828, %v832
  %v834 = vshrl.u32 %v739, 16
  %v836 = vor.u32 %v834, %v832
  %v838 = vshrl.u32 %v584, 16
  %v840 = vshll.u32 %v584, 16
  %v842 = vrot.slane %v840, 1
  %v843 = vor.u32 %v838, %v842
  %v845 = vshll.u32 %v740, 16
  %v847 = vrot.slane %v845, 1
  %v848 = vsel %vm776, %v843, %v847
  %v849 = vshrl.u32 %v740, 16
  %v851 = vor.u32 %v849, %v847
  %v853 = vshrl.u32 %v586, 16
  %v855 = vshll.u32 %v586, 16
  %v857 = vrot.slane %v855, 1
  %v858 = vor.u32 %v853, %v857
  %v860 = vshll.u32 %v741, 16
  %v862 = vrot.slane %v860, 1
  %v863 = vsel %vm776, %v858, %v862
  %v864 = vshrl.u32 %v741, 16
  %v866 = vor.u32 %v864, %v862
  %v868 = vshrl.u32 %v588, 16
  %v870 = vshll.u32 %v588, 16
  %v872 = vrot.slane %v870, 1
  %v873 = vor.u32 %v868, %v872
  %v875 = vshll.u32 %v742, 16
  %v877 = vrot.slane %v875, 1
  %v878 = vsel %vm776, %v873, %v877
  %v879 = vshrl.u32 %v742, 16
  %v881 = vor.u32 %v879, %v877
  %v883 = vshrl.u32 %v590, 16
  %v885 = vshll.u32 %v590, 16
  %v887 = vrot.slane %v885, 1
  %v888 = vor.u32 %v883, %v887
  %v890 = vshll.u32 %v743, 16
  %v892 = vrot.slane %v890, 1
  %v893 = vsel %vm776, %v888, %v892
  %v894 = vshrl.u32 %v743, 16
  %v896 = vor.u32 %v894, %v892
  %v898 = vshrl.u32 %v592, 16
  %v900 = vshll.u32 %v592, 16
  %v902 = vrot.slane %v900, 1
  %v903 = vor.u32 %v898, %v902
  %v905 = vshll.u32 %v744, 16
  %v907 = vrot.slane %v905, 1
  %v908 = vsel %vm776, %v903, %v907
  %v909 = vshrl.u32 %v744, 16
  %v911 = vor.u32 %v909, %v907
  %v913 = vshrl.u32 %v594, 16
  %v915 = vshll.u32 %v594, 16
  %v917 = vrot.slane %v915, 1
  %v918 = vor.u32 %v913, %v917
  %v920 = vshll.u32 %v745, 16
  %v922 = vrot.slane %v920, 1
  %v923 = vsel %vm776, %v918, %v922
  %v924 = vshrl.u32 %v745, 16
  %v926 = vor.u32 %v924, %v922
  %v928 = vshrl.u32 %v596, 16
  %v930 = vshll.u32 %v596, 16
  %v932 = vrot.slane %v930, 1
  %v933 = vor.u32 %v928, %v932
  %v935 = vshll.u32 %v746, 16
  %v937 = vrot.slane %v935, 1
  %v938 = vsel %vm776, %v933, %v937
  %v939 = vshrl.u32 %v746, 16
  %v941 = vor.u32 %v939, %v937
  %v943 = vshrl.u32 %v598, 16
  %v945 = vshll.u32 %v598, 16
  %v947 = vrot.slane %v945, 1
  %v948 = vor.u32 %v943, %v947
  %v950 = vshll.u32 %v747, 16
  %v952 = vrot.slane %v950, 1
  %v953 = vsel %vm776, %v948, %v952
  %v954 = vshrl.u32 %v747, 16
  %v956 = vor.u32 %v954, %v952
  %v958 = vshrl.u32 %v600, 16
  %v960 = vshll.u32 %v600, 16
  %v962 = vrot.slane %v960, 1
  %v963 = vor.u32 %v958, %v962
  %v965 = vshll.u32 %v748, 16
  %v967 = vrot.slane %v965, 1
  %v968 = vsel %vm776, %v963, %v967
  %v969 = vshrl.u32 %v748, 16
  %v971 = vor.u32 %v969, %v967
  %v973 = vshrl.u32 %v602, 16
  %v975 = vshll.u32 %v602, 16
  %v977 = vrot.slane %v975, 1
  %v978 = vor.u32 %v973, %v977
  %v980 = vshll.u32 %v749, 16
  %v982 = vrot.slane %v980, 1
  %v983 = vsel %vm776, %v978, %v982
  %v984 = vshrl.u32 %v749, 16
  %v986 = vor.u32 %v984, %v982
  %v988 = vshrl.u32 %v604, 16
  %v990 = vshll.u32 %v604, 16
  %v992 = vrot.slane %v990, 1
  %v993 = vor.u32 %v988, %v992
  %v995 = vshll.u32 %v750, 16
  %v997 = vrot.slane %v995, 1
  %v998 = vsel %vm776, %v993, %v997
  %v999 = vshrl.u32 %v750, 16
  %v1001 = vor.u32 %v999, %v997
  %v1003 = vshrl.u32 %v606, 16
  %v1005 = vshll.u32 %v606, 16
  %v1007 = vrot.slane %v1005, 1
  %v1008 = vor.u32 %v1003, %v1007
  %v1010 = vshll.u32 %v751, 16
  %v1012 = vrot.slane %v1010, 1
  %v1013 = vsel %vm776, %v1008, %v1012
  %v1014 = vshrl.u32 %v751, 16
  %v1016 = vor.u32 %v1014, %v1012
  %v1018 = vshrl.u32 %v608, 16
  %v1020 = vshll.u32 %v608, 16
  %v1022 = vrot.slane %v1020, 1
  %v1023 = vor.u32 %v1018, %v1022
  %v1025 = vshll.u32 %v752, 16
  %v1027 = vrot.slane %v1025, 1
  %v1028 = vsel %vm776, %v1023, %v1027
  %v1029 = vshrl.u32 %v752, 16
  %v1031 = vor.u32 %v1029, %v1027
  %v1033 = vshrl.u32 %v610, 16
  %v1035 = vshll.u32 %v610, 16
  %v1037 = vrot.slane %v1035, 1
  %v1038 = vor.u32 %v1033, %v1037
  %v1040 = vshll.u32 %v753, 16
  %v1042 = vrot.slane %v1040, 1
  %v1043 = vsel %vm776, %v1038, %v1042
  %v1044 = vshrl.u32 %v753, 16
  %v1046 = vor.u32 %v1044, %v1042
  %v1048 = vshrl.u32 %v612, 16
  %v1050 = vshll.u32 %v612, 16
  %v1052 = vrot.slane %v1050, 1
  %v1053 = vor.u32 %v1048, %v1052
  %v1055 = vshll.u32 %v754, 16
  %v1057 = vrot.slane %v1055, 1
  %v1058 = vsel %vm776, %v1053, %v1057
  %v1059 = vshrl.u32 %v754, 16
  %v1061 = vor.u32 %v1059, %v1057
  %v1063 = vshrl.u32 %v614, 16
  %v1065 = vshll.u32 %v614, 16
  %v1067 = vrot.slane %v1065, 1
  %v1068 = vor.u32 %v1063, %v1067
  %v1070 = vshll.u32 %v755, 16
  %v1072 = vrot.slane %v1070, 1
  %v1073 = vsel %vm776, %v1068, %v1072
  %v1074 = vshrl.u32 %v755, 16
  %v1076 = vor.u32 %v1074, %v1072
  %v1078 = vshrl.u32 %v616, 16
  %v1080 = vshll.u32 %v616, 16
  %v1082 = vrot.slane %v1080, 1
  %v1083 = vor.u32 %v1078, %v1082
  %v1085 = vshll.u32 %v756, 16
  %v1087 = vrot.slane %v1085, 1
  %v1088 = vsel %vm776, %v1083, %v1087
  %v1089 = vshrl.u32 %v756, 16
  %v1091 = vor.u32 %v1089, %v1087
  %v1093 = vshrl.u32 %v618, 16
  %v1095 = vshll.u32 %v618, 16
  %v1097 = vrot.slane %v1095, 1
  %v1098 = vor.u32 %v1093, %v1097
  %v1100 = vshll.u32 %v757, 16
  %v1102 = vrot.slane %v1100, 1
  %v1103 = vsel %vm776, %v1098, %v1102
  %v1104 = vshrl.u32 %v757, 16
  %v1106 = vor.u32 %v1104, %v1102
  %v1108 = vshrl.u32 %v620, 16
  %v1110 = vshll.u32 %v620, 16
  %v1112 = vrot.slane %v1110, 1
  %v1113 = vor.u32 %v1108, %v1112
  %v1115 = vshll.u32 %v758, 16
  %v1117 = vrot.slane %v1115, 1
  %v1118 = vsel %vm776, %v1113, %v1117
  %v1119 = vshrl.u32 %v758, 16
  %v1121 = vor.u32 %v1119, %v1117
  %v1123 = vshrl.u32 %v622, 16
  %v1125 = vshll.u32 %v622, 16
  %v1127 = vrot.slane %v1125, 1
  %v1128 = vor.u32 %v1123, %v1127
  %v1130 = vshll.u32 %v759, 16
  %v1132 = vrot.slane %v1130, 1
  %v1133 = vsel %vm776, %v1128, %v1132
  %v1134 = vshrl.u32 %v759, 16
  %v1136 = vor.u32 %v1134, %v1132
  %v1138 = vshrl.u32 %v624, 16
  %v1140 = vshll.u32 %v624, 16
  %v1142 = vrot.slane %v1140, 1
  %v1143 = vor.u32 %v1138, %v1142
  %v1145 = vshll.u32 %v760, 16
  %v1147 = vrot.slane %v1145, 1
  %v1148 = vsel %vm776, %v1143, %v1147
  %v1149 = vshrl.u32 %v760, 16
  %v1151 = vor.u32 %v1149, %v1147
  %v1153 = vshrl.u32 %v626, 16
  %v1155 = vshll.u32 %v626, 16
  %v1157 = vrot.slane %v1155, 1
  %v1158 = vor.u32 %v1153, %v1157
  %v1160 = vshll.u32 %v761, 16
  %v1162 = vrot.slane %v1160, 1
  %v1163 = vsel %vm776, %v1158, %v1162
  %v1164 = vshrl.u32 %v761, 16
  %v1166 = vor.u32 %v1164, %v1162
  %v1168 = vshrl.u32 %v628, 16
  %v1170 = vshll.u32 %v628, 16
  %v1172 = vrot.slane %v1170, 1
  %v1173 = vor.u32 %v1168, %v1172
  %v1175 = vshll.u32 %v762, 16
  %v1177 = vrot.slane %v1175, 1
  %v1178 = vsel %vm776, %v1173, %v1177
  %v1179 = vshrl.u32 %v762, 16
  %v1181 = vor.u32 %v1179, %v1177
  %v1183 = vshrl.u32 %v630, 16
  %v1185 = vshll.u32 %v630, 16
  %v1187 = vrot.slane %v1185, 1
  %v1188 = vor.u32 %v1183, %v1187
  %v1190 = vshll.u32 %v763, 16
  %v1192 = vrot.slane %v1190, 1
  %v1193 = vsel %vm776, %v1188, %v1192
  %v1194 = vshrl.u32 %v763, 16
  %v1196 = vor.u32 %v1194, %v1192
  %v1198 = vshrl.u32 %v632, 16
  %v1200 = vshll.u32 %v632, 16
  %v1202 = vrot.slane %v1200, 1
  %v1203 = vor.u32 %v1198, %v1202
  %v1205 = vshll.u32 %v764, 16
  %v1207 = vrot.slane %v1205, 1
  %v1208 = vsel %vm776, %v1203, %v1207
  %v1209 = vshrl.u32 %v764, 16
  %v1211 = vor.u32 %v1209, %v1207
  %v1213 = vshrl.u32 %v634, 16
  %v1215 = vshll.u32 %v634, 16
  %v1217 = vrot.slane %v1215, 1
  %v1218 = vor.u32 %v1213, %v1217
  %v1220 = vshll.u32 %v765, 16
  %v1222 = vrot.slane %v1220, 1
  %v1223 = vsel %vm776, %v1218, %v1222
  %v1224 = vshrl.u32 %v765, 16
  %v1226 = vor.u32 %v1224, %v1222
  %v1228 = vshrl.u32 %v636, 16
  %v1230 = vshll.u32 %v636, 16
  %v1232 = vrot.slane %v1230, 1
  %v1233 = vor.u32 %v1228, %v1232
  %v1235 = vshll.u32 %v766, 16
  %v1237 = vrot.slane %v1235, 1
  %v1238 = vsel %vm776, %v1233, %v1237
  %v1239 = vshrl.u32 %v766, 16
  %v1241 = vor.u32 %v1239, %v1237
  %v1243 = vshrl.u32 %v638, 16
  %v1245 = vshll.u32 %v638, 16
  %v1247 = vrot.slane %v1245, 1
  %v1248 = vor.u32 %v1243, %v1247
  %v1250 = vshll.u32 %v767, 16
  %v1252 = vrot.slane %v1250, 1
  %v1253 = vsel %vm776, %v1248, %v1252
  %v1254 = vshrl.u32 %v767, 16
  %v1256 = vor.u32 %v1254, %v1252
  %v1258 = vshrl.u32 %v640, 16
  %v1260 = vshll.u32 %v640, 16
  %v1262 = vrot.slane %v1260, 1
  %v1263 = vor.u32 %v1258, %v1262
  %v1265 = vshll.u32 %v768, 16
  %v1267 = vrot.slane %v1265, 1
  %v1268 = vsel %vm776, %v1263, %v1267
  %v1269 = vshrl.u32 %v768, 16
  %v1271 = vor.u32 %v1269, %v1267
  %v1273 = vshrl.u32 %v642, 16
  %v1275 = vshll.u32 %v642, 16
  %v1277 = vrot.slane %v1275, 1
  %v1278 = vor.u32 %v1273, %v1277
  %v1280 = vshll.u32 %v769, 16
  %v1282 = vrot.slane %v1280, 1
  %v1283 = vsel %vm776, %v1278, %v1282
  %v1284 = vshrl.u32 %v769, 16
  %v1286 = vor.u32 %v1284, %v1282
  %v1288 = vshrl.u32 %v644, 16
  %v1290 = vshll.u32 %v644, 16
  %v1292 = vrot.slane %v1290, 1
  %v1293 = vor.u32 %v1288, %v1292
  %v1295 = vshll.u32 %v770, 16
  %v1297 = vrot.slane %v1295, 1
  %v1298 = vsel %vm776, %v1293, %v1297
  %v1299 = vshrl.u32 %v770, 16
  %v1301 = vor.u32 %v1299, %v1297
  %v1303 = vshrl.u32 %v646, 16
  %v1305 = vshll.u32 %v646, 16
  %v1307 = vrot.slane %v1305, 1
  %v1308 = vor.u32 %v1303, %v1307
  %v1310 = vshll.u32 %v771, 16
  %v1312 = vrot.slane %v1310, 1
  %v1313 = vsel %vm776, %v1308, %v1312
  %v1314 = vshrl.u32 %v771, 16
  %v1316 = vor.u32 %v1314, %v1312
  %v1318 = vshrl.u32 %v648, 16
  %v1320 = vshll.u32 %v648, 16
  %v1322 = vrot.slane %v1320, 1
  %v1323 = vor.u32 %v1318, %v1322
  %v1325 = vshll.u32 %v772, 16
  %v1327 = vrot.slane %v1325, 1
  %v1328 = vsel %vm776, %v1323, %v1327
  %v1329 = vshrl.u32 %v772, 16
  %v1331 = vor.u32 %v1329, %v1327
  %v1333 = vshrl.u32 %v650, 16
  %v1335 = vshll.u32 %v650, 16
  %v1337 = vrot.slane %v1335, 1
  %v1338 = vor.u32 %v1333, %v1337
  %v1340 = vshll.u32 %v773, 16
  %v1342 = vrot.slane %v1340, 1
  %v1343 = vsel %vm776, %v1338, %v1342
  %v1344 = vshrl.u32 %v773, 16
  %v1346 = vor.u32 %v1344, %v1342
  %v1348 = vshrl.u32 %v652, 16
  %v1350 = vshll.u32 %v652, 16
  %v1352 = vrot.slane %v1350, 1
  %v1353 = vor.u32 %v1348, %v1352
  %v1355 = vshll.u32 %v774, 16
  %v1357 = vrot.slane %v1355, 1
  %v1358 = vsel %vm776, %v1353, %v1357
  %v1359 = vshrl.u32 %v774, 16
  %v1361 = vor.u32 %v1359, %v1357
  %v1363 = vshrl.u32 %v654, 16
  %v1365 = vshll.u32 %v654, 16
  %v1367 = vrot.slane %v1365, 1
  %v1368 = vor.u32 %v1363, %v1367
  %v1370 = vshll.u32 %v775, 16
  %v1372 = vrot.slane %v1370, 1
  %v1373 = vsel %vm776, %v1368, %v1372
  %v1374 = vshrl.u32 %v775, 16
  %v1376 = vor.u32 %v1374, %v1372
  %1377 = vrot.lane.b32.xlu0 %v788, 64
  %v1378 = vpop.permute.xlu0 %1377
  %1379 = vrot.lane.b32.xlu0 %v791, 64
  %v1380 = vpop.permute.xlu0 %1379
  %1381 = vrot.lane.b32.xlu0 %v803, 64
  %v1382 = vpop.permute.xlu0 %1381
  %1383 = vrot.lane.b32.xlu0 %v806, 64
  %v1384 = vpop.permute.xlu0 %1383
  %1385 = vrot.lane.b32.xlu0 %v818, 64
  %v1386 = vpop.permute.xlu0 %1385
  %1387 = vrot.lane.b32.xlu0 %v821, 64
  %v1388 = vpop.permute.xlu0 %1387
  %1389 = vrot.lane.b32.xlu0 %v833, 64
  %v1390 = vpop.permute.xlu0 %1389
  %1391 = vrot.lane.b32.xlu0 %v836, 64
  %v1392 = vpop.permute.xlu0 %1391
  %1393 = vrot.lane.b32.xlu0 %v848, 64
  %v1394 = vpop.permute.xlu0 %1393
  %1395 = vrot.lane.b32.xlu0 %v851, 64
  %v1396 = vpop.permute.xlu0 %1395
  %1397 = vrot.lane.b32.xlu0 %v863, 64
  %v1398 = vpop.permute.xlu0 %1397
  %1399 = vrot.lane.b32.xlu0 %v866, 64
  %v1400 = vpop.permute.xlu0 %1399
  %1401 = vrot.lane.b32.xlu0 %v878, 64
  %v1402 = vpop.permute.xlu0 %1401
  %1403 = vrot.lane.b32.xlu0 %v881, 64
  %v1404 = vpop.permute.xlu0 %1403
  %1405 = vrot.lane.b32.xlu0 %v893, 64
  %v1406 = vpop.permute.xlu0 %1405
  %1407 = vrot.lane.b32.xlu0 %v896, 64
  %v1408 = vpop.permute.xlu0 %1407
  %1409 = vrot.lane.b32.xlu0 %v908, 64
  %v1410 = vpop.permute.xlu0 %1409
  %1411 = vrot.lane.b32.xlu0 %v911, 64
  %v1412 = vpop.permute.xlu0 %1411
  %1413 = vrot.lane.b32.xlu0 %v923, 64
  %v1414 = vpop.permute.xlu0 %1413
  %1415 = vrot.lane.b32.xlu0 %v926, 64
  %v1416 = vpop.permute.xlu0 %1415
  %1417 = vrot.lane.b32.xlu0 %v938, 64
  %v1418 = vpop.permute.xlu0 %1417
  %1419 = vrot.lane.b32.xlu0 %v941, 64
  %v1420 = vpop.permute.xlu0 %1419
  %1421 = vrot.lane.b32.xlu0 %v953, 64
  %v1422 = vpop.permute.xlu0 %1421
  %1423 = vrot.lane.b32.xlu0 %v956, 64
  %v1424 = vpop.permute.xlu0 %1423
  %1425 = vrot.lane.b32.xlu0 %v968, 64
  %v1426 = vpop.permute.xlu0 %1425
  %1427 = vrot.lane.b32.xlu0 %v971, 64
  %v1428 = vpop.permute.xlu0 %1427
  %1429 = vrot.lane.b32.xlu0 %v983, 64
  %v1430 = vpop.permute.xlu0 %1429
  %1431 = vrot.lane.b32.xlu0 %v986, 64
  %v1432 = vpop.permute.xlu0 %1431
  %1433 = vrot.lane.b32.xlu0 %v998, 64
  %v1434 = vpop.permute.xlu0 %1433
  %1435 = vrot.lane.b32.xlu0 %v1001, 64
  %v1436 = vpop.permute.xlu0 %1435
  %1437 = vrot.lane.b32.xlu0 %v1013, 64
  %v1438 = vpop.permute.xlu0 %1437
  %1439 = vrot.lane.b32.xlu0 %v1016, 64
  %v1440 = vpop.permute.xlu0 %1439
  %1441 = vrot.lane.b32.xlu0 %v1028, 64
  %v1442 = vpop.permute.xlu0 %1441
  %1443 = vrot.lane.b32.xlu0 %v1031, 64
  %v1444 = vpop.permute.xlu0 %1443
  %1445 = vrot.lane.b32.xlu0 %v1043, 64
  %v1446 = vpop.permute.xlu0 %1445
  %1447 = vrot.lane.b32.xlu0 %v1046, 64
  %v1448 = vpop.permute.xlu0 %1447
  %1449 = vrot.lane.b32.xlu0 %v1058, 64
  %v1450 = vpop.permute.xlu0 %1449
  %1451 = vrot.lane.b32.xlu0 %v1061, 64
  %v1452 = vpop.permute.xlu0 %1451
  %1453 = vrot.lane.b32.xlu0 %v1073, 64
  %v1454 = vpop.permute.xlu0 %1453
  %1455 = vrot.lane.b32.xlu0 %v1076, 64
  %v1456 = vpop.permute.xlu0 %1455
  %1457 = vrot.lane.b32.xlu0 %v1088, 64
  %v1458 = vpop.permute.xlu0 %1457
  %1459 = vrot.lane.b32.xlu0 %v1091, 64
  %v1460 = vpop.permute.xlu0 %1459
  %1461 = vrot.lane.b32.xlu0 %v1103, 64
  %v1462 = vpop.permute.xlu0 %1461
  %1463 = vrot.lane.b32.xlu0 %v1106, 64
  %v1464 = vpop.permute.xlu0 %1463
  %1465 = vrot.lane.b32.xlu0 %v1118, 64
  %v1466 = vpop.permute.xlu0 %1465
  %1467 = vrot.lane.b32.xlu0 %v1121, 64
  %v1468 = vpop.permute.xlu0 %1467
  %1469 = vrot.lane.b32.xlu0 %v1133, 64
  %v1470 = vpop.permute.xlu0 %1469
  %1471 = vrot.lane.b32.xlu0 %v1136, 64
  %v1472 = vpop.permute.xlu0 %1471
  %1473 = vrot.lane.b32.xlu0 %v1148, 64
  %v1474 = vpop.permute.xlu0 %1473
  %1475 = vrot.lane.b32.xlu0 %v1151, 64
  %v1476 = vpop.permute.xlu0 %1475
  %1477 = vrot.lane.b32.xlu0 %v1163, 64
  %v1478 = vpop.permute.xlu0 %1477
  %1479 = vrot.lane.b32.xlu0 %v1166, 64
  %v1480 = vpop.permute.xlu0 %1479
  %1481 = vrot.lane.b32.xlu0 %v1178, 64
  %v1482 = vpop.permute.xlu0 %1481
  %1483 = vrot.lane.b32.xlu0 %v1181, 64
  %v1484 = vpop.permute.xlu0 %1483
  %1485 = vrot.lane.b32.xlu0 %v1193, 64
  %v1486 = vpop.permute.xlu0 %1485
  %1487 = vrot.lane.b32.xlu0 %v1196, 64
  %v1488 = vpop.permute.xlu0 %1487
  %1489 = vrot.lane.b32.xlu0 %v1208, 64
  %v1490 = vpop.permute.xlu0 %1489
  %1491 = vrot.lane.b32.xlu0 %v1211, 64
  %v1492 = vpop.permute.xlu0 %1491
  %1493 = vrot.lane.b32.xlu0 %v1223, 64
  %v1494 = vpop.permute.xlu0 %1493
  %1495 = vrot.lane.b32.xlu0 %v1226, 64
  %v1496 = vpop.permute.xlu0 %1495
  %1497 = vrot.lane.b32.xlu0 %v1238, 64
  %v1498 = vpop.permute.xlu0 %1497
  %1499 = vrot.lane.b32.xlu0 %v1241, 64
  %v1500 = vpop.permute.xlu0 %1499
  %1501 = vrot.lane.b32.xlu0 %v1253, 64
  %v1502 = vpop.permute.xlu0 %1501
  %1503 = vrot.lane.b32.xlu0 %v1256, 64
  %v1504 = vpop.permute.xlu0 %1503
  %1505 = vrot.lane.b32.xlu0 %v1268, 64
  %v1506 = vpop.permute.xlu0 %1505
  %1507 = vrot.lane.b32.xlu0 %v1271, 64
  %v1508 = vpop.permute.xlu0 %1507
  %1509 = vrot.lane.b32.xlu0 %v1283, 64
  %v1510 = vpop.permute.xlu0 %1509
  %1511 = vrot.lane.b32.xlu0 %v1286, 64
  %v1512 = vpop.permute.xlu0 %1511
  %1513 = vrot.lane.b32.xlu0 %v1298, 64
  %v1514 = vpop.permute.xlu0 %1513
  %1515 = vrot.lane.b32.xlu0 %v1301, 64
  %v1516 = vpop.permute.xlu0 %1515
  %1517 = vrot.lane.b32.xlu0 %v1313, 64
  %v1518 = vpop.permute.xlu0 %1517
  %1519 = vrot.lane.b32.xlu0 %v1316, 64
  %v1520 = vpop.permute.xlu0 %1519
  %1521 = vrot.lane.b32.xlu0 %v1328, 64
  %v1522 = vpop.permute.xlu0 %1521
  %1523 = vrot.lane.b32.xlu0 %v1331, 64
  %v1524 = vpop.permute.xlu0 %1523
  %1525 = vrot.lane.b32.xlu0 %v1343, 64
  %v1526 = vpop.permute.xlu0 %1525
  %1527 = vrot.lane.b32.xlu0 %v1346, 64
  %v1528 = vpop.permute.xlu0 %1527
  %1529 = vrot.lane.b32.xlu0 %v1358, 64
  %v1530 = vpop.permute.xlu0 %1529
  %1531 = vrot.lane.b32.xlu0 %v1361, 64
  %v1532 = vpop.permute.xlu0 %1531
  %1533 = vrot.lane.b32.xlu0 %v1373, 64
  %v1534 = vpop.permute.xlu0 %1533
  %1535 = vrot.lane.b32.xlu0 %v1376, 64
  %v1536 = vpop.permute.xlu0 %1535
  %v1657 = vunpack.c.l.b16 %v176
  %v1658 = vunpack.c.l.b16 %v177
  %v1659 = vunpack.c.l.b16 %v178
  %v1660 = vunpack.c.l.b16 %v179
  %v1661 = vunpack.c.l.b16 %v180
  %v1662 = vunpack.c.l.b16 %v181
  %v1663 = vunpack.c.l.b16 %v182
  %v1664 = vunpack.c.l.b16 %v183
  %v1665 = vunpack.c.l.b16 %v184
  %v1666 = vunpack.c.l.b16 %v185
  %v1667 = vunpack.c.l.b16 %v186
  %v1668 = vunpack.c.l.b16 %v187
  %v1669 = vunpack.c.l.b16 %v188
  %v1670 = vunpack.c.l.b16 %v189
  %v1671 = vunpack.c.l.b16 %v190
  %v1672 = vunpack.c.l.b16 %v191
  %v1673 = vunpack.c.l.b16 %v192
  %v1674 = vunpack.c.l.b16 %v193
  %v1675 = vunpack.c.l.b16 %v194
  %v1676 = vunpack.c.l.b16 %v195
  %v1677 = vunpack.c.l.b16 %v196
  %v1678 = vunpack.c.l.b16 %v197
  %v1679 = vunpack.c.l.b16 %v198
  %v1680 = vunpack.c.l.b16 %v199
  %v1681 = vunpack.c.l.b16 %v200
  %v1682 = vunpack.c.l.b16 %v201
  %v1683 = vunpack.c.l.b16 %v202
  %v1684 = vunpack.c.l.b16 %v203
  %v1685 = vunpack.c.l.b16 %v204
  %v1686 = vunpack.c.l.b16 %v205
  %v1687 = vunpack.c.l.b16 %v206
  %v1688 = vunpack.c.l.b16 %v207
  %v1689 = vunpack.c.l.b16 %v208
  %v1690 = vunpack.c.l.b16 %v209
  %v1691 = vunpack.c.l.b16 %v210
  %v1692 = vunpack.c.l.b16 %v211
  %v1693 = vunpack.c.l.b16 %v212
  %v1694 = vunpack.c.l.b16 %v213
  %v1695 = vunpack.c.l.b16 %v214
  %v1696 = vunpack.c.l.b16 %v215
  %v1697 = vunpack.c.l.b16 %v216
  %v1698 = vunpack.c.l.b16 %v217
  %v1699 = vunpack.c.l.b16 %v218
  %v1700 = vunpack.c.l.b16 %v219
  %v1701 = vunpack.c.l.b16 %v220
  %v1702 = vunpack.c.l.b16 %v221
  %v1703 = vunpack.c.l.b16 %v222
  %v1704 = vunpack.c.l.b16 %v223
  %v1705 = vunpack.c.l.b16 %v224
  %v1706 = vunpack.c.l.b16 %v225
  %v1707 = vunpack.c.l.b16 %v226
  %v1708 = vunpack.c.l.b16 %v227
  %v1709 = vunpack.c.l.b16 %v228
  %v1710 = vunpack.c.l.b16 %v229
  %v1711 = vunpack.c.l.b16 %v230
  %v1712 = vunpack.c.l.b16 %v231
  %v1713 = vunpack.c.l.b16 %v232
  %v1714 = vunpack.c.l.b16 %v233
  %v1715 = vunpack.c.l.b16 %v234
  %v1716 = vunpack.c.l.b16 %v235
  %v1717 = vunpack.c.l.b16 %v236
  %v1718 = vunpack.c.l.b16 %v237
  %v1719 = vunpack.c.l.b16 %v238
  %v1720 = vunpack.c.l.b16 %v239
  %v1721 = vunpack.c.l.b16 %v240
  %v1722 = vunpack.c.l.b16 %v241
  %v1723 = vunpack.c.l.b16 %v242
  %v1724 = vunpack.c.l.b16 %v243
  %v1725 = vunpack.c.l.b16 %v244
  %v1726 = vunpack.c.l.b16 %v245
  %v1727 = vunpack.c.l.b16 %v246
  %v1728 = vunpack.c.l.b16 %v247
  %v1729 = vunpack.c.l.b16 %v248
  %v1730 = vunpack.c.l.b16 %v249
  %v1731 = vunpack.c.l.b16 %v250
  %v1732 = vunpack.c.l.b16 %v251
  %v1733 = vunpack.c.l.b16 %v252
  %v1734 = vunpack.c.l.b16 %v253
  %v1735 = vunpack.c.l.b16 %v254
  %v1736 = vunpack.c.l.b16 %v255
  %v1737 = vunpack.c.l.b16 %v256
  %v1738 = vunpack.c.l.b16 %v257
  %v1739 = vunpack.c.l.b16 %v258
  %v1740 = vunpack.c.l.b16 %v259
  %v1741 = vunpack.c.l.b16 %v260
  %v1742 = vunpack.c.l.b16 %v261
  %v1743 = vunpack.c.l.b16 %v262
  %v1744 = vunpack.c.l.b16 %v263
  %v1745 = vunpack.c.l.b16 %v264
  %v1746 = vunpack.c.l.b16 %v265
  %v1747 = vunpack.c.l.b16 %v266
  %v1748 = vunpack.c.l.b16 %v267
  %v1749 = vunpack.c.l.b16 %v268
  %v1750 = vunpack.c.l.b16 %v269
  %v1751 = vunpack.c.l.b16 %v270
  %v1752 = vunpack.c.l.b16 %v271
  %v1753 = vunpack.c.l.b16 %v272
  %v1754 = vunpack.c.l.b16 %v273
  %v1755 = vunpack.c.l.b16 %v274
  %v1756 = vunpack.c.l.b16 %v275
  %v1757 = vunpack.c.l.b16 %v276
  %v1758 = vunpack.c.l.b16 %v277
  %v1759 = vunpack.c.l.b16 %v278
  %v1760 = vunpack.c.l.b16 %v279
  %v1761 = vunpack.c.l.b16 %v280
  %v1762 = vunpack.c.l.b16 %v281
  %v1763 = vunpack.c.l.b16 %v282
  %v1764 = vunpack.c.l.b16 %v283
  %v1765 = vunpack.c.l.b16 %v284
  %v1766 = vunpack.c.l.b16 %v285
  %v1767 = vunpack.c.l.b16 %v286
  %v1768 = vunpack.c.l.b16 %v287
  %v1769 = vunpack.c.l.b16 %v288
  %v1770 = vunpack.c.l.b16 %v289
  %v1771 = vunpack.c.l.b16 %v290
  %v1772 = vunpack.c.l.b16 %v291
  %v1773 = vunpack.c.l.b16 %v292
  %v1774 = vunpack.c.l.b16 %v293
  %v1775 = vunpack.c.l.b16 %v294
  %v1776 = vunpack.c.l.b16 %v295
  %v1777 = vpack.c.b16 %v1658, %v1657
  %v1778 = vpack.c.b16 %v1659, %v1659
  %v1779 = vpack.c.b16 %v1661, %v1660
  %v1780 = vpack.c.b16 %v1662, %v1662
  %v1781 = vpack.c.b16 %v1664, %v1663
  %v1782 = vpack.c.b16 %v1665, %v1665
  %v1783 = vpack.c.b16 %v1667, %v1666
  %v1784 = vpack.c.b16 %v1668, %v1668
  %v1785 = vpack.c.b16 %v1670, %v1669
  %v1786 = vpack.c.b16 %v1671, %v1671
  %v1787 = vpack.c.b16 %v1673, %v1672
  %v1788 = vpack.c.b16 %v1674, %v1674
  %v1789 = vpack.c.b16 %v1676, %v1675
  %v1790 = vpack.c.b16 %v1677, %v1677
  %v1791 = vpack.c.b16 %v1679, %v1678
  %v1792 = vpack.c.b16 %v1680, %v1680
  %v1793 = vpack.c.b16 %v1682, %v1681
  %v1794 = vpack.c.b16 %v1683, %v1683
  %v1795 = vpack.c.b16 %v1685, %v1684
  %v1796 = vpack.c.b16 %v1686, %v1686
  %v1797 = vpack.c.b16 %v1688, %v1687
  %v1798 = vpack.c.b16 %v1689, %v1689
  %v1799 = vpack.c.b16 %v1691, %v1690
  %v1800 = vpack.c.b16 %v1692, %v1692
  %v1801 = vpack.c.b16 %v1694, %v1693
  %v1802 = vpack.c.b16 %v1695, %v1695
  %v1803 = vpack.c.b16 %v1697, %v1696
  %v1804 = vpack.c.b16 %v1698, %v1698
  %v1805 = vpack.c.b16 %v1700, %v1699
  %v1806 = vpack.c.b16 %v1701, %v1701
  %v1807 = vpack.c.b16 %v1703, %v1702
  %v1808 = vpack.c.b16 %v1704, %v1704
  %v1809 = vpack.c.b16 %v1706, %v1705
  %v1810 = vpack.c.b16 %v1707, %v1707
  %v1811 = vpack.c.b16 %v1709, %v1708
  %v1812 = vpack.c.b16 %v1710, %v1710
  %v1813 = vpack.c.b16 %v1712, %v1711
  %v1814 = vpack.c.b16 %v1713, %v1713
  %v1815 = vpack.c.b16 %v1715, %v1714
  %v1816 = vpack.c.b16 %v1716, %v1716
  %v1817 = vpack.c.b16 %v1718, %v1717
  %v1818 = vpack.c.b16 %v1719, %v1719
  %v1819 = vpack.c.b16 %v1721, %v1720
  %v1820 = vpack.c.b16 %v1722, %v1722
  %v1821 = vpack.c.b16 %v1724, %v1723
  %v1822 = vpack.c.b16 %v1725, %v1725
  %v1823 = vpack.c.b16 %v1727, %v1726
  %v1824 = vpack.c.b16 %v1728, %v1728
  %v1825 = vpack.c.b16 %v1730, %v1729
  %v1826 = vpack.c.b16 %v1731, %v1731
  %v1827 = vpack.c.b16 %v1733, %v1732
  %v1828 = vpack.c.b16 %v1734, %v1734
  %v1829 = vpack.c.b16 %v1736, %v1735
  %v1830 = vpack.c.b16 %v1737, %v1737
  %v1831 = vpack.c.b16 %v1739, %v1738
  %v1832 = vpack.c.b16 %v1740, %v1740
  %v1833 = vpack.c.b16 %v1742, %v1741
  %v1834 = vpack.c.b16 %v1743, %v1743
  %v1835 = vpack.c.b16 %v1745, %v1744
  %v1836 = vpack.c.b16 %v1746, %v1746
  %v1837 = vpack.c.b16 %v1748, %v1747
  %v1838 = vpack.c.b16 %v1749, %v1749
  %v1839 = vpack.c.b16 %v1751, %v1750
  %v1840 = vpack.c.b16 %v1752, %v1752
  %v1841 = vpack.c.b16 %v1754, %v1753
  %v1842 = vpack.c.b16 %v1755, %v1755
  %v1843 = vpack.c.b16 %v1757, %v1756
  %v1844 = vpack.c.b16 %v1758, %v1758
  %v1845 = vpack.c.b16 %v1760, %v1759
  %v1846 = vpack.c.b16 %v1761, %v1761
  %v1847 = vpack.c.b16 %v1763, %v1762
  %v1848 = vpack.c.b16 %v1764, %v1764
  %v1849 = vpack.c.b16 %v1766, %v1765
  %v1850 = vpack.c.b16 %v1767, %v1767
  %v1851 = vpack.c.b16 %v1769, %v1768
  %v1852 = vpack.c.b16 %v1770, %v1770
  %v1853 = vpack.c.b16 %v1772, %v1771
  %v1854 = vpack.c.b16 %v1773, %v1773
  %v1855 = vpack.c.b16 %v1775, %v1774
  %v1856 = vpack.c.b16 %v1776, %v1776
  %v1897 = vunpack.c.l.b16 %v296
  %v1898 = vunpack.c.l.b16 %v297
  %v1899 = vunpack.c.l.b16 %v298
  %v1900 = vunpack.c.l.b16 %v299
  %v1901 = vunpack.c.l.b16 %v300
  %v1902 = vunpack.c.l.b16 %v301
  %v1903 = vunpack.c.l.b16 %v302
  %v1904 = vunpack.c.l.b16 %v303
  %v1905 = vunpack.c.l.b16 %v304
  %v1906 = vunpack.c.l.b16 %v305
  %v1907 = vunpack.c.l.b16 %v306
  %v1908 = vunpack.c.l.b16 %v307
  %v1909 = vunpack.c.l.b16 %v308
  %v1910 = vunpack.c.l.b16 %v309
  %v1911 = vunpack.c.l.b16 %v310
  %v1912 = vunpack.c.l.b16 %v311
  %v1913 = vunpack.c.l.b16 %v312
  %v1914 = vunpack.c.l.b16 %v313
  %v1915 = vunpack.c.l.b16 %v314
  %v1916 = vunpack.c.l.b16 %v315
  %v1917 = vunpack.c.l.b16 %v316
  %v1918 = vunpack.c.l.b16 %v317
  %v1919 = vunpack.c.l.b16 %v318
  %v1920 = vunpack.c.l.b16 %v319
  %v1921 = vunpack.c.l.b16 %v320
  %v1922 = vunpack.c.l.b16 %v321
  %v1923 = vunpack.c.l.b16 %v322
  %v1924 = vunpack.c.l.b16 %v323
  %v1925 = vunpack.c.l.b16 %v324
  %v1926 = vunpack.c.l.b16 %v325
  %v1927 = vunpack.c.l.b16 %v326
  %v1928 = vunpack.c.l.b16 %v327
  %v1929 = vunpack.c.l.b16 %v328
  %v1930 = vunpack.c.l.b16 %v329
  %v1931 = vunpack.c.l.b16 %v330
  %v1932 = vunpack.c.l.b16 %v331
  %v1933 = vunpack.c.l.b16 %v332
  %v1934 = vunpack.c.l.b16 %v333
  %v1935 = vunpack.c.l.b16 %v334
  %v1936 = vunpack.c.l.b16 %v335
  %v1937 = vpack.c.b16 %v1897, %v1659
  %v1938 = vpack.c.b16 %v1898, %v1662
  %v1939 = vpack.c.b16 %v1899, %v1665
  %v1940 = vpack.c.b16 %v1900, %v1668
  %v1941 = vpack.c.b16 %v1901, %v1671
  %v1942 = vpack.c.b16 %v1902, %v1674
  %v1943 = vpack.c.b16 %v1903, %v1677
  %v1944 = vpack.c.b16 %v1904, %v1680
  %v1945 = vpack.c.b16 %v1905, %v1683
  %v1946 = vpack.c.b16 %v1906, %v1686
  %v1947 = vpack.c.b16 %v1907, %v1689
  %v1948 = vpack.c.b16 %v1908, %v1692
  %v1949 = vpack.c.b16 %v1909, %v1695
  %v1950 = vpack.c.b16 %v1910, %v1698
  %v1951 = vpack.c.b16 %v1911, %v1701
  %v1952 = vpack.c.b16 %v1912, %v1704
  %v1953 = vpack.c.b16 %v1913, %v1707
  %v1954 = vpack.c.b16 %v1914, %v1710
  %v1955 = vpack.c.b16 %v1915, %v1713
  %v1956 = vpack.c.b16 %v1916, %v1716
  %v1957 = vpack.c.b16 %v1917, %v1719
  %v1958 = vpack.c.b16 %v1918, %v1722
  %v1959 = vpack.c.b16 %v1919, %v1725
  %v1960 = vpack.c.b16 %v1920, %v1728
  %v1961 = vpack.c.b16 %v1921, %v1731
  %v1962 = vpack.c.b16 %v1922, %v1734
  %v1963 = vpack.c.b16 %v1923, %v1737
  %v1964 = vpack.c.b16 %v1924, %v1740
  %v1965 = vpack.c.b16 %v1925, %v1743
  %v1966 = vpack.c.b16 %v1926, %v1746
  %v1967 = vpack.c.b16 %v1927, %v1749
  %v1968 = vpack.c.b16 %v1928, %v1752
  %v1969 = vpack.c.b16 %v1929, %v1755
  %v1970 = vpack.c.b16 %v1930, %v1758
  %v1971 = vpack.c.b16 %v1931, %v1761
  %v1972 = vpack.c.b16 %v1932, %v1764
  %v1973 = vpack.c.b16 %v1933, %v1767
  %v1974 = vpack.c.b16 %v1934, %v1770
  %v1975 = vpack.c.b16 %v1935, %v1773
  %v1976 = vpack.c.b16 %v1936, %v1776
  %v1978 = vshrl.u32 %v1777, 16
  %v1980 = vshll.u32 %v1777, 16
  %v1982 = vrot.slane %v1980, 1
  %v1983 = vor.u32 %v1978, %v1982
  %v1985 = vshll.u32 %v1937, 16
  %v1987 = vrot.slane %v1985, 1
  %v1988 = vsel %vm776, %v1983, %v1987
  %v1989 = vshrl.u32 %v1937, 16
  %v1991 = vor.u32 %v1989, %v1987
  %v1993 = vshrl.u32 %v1779, 16
  %v1995 = vshll.u32 %v1779, 16
  %v1997 = vrot.slane %v1995, 1
  %v1998 = vor.u32 %v1993, %v1997
  %v2000 = vshll.u32 %v1938, 16
  %v2002 = vrot.slane %v2000, 1
  %v2003 = vsel %vm776, %v1998, %v2002
  %v2004 = vshrl.u32 %v1938, 16
  %v2006 = vor.u32 %v2004, %v2002
  %v2008 = vshrl.u32 %v1781, 16
  %v2010 = vshll.u32 %v1781, 16
  %v2012 = vrot.slane %v2010, 1
  %v2013 = vor.u32 %v2008, %v2012
  %v2015 = vshll.u32 %v1939, 16
  %v2017 = vrot.slane %v2015, 1
  %v2018 = vsel %vm776, %v2013, %v2017
  %v2019 = vshrl.u32 %v1939, 16
  %v2021 = vor.u32 %v2019, %v2017
  %v2023 = vshrl.u32 %v1783, 16
  %v2025 = vshll.u32 %v1783, 16
  %v2027 = vrot.slane %v2025, 1
  %v2028 = vor.u32 %v2023, %v2027
  %v2030 = vshll.u32 %v1940, 16
  %v2032 = vrot.slane %v2030, 1
  %v2033 = vsel %vm776, %v2028, %v2032
  %v2034 = vshrl.u32 %v1940, 16
  %v2036 = vor.u32 %v2034, %v2032
  %v2038 = vshrl.u32 %v1785, 16
  %v2040 = vshll.u32 %v1785, 16
  %v2042 = vrot.slane %v2040, 1
  %v2043 = vor.u32 %v2038, %v2042
  %v2045 = vshll.u32 %v1941, 16
  %v2047 = vrot.slane %v2045, 1
  %v2048 = vsel %vm776, %v2043, %v2047
  %v2049 = vshrl.u32 %v1941, 16
  %v2051 = vor.u32 %v2049, %v2047
  %v2053 = vshrl.u32 %v1787, 16
  %v2055 = vshll.u32 %v1787, 16
  %v2057 = vrot.slane %v2055, 1
  %v2058 = vor.u32 %v2053, %v2057
  %v2060 = vshll.u32 %v1942, 16
  %v2062 = vrot.slane %v2060, 1
  %v2063 = vsel %vm776, %v2058, %v2062
  %v2064 = vshrl.u32 %v1942, 16
  %v2066 = vor.u32 %v2064, %v2062
  %v2068 = vshrl.u32 %v1789, 16
  %v2070 = vshll.u32 %v1789, 16
  %v2072 = vrot.slane %v2070, 1
  %v2073 = vor.u32 %v2068, %v2072
  %v2075 = vshll.u32 %v1943, 16
  %v2077 = vrot.slane %v2075, 1
  %v2078 = vsel %vm776, %v2073, %v2077
  %v2079 = vshrl.u32 %v1943, 16
  %v2081 = vor.u32 %v2079, %v2077
  %v2083 = vshrl.u32 %v1791, 16
  %v2085 = vshll.u32 %v1791, 16
  %v2087 = vrot.slane %v2085, 1
  %v2088 = vor.u32 %v2083, %v2087
  %v2090 = vshll.u32 %v1944, 16
  %v2092 = vrot.slane %v2090, 1
  %v2093 = vsel %vm776, %v2088, %v2092
  %v2094 = vshrl.u32 %v1944, 16
  %v2096 = vor.u32 %v2094, %v2092
  %v2098 = vshrl.u32 %v1793, 16
  %v2100 = vshll.u32 %v1793, 16
  %v2102 = vrot.slane %v2100, 1
  %v2103 = vor.u32 %v2098, %v2102
  %v2105 = vshll.u32 %v1945, 16
  %v2107 = vrot.slane %v2105, 1
  %v2108 = vsel %vm776, %v2103, %v2107
  %v2109 = vshrl.u32 %v1945, 16
  %v2111 = vor.u32 %v2109, %v2107
  %v2113 = vshrl.u32 %v1795, 16
  %v2115 = vshll.u32 %v1795, 16
  %v2117 = vrot.slane %v2115, 1
  %v2118 = vor.u32 %v2113, %v2117
  %v2120 = vshll.u32 %v1946, 16
  %v2122 = vrot.slane %v2120, 1
  %v2123 = vsel %vm776, %v2118, %v2122
  %v2124 = vshrl.u32 %v1946, 16
  %v2126 = vor.u32 %v2124, %v2122
  %v2128 = vshrl.u32 %v1797, 16
  %v2130 = vshll.u32 %v1797, 16
  %v2132 = vrot.slane %v2130, 1
  %v2133 = vor.u32 %v2128, %v2132
  %v2135 = vshll.u32 %v1947, 16
  %v2137 = vrot.slane %v2135, 1
  %v2138 = vsel %vm776, %v2133, %v2137
  %v2139 = vshrl.u32 %v1947, 16
  %v2141 = vor.u32 %v2139, %v2137
  %v2143 = vshrl.u32 %v1799, 16
  %v2145 = vshll.u32 %v1799, 16
  %v2147 = vrot.slane %v2145, 1
  %v2148 = vor.u32 %v2143, %v2147
  %v2150 = vshll.u32 %v1948, 16
  %v2152 = vrot.slane %v2150, 1
  %v2153 = vsel %vm776, %v2148, %v2152
  %v2154 = vshrl.u32 %v1948, 16
  %v2156 = vor.u32 %v2154, %v2152
  %v2158 = vshrl.u32 %v1801, 16
  %v2160 = vshll.u32 %v1801, 16
  %v2162 = vrot.slane %v2160, 1
  %v2163 = vor.u32 %v2158, %v2162
  %v2165 = vshll.u32 %v1949, 16
  %v2167 = vrot.slane %v2165, 1
  %v2168 = vsel %vm776, %v2163, %v2167
  %v2169 = vshrl.u32 %v1949, 16
  %v2171 = vor.u32 %v2169, %v2167
  %v2173 = vshrl.u32 %v1803, 16
  %v2175 = vshll.u32 %v1803, 16
  %v2177 = vrot.slane %v2175, 1
  %v2178 = vor.u32 %v2173, %v2177
  %v2180 = vshll.u32 %v1950, 16
  %v2182 = vrot.slane %v2180, 1
  %v2183 = vsel %vm776, %v2178, %v2182
  %v2184 = vshrl.u32 %v1950, 16
  %v2186 = vor.u32 %v2184, %v2182
  %v2188 = vshrl.u32 %v1805, 16
  %v2190 = vshll.u32 %v1805, 16
  %v2192 = vrot.slane %v2190, 1
  %v2193 = vor.u32 %v2188, %v2192
  %v2195 = vshll.u32 %v1951, 16
  %v2197 = vrot.slane %v2195, 1
  %v2198 = vsel %vm776, %v2193, %v2197
  %v2199 = vshrl.u32 %v1951, 16
  %v2201 = vor.u32 %v2199, %v2197
  %v2203 = vshrl.u32 %v1807, 16
  %v2205 = vshll.u32 %v1807, 16
  %v2207 = vrot.slane %v2205, 1
  %v2208 = vor.u32 %v2203, %v2207
  %v2210 = vshll.u32 %v1952, 16
  %v2212 = vrot.slane %v2210, 1
  %v2213 = vsel %vm776, %v2208, %v2212
  %v2214 = vshrl.u32 %v1952, 16
  %v2216 = vor.u32 %v2214, %v2212
  %v2218 = vshrl.u32 %v1809, 16
  %v2220 = vshll.u32 %v1809, 16
  %v2222 = vrot.slane %v2220, 1
  %v2223 = vor.u32 %v2218, %v2222
  %v2225 = vshll.u32 %v1953, 16
  %v2227 = vrot.slane %v2225, 1
  %v2228 = vsel %vm776, %v2223, %v2227
  %v2229 = vshrl.u32 %v1953, 16
  %v2231 = vor.u32 %v2229, %v2227
  %v2233 = vshrl.u32 %v1811, 16
  %v2235 = vshll.u32 %v1811, 16
  %v2237 = vrot.slane %v2235, 1
  %v2238 = vor.u32 %v2233, %v2237
  %v2240 = vshll.u32 %v1954, 16
  %v2242 = vrot.slane %v2240, 1
  %v2243 = vsel %vm776, %v2238, %v2242
  %v2244 = vshrl.u32 %v1954, 16
  %v2246 = vor.u32 %v2244, %v2242
  %v2248 = vshrl.u32 %v1813, 16
  %v2250 = vshll.u32 %v1813, 16
  %v2252 = vrot.slane %v2250, 1
  %v2253 = vor.u32 %v2248, %v2252
  %v2255 = vshll.u32 %v1955, 16
  %v2257 = vrot.slane %v2255, 1
  %v2258 = vsel %vm776, %v2253, %v2257
  %v2259 = vshrl.u32 %v1955, 16
  %v2261 = vor.u32 %v2259, %v2257
  %v2263 = vshrl.u32 %v1815, 16
  %v2265 = vshll.u32 %v1815, 16
  %v2267 = vrot.slane %v2265, 1
  %v2268 = vor.u32 %v2263, %v2267
  %v2270 = vshll.u32 %v1956, 16
  %v2272 = vrot.slane %v2270, 1
  %v2273 = vsel %vm776, %v2268, %v2272
  %v2274 = vshrl.u32 %v1956, 16
  %v2276 = vor.u32 %v2274, %v2272
  %v2278 = vshrl.u32 %v1817, 16
  %v2280 = vshll.u32 %v1817, 16
  %v2282 = vrot.slane %v2280, 1
  %v2283 = vor.u32 %v2278, %v2282
  %v2285 = vshll.u32 %v1957, 16
  %v2287 = vrot.slane %v2285, 1
  %v2288 = vsel %vm776, %v2283, %v2287
  %v2289 = vshrl.u32 %v1957, 16
  %v2291 = vor.u32 %v2289, %v2287
  %v2293 = vshrl.u32 %v1819, 16
  %v2295 = vshll.u32 %v1819, 16
  %v2297 = vrot.slane %v2295, 1
  %v2298 = vor.u32 %v2293, %v2297
  %v2300 = vshll.u32 %v1958, 16
  %v2302 = vrot.slane %v2300, 1
  %v2303 = vsel %vm776, %v2298, %v2302
  %v2304 = vshrl.u32 %v1958, 16
  %v2306 = vor.u32 %v2304, %v2302
  %v2308 = vshrl.u32 %v1821, 16
  %v2310 = vshll.u32 %v1821, 16
  %v2312 = vrot.slane %v2310, 1
  %v2313 = vor.u32 %v2308, %v2312
  %v2315 = vshll.u32 %v1959, 16
  %v2317 = vrot.slane %v2315, 1
  %v2318 = vsel %vm776, %v2313, %v2317
  %v2319 = vshrl.u32 %v1959, 16
  %v2321 = vor.u32 %v2319, %v2317
  %v2323 = vshrl.u32 %v1823, 16
  %v2325 = vshll.u32 %v1823, 16
  %v2327 = vrot.slane %v2325, 1
  %v2328 = vor.u32 %v2323, %v2327
  %v2330 = vshll.u32 %v1960, 16
  %v2332 = vrot.slane %v2330, 1
  %v2333 = vsel %vm776, %v2328, %v2332
  %v2334 = vshrl.u32 %v1960, 16
  %v2336 = vor.u32 %v2334, %v2332
  %v2338 = vshrl.u32 %v1825, 16
  %v2340 = vshll.u32 %v1825, 16
  %v2342 = vrot.slane %v2340, 1
  %v2343 = vor.u32 %v2338, %v2342
  %v2345 = vshll.u32 %v1961, 16
  %v2347 = vrot.slane %v2345, 1
  %v2348 = vsel %vm776, %v2343, %v2347
  %v2349 = vshrl.u32 %v1961, 16
  %v2351 = vor.u32 %v2349, %v2347
  %v2353 = vshrl.u32 %v1827, 16
  %v2355 = vshll.u32 %v1827, 16
  %v2357 = vrot.slane %v2355, 1
  %v2358 = vor.u32 %v2353, %v2357
  %v2360 = vshll.u32 %v1962, 16
  %v2362 = vrot.slane %v2360, 1
  %v2363 = vsel %vm776, %v2358, %v2362
  %v2364 = vshrl.u32 %v1962, 16
  %v2366 = vor.u32 %v2364, %v2362
  %v2368 = vshrl.u32 %v1829, 16
  %v2370 = vshll.u32 %v1829, 16
  %v2372 = vrot.slane %v2370, 1
  %v2373 = vor.u32 %v2368, %v2372
  %v2375 = vshll.u32 %v1963, 16
  %v2377 = vrot.slane %v2375, 1
  %v2378 = vsel %vm776, %v2373, %v2377
  %v2379 = vshrl.u32 %v1963, 16
  %v2381 = vor.u32 %v2379, %v2377
  %v2383 = vshrl.u32 %v1831, 16
  %v2385 = vshll.u32 %v1831, 16
  %v2387 = vrot.slane %v2385, 1
  %v2388 = vor.u32 %v2383, %v2387
  %v2390 = vshll.u32 %v1964, 16
  %v2392 = vrot.slane %v2390, 1
  %v2393 = vsel %vm776, %v2388, %v2392
  %v2394 = vshrl.u32 %v1964, 16
  %v2396 = vor.u32 %v2394, %v2392
  %v2398 = vshrl.u32 %v1833, 16
  %v2400 = vshll.u32 %v1833, 16
  %v2402 = vrot.slane %v2400, 1
  %v2403 = vor.u32 %v2398, %v2402
  %v2405 = vshll.u32 %v1965, 16
  %v2407 = vrot.slane %v2405, 1
  %v2408 = vsel %vm776, %v2403, %v2407
  %v2409 = vshrl.u32 %v1965, 16
  %v2411 = vor.u32 %v2409, %v2407
  %v2413 = vshrl.u32 %v1835, 16
  %v2415 = vshll.u32 %v1835, 16
  %v2417 = vrot.slane %v2415, 1
  %v2418 = vor.u32 %v2413, %v2417
  %v2420 = vshll.u32 %v1966, 16
  %v2422 = vrot.slane %v2420, 1
  %v2423 = vsel %vm776, %v2418, %v2422
  %v2424 = vshrl.u32 %v1966, 16
  %v2426 = vor.u32 %v2424, %v2422
  %v2428 = vshrl.u32 %v1837, 16
  %v2430 = vshll.u32 %v1837, 16
  %v2432 = vrot.slane %v2430, 1
  %v2433 = vor.u32 %v2428, %v2432
  %v2435 = vshll.u32 %v1967, 16
  %v2437 = vrot.slane %v2435, 1
  %v2438 = vsel %vm776, %v2433, %v2437
  %v2439 = vshrl.u32 %v1967, 16
  %v2441 = vor.u32 %v2439, %v2437
  %v2443 = vshrl.u32 %v1839, 16
  %v2445 = vshll.u32 %v1839, 16
  %v2447 = vrot.slane %v2445, 1
  %v2448 = vor.u32 %v2443, %v2447
  %v2450 = vshll.u32 %v1968, 16
  %v2452 = vrot.slane %v2450, 1
  %v2453 = vsel %vm776, %v2448, %v2452
  %v2454 = vshrl.u32 %v1968, 16
  %v2456 = vor.u32 %v2454, %v2452
  %v2458 = vshrl.u32 %v1841, 16
  %v2460 = vshll.u32 %v1841, 16
  %v2462 = vrot.slane %v2460, 1
  %v2463 = vor.u32 %v2458, %v2462
  %v2465 = vshll.u32 %v1969, 16
  %v2467 = vrot.slane %v2465, 1
  %v2468 = vsel %vm776, %v2463, %v2467
  %v2469 = vshrl.u32 %v1969, 16
  %v2471 = vor.u32 %v2469, %v2467
  %v2473 = vshrl.u32 %v1843, 16
  %v2475 = vshll.u32 %v1843, 16
  %v2477 = vrot.slane %v2475, 1
  %v2478 = vor.u32 %v2473, %v2477
  %v2480 = vshll.u32 %v1970, 16
  %v2482 = vrot.slane %v2480, 1
  %v2483 = vsel %vm776, %v2478, %v2482
  %v2484 = vshrl.u32 %v1970, 16
  %v2486 = vor.u32 %v2484, %v2482
  %v2488 = vshrl.u32 %v1845, 16
  %v2490 = vshll.u32 %v1845, 16
  %v2492 = vrot.slane %v2490, 1
  %v2493 = vor.u32 %v2488, %v2492
  %v2495 = vshll.u32 %v1971, 16
  %v2497 = vrot.slane %v2495, 1
  %v2498 = vsel %vm776, %v2493, %v2497
  %v2499 = vshrl.u32 %v1971, 16
  %v2501 = vor.u32 %v2499, %v2497
  %v2503 = vshrl.u32 %v1847, 16
  %v2505 = vshll.u32 %v1847, 16
  %v2507 = vrot.slane %v2505, 1
  %v2508 = vor.u32 %v2503, %v2507
  %v2510 = vshll.u32 %v1972, 16
  %v2512 = vrot.slane %v2510, 1
  %v2513 = vsel %vm776, %v2508, %v2512
  %v2514 = vshrl.u32 %v1972, 16
  %v2516 = vor.u32 %v2514, %v2512
  %v2518 = vshrl.u32 %v1849, 16
  %v2520 = vshll.u32 %v1849, 16
  %v2522 = vrot.slane %v2520, 1
  %v2523 = vor.u32 %v2518, %v2522
  %v2525 = vshll.u32 %v1973, 16
  %v2527 = vrot.slane %v2525, 1
  %v2528 = vsel %vm776, %v2523, %v2527
  %v2529 = vshrl.u32 %v1973, 16
  %v2531 = vor.u32 %v2529, %v2527
  %v2533 = vshrl.u32 %v1851, 16
  %v2535 = vshll.u32 %v1851, 16
  %v2537 = vrot.slane %v2535, 1
  %v2538 = vor.u32 %v2533, %v2537
  %v2540 = vshll.u32 %v1974, 16
  %v2542 = vrot.slane %v2540, 1
  %v2543 = vsel %vm776, %v2538, %v2542
  %v2544 = vshrl.u32 %v1974, 16
  %v2546 = vor.u32 %v2544, %v2542
  %v2548 = vshrl.u32 %v1853, 16
  %v2550 = vshll.u32 %v1853, 16
  %v2552 = vrot.slane %v2550, 1
  %v2553 = vor.u32 %v2548, %v2552
  %v2555 = vshll.u32 %v1975, 16
  %v2557 = vrot.slane %v2555, 1
  %v2558 = vsel %vm776, %v2553, %v2557
  %v2559 = vshrl.u32 %v1975, 16
  %v2561 = vor.u32 %v2559, %v2557
  %v2563 = vshrl.u32 %v1855, 16
  %v2565 = vshll.u32 %v1855, 16
  %v2567 = vrot.slane %v2565, 1
  %v2568 = vor.u32 %v2563, %v2567
  %v2570 = vshll.u32 %v1976, 16
  %v2572 = vrot.slane %v2570, 1
  %v2573 = vsel %vm776, %v2568, %v2572
  %v2574 = vshrl.u32 %v1976, 16
  %v2576 = vor.u32 %v2574, %v2572
  %2577 = vrot.lane.b32.xlu0 %v1988, 64
  %v2578 = vpop.permute.xlu0 %2577
  %2579 = vrot.lane.b32.xlu0 %v1991, 64
  %v2580 = vpop.permute.xlu0 %2579
  %2581 = vrot.lane.b32.xlu0 %v2003, 64
  %v2582 = vpop.permute.xlu0 %2581
  %2583 = vrot.lane.b32.xlu0 %v2006, 64
  %v2584 = vpop.permute.xlu0 %2583
  %2585 = vrot.lane.b32.xlu0 %v2018, 64
  %v2586 = vpop.permute.xlu0 %2585
  %2587 = vrot.lane.b32.xlu0 %v2021, 64
  %v2588 = vpop.permute.xlu0 %2587
  %2589 = vrot.lane.b32.xlu0 %v2033, 64
  %v2590 = vpop.permute.xlu0 %2589
  %2591 = vrot.lane.b32.xlu0 %v2036, 64
  %v2592 = vpop.permute.xlu0 %2591
  %2593 = vrot.lane.b32.xlu0 %v2048, 64
  %v2594 = vpop.permute.xlu0 %2593
  %2595 = vrot.lane.b32.xlu0 %v2051, 64
  %v2596 = vpop.permute.xlu0 %2595
  %2597 = vrot.lane.b32.xlu0 %v2063, 64
  %v2598 = vpop.permute.xlu0 %2597
  %2599 = vrot.lane.b32.xlu0 %v2066, 64
  %v2600 = vpop.permute.xlu0 %2599
  %2601 = vrot.lane.b32.xlu0 %v2078, 64
  %v2602 = vpop.permute.xlu0 %2601
  %2603 = vrot.lane.b32.xlu0 %v2081, 64
  %v2604 = vpop.permute.xlu0 %2603
  %2605 = vrot.lane.b32.xlu0 %v2093, 64
  %v2606 = vpop.permute.xlu0 %2605
  %2607 = vrot.lane.b32.xlu0 %v2096, 64
  %v2608 = vpop.permute.xlu0 %2607
  %2609 = vrot.lane.b32.xlu0 %v2108, 64
  %v2610 = vpop.permute.xlu0 %2609
  %2611 = vrot.lane.b32.xlu0 %v2111, 64
  %v2612 = vpop.permute.xlu0 %2611
  %2613 = vrot.lane.b32.xlu0 %v2123, 64
  %v2614 = vpop.permute.xlu0 %2613
  %2615 = vrot.lane.b32.xlu0 %v2126, 64
  %v2616 = vpop.permute.xlu0 %2615
  %2617 = vrot.lane.b32.xlu0 %v2138, 64
  %v2618 = vpop.permute.xlu0 %2617
  %2619 = vrot.lane.b32.xlu0 %v2141, 64
  %v2620 = vpop.permute.xlu0 %2619
  %2621 = vrot.lane.b32.xlu0 %v2153, 64
  %v2622 = vpop.permute.xlu0 %2621
  %2623 = vrot.lane.b32.xlu0 %v2156, 64
  %v2624 = vpop.permute.xlu0 %2623
  %2625 = vrot.lane.b32.xlu0 %v2168, 64
  %v2626 = vpop.permute.xlu0 %2625
  %2627 = vrot.lane.b32.xlu0 %v2171, 64
  %v2628 = vpop.permute.xlu0 %2627
  %2629 = vrot.lane.b32.xlu0 %v2183, 64
  %v2630 = vpop.permute.xlu0 %2629
  %2631 = vrot.lane.b32.xlu0 %v2186, 64
  %v2632 = vpop.permute.xlu0 %2631
  %2633 = vrot.lane.b32.xlu0 %v2198, 64
  %v2634 = vpop.permute.xlu0 %2633
  %2635 = vrot.lane.b32.xlu0 %v2201, 64
  %v2636 = vpop.permute.xlu0 %2635
  %2637 = vrot.lane.b32.xlu0 %v2213, 64
  %v2638 = vpop.permute.xlu0 %2637
  %2639 = vrot.lane.b32.xlu0 %v2216, 64
  %v2640 = vpop.permute.xlu0 %2639
  %2641 = vrot.lane.b32.xlu0 %v2228, 64
  %v2642 = vpop.permute.xlu0 %2641
  %2643 = vrot.lane.b32.xlu0 %v2231, 64
  %v2644 = vpop.permute.xlu0 %2643
  %2645 = vrot.lane.b32.xlu0 %v2243, 64
  %v2646 = vpop.permute.xlu0 %2645
  %2647 = vrot.lane.b32.xlu0 %v2246, 64
  %v2648 = vpop.permute.xlu0 %2647
  %2649 = vrot.lane.b32.xlu0 %v2258, 64
  %v2650 = vpop.permute.xlu0 %2649
  %2651 = vrot.lane.b32.xlu0 %v2261, 64
  %v2652 = vpop.permute.xlu0 %2651
  %2653 = vrot.lane.b32.xlu0 %v2273, 64
  %v2654 = vpop.permute.xlu0 %2653
  %2655 = vrot.lane.b32.xlu0 %v2276, 64
  %v2656 = vpop.permute.xlu0 %2655
  %2657 = vrot.lane.b32.xlu0 %v2288, 64
  %v2658 = vpop.permute.xlu0 %2657
  %2659 = vrot.lane.b32.xlu0 %v2291, 64
  %v2660 = vpop.permute.xlu0 %2659
  %2661 = vrot.lane.b32.xlu0 %v2303, 64
  %v2662 = vpop.permute.xlu0 %2661
  %2663 = vrot.lane.b32.xlu0 %v2306, 64
  %v2664 = vpop.permute.xlu0 %2663
  %2665 = vrot.lane.b32.xlu0 %v2318, 64
  %v2666 = vpop.permute.xlu0 %2665
  %2667 = vrot.lane.b32.xlu0 %v2321, 64
  %v2668 = vpop.permute.xlu0 %2667
  %2669 = vrot.lane.b32.xlu0 %v2333, 64
  %v2670 = vpop.permute.xlu0 %2669
  %2671 = vrot.lane.b32.xlu0 %v2336, 64
  %v2672 = vpop.permute.xlu0 %2671
  %2673 = vrot.lane.b32.xlu0 %v2348, 64
  %v2674 = vpop.permute.xlu0 %2673
  %2675 = vrot.lane.b32.xlu0 %v2351, 64
  %v2676 = vpop.permute.xlu0 %2675
  %2677 = vrot.lane.b32.xlu0 %v2363, 64
  %v2678 = vpop.permute.xlu0 %2677
  %2679 = vrot.lane.b32.xlu0 %v2366, 64
  %v2680 = vpop.permute.xlu0 %2679
  %2681 = vrot.lane.b32.xlu0 %v2378, 64
  %v2682 = vpop.permute.xlu0 %2681
  %2683 = vrot.lane.b32.xlu0 %v2381, 64
  %v2684 = vpop.permute.xlu0 %2683
  %2685 = vrot.lane.b32.xlu0 %v2393, 64
  %v2686 = vpop.permute.xlu0 %2685
  %2687 = vrot.lane.b32.xlu0 %v2396, 64
  %v2688 = vpop.permute.xlu0 %2687
  %2689 = vrot.lane.b32.xlu0 %v2408, 64
  %v2690 = vpop.permute.xlu0 %2689
  %2691 = vrot.lane.b32.xlu0 %v2411, 64
  %v2692 = vpop.permute.xlu0 %2691
  %2693 = vrot.lane.b32.xlu0 %v2423, 64
  %v2694 = vpop.permute.xlu0 %2693
  %2695 = vrot.lane.b32.xlu0 %v2426, 64
  %v2696 = vpop.permute.xlu0 %2695
  %2697 = vrot.lane.b32.xlu0 %v2438, 64
  %v2698 = vpop.permute.xlu0 %2697
  %2699 = vrot.lane.b32.xlu0 %v2441, 64
  %v2700 = vpop.permute.xlu0 %2699
  %2701 = vrot.lane.b32.xlu0 %v2453, 64
  %v2702 = vpop.permute.xlu0 %2701
  %2703 = vrot.lane.b32.xlu0 %v2456, 64
  %v2704 = vpop.permute.xlu0 %2703
  %2705 = vrot.lane.b32.xlu0 %v2468, 64
  %v2706 = vpop.permute.xlu0 %2705
  %2707 = vrot.lane.b32.xlu0 %v2471, 64
  %v2708 = vpop.permute.xlu0 %2707
  %2709 = vrot.lane.b32.xlu0 %v2483, 64
  %v2710 = vpop.permute.xlu0 %2709
  %2711 = vrot.lane.b32.xlu0 %v2486, 64
  %v2712 = vpop.permute.xlu0 %2711
  %2713 = vrot.lane.b32.xlu0 %v2498, 64
  %v2714 = vpop.permute.xlu0 %2713
  %2715 = vrot.lane.b32.xlu0 %v2501, 64
  %v2716 = vpop.permute.xlu0 %2715
  %2717 = vrot.lane.b32.xlu0 %v2513, 64
  %v2718 = vpop.permute.xlu0 %2717
  %2719 = vrot.lane.b32.xlu0 %v2516, 64
  %v2720 = vpop.permute.xlu0 %2719
  %2721 = vrot.lane.b32.xlu0 %v2528, 64
  %v2722 = vpop.permute.xlu0 %2721
  %2723 = vrot.lane.b32.xlu0 %v2531, 64
  %v2724 = vpop.permute.xlu0 %2723
  %2725 = vrot.lane.b32.xlu0 %v2543, 64
  %v2726 = vpop.permute.xlu0 %2725
  %2727 = vrot.lane.b32.xlu0 %v2546, 64
  %v2728 = vpop.permute.xlu0 %2727
  %2729 = vrot.lane.b32.xlu0 %v2558, 64
  %v2730 = vpop.permute.xlu0 %2729
  %2731 = vrot.lane.b32.xlu0 %v2561, 64
  %v2732 = vpop.permute.xlu0 %2731
  %2733 = vrot.lane.b32.xlu0 %v2573, 64
  %v2734 = vpop.permute.xlu0 %2733
  %2735 = vrot.lane.b32.xlu0 %v2576, 64
  %v2736 = vpop.permute.xlu0 %2735
  %vm2737 = vcmask 523264
  %v2739 = vsel %vm2737, %v576, %v1378
  %v2742 = vsel %vm2737, %v577, %v1380
  %v2744 = vsel %vm2737, %v578, %v1382
  %v2747 = vsel %vm2737, %v579, %v1384
  %v2749 = vsel %vm2737, %v580, %v1386
  %v2752 = vsel %vm2737, %v581, %v1388
  %v2754 = vsel %vm2737, %v582, %v1390
  %v2757 = vsel %vm2737, %v583, %v1392
  %v2759 = vsel %vm2737, %v584, %v1394
  %v2762 = vsel %vm2737, %v585, %v1396
  %v2764 = vsel %vm2737, %v586, %v1398
  %v2767 = vsel %vm2737, %v587, %v1400
  %v2769 = vsel %vm2737, %v588, %v1402
  %v2772 = vsel %vm2737, %v589, %v1404
  %v2774 = vsel %vm2737, %v590, %v1406
  %v2777 = vsel %vm2737, %v591, %v1408
  %v2779 = vsel %vm2737, %v592, %v1410
  %v2782 = vsel %vm2737, %v593, %v1412
  %v2784 = vsel %vm2737, %v594, %v1414
  %v2787 = vsel %vm2737, %v595, %v1416
  %v2789 = vsel %vm2737, %v596, %v1418
  %v2792 = vsel %vm2737, %v597, %v1420
  %v2794 = vsel %vm2737, %v598, %v1422
  %v2797 = vsel %vm2737, %v599, %v1424
  %v2799 = vsel %vm2737, %v600, %v1426
  %v2802 = vsel %vm2737, %v601, %v1428
  %v2804 = vsel %vm2737, %v602, %v1430
  %v2807 = vsel %vm2737, %v603, %v1432
  %v2809 = vsel %vm2737, %v604, %v1434
  %v2812 = vsel %vm2737, %v605, %v1436
  %v2814 = vsel %vm2737, %v606, %v1438
  %v2817 = vsel %vm2737, %v607, %v1440
  %v2819 = vsel %vm2737, %v608, %v1442
  %v2822 = vsel %vm2737, %v609, %v1444
  %v2824 = vsel %vm2737, %v610, %v1446
  %v2827 = vsel %vm2737, %v611, %v1448
  %v2829 = vsel %vm2737, %v612, %v1450
  %v2832 = vsel %vm2737, %v613, %v1452
  %v2834 = vsel %vm2737, %v614, %v1454
  %v2837 = vsel %vm2737, %v615, %v1456
  %v2839 = vsel %vm2737, %v616, %v1458
  %v2842 = vsel %vm2737, %v617, %v1460
  %v2844 = vsel %vm2737, %v618, %v1462
  %v2847 = vsel %vm2737, %v619, %v1464
  %v2849 = vsel %vm2737, %v620, %v1466
  %v2852 = vsel %vm2737, %v621, %v1468
  %v2854 = vsel %vm2737, %v622, %v1470
  %v2857 = vsel %vm2737, %v623, %v1472
  %v2859 = vsel %vm2737, %v624, %v1474
  %v2862 = vsel %vm2737, %v625, %v1476
  %v2864 = vsel %vm2737, %v626, %v1478
  %v2867 = vsel %vm2737, %v627, %v1480
  %v2869 = vsel %vm2737, %v628, %v1482
  %v2872 = vsel %vm2737, %v629, %v1484
  %v2874 = vsel %vm2737, %v630, %v1486
  %v2877 = vsel %vm2737, %v631, %v1488
  %v2879 = vsel %vm2737, %v632, %v1490
  %v2882 = vsel %vm2737, %v633, %v1492
  %v2884 = vsel %vm2737, %v634, %v1494
  %v2887 = vsel %vm2737, %v635, %v1496
  %v2889 = vsel %vm2737, %v636, %v1498
  %v2892 = vsel %vm2737, %v637, %v1500
  %v2894 = vsel %vm2737, %v638, %v1502
  %v2897 = vsel %vm2737, %v639, %v1504
  %v2899 = vsel %vm2737, %v640, %v1506
  %v2902 = vsel %vm2737, %v641, %v1508
  %v2904 = vsel %vm2737, %v642, %v1510
  %v2907 = vsel %vm2737, %v643, %v1512
  %v2909 = vsel %vm2737, %v644, %v1514
  %v2912 = vsel %vm2737, %v645, %v1516
  %v2914 = vsel %vm2737, %v646, %v1518
  %v2917 = vsel %vm2737, %v647, %v1520
  %v2919 = vsel %vm2737, %v648, %v1522
  %v2922 = vsel %vm2737, %v649, %v1524
  %v2924 = vsel %vm2737, %v650, %v1526
  %v2927 = vsel %vm2737, %v651, %v1528
  %v2929 = vsel %vm2737, %v652, %v1530
  %v2932 = vsel %vm2737, %v653, %v1532
  %v2934 = vsel %vm2737, %v654, %v1534
  %v2937 = vsel %vm2737, %v655, %v1536
  %v2939 = vsel %vm2737, %v1777, %v2578
  %v2942 = vsel %vm2737, %v1778, %v2580
  %v2944 = vsel %vm2737, %v1779, %v2582
  %v2947 = vsel %vm2737, %v1780, %v2584
  %v2949 = vsel %vm2737, %v1781, %v2586
  %v2952 = vsel %vm2737, %v1782, %v2588
  %v2954 = vsel %vm2737, %v1783, %v2590
  %v2957 = vsel %vm2737, %v1784, %v2592
  %v2959 = vsel %vm2737, %v1785, %v2594
  %v2962 = vsel %vm2737, %v1786, %v2596
  %v2964 = vsel %vm2737, %v1787, %v2598
  %v2967 = vsel %vm2737, %v1788, %v2600
  %v2969 = vsel %vm2737, %v1789, %v2602
  %v2972 = vsel %vm2737, %v1790, %v2604
  %v2974 = vsel %vm2737, %v1791, %v2606
  %v2977 = vsel %vm2737, %v1792, %v2608
  %v2979 = vsel %vm2737, %v1793, %v2610
  %v2982 = vsel %vm2737, %v1794, %v2612
  %v2984 = vsel %vm2737, %v1795, %v2614
  %v2987 = vsel %vm2737, %v1796, %v2616
  %v2989 = vsel %vm2737, %v1797, %v2618
  %v2992 = vsel %vm2737, %v1798, %v2620
  %v2994 = vsel %vm2737, %v1799, %v2622
  %v2997 = vsel %vm2737, %v1800, %v2624
  %v2999 = vsel %vm2737, %v1801, %v2626
  %v3002 = vsel %vm2737, %v1802, %v2628
  %v3004 = vsel %vm2737, %v1803, %v2630
  %v3007 = vsel %vm2737, %v1804, %v2632
  %v3009 = vsel %vm2737, %v1805, %v2634
  %v3012 = vsel %vm2737, %v1806, %v2636
  %v3014 = vsel %vm2737, %v1807, %v2638
  %v3017 = vsel %vm2737, %v1808, %v2640
  %v3019 = vsel %vm2737, %v1809, %v2642
  %v3022 = vsel %vm2737, %v1810, %v2644
  %v3024 = vsel %vm2737, %v1811, %v2646
  %v3027 = vsel %vm2737, %v1812, %v2648
  %v3029 = vsel %vm2737, %v1813, %v2650
  %v3032 = vsel %vm2737, %v1814, %v2652
  %v3034 = vsel %vm2737, %v1815, %v2654
  %v3037 = vsel %vm2737, %v1816, %v2656
  %v3039 = vsel %vm2737, %v1817, %v2658
  %v3042 = vsel %vm2737, %v1818, %v2660
  %v3044 = vsel %vm2737, %v1819, %v2662
  %v3047 = vsel %vm2737, %v1820, %v2664
  %v3049 = vsel %vm2737, %v1821, %v2666
  %v3052 = vsel %vm2737, %v1822, %v2668
  %v3054 = vsel %vm2737, %v1823, %v2670
  %v3057 = vsel %vm2737, %v1824, %v2672
  %v3059 = vsel %vm2737, %v1825, %v2674
  %v3062 = vsel %vm2737, %v1826, %v2676
  %v3064 = vsel %vm2737, %v1827, %v2678
  %v3067 = vsel %vm2737, %v1828, %v2680
  %v3069 = vsel %vm2737, %v1829, %v2682
  %v3072 = vsel %vm2737, %v1830, %v2684
  %v3074 = vsel %vm2737, %v1831, %v2686
  %v3077 = vsel %vm2737, %v1832, %v2688
  %v3079 = vsel %vm2737, %v1833, %v2690
  %v3082 = vsel %vm2737, %v1834, %v2692
  %v3084 = vsel %vm2737, %v1835, %v2694
  %v3087 = vsel %vm2737, %v1836, %v2696
  %v3089 = vsel %vm2737, %v1837, %v2698
  %v3092 = vsel %vm2737, %v1838, %v2700
  %v3094 = vsel %vm2737, %v1839, %v2702
  %v3097 = vsel %vm2737, %v1840, %v2704
  %v3099 = vsel %vm2737, %v1841, %v2706
  %v3102 = vsel %vm2737, %v1842, %v2708
  %v3104 = vsel %vm2737, %v1843, %v2710
  %v3107 = vsel %vm2737, %v1844, %v2712
  %v3109 = vsel %vm2737, %v1845, %v2714
  %v3112 = vsel %vm2737, %v1846, %v2716
  %v3114 = vsel %vm2737, %v1847, %v2718
  %v3117 = vsel %vm2737, %v1848, %v2720
  %v3119 = vsel %vm2737, %v1849, %v2722
  %v3122 = vsel %vm2737, %v1850, %v2724
  %v3124 = vsel %vm2737, %v1851, %v2726
  %v3127 = vsel %vm2737, %v1852, %v2728
  %v3129 = vsel %vm2737, %v1853, %v2730
  %v3132 = vsel %vm2737, %v1854, %v2732
  %v3134 = vsel %vm2737, %v1855, %v2734
  %v3137 = vsel %vm2737, %v1856, %v2736
  %v3298 = vunpack.c.l.b16 %v2739
  %v3299 = vunpack.c.l.b16 %v2939
  %v3300 = vunpack.c.h.b16 %v2739
  %v3301 = vunpack.c.h.b16 %v2939
  %v3302 = vunpack.c.l.b16 %v2742
  %v3303 = vunpack.c.l.b16 %v2942
  %v3304 = vunpack.c.l.b16 %v2744
  %v3305 = vunpack.c.l.b16 %v2944
  %v3306 = vunpack.c.h.b16 %v2744
  %v3307 = vunpack.c.h.b16 %v2944
  %v3308 = vunpack.c.l.b16 %v2747
  %v3309 = vunpack.c.l.b16 %v2947
  %v3310 = vunpack.c.l.b16 %v2749
  %v3311 = vunpack.c.l.b16 %v2949
  %v3312 = vunpack.c.h.b16 %v2749
  %v3313 = vunpack.c.h.b16 %v2949
  %v3314 = vunpack.c.l.b16 %v2752
  %v3315 = vunpack.c.l.b16 %v2952
  %v3316 = vunpack.c.l.b16 %v2754
  %v3317 = vunpack.c.l.b16 %v2954
  %v3318 = vunpack.c.h.b16 %v2754
  %v3319 = vunpack.c.h.b16 %v2954
  %v3320 = vunpack.c.l.b16 %v2757
  %v3321 = vunpack.c.l.b16 %v2957
  %v3322 = vunpack.c.l.b16 %v2759
  %v3323 = vunpack.c.l.b16 %v2959
  %v3324 = vunpack.c.h.b16 %v2759
  %v3325 = vunpack.c.h.b16 %v2959
  %v3326 = vunpack.c.l.b16 %v2762
  %v3327 = vunpack.c.l.b16 %v2962
  %v3328 = vunpack.c.l.b16 %v2764
  %v3329 = vunpack.c.l.b16 %v2964
  %v3330 = vunpack.c.h.b16 %v2764
  %v3331 = vunpack.c.h.b16 %v2964
  %v3332 = vunpack.c.l.b16 %v2767
  %v3333 = vunpack.c.l.b16 %v2967
  %v3334 = vunpack.c.l.b16 %v2769
  %v3335 = vunpack.c.l.b16 %v2969
  %v3336 = vunpack.c.h.b16 %v2769
  %v3337 = vunpack.c.h.b16 %v2969
  %v3338 = vunpack.c.l.b16 %v2772
  %v3339 = vunpack.c.l.b16 %v2972
  %v3340 = vunpack.c.l.b16 %v2774
  %v3341 = vunpack.c.l.b16 %v2974
  %v3342 = vunpack.c.h.b16 %v2774
  %v3343 = vunpack.c.h.b16 %v2974
  %v3344 = vunpack.c.l.b16 %v2777
  %v3345 = vunpack.c.l.b16 %v2977
  %v3346 = vunpack.c.l.b16 %v2779
  %v3347 = vunpack.c.l.b16 %v2979
  %v3348 = vunpack.c.h.b16 %v2779
  %v3349 = vunpack.c.h.b16 %v2979
  %v3350 = vunpack.c.l.b16 %v2782
  %v3351 = vunpack.c.l.b16 %v2982
  %v3352 = vunpack.c.l.b16 %v2784
  %v3353 = vunpack.c.l.b16 %v2984
  %v3354 = vunpack.c.h.b16 %v2784
  %v3355 = vunpack.c.h.b16 %v2984
  %v3356 = vunpack.c.l.b16 %v2787
  %v3357 = vunpack.c.l.b16 %v2987
  %v3358 = vunpack.c.l.b16 %v2789
  %v3359 = vunpack.c.l.b16 %v2989
  %v3360 = vunpack.c.h.b16 %v2789
  %v3361 = vunpack.c.h.b16 %v2989
  %v3362 = vunpack.c.l.b16 %v2792
  %v3363 = vunpack.c.l.b16 %v2992
  %v3364 = vunpack.c.l.b16 %v2794
  %v3365 = vunpack.c.l.b16 %v2994
  %v3366 = vunpack.c.h.b16 %v2794
  %v3367 = vunpack.c.h.b16 %v2994
  %v3368 = vunpack.c.l.b16 %v2797
  %v3369 = vunpack.c.l.b16 %v2997
  %v3370 = vunpack.c.l.b16 %v2799
  %v3371 = vunpack.c.l.b16 %v2999
  %v3372 = vunpack.c.h.b16 %v2799
  %v3373 = vunpack.c.h.b16 %v2999
  %v3374 = vunpack.c.l.b16 %v2802
  %v3375 = vunpack.c.l.b16 %v3002
  %v3376 = vunpack.c.l.b16 %v2804
  %v3377 = vunpack.c.l.b16 %v3004
  %v3378 = vunpack.c.h.b16 %v2804
  %v3379 = vunpack.c.h.b16 %v3004
  %v3380 = vunpack.c.l.b16 %v2807
  %v3381 = vunpack.c.l.b16 %v3007
  %v3382 = vunpack.c.l.b16 %v2809
  %v3383 = vunpack.c.l.b16 %v3009
  %v3384 = vunpack.c.h.b16 %v2809
  %v3385 = vunpack.c.h.b16 %v3009
  %v3386 = vunpack.c.l.b16 %v2812
  %v3387 = vunpack.c.l.b16 %v3012
  %v3388 = vunpack.c.l.b16 %v2814
  %v3389 = vunpack.c.l.b16 %v3014
  %v3390 = vunpack.c.h.b16 %v2814
  %v3391 = vunpack.c.h.b16 %v3014
  %v3392 = vunpack.c.l.b16 %v2817
  %v3393 = vunpack.c.l.b16 %v3017
  %v3394 = vunpack.c.l.b16 %v2819
  %v3395 = vunpack.c.l.b16 %v3019
  %v3396 = vunpack.c.h.b16 %v2819
  %v3397 = vunpack.c.h.b16 %v3019
  %v3398 = vunpack.c.l.b16 %v2822
  %v3399 = vunpack.c.l.b16 %v3022
  %v3400 = vunpack.c.l.b16 %v2824
  %v3401 = vunpack.c.l.b16 %v3024
  %v3402 = vunpack.c.h.b16 %v2824
  %v3403 = vunpack.c.h.b16 %v3024
  %v3404 = vunpack.c.l.b16 %v2827
  %v3405 = vunpack.c.l.b16 %v3027
  %v3406 = vunpack.c.l.b16 %v2829
  %v3407 = vunpack.c.l.b16 %v3029
  %v3408 = vunpack.c.h.b16 %v2829
  %v3409 = vunpack.c.h.b16 %v3029
  %v3410 = vunpack.c.l.b16 %v2832
  %v3411 = vunpack.c.l.b16 %v3032
  %v3412 = vunpack.c.l.b16 %v2834
  %v3413 = vunpack.c.l.b16 %v3034
  %v3414 = vunpack.c.h.b16 %v2834
  %v3415 = vunpack.c.h.b16 %v3034
  %v3416 = vunpack.c.l.b16 %v2837
  %v3417 = vunpack.c.l.b16 %v3037
  %v3418 = vunpack.c.l.b16 %v2839
  %v3419 = vunpack.c.l.b16 %v3039
  %v3420 = vunpack.c.h.b16 %v2839
  %v3421 = vunpack.c.h.b16 %v3039
  %v3422 = vunpack.c.l.b16 %v2842
  %v3423 = vunpack.c.l.b16 %v3042
  %v3424 = vunpack.c.l.b16 %v2844
  %v3425 = vunpack.c.l.b16 %v3044
  %v3426 = vunpack.c.h.b16 %v2844
  %v3427 = vunpack.c.h.b16 %v3044
  %v3428 = vunpack.c.l.b16 %v2847
  %v3429 = vunpack.c.l.b16 %v3047
  %v3430 = vunpack.c.l.b16 %v2849
  %v3431 = vunpack.c.l.b16 %v3049
  %v3432 = vunpack.c.h.b16 %v2849
  %v3433 = vunpack.c.h.b16 %v3049
  %v3434 = vunpack.c.l.b16 %v2852
  %v3435 = vunpack.c.l.b16 %v3052
  %v3436 = vunpack.c.l.b16 %v2854
  %v3437 = vunpack.c.l.b16 %v3054
  %v3438 = vunpack.c.h.b16 %v2854
  %v3439 = vunpack.c.h.b16 %v3054
  %v3440 = vunpack.c.l.b16 %v2857
  %v3441 = vunpack.c.l.b16 %v3057
  %v3442 = vunpack.c.l.b16 %v2859
  %v3443 = vunpack.c.l.b16 %v3059
  %v3444 = vunpack.c.h.b16 %v2859
  %v3445 = vunpack.c.h.b16 %v3059
  %v3446 = vunpack.c.l.b16 %v2862
  %v3447 = vunpack.c.l.b16 %v3062
  %v3448 = vunpack.c.l.b16 %v2864
  %v3449 = vunpack.c.l.b16 %v3064
  %v3450 = vunpack.c.h.b16 %v2864
  %v3451 = vunpack.c.h.b16 %v3064
  %v3452 = vunpack.c.l.b16 %v2867
  %v3453 = vunpack.c.l.b16 %v3067
  %v3454 = vunpack.c.l.b16 %v2869
  %v3455 = vunpack.c.l.b16 %v3069
  %v3456 = vunpack.c.h.b16 %v2869
  %v3457 = vunpack.c.h.b16 %v3069
  %v3458 = vunpack.c.l.b16 %v2872
  %v3459 = vunpack.c.l.b16 %v3072
  %v3460 = vunpack.c.l.b16 %v2874
  %v3461 = vunpack.c.l.b16 %v3074
  %v3462 = vunpack.c.h.b16 %v2874
  %v3463 = vunpack.c.h.b16 %v3074
  %v3464 = vunpack.c.l.b16 %v2877
  %v3465 = vunpack.c.l.b16 %v3077
  %v3466 = vunpack.c.l.b16 %v2879
  %v3467 = vunpack.c.l.b16 %v3079
  %v3468 = vunpack.c.h.b16 %v2879
  %v3469 = vunpack.c.h.b16 %v3079
  %v3470 = vunpack.c.l.b16 %v2882
  %v3471 = vunpack.c.l.b16 %v3082
  %v3472 = vunpack.c.l.b16 %v2884
  %v3473 = vunpack.c.l.b16 %v3084
  %v3474 = vunpack.c.h.b16 %v2884
  %v3475 = vunpack.c.h.b16 %v3084
  %v3476 = vunpack.c.l.b16 %v2887
  %v3477 = vunpack.c.l.b16 %v3087
  %v3478 = vunpack.c.l.b16 %v2889
  %v3479 = vunpack.c.l.b16 %v3089
  %v3480 = vunpack.c.h.b16 %v2889
  %v3481 = vunpack.c.h.b16 %v3089
  %v3482 = vunpack.c.l.b16 %v2892
  %v3483 = vunpack.c.l.b16 %v3092
  %v3484 = vunpack.c.l.b16 %v2894
  %v3485 = vunpack.c.l.b16 %v3094
  %v3486 = vunpack.c.h.b16 %v2894
  %v3487 = vunpack.c.h.b16 %v3094
  %v3488 = vunpack.c.l.b16 %v2897
  %v3489 = vunpack.c.l.b16 %v3097
  %v3490 = vunpack.c.l.b16 %v2899
  %v3491 = vunpack.c.l.b16 %v3099
  %v3492 = vunpack.c.h.b16 %v2899
  %v3493 = vunpack.c.h.b16 %v3099
  %v3494 = vunpack.c.l.b16 %v2902
  %v3495 = vunpack.c.l.b16 %v3102
  %v3496 = vunpack.c.l.b16 %v2904
  %v3497 = vunpack.c.l.b16 %v3104
  %v3498 = vunpack.c.h.b16 %v2904
  %v3499 = vunpack.c.h.b16 %v3104
  %v3500 = vunpack.c.l.b16 %v2907
  %v3501 = vunpack.c.l.b16 %v3107
  %v3502 = vunpack.c.l.b16 %v2909
  %v3503 = vunpack.c.l.b16 %v3109
  %v3504 = vunpack.c.h.b16 %v2909
  %v3505 = vunpack.c.h.b16 %v3109
  %v3506 = vunpack.c.l.b16 %v2912
  %v3507 = vunpack.c.l.b16 %v3112
  %v3508 = vunpack.c.l.b16 %v2914
  %v3509 = vunpack.c.l.b16 %v3114
  %v3510 = vunpack.c.h.b16 %v2914
  %v3511 = vunpack.c.h.b16 %v3114
  %v3512 = vunpack.c.l.b16 %v2917
  %v3513 = vunpack.c.l.b16 %v3117
  %v3514 = vunpack.c.l.b16 %v2919
  %v3515 = vunpack.c.l.b16 %v3119
  %v3516 = vunpack.c.h.b16 %v2919
  %v3517 = vunpack.c.h.b16 %v3119
  %v3518 = vunpack.c.l.b16 %v2922
  %v3519 = vunpack.c.l.b16 %v3122
  %v3520 = vunpack.c.l.b16 %v2924
  %v3521 = vunpack.c.l.b16 %v3124
  %v3522 = vunpack.c.h.b16 %v2924
  %v3523 = vunpack.c.h.b16 %v3124
  %v3524 = vunpack.c.l.b16 %v2927
  %v3525 = vunpack.c.l.b16 %v3127
  %v3526 = vunpack.c.l.b16 %v2929
  %v3527 = vunpack.c.l.b16 %v3129
  %v3528 = vunpack.c.h.b16 %v2929
  %v3529 = vunpack.c.h.b16 %v3129
  %v3530 = vunpack.c.l.b16 %v2932
  %v3531 = vunpack.c.l.b16 %v3132
  %v3532 = vunpack.c.l.b16 %v2934
  %v3533 = vunpack.c.l.b16 %v3134
  %v3534 = vunpack.c.h.b16 %v2934
  %v3535 = vunpack.c.h.b16 %v3134
  %v3536 = vunpack.c.l.b16 %v2937
  %v3537 = vunpack.c.l.b16 %v3137
  %v3538 = vld [vmem:[%s1] sm:$0xf]
  %v3539 = vld [vmem:[%s1 + $0x4] sm:$0xf]
  %v3540 = vld [vmem:[%s1 + $0x8] sm:$0xf]
  %v3541 = vld [vmem:[%s1 + $0xc] sm:$0xf]
  %v3542 = vld [vmem:[%s1 + $0x10] sm:$0xf]
  %v3543 = vld [vmem:[%s1 + $0x14] sm:$0xf]
  %v3544 = vld [vmem:[%s1 + $0x18] sm:$0xf]
  %v3545 = vld [vmem:[%s1 + $0x1c] sm:$0xf]
  %v3546 = vld [vmem:[%s1 + $0x20] sm:$0xf]
  %v3547 = vld [vmem:[%s1 + $0x24] sm:$0xf]
  %v3548 = vld [vmem:[%s1 + $0x28] sm:$0xf]
  %v3549 = vld [vmem:[%s1 + $0x2c] sm:$0xf]
  %v3550 = vld [vmem:[%s1 + $0x30] sm:$0xf]
  %v3551 = vld [vmem:[%s1 + $0x34] sm:$0xf]
  %v3552 = vld [vmem:[%s1 + $0x38] sm:$0xf]
  %v3553 = vld [vmem:[%s1 + $0x3c] sm:$0xf]
  %v3554 = vld [vmem:[%s1 + $0x40] sm:$0xf]
  %v3555 = vld [vmem:[%s1 + $0x44] sm:$0xf]
  %v3556 = vld [vmem:[%s1 + $0x48] sm:$0xf]
  %v3557 = vld [vmem:[%s1 + $0x4c] sm:$0xf]
  %v3558 = vld [vmem:[%s1 + $0x50] sm:$0xf]
  %v3559 = vld [vmem:[%s1 + $0x54] sm:$0xf]
  %v3560 = vld [vmem:[%s1 + $0x58] sm:$0xf]
  %v3561 = vld [vmem:[%s1 + $0x5c] sm:$0xf]
  %v3562 = vld [vmem:[%s1 + $0x60] sm:$0xf]
  %v3563 = vld [vmem:[%s1 + $0x64] sm:$0xf]
  %v3564 = vld [vmem:[%s1 + $0x68] sm:$0xf]
  %v3565 = vld [vmem:[%s1 + $0x6c] sm:$0xf]
  %v3566 = vld [vmem:[%s1 + $0x70] sm:$0xf]
  %v3567 = vld [vmem:[%s1 + $0x74] sm:$0xf]
  %v3568 = vld [vmem:[%s1 + $0x78] sm:$0xf]
  %v3569 = vld [vmem:[%s1 + $0x7c] sm:$0xf]
  %v3570 = vld [vmem:[%s2] sm:$0x1]
  %v3572 = vlaneseq
  %v3573 = vshrl.u32 %v3572, 7
  %v3574 = vsub.s32 0, %v3573
  %v3575 = vrot.slane %v3570, %v3574
  %v3577 = vpack.c.b16 %v3300, %v3298
  %v3578 = vpack.c.b16 %v3301, %v3299
  %v3579 = vpack.c.b16 %v3304, %v3302
  %v3580 = vpack.c.b16 %v3305, %v3303
  %v3581 = vpack.c.b16 %v3308, %v3306
  %v3582 = vpack.c.b16 %v3309, %v3307
  %v3583 = vpack.c.b16 %v3312, %v3310
  %v3584 = vpack.c.b16 %v3313, %v3311
  %v3585 = vpack.c.b16 %v3316, %v3314
  %v3586 = vpack.c.b16 %v3317, %v3315
  %v3587 = vpack.c.b16 %v3320, %v3318
  %v3588 = vpack.c.b16 %v3321, %v3319
  %v3589 = vpack.c.b16 %v3324, %v3322
  %v3590 = vpack.c.b16 %v3325, %v3323
  %v3591 = vpack.c.b16 %v3328, %v3326
  %v3592 = vpack.c.b16 %v3329, %v3327
  %v3593 = vpack.c.b16 %v3332, %v3330
  %v3594 = vpack.c.b16 %v3333, %v3331
  %v3595 = vpack.c.b16 %v3336, %v3334
  %v3596 = vpack.c.b16 %v3337, %v3335
  %v3597 = vpack.c.b16 %v3340, %v3338
  %v3598 = vpack.c.b16 %v3341, %v3339
  %v3599 = vpack.c.b16 %v3344, %v3342
  %v3600 = vpack.c.b16 %v3345, %v3343
  %v3601 = vpack.c.b16 %v3348, %v3346
  %v3602 = vpack.c.b16 %v3349, %v3347
  %v3603 = vpack.c.b16 %v3352, %v3350
  %v3604 = vpack.c.b16 %v3353, %v3351
  %v3605 = vpack.c.b16 %v3356, %v3354
  %v3606 = vpack.c.b16 %v3357, %v3355
  %v3607 = vpack.c.b16 %v3360, %v3358
  %v3608 = vpack.c.b16 %v3361, %v3359
  %v3609 = vpack.c.b16 %v3364, %v3362
  %v3610 = vpack.c.b16 %v3365, %v3363
  %v3611 = vpack.c.b16 %v3368, %v3366
  %v3612 = vpack.c.b16 %v3369, %v3367
  %v3613 = vpack.c.b16 %v3372, %v3370
  %v3614 = vpack.c.b16 %v3373, %v3371
  %v3615 = vpack.c.b16 %v3376, %v3374
  %v3616 = vpack.c.b16 %v3377, %v3375
  %v3617 = vpack.c.b16 %v3380, %v3378
  %v3618 = vpack.c.b16 %v3381, %v3379
  %v3619 = vpack.c.b16 %v3384, %v3382
  %v3620 = vpack.c.b16 %v3385, %v3383
  %v3621 = vpack.c.b16 %v3388, %v3386
  %v3622 = vpack.c.b16 %v3389, %v3387
  %v3623 = vpack.c.b16 %v3392, %v3390
  %v3624 = vpack.c.b16 %v3393, %v3391
  %v3625 = vpack.c.b16 %v3396, %v3394
  %v3626 = vpack.c.b16 %v3397, %v3395
  %v3627 = vpack.c.b16 %v3400, %v3398
  %v3628 = vpack.c.b16 %v3401, %v3399
  %v3629 = vpack.c.b16 %v3404, %v3402
  %v3630 = vpack.c.b16 %v3405, %v3403
  %v3631 = vpack.c.b16 %v3408, %v3406
  %v3632 = vpack.c.b16 %v3409, %v3407
  %v3633 = vpack.c.b16 %v3412, %v3410
  %v3634 = vpack.c.b16 %v3413, %v3411
  %v3635 = vpack.c.b16 %v3416, %v3414
  %v3636 = vpack.c.b16 %v3417, %v3415
  %v3637 = vpack.c.b16 %v3420, %v3418
  %v3638 = vpack.c.b16 %v3421, %v3419
  %v3639 = vpack.c.b16 %v3424, %v3422
  %v3640 = vpack.c.b16 %v3425, %v3423
  %v3641 = vpack.c.b16 %v3428, %v3426
  %v3642 = vpack.c.b16 %v3429, %v3427
  %v3643 = vpack.c.b16 %v3432, %v3430
  %v3644 = vpack.c.b16 %v3433, %v3431
  %v3645 = vpack.c.b16 %v3436, %v3434
  %v3646 = vpack.c.b16 %v3437, %v3435
  %v3647 = vpack.c.b16 %v3440, %v3438
  %v3648 = vpack.c.b16 %v3441, %v3439
  %v3649 = vpack.c.b16 %v3444, %v3442
  %v3650 = vpack.c.b16 %v3445, %v3443
  %v3651 = vpack.c.b16 %v3448, %v3446
  %v3652 = vpack.c.b16 %v3449, %v3447
  %v3653 = vpack.c.b16 %v3452, %v3450
  %v3654 = vpack.c.b16 %v3453, %v3451
  %v3655 = vpack.c.b16 %v3456, %v3454
  %v3656 = vpack.c.b16 %v3457, %v3455
  %v3657 = vpack.c.b16 %v3460, %v3458
  %v3658 = vpack.c.b16 %v3461, %v3459
  %v3659 = vpack.c.b16 %v3464, %v3462
  %v3660 = vpack.c.b16 %v3465, %v3463
  %v3661 = vpack.c.b16 %v3468, %v3466
  %v3662 = vpack.c.b16 %v3469, %v3467
  %v3663 = vpack.c.b16 %v3472, %v3470
  %v3664 = vpack.c.b16 %v3473, %v3471
  %v3665 = vpack.c.b16 %v3476, %v3474
  %v3666 = vpack.c.b16 %v3477, %v3475
  %v3667 = vpack.c.b16 %v3480, %v3478
  %v3668 = vpack.c.b16 %v3481, %v3479
  %v3669 = vpack.c.b16 %v3484, %v3482
  %v3670 = vpack.c.b16 %v3485, %v3483
  %v3671 = vpack.c.b16 %v3488, %v3486
  %v3672 = vpack.c.b16 %v3489, %v3487
  %v3673 = vpack.c.b16 %v3492, %v3490
  %v3674 = vpack.c.b16 %v3493, %v3491
  %v3675 = vpack.c.b16 %v3496, %v3494
  %v3676 = vpack.c.b16 %v3497, %v3495
  %v3677 = vpack.c.b16 %v3500, %v3498
  %v3678 = vpack.c.b16 %v3501, %v3499
  %v3679 = vpack.c.b16 %v3504, %v3502
  %v3680 = vpack.c.b16 %v3505, %v3503
  %v3681 = vpack.c.b16 %v3508, %v3506
  %v3682 = vpack.c.b16 %v3509, %v3507
  %v3683 = vpack.c.b16 %v3512, %v3510
  %v3684 = vpack.c.b16 %v3513, %v3511
  %v3685 = vpack.c.b16 %v3516, %v3514
  %v3686 = vpack.c.b16 %v3517, %v3515
  %v3687 = vpack.c.b16 %v3520, %v3518
  %v3688 = vpack.c.b16 %v3521, %v3519
  %v3689 = vpack.c.b16 %v3524, %v3522
  %v3690 = vpack.c.b16 %v3525, %v3523
  %v3691 = vpack.c.b16 %v3528, %v3526
  %v3692 = vpack.c.b16 %v3529, %v3527
  %v3693 = vpack.c.b16 %v3532, %v3530
  %v3694 = vpack.c.b16 %v3533, %v3531
  %v3695 = vpack.c.b16 %v3536, %v3534
  %v3696 = vpack.c.b16 %v3537, %v3535
  %v3849 = vunpack.c.l.b16 %v3538
  %v3850 = vunpack.c.l.b16 %v3539
  %v3851 = vunpack.c.l.b16 %v3540
  %v3852 = vunpack.c.l.b16 %v3541
  %v3853 = vunpack.c.l.b16 %v3542
  %v3854 = vunpack.c.l.b16 %v3543
  %v3855 = vunpack.c.l.b16 %v3544
  %v3856 = vunpack.c.l.b16 %v3545
  %v3857 = vunpack.c.l.b16 %v3546
  %v3858 = vunpack.c.l.b16 %v3547
  %v3859 = vunpack.c.l.b16 %v3548
  %v3860 = vunpack.c.l.b16 %v3549
  %v3861 = vunpack.c.l.b16 %v3550
  %v3862 = vunpack.c.l.b16 %v3551
  %v3863 = vunpack.c.l.b16 %v3552
  %v3864 = vunpack.c.l.b16 %v3553
  %v3865 = vunpack.c.l.b16 %v3554
  %v3866 = vunpack.c.l.b16 %v3555
  %v3867 = vunpack.c.l.b16 %v3556
  %v3868 = vunpack.c.l.b16 %v3557
  %v3869 = vunpack.c.l.b16 %v3558
  %v3870 = vunpack.c.l.b16 %v3559
  %v3871 = vunpack.c.l.b16 %v3560
  %v3872 = vunpack.c.l.b16 %v3561
  %v3873 = vunpack.c.l.b16 %v3562
  %v3874 = vunpack.c.l.b16 %v3563
  %v3875 = vunpack.c.l.b16 %v3564
  %v3876 = vunpack.c.l.b16 %v3565
  %v3877 = vunpack.c.l.b16 %v3566
  %v3878 = vunpack.c.l.b16 %v3567
  %v3879 = vunpack.c.l.b16 %v3568
  %v3880 = vunpack.c.l.b16 %v3569
  %v3881 = vpack.c.b16 %v3850, %v3849
  %v3882 = vpack.c.b16 %v3852, %v3851
  %v3883 = vpack.c.b16 %v3854, %v3853
  %v3884 = vpack.c.b16 %v3856, %v3855
  %v3885 = vpack.c.b16 %v3858, %v3857
  %v3886 = vpack.c.b16 %v3860, %v3859
  %v3887 = vpack.c.b16 %v3862, %v3861
  %v3888 = vpack.c.b16 %v3864, %v3863
  %v3889 = vpack.c.b16 %v3866, %v3865
  %v3890 = vpack.c.b16 %v3868, %v3867
  %v3891 = vpack.c.b16 %v3870, %v3869
  %v3892 = vpack.c.b16 %v3872, %v3871
  %v3893 = vpack.c.b16 %v3874, %v3873
  %v3894 = vpack.c.b16 %v3876, %v3875
  %v3895 = vpack.c.b16 %v3878, %v3877
  %v3896 = vpack.c.b16 %v3880, %v3879
  %3913 = vmatprep.subr.bf16.mxu0 0
  %3914 = vmatpush1.bf16.msra.mxu0 %v3881
  %3915 = vmatprep.subr.bf16.mxu0 0
  %3916 = vmatpush1.bf16.msra.mxu0 %v3882
  %3917 = vmatprep.subr.bf16.mxu0 0
  %3918 = vmatpush1.bf16.msra.mxu0 %v3883
  %3919 = vmatprep.subr.bf16.mxu0 0
  %3920 = vmatpush1.bf16.msra.mxu0 %v3884
  %3921 = vmatprep.subr.bf16.mxu0 0
  %3922 = vmatpush1.bf16.msra.mxu0 %v3885
  %3923 = vmatprep.subr.bf16.mxu0 0
  %3924 = vmatpush1.bf16.msra.mxu0 %v3886
  %3925 = vmatprep.subr.bf16.mxu0 0
  %3926 = vmatpush1.bf16.msra.mxu0 %v3887
  %3927 = vmatprep.subr.bf16.mxu0 0
  %3928 = vmatpush1.bf16.msra.mxu0 %v3888
  %3929 = vmatprep.subr.bf16.mxu0 0
  %3930 = vmatpush1.bf16.msra.mxu0 %v3889
  %3931 = vmatprep.subr.bf16.mxu0 0
  %3932 = vmatpush1.bf16.msra.mxu0 %v3890
  %3933 = vmatprep.subr.bf16.mxu0 0
  %3934 = vmatpush1.bf16.msra.mxu0 %v3891
  %3935 = vmatprep.subr.bf16.mxu0 0
  %3936 = vmatpush1.bf16.msra.mxu0 %v3892
  %3937 = vmatprep.subr.bf16.mxu0 0
  %3938 = vmatpush1.bf16.msra.mxu0 %v3893
  %3939 = vmatprep.subr.bf16.mxu0 0
  %3940 = vmatpush1.bf16.msra.mxu0 %v3894
  %3941 = vmatprep.subr.bf16.mxu0 0
  %3942 = vmatpush1.bf16.msra.mxu0 %v3895
  %3943 = vmatprep.subr.bf16.mxu0 0
  %3944 = vmatpush1.bf16.msra.mxu0 %v3896
  %3945 = vmatprep.mubr.bf16.mxu0 %v3578
  %3946 = vmatmul.mubr.bf16.gmra.mrb[0].mxu0 %v3577
  %v3947 = vpop.f32.mrb[0].mxu0
  %v3948 = vadd.f32 %v3575, %v3947
  %v3949 = vpop.f32.mrb[0].mxu0
  %v3950 = vpop.f32.mrb[0].mxu0
  %v3951 = vadd.f32 %v3575, %v3950
  %v3952 = vpop.f32.mrb[0].mxu0
  %3953 = vmatprep.mubr.bf16.mxu0 %v3580
  %3954 = vmatmul.mubr.bf16.gmra.mrb[0].mxu0 %v3579
  %v3955 = vpop.f32.mrb[0].mxu0
  %v3956 = vadd.f32 %v3575, %v3955
  %v3957 = vpop.f32.mrb[0].mxu0
  %v3958 = vpop.f32.mrb[0].mxu0
  %v3959 = vadd.f32 %v3575, %v3958
  %v3960 = vpop.f32.mrb[0].mxu0
  %3961 = vmatprep.mubr.bf16.mxu0 %v3582
  %3962 = vmatmul.mubr.bf16.gmra.mrb[0].mxu0 %v3581
  %v3963 = vpop.f32.mrb[0].mxu0
  %v3964 = vadd.f32 %v3575, %v3963
  %v3965 = vpop.f32.mrb[0].mxu0
  %v3966 = vpop.f32.mrb[0].mxu0
  %v3967 = vadd.f32 %v3575, %v3966
  %v3968 = vpop.f32.mrb[0].mxu0
  %3969 = vmatprep.mubr.bf16.mxu0 %v3584
  %3970 = vmatmul.mubr.bf16.gmra.mrb[0].mxu0 %v3583
  %v3971 = vpop.f32.mrb[0].mxu0
  %v3972 = vadd.f32 %v3575, %v3971
  %v3973 = vpop.f32.mrb[0].mxu0
  %v3974 = vpop.f32.mrb[0].mxu0
  %v3975 = vadd.f32 %v3575, %v3974
  %v3976 = vpop.f32.mrb[0].mxu0
  %3977 = vmatprep.mubr.bf16.mxu0 %v3586
  %3978 = vmatmul.mubr.bf16.gmra.mrb[0].mxu0 %v3585
  %v3979 = vpop.f32.mrb[0].mxu0
  %v3980 = vadd.f32 %v3575, %v3979
  %v3981 = vpop.f32.mrb[0].mxu0
  %v3982 = vpop.f32.mrb[0].mxu0
  %v3983 = vadd.f32 %v3575, %v3982
  %v3984 = vpop.f32.mrb[0].mxu0
  %3985 = vmatprep.mubr.bf16.mxu0 %v3588
  %3986 = vmatmul.mubr.bf16.gmra.mrb[0].mxu0 %v3587
  %v3987 = vpop.f32.mrb[0].mxu0
  %v3988 = vadd.f32 %v3575, %v3987
  %v3989 = vpop.f32.mrb[0].mxu0
  %v3990 = vpop.f32.mrb[0].mxu0
  %v3991 = vadd.f32 %v3575, %v3990
  %v3992 = vpop.f32.mrb[0].mxu0
  %3993 = vmatprep.mubr.bf16.mxu0 %v3590
  %3994 = vmatmul.mubr.bf16.gmra.mrb[0].mxu0 %v3589
  %v3995 = vpop.f32.mrb[0].mxu0
  %v3996 = vadd.f32 %v3575, %v3995
  %v3997 = vpop.f32.mrb[0].mxu0
  %v3998 = vpop.f32.mrb[0].mxu0
  %v3999 = vadd.f32 %v3575, %v3998
  %v4000 = vpop.f32.mrb[0].mxu0
  %4001 = vmatprep.mubr.bf16.mxu0 %v3592
  %4002 = vmatmul.mubr.bf16.gmra.mrb[0].mxu0 %v3591
  %v4003 = vpop.f32.mrb[0].mxu0
  %v4004 = vadd.f32 %v3575, %v4003
  %v4005 = vpop.f32.mrb[0].mxu0
  %v4006 = vpop.f32.mrb[0].mxu0
  %v4007 = vadd.f32 %v3575, %v4006
  %v4008 = vpop.f32.mrb[0].mxu0
  %4009 = vmatprep.mubr.bf16.mxu0 %v3594
  %4010 = vmatmul.mubr.bf16.gmra.mrb[0].mxu0 %v3593
  %v4011 = vpop.f32.mrb[0].mxu0
  %v4012 = vadd.f32 %v3575, %v4011
  %v4013 = vpop.f32.mrb[0].mxu0
  %v4014 = vpop.f32.mrb[0].mxu0
  %v4015 = vadd.f32 %v3575, %v4014
  %v4016 = vpop.f32.mrb[0].mxu0
  %4017 = vmatprep.mubr.bf16.mxu0 %v3596
  %4018 = vmatmul.mubr.bf16.gmra.mrb[0].mxu0 %v3595
  %v4019 = vpop.f32.mrb[0].mxu0
  %v4020 = vadd.f32 %v3575, %v4019
  %v4021 = vpop.f32.mrb[0].mxu0
  %v4022 = vpop.f32.mrb[0].mxu0
  %v4023 = vadd.f32 %v3575, %v4022
  %v4024 = vpop.f32.mrb[0].mxu0
  %4025 = vmatprep.mubr.bf16.mxu0 %v3598
  %4026 = vmatmul.mubr.bf16.gmra.mrb[0].mxu0 %v3597
  %v4027 = vpop.f32.mrb[0].mxu0
  %v4028 = vadd.f32 %v3575, %v4027
  %v4029 = vpop.f32.mrb[0].mxu0
  %v4030 = vpop.f32.mrb[0].mxu0
  %v4031 = vadd.f32 %v3575, %v4030
  %v4032 = vpop.f32.mrb[0].mxu0
  %4033 = vmatprep.mubr.bf16.mxu0 %v3600
  %4034 = vmatmul.mubr.bf16.gmra.mrb[0].mxu0 %v3599
  %v4035 = vpop.f32.mrb[0].mxu0
  %v4036 = vadd.f32 %v3575, %v4035
  %v4037 = vpop.f32.mrb[0].mxu0
  %v4038 = vpop.f32.mrb[0].mxu0
  %v4039 = vadd.f32 %v3575, %v4038
  %v4040 = vpop.f32.mrb[0].mxu0
  %4041 = vmatprep.mubr.bf16.mxu0 %v3602
  %4042 = vmatmul.mubr.bf16.gmra.mrb[0].mxu0 %v3601
  %v4043 = vpop.f32.mrb[0].mxu0
  %v4044 = vadd.f32 %v3575, %v4043
  %v4045 = vpop.f32.mrb[0].mxu0
  %v4046 = vpop.f32.mrb[0].mxu0
  %v4047 = vadd.f32 %v3575, %v4046
  %v4048 = vpop.f32.mrb[0].mxu0
  %4049 = vmatprep.mubr.bf16.mxu0 %v3604
  %4050 = vmatmul.mubr.bf16.gmra.mrb[0].mxu0 %v3603
  %v4051 = vpop.f32.mrb[0].mxu0
  %v4052 = vadd.f32 %v3575, %v4051
  %v4053 = vpop.f32.mrb[0].mxu0
  %v4054 = vpop.f32.mrb[0].mxu0
  %v4055 = vadd.f32 %v3575, %v4054
  %v4056 = vpop.f32.mrb[0].mxu0
  %4057 = vmatprep.mubr.bf16.mxu0 %v3606
  %4058 = vmatmul.mubr.bf16.gmra.mrb[0].mxu0 %v3605
  %v4059 = vpop.f32.mrb[0].mxu0
  %v4060 = vadd.f32 %v3575, %v4059
  %v4061 = vpop.f32.mrb[0].mxu0
  %v4062 = vpop.f32.mrb[0].mxu0
  %v4063 = vadd.f32 %v3575, %v4062
  %v4064 = vpop.f32.mrb[0].mxu0
  %4065 = vmatprep.mubr.bf16.mxu0 %v3608
  %4066 = vmatmul.mubr.bf16.gmra.mrb[0].mxu0 %v3607
  %v4067 = vpop.f32.mrb[0].mxu0
  %v4068 = vadd.f32 %v3575, %v4067
  %v4069 = vpop.f32.mrb[0].mxu0
  %v4070 = vpop.f32.mrb[0].mxu0
  %v4071 = vadd.f32 %v3575, %v4070
  %v4072 = vpop.f32.mrb[0].mxu0
  %4073 = vmatprep.mubr.bf16.mxu0 %v3610
  %4074 = vmatmul.mubr.bf16.gmra.mrb[0].mxu0 %v3609
  %v4075 = vpop.f32.mrb[0].mxu0
  %v4076 = vadd.f32 %v3575, %v4075
  %v4077 = vpop.f32.mrb[0].mxu0
  %v4078 = vpop.f32.mrb[0].mxu0
  %v4079 = vadd.f32 %v3575, %v4078
  %v4080 = vpop.f32.mrb[0].mxu0
  %4081 = vmatprep.mubr.bf16.mxu0 %v3612
  %4082 = vmatmul.mubr.bf16.gmra.mrb[0].mxu0 %v3611
  %v4083 = vpop.f32.mrb[0].mxu0
  %v4084 = vadd.f32 %v3575, %v4083
  %v4085 = vpop.f32.mrb[0].mxu0
  %v4086 = vpop.f32.mrb[0].mxu0
  %v4087 = vadd.f32 %v3575, %v4086
  %v4088 = vpop.f32.mrb[0].mxu0
  %4089 = vmatprep.mubr.bf16.mxu0 %v3614
  %4090 = vmatmul.mubr.bf16.gmra.mrb[0].mxu0 %v3613
  %v4091 = vpop.f32.mrb[0].mxu0
  %v4092 = vadd.f32 %v3575, %v4091
  %v4093 = vpop.f32.mrb[0].mxu0
  %v4094 = vpop.f32.mrb[0].mxu0
  %v4095 = vadd.f32 %v3575, %v4094
  %v4096 = vpop.f32.mrb[0].mxu0
  %4097 = vmatprep.mubr.bf16.mxu0 %v3616
  %4098 = vmatmul.mubr.bf16.gmra.mrb[0].mxu0 %v3615
  %v4099 = vpop.f32.mrb[0].mxu0
  %v4100 = vadd.f32 %v3575, %v4099
  %v4101 = vpop.f32.mrb[0].mxu0
  %v4102 = vpop.f32.mrb[0].mxu0
  %v4103 = vadd.f32 %v3575, %v4102
  %v4104 = vpop.f32.mrb[0].mxu0
  %4105 = vmatprep.mubr.bf16.mxu0 %v3618
  %4106 = vmatmul.mubr.bf16.gmra.mrb[0].mxu0 %v3617
  %v4107 = vpop.f32.mrb[0].mxu0
  %v4108 = vadd.f32 %v3575, %v4107
  %v4109 = vpop.f32.mrb[0].mxu0
  %v4110 = vpop.f32.mrb[0].mxu0
  %v4111 = vadd.f32 %v3575, %v4110
  %v4112 = vpop.f32.mrb[0].mxu0
  %4113 = vmatprep.mubr.bf16.mxu0 %v3620
  %4114 = vmatmul.mubr.bf16.gmra.mrb[0].mxu0 %v3619
  %v4115 = vpop.f32.mrb[0].mxu0
  %v4116 = vadd.f32 %v3575, %v4115
  %v4117 = vpop.f32.mrb[0].mxu0
  %v4118 = vpop.f32.mrb[0].mxu0
  %v4119 = vadd.f32 %v3575, %v4118
  %v4120 = vpop.f32.mrb[0].mxu0
  %4121 = vmatprep.mubr.bf16.mxu0 %v3622
  %4122 = vmatmul.mubr.bf16.gmra.mrb[0].mxu0 %v3621
  %v4123 = vpop.f32.mrb[0].mxu0
  %v4124 = vadd.f32 %v3575, %v4123
  %v4125 = vpop.f32.mrb[0].mxu0
  %v4126 = vpop.f32.mrb[0].mxu0
  %v4127 = vadd.f32 %v3575, %v4126
  %v4128 = vpop.f32.mrb[0].mxu0
  %4129 = vmatprep.mubr.bf16.mxu0 %v3624
  %4130 = vmatmul.mubr.bf16.gmra.mrb[0].mxu0 %v3623
  %v4131 = vpop.f32.mrb[0].mxu0
  %v4132 = vadd.f32 %v3575, %v4131
  %v4133 = vpop.f32.mrb[0].mxu0
  %v4134 = vpop.f32.mrb[0].mxu0
  %v4135 = vadd.f32 %v3575, %v4134
  %v4136 = vpop.f32.mrb[0].mxu0
  %4137 = vmatprep.mubr.bf16.mxu0 %v3626
  %4138 = vmatmul.mubr.bf16.gmra.mrb[0].mxu0 %v3625
  %v4139 = vpop.f32.mrb[0].mxu0
  %v4140 = vadd.f32 %v3575, %v4139
  %v4141 = vpop.f32.mrb[0].mxu0
  %v4142 = vpop.f32.mrb[0].mxu0
  %v4143 = vadd.f32 %v3575, %v4142
  %v4144 = vpop.f32.mrb[0].mxu0
  %4145 = vmatprep.mubr.bf16.mxu0 %v3628
  %4146 = vmatmul.mubr.bf16.gmra.mrb[0].mxu0 %v3627
  %v4147 = vpop.f32.mrb[0].mxu0
  %v4148 = vadd.f32 %v3575, %v4147
  %v4149 = vpop.f32.mrb[0].mxu0
  %v4150 = vpop.f32.mrb[0].mxu0
  %v4151 = vadd.f32 %v3575, %v4150
  %v4152 = vpop.f32.mrb[0].mxu0
  %4153 = vmatprep.mubr.bf16.mxu0 %v3630
  %4154 = vmatmul.mubr.bf16.gmra.mrb[0].mxu0 %v3629
  %v4155 = vpop.f32.mrb[0].mxu0
  %v4156 = vadd.f32 %v3575, %v4155
  %v4157 = vpop.f32.mrb[0].mxu0
  %v4158 = vpop.f32.mrb[0].mxu0
  %v4159 = vadd.f32 %v3575, %v4158
  %v4160 = vpop.f32.mrb[0].mxu0
  %4161 = vmatprep.mubr.bf16.mxu0 %v3632
  %4162 = vmatmul.mubr.bf16.gmra.mrb[0].mxu0 %v3631
  %v4163 = vpop.f32.mrb[0].mxu0
  %v4164 = vadd.f32 %v3575, %v4163
  %v4165 = vpop.f32.mrb[0].mxu0
  %v4166 = vpop.f32.mrb[0].mxu0
  %v4167 = vadd.f32 %v3575, %v4166
  %v4168 = vpop.f32.mrb[0].mxu0
  %4169 = vmatprep.mubr.bf16.mxu0 %v3634
  %4170 = vmatmul.mubr.bf16.gmra.mrb[0].mxu0 %v3633
  %v4171 = vpop.f32.mrb[0].mxu0
  %v4172 = vadd.f32 %v3575, %v4171
  %v4173 = vpop.f32.mrb[0].mxu0
  %v4174 = vpop.f32.mrb[0].mxu0
  %v4175 = vadd.f32 %v3575, %v4174
  %v4176 = vpop.f32.mrb[0].mxu0
  %4177 = vmatprep.mubr.bf16.mxu0 %v3636
  %4178 = vmatmul.mubr.bf16.gmra.mrb[0].mxu0 %v3635
  %v4179 = vpop.f32.mrb[0].mxu0
  %v4180 = vadd.f32 %v3575, %v4179
  %v4181 = vpop.f32.mrb[0].mxu0
  %v4182 = vpop.f32.mrb[0].mxu0
  %v4183 = vadd.f32 %v3575, %v4182
  %v4184 = vpop.f32.mrb[0].mxu0
  %4185 = vmatprep.mubr.bf16.mxu0 %v3638
  %4186 = vmatmul.mubr.bf16.gmra.mrb[0].mxu0 %v3637
  %v4187 = vpop.f32.mrb[0].mxu0
  %v4188 = vadd.f32 %v3575, %v4187
  %v4189 = vpop.f32.mrb[0].mxu0
  %v4190 = vpop.f32.mrb[0].mxu0
  %v4191 = vadd.f32 %v3575, %v4190
  %v4192 = vpop.f32.mrb[0].mxu0
  %4193 = vmatprep.mubr.bf16.mxu0 %v3640
  %4194 = vmatmul.mubr.bf16.gmra.mrb[0].mxu0 %v3639
  %v4195 = vpop.f32.mrb[0].mxu0
  %v4196 = vadd.f32 %v3575, %v4195
  %v4197 = vpop.f32.mrb[0].mxu0
  %v4198 = vpop.f32.mrb[0].mxu0
  %v4199 = vadd.f32 %v3575, %v4198
  %v4200 = vpop.f32.mrb[0].mxu0
  %4201 = vmatprep.mubr.bf16.mxu0 %v3642
  %4202 = vmatmul.mubr.bf16.gmra.mrb[0].mxu0 %v3641
  %v4203 = vpop.f32.mrb[0].mxu0
  %v4204 = vadd.f32 %v3575, %v4203
  %v4205 = vpop.f32.mrb[0].mxu0
  %v4206 = vpop.f32.mrb[0].mxu0
  %v4207 = vadd.f32 %v3575, %v4206
  %v4208 = vpop.f32.mrb[0].mxu0
  %4209 = vmatprep.mubr.bf16.mxu0 %v3644
  %4210 = vmatmul.mubr.bf16.gmra.mrb[0].mxu0 %v3643
  %v4211 = vpop.f32.mrb[0].mxu0
  %v4212 = vadd.f32 %v3575, %v4211
  %v4213 = vpop.f32.mrb[0].mxu0
  %v4214 = vpop.f32.mrb[0].mxu0
  %v4215 = vadd.f32 %v3575, %v4214
  %v4216 = vpop.f32.mrb[0].mxu0
  %4217 = vmatprep.mubr.bf16.mxu0 %v3646
  %4218 = vmatmul.mubr.bf16.gmra.mrb[0].mxu0 %v3645
  %v4219 = vpop.f32.mrb[0].mxu0
  %v4220 = vadd.f32 %v3575, %v4219
  %v4221 = vpop.f32.mrb[0].mxu0
  %v4222 = vpop.f32.mrb[0].mxu0
  %v4223 = vadd.f32 %v3575, %v4222
  %v4224 = vpop.f32.mrb[0].mxu0
  %4225 = vmatprep.mubr.bf16.mxu0 %v3648
  %4226 = vmatmul.mubr.bf16.gmra.mrb[0].mxu0 %v3647
  %v4227 = vpop.f32.mrb[0].mxu0
  %v4228 = vadd.f32 %v3575, %v4227
  %v4229 = vpop.f32.mrb[0].mxu0
  %v4230 = vpop.f32.mrb[0].mxu0
  %v4231 = vadd.f32 %v3575, %v4230
  %v4232 = vpop.f32.mrb[0].mxu0
  %4233 = vmatprep.mubr.bf16.mxu0 %v3650
  %4234 = vmatmul.mubr.bf16.gmra.mrb[0].mxu0 %v3649
  %v4235 = vpop.f32.mrb[0].mxu0
  %v4236 = vadd.f32 %v3575, %v4235
  %v4237 = vpop.f32.mrb[0].mxu0
  %v4238 = vpop.f32.mrb[0].mxu0
  %v4239 = vadd.f32 %v3575, %v4238
  %v4240 = vpop.f32.mrb[0].mxu0
  %4241 = vmatprep.mubr.bf16.mxu0 %v3652
  %4242 = vmatmul.mubr.bf16.gmra.mrb[0].mxu0 %v3651
  %v4243 = vpop.f32.mrb[0].mxu0
  %v4244 = vadd.f32 %v3575, %v4243
  %v4245 = vpop.f32.mrb[0].mxu0
  %v4246 = vpop.f32.mrb[0].mxu0
  %v4247 = vadd.f32 %v3575, %v4246
  %v4248 = vpop.f32.mrb[0].mxu0
  %4249 = vmatprep.mubr.bf16.mxu0 %v3654
  %4250 = vmatmul.mubr.bf16.gmra.mrb[0].mxu0 %v3653
  %v4251 = vpop.f32.mrb[0].mxu0
  %v4252 = vadd.f32 %v3575, %v4251
  %v4253 = vpop.f32.mrb[0].mxu0
  %v4254 = vpop.f32.mrb[0].mxu0
  %v4255 = vadd.f32 %v3575, %v4254
  %v4256 = vpop.f32.mrb[0].mxu0
  %4257 = vmatprep.mubr.bf16.mxu0 %v3656
  %4258 = vmatmul.mubr.bf16.gmra.mrb[0].mxu0 %v3655
  %v4259 = vpop.f32.mrb[0].mxu0
  %v4260 = vadd.f32 %v3575, %v4259
  %v4261 = vpop.f32.mrb[0].mxu0
  %v4262 = vpop.f32.mrb[0].mxu0
  %v4263 = vadd.f32 %v3575, %v4262
  %v4264 = vpop.f32.mrb[0].mxu0
  %4265 = vmatprep.mubr.bf16.mxu0 %v3658
  %4266 = vmatmul.mubr.bf16.gmra.mrb[0].mxu0 %v3657
  %v4267 = vpop.f32.mrb[0].mxu0
  %v4268 = vadd.f32 %v3575, %v4267
  %v4269 = vpop.f32.mrb[0].mxu0
  %v4270 = vpop.f32.mrb[0].mxu0
  %v4271 = vadd.f32 %v3575, %v4270
  %v4272 = vpop.f32.mrb[0].mxu0
  %4273 = vmatprep.mubr.bf16.mxu0 %v3660
  %4274 = vmatmul.mubr.bf16.gmra.mrb[0].mxu0 %v3659
  %v4275 = vpop.f32.mrb[0].mxu0
  %v4276 = vadd.f32 %v3575, %v4275
  %v4277 = vpop.f32.mrb[0].mxu0
  %v4278 = vpop.f32.mrb[0].mxu0
  %v4279 = vadd.f32 %v3575, %v4278
  %v4280 = vpop.f32.mrb[0].mxu0
  %4281 = vmatprep.mubr.bf16.mxu0 %v3662
  %4282 = vmatmul.mubr.bf16.gmra.mrb[0].mxu0 %v3661
  %v4283 = vpop.f32.mrb[0].mxu0
  %v4284 = vadd.f32 %v3575, %v4283
  %v4285 = vpop.f32.mrb[0].mxu0
  %v4286 = vpop.f32.mrb[0].mxu0
  %v4287 = vadd.f32 %v3575, %v4286
  %v4288 = vpop.f32.mrb[0].mxu0
  %4289 = vmatprep.mubr.bf16.mxu0 %v3664
  %4290 = vmatmul.mubr.bf16.gmra.mrb[0].mxu0 %v3663
  %v4291 = vpop.f32.mrb[0].mxu0
  %v4292 = vadd.f32 %v3575, %v4291
  %v4293 = vpop.f32.mrb[0].mxu0
  %v4294 = vpop.f32.mrb[0].mxu0
  %v4295 = vadd.f32 %v3575, %v4294
  %v4296 = vpop.f32.mrb[0].mxu0
  %4297 = vmatprep.mubr.bf16.mxu0 %v3666
  %4298 = vmatmul.mubr.bf16.gmra.mrb[0].mxu0 %v3665
  %v4299 = vpop.f32.mrb[0].mxu0
  %v4300 = vadd.f32 %v3575, %v4299
  %v4301 = vpop.f32.mrb[0].mxu0
  %v4302 = vpop.f32.mrb[0].mxu0
  %v4303 = vadd.f32 %v3575, %v4302
  %v4304 = vpop.f32.mrb[0].mxu0
  %4305 = vmatprep.mubr.bf16.mxu0 %v3668
  %4306 = vmatmul.mubr.bf16.gmra.mrb[0].mxu0 %v3667
  %v4307 = vpop.f32.mrb[0].mxu0
  %v4308 = vadd.f32 %v3575, %v4307
  %v4309 = vpop.f32.mrb[0].mxu0
  %v4310 = vpop.f32.mrb[0].mxu0
  %v4311 = vadd.f32 %v3575, %v4310
  %v4312 = vpop.f32.mrb[0].mxu0
  %4313 = vmatprep.mubr.bf16.mxu0 %v3670
  %4314 = vmatmul.mubr.bf16.gmra.mrb[0].mxu0 %v3669
  %v4315 = vpop.f32.mrb[0].mxu0
  %v4316 = vadd.f32 %v3575, %v4315
  %v4317 = vpop.f32.mrb[0].mxu0
  %v4318 = vpop.f32.mrb[0].mxu0
  %v4319 = vadd.f32 %v3575, %v4318
  %v4320 = vpop.f32.mrb[0].mxu0
  %4321 = vmatprep.mubr.bf16.mxu0 %v3672
  %4322 = vmatmul.mubr.bf16.gmra.mrb[0].mxu0 %v3671
  %v4323 = vpop.f32.mrb[0].mxu0
  %v4324 = vadd.f32 %v3575, %v4323
  %v4325 = vpop.f32.mrb[0].mxu0
  %v4326 = vpop.f32.mrb[0].mxu0
  %v4327 = vadd.f32 %v3575, %v4326
  %v4328 = vpop.f32.mrb[0].mxu0
  %4329 = vmatprep.mubr.bf16.mxu0 %v3674
  %4330 = vmatmul.mubr.bf16.gmra.mrb[0].mxu0 %v3673
  %v4331 = vpop.f32.mrb[0].mxu0
  %v4332 = vadd.f32 %v3575, %v4331
  %v4333 = vpop.f32.mrb[0].mxu0
  %v4334 = vpop.f32.mrb[0].mxu0
  %v4335 = vadd.f32 %v3575, %v4334
  %v4336 = vpop.f32.mrb[0].mxu0
  %4337 = vmatprep.mubr.bf16.mxu0 %v3676
  %4338 = vmatmul.mubr.bf16.gmra.mrb[0].mxu0 %v3675
  %v4339 = vpop.f32.mrb[0].mxu0
  %v4340 = vadd.f32 %v3575, %v4339
  %v4341 = vpop.f32.mrb[0].mxu0
  %v4342 = vpop.f32.mrb[0].mxu0
  %v4343 = vadd.f32 %v3575, %v4342
  %v4344 = vpop.f32.mrb[0].mxu0
  %4345 = vmatprep.mubr.bf16.mxu0 %v3678
  %4346 = vmatmul.mubr.bf16.gmra.mrb[0].mxu0 %v3677
  %v4347 = vpop.f32.mrb[0].mxu0
  %v4348 = vadd.f32 %v3575, %v4347
  %v4349 = vpop.f32.mrb[0].mxu0
  %v4350 = vpop.f32.mrb[0].mxu0
  %v4351 = vadd.f32 %v3575, %v4350
  %v4352 = vpop.f32.mrb[0].mxu0
  %4353 = vmatprep.mubr.bf16.mxu0 %v3680
  %4354 = vmatmul.mubr.bf16.gmra.mrb[0].mxu0 %v3679
  %v4355 = vpop.f32.mrb[0].mxu0
  %v4356 = vadd.f32 %v3575, %v4355
  %v4357 = vpop.f32.mrb[0].mxu0
  %v4358 = vpop.f32.mrb[0].mxu0
  %v4359 = vadd.f32 %v3575, %v4358
  %v4360 = vpop.f32.mrb[0].mxu0
  %4361 = vmatprep.mubr.bf16.mxu0 %v3682
  %4362 = vmatmul.mubr.bf16.gmra.mrb[0].mxu0 %v3681
  %v4363 = vpop.f32.mrb[0].mxu0
  %v4364 = vadd.f32 %v3575, %v4363
  %v4365 = vpop.f32.mrb[0].mxu0
  %v4366 = vpop.f32.mrb[0].mxu0
  %v4367 = vadd.f32 %v3575, %v4366
  %v4368 = vpop.f32.mrb[0].mxu0
  %4369 = vmatprep.mubr.bf16.mxu0 %v3684
  %4370 = vmatmul.mubr.bf16.gmra.mrb[0].mxu0 %v3683
  %v4371 = vpop.f32.mrb[0].mxu0
  %v4372 = vadd.f32 %v3575, %v4371
  %v4373 = vpop.f32.mrb[0].mxu0
  %v4374 = vpop.f32.mrb[0].mxu0
  %v4375 = vadd.f32 %v3575, %v4374
  %v4376 = vpop.f32.mrb[0].mxu0
  %4377 = vmatprep.mubr.bf16.mxu0 %v3686
  %4378 = vmatmul.mubr.bf16.gmra.mrb[0].mxu0 %v3685
  %v4379 = vpop.f32.mrb[0].mxu0
  %v4380 = vadd.f32 %v3575, %v4379
  %v4381 = vpop.f32.mrb[0].mxu0
  %v4382 = vpop.f32.mrb[0].mxu0
  %v4383 = vadd.f32 %v3575, %v4382
  %v4384 = vpop.f32.mrb[0].mxu0
  %4385 = vmatprep.mubr.bf16.mxu0 %v3688
  %4386 = vmatmul.mubr.bf16.gmra.mrb[0].mxu0 %v3687
  %v4387 = vpop.f32.mrb[0].mxu0
  %v4388 = vadd.f32 %v3575, %v4387
  %v4389 = vpop.f32.mrb[0].mxu0
  %v4390 = vpop.f32.mrb[0].mxu0
  %v4391 = vadd.f32 %v3575, %v4390
  %v4392 = vpop.f32.mrb[0].mxu0
  %4393 = vmatprep.mubr.bf16.mxu0 %v3690
  %4394 = vmatmul.mubr.bf16.gmra.mrb[0].mxu0 %v3689
  %v4395 = vpop.f32.mrb[0].mxu0
  %v4396 = vadd.f32 %v3575, %v4395
  %v4397 = vpop.f32.mrb[0].mxu0
  %v4398 = vpop.f32.mrb[0].mxu0
  %v4399 = vadd.f32 %v3575, %v4398
  %v4400 = vpop.f32.mrb[0].mxu0
  %4401 = vmatprep.mubr.bf16.mxu0 %v3692
  %4402 = vmatmul.mubr.bf16.gmra.mrb[0].mxu0 %v3691
  %v4403 = vpop.f32.mrb[0].mxu0
  %v4404 = vadd.f32 %v3575, %v4403
  %v4405 = vpop.f32.mrb[0].mxu0
  %v4406 = vpop.f32.mrb[0].mxu0
  %v4407 = vadd.f32 %v3575, %v4406
  %v4408 = vpop.f32.mrb[0].mxu0
  %4409 = vmatprep.mubr.bf16.mxu0 %v3694
  %4410 = vmatmul.mubr.bf16.gmra.mrb[0].mxu0 %v3693
  %v4411 = vpop.f32.mrb[0].mxu0
  %v4412 = vadd.f32 %v3575, %v4411
  %v4413 = vpop.f32.mrb[0].mxu0
  %v4414 = vpop.f32.mrb[0].mxu0
  %v4415 = vadd.f32 %v3575, %v4414
  %v4416 = vpop.f32.mrb[0].mxu0
  %4417 = vmatprep.mubr.bf16.mxu0 %v3696
  %4418 = vmatmul.mubr.bf16.gmra.mrb[0].mxu0 %v3695
  %v4419 = vpop.f32.mrb[0].mxu0
  %v4420 = vadd.f32 %v3575, %v4419
  %v4421 = vpop.f32.mrb[0].mxu0
  %v4422 = vpop.f32.mrb[0].mxu0
  %v4423 = vadd.f32 %v3575, %v4422
  %v4424 = vpop.f32.mrb[0].mxu0
  %4425 = vdwg.mxu0
  %v4426 = vmax.f32 %v3948, 0.0
  %v4427 = vmax.f32 %v3951, 0.0
  %v4428 = vmax.f32 %v3956, 0.0
  %v4429 = vmax.f32 %v3959, 0.0
  %v4430 = vmax.f32 %v3964, 0.0
  %v4431 = vmax.f32 %v3967, 0.0
  %v4432 = vmax.f32 %v3972, 0.0
  %v4433 = vmax.f32 %v3975, 0.0
  %v4434 = vmax.f32 %v3980, 0.0
  %v4435 = vmax.f32 %v3983, 0.0
  %v4436 = vmax.f32 %v3988, 0.0
  %v4437 = vmax.f32 %v3991, 0.0
  %v4438 = vmax.f32 %v3996, 0.0
  %v4439 = vmax.f32 %v3999, 0.0
  %v4440 = vmax.f32 %v4004, 0.0
  %v4441 = vmax.f32 %v4007, 0.0
  %v4442 = vmax.f32 %v4012, 0.0
  %v4443 = vmax.f32 %v4015, 0.0
  %v4444 = vmax.f32 %v4020, 0.0
  %v4445 = vmax.f32 %v4023, 0.0
  %v4446 = vmax.f32 %v4028, 0.0
  %v4447 = vmax.f32 %v4031, 0.0
  %v4448 = vmax.f32 %v4036, 0.0
  %v4449 = vmax.f32 %v4039, 0.0
  %v4450 = vmax.f32 %v4044, 0.0
  %v4451 = vmax.f32 %v4047, 0.0
  %v4452 = vmax.f32 %v4052, 0.0
  %v4453 = vmax.f32 %v4055, 0.0
  %v4454 = vmax.f32 %v4060, 0.0
  %v4455 = vmax.f32 %v4063, 0.0
  %v4456 = vmax.f32 %v4068, 0.0
  %v4457 = vmax.f32 %v4071, 0.0
  %v4458 = vmax.f32 %v4076, 0.0
  %v4459 = vmax.f32 %v4079, 0.0
  %v4460 = vmax.f32 %v4084, 0.0
  %v4461 = vmax.f32 %v4087, 0.0
  %v4462 = vmax.f32 %v4092, 0.0
  %v4463 = vmax.f32 %v4095, 0.0
  %v4464 = vmax.f32 %v4100, 0.0
  %v4465 = vmax.f32 %v4103, 0.0
  %v4466 = vmax.f32 %v4108, 0.0
  %v4467 = vmax.f32 %v4111, 0.0
  %v4468 = vmax.f32 %v4116, 0.0
  %v4469 = vmax.f32 %v4119, 0.0
  %v4470 = vmax.f32 %v4124, 0.0
  %v4471 = vmax.f32 %v4127, 0.0
  %v4472 = vmax.f32 %v4132, 0.0
  %v4473 = vmax.f32 %v4135, 0.0
  %v4474 = vmax.f32 %v4140, 0.0
  %v4475 = vmax.f32 %v4143, 0.0
  %v4476 = vmax.f32 %v4148, 0.0
  %v4477 = vmax.f32 %v4151, 0.0
  %v4478 = vmax.f32 %v4156, 0.0
  %v4479 = vmax.f32 %v4159, 0.0
  %v4480 = vmax.f32 %v4164, 0.0
  %v4481 = vmax.f32 %v4167, 0.0
  %v4482 = vmax.f32 %v4172, 0.0
  %v4483 = vmax.f32 %v4175, 0.0
  %v4484 = vmax.f32 %v4180, 0.0
  %v4485 = vmax.f32 %v4183, 0.0
  %v4486 = vmax.f32 %v4188, 0.0
  %v4487 = vmax.f32 %v4191, 0.0
  %v4488 = vmax.f32 %v4196, 0.0
  %v4489 = vmax.f32 %v4199, 0.0
  %v4490 = vmax.f32 %v4204, 0.0
  %v4491 = vmax.f32 %v4207, 0.0
  %v4492 = vmax.f32 %v4212, 0.0
  %v4493 = vmax.f32 %v4215, 0.0
  %v4494 = vmax.f32 %v4220, 0.0
  %v4495 = vmax.f32 %v4223, 0.0
  %v4496 = vmax.f32 %v4228, 0.0
  %v4497 = vmax.f32 %v4231, 0.0
  %v4498 = vmax.f32 %v4236, 0.0
  %v4499 = vmax.f32 %v4239, 0.0
  %v4500 = vmax.f32 %v4244, 0.0
  %v4501 = vmax.f32 %v4247, 0.0
  %v4502 = vmax.f32 %v4252, 0.0
  %v4503 = vmax.f32 %v4255, 0.0
  %v4504 = vmax.f32 %v4260, 0.0
  %v4505 = vmax.f32 %v4263, 0.0
  %v4506 = vmax.f32 %v4268, 0.0
  %v4507 = vmax.f32 %v4271, 0.0
  %v4508 = vmax.f32 %v4276, 0.0
  %v4509 = vmax.f32 %v4279, 0.0
  %v4510 = vmax.f32 %v4284, 0.0
  %v4511 = vmax.f32 %v4287, 0.0
  %v4512 = vmax.f32 %v4292, 0.0
  %v4513 = vmax.f32 %v4295, 0.0
  %v4514 = vmax.f32 %v4300, 0.0
  %v4515 = vmax.f32 %v4303, 0.0
  %v4516 = vmax.f32 %v4308, 0.0
  %v4517 = vmax.f32 %v4311, 0.0
  %v4518 = vmax.f32 %v4316, 0.0
  %v4519 = vmax.f32 %v4319, 0.0
  %v4520 = vmax.f32 %v4324, 0.0
  %v4521 = vmax.f32 %v4327, 0.0
  %v4522 = vmax.f32 %v4332, 0.0
  %v4523 = vmax.f32 %v4335, 0.0
  %v4524 = vmax.f32 %v4340, 0.0
  %v4525 = vmax.f32 %v4343, 0.0
  %v4526 = vmax.f32 %v4348, 0.0
  %v4527 = vmax.f32 %v4351, 0.0
  %v4528 = vmax.f32 %v4356, 0.0
  %v4529 = vmax.f32 %v4359, 0.0
  %v4530 = vmax.f32 %v4364, 0.0
  %v4531 = vmax.f32 %v4367, 0.0
  %v4532 = vmax.f32 %v4372, 0.0
  %v4533 = vmax.f32 %v4375, 0.0
  %v4534 = vmax.f32 %v4380, 0.0
  %v4535 = vmax.f32 %v4383, 0.0
  %v4536 = vmax.f32 %v4388, 0.0
  %v4537 = vmax.f32 %v4391, 0.0
  %v4538 = vmax.f32 %v4396, 0.0
  %v4539 = vmax.f32 %v4399, 0.0
  %v4540 = vmax.f32 %v4404, 0.0
  %v4541 = vmax.f32 %v4407, 0.0
  %v4542 = vmax.f32 %v4412, 0.0
  %v4543 = vmax.f32 %v4415, 0.0
  %v4544 = vmax.f32 %v4420, 0.0
  %v4545 = vmax.f32 %v4423, 0.0
  %v4546 = vpack.c.bf16 %v4427, %v4426
  %v4547 = vpack.c.bf16 %v4428, %v4428
  %v4548 = vpack.c.bf16 %v4430, %v4429
  %v4549 = vpack.c.bf16 %v4431, %v4431
  %v4550 = vpack.c.bf16 %v4433, %v4432
  %v4551 = vpack.c.bf16 %v4434, %v4434
  %v4552 = vpack.c.bf16 %v4436, %v4435
  %v4553 = vpack.c.bf16 %v4437, %v4437
  %v4554 = vpack.c.bf16 %v4439, %v4438
  %v4555 = vpack.c.bf16 %v4440, %v4440
  %v4556 = vpack.c.bf16 %v4442, %v4441
  %v4557 = vpack.c.bf16 %v4443, %v4443
  %v4558 = vpack.c.bf16 %v4445, %v4444
  %v4559 = vpack.c.bf16 %v4446, %v4446
  %v4560 = vpack.c.bf16 %v4448, %v4447
  %v4561 = vpack.c.bf16 %v4449, %v4449
  %v4562 = vpack.c.bf16 %v4451, %v4450
  %v4563 = vpack.c.bf16 %v4452, %v4452
  %v4564 = vpack.c.bf16 %v4454, %v4453
  %v4565 = vpack.c.bf16 %v4455, %v4455
  %v4566 = vpack.c.bf16 %v4457, %v4456
  %v4567 = vpack.c.bf16 %v4458, %v4458
  %v4568 = vpack.c.bf16 %v4460, %v4459
  %v4569 = vpack.c.bf16 %v4461, %v4461
  %v4570 = vpack.c.bf16 %v4463, %v4462
  %v4571 = vpack.c.bf16 %v4464, %v4464
  %v4572 = vpack.c.bf16 %v4466, %v4465
  %v4573 = vpack.c.bf16 %v4467, %v4467
  %v4574 = vpack.c.bf16 %v4469, %v4468
  %v4575 = vpack.c.bf16 %v4470, %v4470
  %v4576 = vpack.c.bf16 %v4472, %v4471
  %v4577 = vpack.c.bf16 %v4473, %v4473
  %v4578 = vpack.c.bf16 %v4475, %v4474
  %v4579 = vpack.c.bf16 %v4476, %v4476
  %v4580 = vpack.c.bf16 %v4478, %v4477
  %v4581 = vpack.c.bf16 %v4479, %v4479
  %v4582 = vpack.c.bf16 %v4481, %v4480
  %v4583 = vpack.c.bf16 %v4482, %v4482
  %v4584 = vpack.c.bf16 %v4484, %v4483
  %v4585 = vpack.c.bf16 %v4485, %v4485
  %v4586 = vpack.c.bf16 %v4487, %v4486
  %v4587 = vpack.c.bf16 %v4488, %v4488
  %v4588 = vpack.c.bf16 %v4490, %v4489
  %v4589 = vpack.c.bf16 %v4491, %v4491
  %v4590 = vpack.c.bf16 %v4493, %v4492
  %v4591 = vpack.c.bf16 %v4494, %v4494
  %v4592 = vpack.c.bf16 %v4496, %v4495
  %v4593 = vpack.c.bf16 %v4497, %v4497
  %v4594 = vpack.c.bf16 %v4499, %v4498
  %v4595 = vpack.c.bf16 %v4500, %v4500
  %v4596 = vpack.c.bf16 %v4502, %v4501
  %v4597 = vpack.c.bf16 %v4503, %v4503
  %v4598 = vpack.c.bf16 %v4505, %v4504
  %v4599 = vpack.c.bf16 %v4506, %v4506
  %v4600 = vpack.c.bf16 %v4508, %v4507
  %v4601 = vpack.c.bf16 %v4509, %v4509
  %v4602 = vpack.c.bf16 %v4511, %v4510
  %v4603 = vpack.c.bf16 %v4512, %v4512
  %v4604 = vpack.c.bf16 %v4514, %v4513
  %v4605 = vpack.c.bf16 %v4515, %v4515
  %v4606 = vpack.c.bf16 %v4517, %v4516
  %v4607 = vpack.c.bf16 %v4518, %v4518
  %v4608 = vpack.c.bf16 %v4520, %v4519
  %v4609 = vpack.c.bf16 %v4521, %v4521
  %v4610 = vpack.c.bf16 %v4523, %v4522
  %v4611 = vpack.c.bf16 %v4524, %v4524
  %v4612 = vpack.c.bf16 %v4526, %v4525
  %v4613 = vpack.c.bf16 %v4527, %v4527
  %v4614 = vpack.c.bf16 %v4529, %v4528
  %v4615 = vpack.c.bf16 %v4530, %v4530
  %v4616 = vpack.c.bf16 %v4532, %v4531
  %v4617 = vpack.c.bf16 %v4533, %v4533
  %v4618 = vpack.c.bf16 %v4535, %v4534
  %v4619 = vpack.c.bf16 %v4536, %v4536
  %v4620 = vpack.c.bf16 %v4538, %v4537
  %v4621 = vpack.c.bf16 %v4539, %v4539
  %v4622 = vpack.c.bf16 %v4541, %v4540
  %v4623 = vpack.c.bf16 %v4542, %v4542
  %v4624 = vpack.c.bf16 %v4544, %v4543
  %v4625 = vpack.c.bf16 %v4545, %v4545
  %v4706 = vunpack.c.l.b16 %v4546
  %v4707 = vunpack.c.h.b16 %v4546
  %v4708 = vunpack.c.l.b16 %v4547
  %v4709 = vunpack.c.l.b16 %v4548
  %v4710 = vunpack.c.h.b16 %v4548
  %v4711 = vunpack.c.l.b16 %v4549
  %v4712 = vunpack.c.l.b16 %v4550
  %v4713 = vunpack.c.h.b16 %v4550
  %v4714 = vunpack.c.l.b16 %v4551
  %v4715 = vunpack.c.l.b16 %v4552
  %v4716 = vunpack.c.h.b16 %v4552
  %v4717 = vunpack.c.l.b16 %v4553
  %v4718 = vunpack.c.l.b16 %v4554
  %v4719 = vunpack.c.h.b16 %v4554
  %v4720 = vunpack.c.l.b16 %v4555
  %v4721 = vunpack.c.l.b16 %v4556
  %v4722 = vunpack.c.h.b16 %v4556
  %v4723 = vunpack.c.l.b16 %v4557
  %v4724 = vunpack.c.l.b16 %v4558
  %v4725 = vunpack.c.h.b16 %v4558
  %v4726 = vunpack.c.l.b16 %v4559
  %v4727 = vunpack.c.l.b16 %v4560
  %v4728 = vunpack.c.h.b16 %v4560
  %v4729 = vunpack.c.l.b16 %v4561
  %v4730 = vunpack.c.l.b16 %v4562
  %v4731 = vunpack.c.h.b16 %v4562
  %v4732 = vunpack.c.l.b16 %v4563
  %v4733 = vunpack.c.l.b16 %v4564
  %v4734 = vunpack.c.h.b16 %v4564
  %v4735 = vunpack.c.l.b16 %v4565
  %v4736 = vunpack.c.l.b16 %v4566
  %v4737 = vunpack.c.h.b16 %v4566
  %v4738 = vunpack.c.l.b16 %v4567
  %v4739 = vunpack.c.l.b16 %v4568
  %v4740 = vunpack.c.h.b16 %v4568
  %v4741 = vunpack.c.l.b16 %v4569
  %v4742 = vunpack.c.l.b16 %v4570
  %v4743 = vunpack.c.h.b16 %v4570
  %v4744 = vunpack.c.l.b16 %v4571
  %v4745 = vunpack.c.l.b16 %v4572
  %v4746 = vunpack.c.h.b16 %v4572
  %v4747 = vunpack.c.l.b16 %v4573
  %v4748 = vunpack.c.l.b16 %v4574
  %v4749 = vunpack.c.h.b16 %v4574
  %v4750 = vunpack.c.l.b16 %v4575
  %v4751 = vunpack.c.l.b16 %v4576
  %v4752 = vunpack.c.h.b16 %v4576
  %v4753 = vunpack.c.l.b16 %v4577
  %v4754 = vunpack.c.l.b16 %v4578
  %v4755 = vunpack.c.h.b16 %v4578
  %v4756 = vunpack.c.l.b16 %v4579
  %v4757 = vunpack.c.l.b16 %v4580
  %v4758 = vunpack.c.h.b16 %v4580
  %v4759 = vunpack.c.l.b16 %v4581
  %v4760 = vunpack.c.l.b16 %v4582
  %v4761 = vunpack.c.h.b16 %v4582
  %v4762 = vunpack.c.l.b16 %v4583
  %v4763 = vunpack.c.l.b16 %v4584
  %v4764 = vunpack.c.h.b16 %v4584
  %v4765 = vunpack.c.l.b16 %v4585
  %v4766 = vunpack.c.l.b16 %v4586
  %v4767 = vunpack.c.h.b16 %v4586
  %v4768 = vunpack.c.l.b16 %v4587
  %v4769 = vunpack.c.l.b16 %v4588
  %v4770 = vunpack.c.h.b16 %v4588
  %v4771 = vunpack.c.l.b16 %v4589
  %v4772 = vunpack.c.l.b16 %v4590
  %v4773 = vunpack.c.h.b16 %v4590
  %v4774 = vunpack.c.l.b16 %v4591
  %v4775 = vunpack.c.l.b16 %v4592
  %v4776 = vunpack.c.h.b16 %v4592
  %v4777 = vunpack.c.l.b16 %v4593
  %v4778 = vunpack.c.l.b16 %v4594
  %v4779 = vunpack.c.h.b16 %v4594
  %v4780 = vunpack.c.l.b16 %v4595
  %v4781 = vunpack.c.l.b16 %v4596
  %v4782 = vunpack.c.h.b16 %v4596
  %v4783 = vunpack.c.l.b16 %v4597
  %v4784 = vunpack.c.l.b16 %v4598
  %v4785 = vunpack.c.h.b16 %v4598
  %v4786 = vunpack.c.l.b16 %v4599
  %v4787 = vunpack.c.l.b16 %v4600
  %v4788 = vunpack.c.h.b16 %v4600
  %v4789 = vunpack.c.l.b16 %v4601
  %v4790 = vunpack.c.l.b16 %v4602
  %v4791 = vunpack.c.h.b16 %v4602
  %v4792 = vunpack.c.l.b16 %v4603
  %v4793 = vunpack.c.l.b16 %v4604
  %v4794 = vunpack.c.h.b16 %v4604
  %v4795 = vunpack.c.l.b16 %v4605
  %v4796 = vunpack.c.l.b16 %v4606
  %v4797 = vunpack.c.h.b16 %v4606
  %v4798 = vunpack.c.l.b16 %v4607
  %v4799 = vunpack.c.l.b16 %v4608
  %v4800 = vunpack.c.h.b16 %v4608
  %v4801 = vunpack.c.l.b16 %v4609
  %v4802 = vunpack.c.l.b16 %v4610
  %v4803 = vunpack.c.h.b16 %v4610
  %v4804 = vunpack.c.l.b16 %v4611
  %v4805 = vunpack.c.l.b16 %v4612
  %v4806 = vunpack.c.h.b16 %v4612
  %v4807 = vunpack.c.l.b16 %v4613
  %v4808 = vunpack.c.l.b16 %v4614
  %v4809 = vunpack.c.h.b16 %v4614
  %v4810 = vunpack.c.l.b16 %v4615
  %v4811 = vunpack.c.l.b16 %v4616
  %v4812 = vunpack.c.h.b16 %v4616
  %v4813 = vunpack.c.l.b16 %v4617
  %v4814 = vunpack.c.l.b16 %v4618
  %v4815 = vunpack.c.h.b16 %v4618
  %v4816 = vunpack.c.l.b16 %v4619
  %v4817 = vunpack.c.l.b16 %v4620
  %v4818 = vunpack.c.h.b16 %v4620
  %v4819 = vunpack.c.l.b16 %v4621
  %v4820 = vunpack.c.l.b16 %v4622
  %v4821 = vunpack.c.h.b16 %v4622
  %v4822 = vunpack.c.l.b16 %v4623
  %v4823 = vunpack.c.l.b16 %v4624
  %v4824 = vunpack.c.h.b16 %v4624
  %v4825 = vunpack.c.l.b16 %v4625
  %v4826 = vpack.c.b16 %v4706, %v4706
  %v4827 = vpack.c.b16 %v4707, %v4707
  %v4828 = vpack.c.b16 %v4708, %v4708
  %v4829 = vpack.c.b16 %v4709, %v4709
  %v4830 = vpack.c.b16 %v4710, %v4710
  %v4831 = vpack.c.b16 %v4711, %v4711
  %v4832 = vpack.c.b16 %v4712, %v4712
  %v4833 = vpack.c.b16 %v4713, %v4713
  %v4834 = vpack.c.b16 %v4714, %v4714
  %v4835 = vpack.c.b16 %v4715, %v4715
  %v4836 = vpack.c.b16 %v4716, %v4716
  %v4837 = vpack.c.b16 %v4717, %v4717
  %v4838 = vpack.c.b16 %v4718, %v4718
  %v4839 = vpack.c.b16 %v4719, %v4719
  %v4840 = vpack.c.b16 %v4720, %v4720
  %v4841 = vpack.c.b16 %v4721, %v4721
  %v4842 = vpack.c.b16 %v4722, %v4722
  %v4843 = vpack.c.b16 %v4723, %v4723
  %v4844 = vpack.c.b16 %v4724, %v4724
  %v4845 = vpack.c.b16 %v4725, %v4725
  %v4846 = vpack.c.b16 %v4726, %v4726
  %v4847 = vpack.c.b16 %v4727, %v4727
  %v4848 = vpack.c.b16 %v4728, %v4728
  %v4849 = vpack.c.b16 %v4729, %v4729
  %v4850 = vpack.c.b16 %v4730, %v4730
  %v4851 = vpack.c.b16 %v4731, %v4731
  %v4852 = vpack.c.b16 %v4732, %v4732
  %v4853 = vpack.c.b16 %v4733, %v4733
  %v4854 = vpack.c.b16 %v4734, %v4734
  %v4855 = vpack.c.b16 %v4735, %v4735
  %v4856 = vpack.c.b16 %v4736, %v4736
  %v4857 = vpack.c.b16 %v4737, %v4737
  %v4858 = vpack.c.b16 %v4738, %v4738
  %v4859 = vpack.c.b16 %v4739, %v4739
  %v4860 = vpack.c.b16 %v4740, %v4740
  %v4861 = vpack.c.b16 %v4741, %v4741
  %v4862 = vpack.c.b16 %v4742, %v4742
  %v4863 = vpack.c.b16 %v4743, %v4743
  %v4864 = vpack.c.b16 %v4744, %v4744
  %v4865 = vpack.c.b16 %v4745, %v4745
  %v4866 = vpack.c.b16 %v4746, %v4746
  %v4867 = vpack.c.b16 %v4747, %v4747
  %v4868 = vpack.c.b16 %v4748, %v4748
  %v4869 = vpack.c.b16 %v4749, %v4749
  %v4870 = vpack.c.b16 %v4750, %v4750
  %v4871 = vpack.c.b16 %v4751, %v4751
  %v4872 = vpack.c.b16 %v4752, %v4752
  %v4873 = vpack.c.b16 %v4753, %v4753
  %v4874 = vpack.c.b16 %v4754, %v4754
  %v4875 = vpack.c.b16 %v4755, %v4755
  %v4876 = vpack.c.b16 %v4756, %v4756
  %v4877 = vpack.c.b16 %v4757, %v4757
  %v4878 = vpack.c.b16 %v4758, %v4758
  %v4879 = vpack.c.b16 %v4759, %v4759
  %v4880 = vpack.c.b16 %v4760, %v4760
  %v4881 = vpack.c.b16 %v4761, %v4761
  %v4882 = vpack.c.b16 %v4762, %v4762
  %v4883 = vpack.c.b16 %v4763, %v4763
  %v4884 = vpack.c.b16 %v4764, %v4764
  %v4885 = vpack.c.b16 %v4765, %v4765
  %v4886 = vpack.c.b16 %v4766, %v4766
  %v4887 = vpack.c.b16 %v4767, %v4767
  %v4888 = vpack.c.b16 %v4768, %v4768
  %v4889 = vpack.c.b16 %v4769, %v4769
  %v4890 = vpack.c.b16 %v4770, %v4770
  %v4891 = vpack.c.b16 %v4771, %v4771
  %v4892 = vpack.c.b16 %v4772, %v4772
  %v4893 = vpack.c.b16 %v4773, %v4773
  %v4894 = vpack.c.b16 %v4774, %v4774
  %v4895 = vpack.c.b16 %v4775, %v4775
  %v4896 = vpack.c.b16 %v4776, %v4776
  %v4897 = vpack.c.b16 %v4777, %v4777
  %v4898 = vpack.c.b16 %v4778, %v4778
  %v4899 = vpack.c.b16 %v4779, %v4779
  %v4900 = vpack.c.b16 %v4780, %v4780
  %v4901 = vpack.c.b16 %v4781, %v4781
  %v4902 = vpack.c.b16 %v4782, %v4782
  %v4903 = vpack.c.b16 %v4783, %v4783
  %v4904 = vpack.c.b16 %v4784, %v4784
  %v4905 = vpack.c.b16 %v4785, %v4785
  %v4906 = vpack.c.b16 %v4786, %v4786
  %v4907 = vpack.c.b16 %v4787, %v4787
  %v4908 = vpack.c.b16 %v4788, %v4788
  %v4909 = vpack.c.b16 %v4789, %v4789
  %v4910 = vpack.c.b16 %v4790, %v4790
  %v4911 = vpack.c.b16 %v4791, %v4791
  %v4912 = vpack.c.b16 %v4792, %v4792
  %v4913 = vpack.c.b16 %v4793, %v4793
  %v4914 = vpack.c.b16 %v4794, %v4794
  %v4915 = vpack.c.b16 %v4795, %v4795
  %v4916 = vpack.c.b16 %v4796, %v4796
  %v4917 = vpack.c.b16 %v4797, %v4797
  %v4918 = vpack.c.b16 %v4798, %v4798
  %v4919 = vpack.c.b16 %v4799, %v4799
  %v4920 = vpack.c.b16 %v4800, %v4800
  %v4921 = vpack.c.b16 %v4801, %v4801
  %v4922 = vpack.c.b16 %v4802, %v4802
  %v4923 = vpack.c.b16 %v4803, %v4803
  %v4924 = vpack.c.b16 %v4804, %v4804
  %v4925 = vpack.c.b16 %v4805, %v4805
  %v4926 = vpack.c.b16 %v4806, %v4806
  %v4927 = vpack.c.b16 %v4807, %v4807
  %v4928 = vpack.c.b16 %v4808, %v4808
  %v4929 = vpack.c.b16 %v4809, %v4809
  %v4930 = vpack.c.b16 %v4810, %v4810
  %v4931 = vpack.c.b16 %v4811, %v4811
  %v4932 = vpack.c.b16 %v4812, %v4812
  %v4933 = vpack.c.b16 %v4813, %v4813
  %v4934 = vpack.c.b16 %v4814, %v4814
  %v4935 = vpack.c.b16 %v4815, %v4815
  %v4936 = vpack.c.b16 %v4816, %v4816
  %v4937 = vpack.c.b16 %v4817, %v4817
  %v4938 = vpack.c.b16 %v4818, %v4818
  %v4939 = vpack.c.b16 %v4819, %v4819
  %v4940 = vpack.c.b16 %v4820, %v4820
  %v4941 = vpack.c.b16 %v4821, %v4821
  %v4942 = vpack.c.b16 %v4822, %v4822
  %v4943 = vpack.c.b16 %v4823, %v4823
  %v4944 = vpack.c.b16 %v4824, %v4824
  %v4945 = vpack.c.b16 %v4825, %v4825
  %vm5066 = vcmask 257024
  %5067 = vst.msk [vmem:[%s3] sm:$0xf] %vm5066, %v4826
  %5068 = vst.msk [vmem:[%s3 + $0x4] sm:$0xf] %vm5066, %v4827
  %5069 = vst.msk [vmem:[%s3 + $0x8] sm:$0xf] %vm5066, %v4828
  %5070 = vst.msk [vmem:[%s3 + $0xc] sm:$0xf] %vm5066, %v4829
  %5071 = vst.msk [vmem:[%s3 + $0x10] sm:$0xf] %vm5066, %v4830
  %5072 = vst.msk [vmem:[%s3 + $0x14] sm:$0xf] %vm5066, %v4831
  %5073 = vst.msk [vmem:[%s3 + $0x18] sm:$0xf] %vm5066, %v4832
  %5074 = vst.msk [vmem:[%s3 + $0x1c] sm:$0xf] %vm5066, %v4833
  %5075 = vst.msk [vmem:[%s3 + $0x20] sm:$0xf] %vm5066, %v4834
  %5076 = vst.msk [vmem:[%s3 + $0x24] sm:$0xf] %vm5066, %v4835
  %5077 = vst.msk [vmem:[%s3 + $0x28] sm:$0xf] %vm5066, %v4836
  %5078 = vst.msk [vmem:[%s3 + $0x2c] sm:$0xf] %vm5066, %v4837
  %5079 = vst.msk [vmem:[%s3 + $0x30] sm:$0xf] %vm5066, %v4838
  %5080 = vst.msk [vmem:[%s3 + $0x34] sm:$0xf] %vm5066, %v4839
  %5081 = vst.msk [vmem:[%s3 + $0x38] sm:$0xf] %vm5066, %v4840
  %5082 = vst.msk [vmem:[%s3 + $0x3c] sm:$0xf] %vm5066, %v4841
  %5083 = vst.msk [vmem:[%s3 + $0x40] sm:$0xf] %vm5066, %v4842
  %5084 = vst.msk [vmem:[%s3 + $0x44] sm:$0xf] %vm5066, %v4843
  %5085 = vst.msk [vmem:[%s3 + $0x48] sm:$0xf] %vm5066, %v4844
  %5086 = vst.msk [vmem:[%s3 + $0x4c] sm:$0xf] %vm5066, %v4845
  %5087 = vst.msk [vmem:[%s3 + $0x50] sm:$0xf] %vm5066, %v4846
  %5088 = vst.msk [vmem:[%s3 + $0x54] sm:$0xf] %vm5066, %v4847
  %5089 = vst.msk [vmem:[%s3 + $0x58] sm:$0xf] %vm5066, %v4848
  %5090 = vst.msk [vmem:[%s3 + $0x5c] sm:$0xf] %vm5066, %v4849
  %5091 = vst.msk [vmem:[%s3 + $0x60] sm:$0xf] %vm5066, %v4850
  %5092 = vst.msk [vmem:[%s3 + $0x64] sm:$0xf] %vm5066, %v4851
  %5093 = vst.msk [vmem:[%s3 + $0x68] sm:$0xf] %vm5066, %v4852
  %5094 = vst.msk [vmem:[%s3 + $0x6c] sm:$0xf] %vm5066, %v4853
  %5095 = vst.msk [vmem:[%s3 + $0x70] sm:$0xf] %vm5066, %v4854
  %5096 = vst.msk [vmem:[%s3 + $0x74] sm:$0xf] %vm5066, %v4855
  %5097 = vst.msk [vmem:[%s3 + $0x78] sm:$0xf] %vm5066, %v4856
  %5098 = vst.msk [vmem:[%s3 + $0x7c] sm:$0xf] %vm5066, %v4857
  %5099 = vst.msk [vmem:[%s3 + $0x80] sm:$0xf] %vm5066, %v4858
  %5100 = vst.msk [vmem:[%s3 + $0x84] sm:$0xf] %vm5066, %v4859
  %5101 = vst.msk [vmem:[%s3 + $0x88] sm:$0xf] %vm5066, %v4860
  %5102 = vst.msk [vmem:[%s3 + $0x8c] sm:$0xf] %vm5066, %v4861
  %5103 = vst.msk [vmem:[%s3 + $0x90] sm:$0xf] %vm5066, %v4862
  %5104 = vst.msk [vmem:[%s3 + $0x94] sm:$0xf] %vm5066, %v4863
  %5105 = vst.msk [vmem:[%s3 + $0x98] sm:$0xf] %vm5066, %v4864
  %5106 = vst.msk [vmem:[%s3 + $0x9c] sm:$0xf] %vm5066, %v4865
  %5107 = vst.msk [vmem:[%s3 + $0xa0] sm:$0xf] %vm5066, %v4866
  %5108 = vst.msk [vmem:[%s3 + $0xa4] sm:$0xf] %vm5066, %v4867
  %5109 = vst.msk [vmem:[%s3 + $0xa8] sm:$0xf] %vm5066, %v4868
  %5110 = vst.msk [vmem:[%s3 + $0xac] sm:$0xf] %vm5066, %v4869
  %5111 = vst.msk [vmem:[%s3 + $0xb0] sm:$0xf] %vm5066, %v4870
  %5112 = vst.msk [vmem:[%s3 + $0xb4] sm:$0xf] %vm5066, %v4871
  %5113 = vst.msk [vmem:[%s3 + $0xb8] sm:$0xf] %vm5066, %v4872
  %5114 = vst.msk [vmem:[%s3 + $0xbc] sm:$0xf] %vm5066, %v4873
  %5115 = vst.msk [vmem:[%s3 + $0xc0] sm:$0xf] %vm5066, %v4874
  %5116 = vst.msk [vmem:[%s3 + $0xc4] sm:$0xf] %vm5066, %v4875
  %5117 = vst.msk [vmem:[%s3 + $0xc8] sm:$0xf] %vm5066, %v4876
  %5118 = vst.msk [vmem:[%s3 + $0xcc] sm:$0xf] %vm5066, %v4877
  %5119 = vst.msk [vmem:[%s3 + $0xd0] sm:$0xf] %vm5066, %v4878
  %5120 = vst.msk [vmem:[%s3 + $0xd4] sm:$0xf] %vm5066, %v4879
  %5121 = vst.msk [vmem:[%s3 + $0xd8] sm:$0xf] %vm5066, %v4880
  %5122 = vst.msk [vmem:[%s3 + $0xdc] sm:$0xf] %vm5066, %v4881
  %5123 = vst.msk [vmem:[%s3 + $0xe0] sm:$0xf] %vm5066, %v4882
  %5124 = vst.msk [vmem:[%s3 + $0xe4] sm:$0xf] %vm5066, %v4883
  %5125 = vst.msk [vmem:[%s3 + $0xe8] sm:$0xf] %vm5066, %v4884
  %5126 = vst.msk [vmem:[%s3 + $0xec] sm:$0xf] %vm5066, %v4885
  %5127 = vst.msk [vmem:[%s3 + $0xf0] sm:$0xf] %vm5066, %v4886
  %5128 = vst.msk [vmem:[%s3 + $0xf4] sm:$0xf] %vm5066, %v4887
  %5129 = vst.msk [vmem:[%s3 + $0xf8] sm:$0xf] %vm5066, %v4888
  %5130 = vst.msk [vmem:[%s3 + $0xfc] sm:$0xf] %vm5066, %v4889
  %5131 = vst.msk [vmem:[%s3 + $0x100] sm:$0xf] %vm5066, %v4890
  %5132 = vst.msk [vmem:[%s3 + $0x104] sm:$0xf] %vm5066, %v4891
  %5133 = vst.msk [vmem:[%s3 + $0x108] sm:$0xf] %vm5066, %v4892
  %5134 = vst.msk [vmem:[%s3 + $0x10c] sm:$0xf] %vm5066, %v4893
  %5135 = vst.msk [vmem:[%s3 + $0x110] sm:$0xf] %vm5066, %v4894
  %5136 = vst.msk [vmem:[%s3 + $0x114] sm:$0xf] %vm5066, %v4895
  %5137 = vst.msk [vmem:[%s3 + $0x118] sm:$0xf] %vm5066, %v4896
  %5138 = vst.msk [vmem:[%s3 + $0x11c] sm:$0xf] %vm5066, %v4897
  %5139 = vst.msk [vmem:[%s3 + $0x120] sm:$0xf] %vm5066, %v4898
  %5140 = vst.msk [vmem:[%s3 + $0x124] sm:$0xf] %vm5066, %v4899
  %5141 = vst.msk [vmem:[%s3 + $0x128] sm:$0xf] %vm5066, %v4900
  %5142 = vst.msk [vmem:[%s3 + $0x12c] sm:$0xf] %vm5066, %v4901
  %5143 = vst.msk [vmem:[%s3 + $0x130] sm:$0xf] %vm5066, %v4902
  %5144 = vst.msk [vmem:[%s3 + $0x134] sm:$0xf] %vm5066, %v4903
  %5145 = vst.msk [vmem:[%s3 + $0x138] sm:$0xf] %vm5066, %v4904
  %5146 = vst.msk [vmem:[%s3 + $0x13c] sm:$0xf] %vm5066, %v4905
  %5147 = vst.msk [vmem:[%s3 + $0x140] sm:$0xf] %vm5066, %v4906
  %5148 = vst.msk [vmem:[%s3 + $0x144] sm:$0xf] %vm5066, %v4907
  %5149 = vst.msk [vmem:[%s3 + $0x148] sm:$0xf] %vm5066, %v4908
  %5150 = vst.msk [vmem:[%s3 + $0x14c] sm:$0xf] %vm5066, %v4909
  %5151 = vst.msk [vmem:[%s3 + $0x150] sm:$0xf] %vm5066, %v4910
  %5152 = vst.msk [vmem:[%s3 + $0x154] sm:$0xf] %vm5066, %v4911
  %5153 = vst.msk [vmem:[%s3 + $0x158] sm:$0xf] %vm5066, %v4912
  %5154 = vst.msk [vmem:[%s3 + $0x15c] sm:$0xf] %vm5066, %v4913
  %5155 = vst.msk [vmem:[%s3 + $0x160] sm:$0xf] %vm5066, %v4914
  %5156 = vst.msk [vmem:[%s3 + $0x164] sm:$0xf] %vm5066, %v4915
  %5157 = vst.msk [vmem:[%s3 + $0x168] sm:$0xf] %vm5066, %v4916
  %5158 = vst.msk [vmem:[%s3 + $0x16c] sm:$0xf] %vm5066, %v4917
  %5159 = vst.msk [vmem:[%s3 + $0x170] sm:$0xf] %vm5066, %v4918
  %5160 = vst.msk [vmem:[%s3 + $0x174] sm:$0xf] %vm5066, %v4919
  %5161 = vst.msk [vmem:[%s3 + $0x178] sm:$0xf] %vm5066, %v4920
  %5162 = vst.msk [vmem:[%s3 + $0x17c] sm:$0xf] %vm5066, %v4921
  %5163 = vst.msk [vmem:[%s3 + $0x180] sm:$0xf] %vm5066, %v4922
  %5164 = vst.msk [vmem:[%s3 + $0x184] sm:$0xf] %vm5066, %v4923
  %5165 = vst.msk [vmem:[%s3 + $0x188] sm:$0xf] %vm5066, %v4924
  %5166 = vst.msk [vmem:[%s3 + $0x18c] sm:$0xf] %vm5066, %v4925
  %5167 = vst.msk [vmem:[%s3 + $0x190] sm:$0xf] %vm5066, %v4926
  %5168 = vst.msk [vmem:[%s3 + $0x194] sm:$0xf] %vm5066, %v4927
  %5169 = vst.msk [vmem:[%s3 + $0x198] sm:$0xf] %vm5066, %v4928
  %5170 = vst.msk [vmem:[%s3 + $0x19c] sm:$0xf] %vm5066, %v4929
  %5171 = vst.msk [vmem:[%s3 + $0x1a0] sm:$0xf] %vm5066, %v4930
  %5172 = vst.msk [vmem:[%s3 + $0x1a4] sm:$0xf] %vm5066, %v4931
  %5173 = vst.msk [vmem:[%s3 + $0x1a8] sm:$0xf] %vm5066, %v4932
  %5174 = vst.msk [vmem:[%s3 + $0x1ac] sm:$0xf] %vm5066, %v4933
  %5175 = vst.msk [vmem:[%s3 + $0x1b0] sm:$0xf] %vm5066, %v4934
  %5176 = vst.msk [vmem:[%s3 + $0x1b4] sm:$0xf] %vm5066, %v4935
  %5177 = vst.msk [vmem:[%s3 + $0x1b8] sm:$0xf] %vm5066, %v4936
  %5178 = vst.msk [vmem:[%s3 + $0x1bc] sm:$0xf] %vm5066, %v4937
  %5179 = vst.msk [vmem:[%s3 + $0x1c0] sm:$0xf] %vm5066, %v4938
  %5180 = vst.msk [vmem:[%s3 + $0x1c4] sm:$0xf] %vm5066, %v4939
  %5181 = vst.msk [vmem:[%s3 + $0x1c8] sm:$0xf] %vm5066, %v4940
  %5182 = vst.msk [vmem:[%s3 + $0x1cc] sm:$0xf] %vm5066, %v4941
  %5183 = vst.msk [vmem:[%s3 + $0x1d0] sm:$0xf] %vm5066, %v4942
  %5184 = vst.msk [vmem:[%s3 + $0x1d4] sm:$0xf] %vm5066, %v4943
  %5185 = vst.msk [vmem:[%s3 + $0x1d8] sm:$0xf] %vm5066, %v4944
  %5186 = vst.msk [vmem:[%s3 + $0x1dc] sm:$0xf] %vm5066, %v4945
  // Predicated region
  $region14: #{dcqn_forward.4} parent=0 // pred_check
    _
  $region15: #{dcqn_forward.4} parent=0 // pred_check_branch
    %5188 = sbr.rel (0) target = $region17
  $region16: #{dcqn_forward.4} parent=0 // pred_region
    _
  $region17: #{dcqn_forward.4} parent=0 // pred_fallthru
    _
  // Predicated region
  $region18: #{dcqn_forward.4} parent=0 // pred_check
    _
  $region19: #{dcqn_forward.4} parent=0 // pred_check_branch
    %5190 = sbr.rel (0) target = $region21
  $region20: #{dcqn_forward.4} parent=0 // pred_region
    _
  $region21: #{dcqn_forward.4} parent=0 // pred_fallthru
    _

// kernel: dcqn_forward.5
$region0: #{dcqn_forward.5}
  #allocation0 [shape = 'u32[]', space=smem, size = 0x4, offset = 0x4, fixed_abs, tag = 'smem constant byte address 0x4 - core index']
  #allocation1 [shape = 'u32[144,128]{1,0:T(1,128)}', space=vmem, size = 0x12000, scoped, tag = 'internal scratch']
  %s0 = inlined_call_operand.vmem [shape: bf16[2,10,17,128], index: 0, kind: input, shape index: {}]
  %s1 = inlined_call_operand.vmem [shape: bf16[512,64], index: 1, kind: input, shape index: {}]
  %s2 = inlined_call_operand.vmem [shape: f32[1,64], index: 2, kind: input, shape index: {}]
  %s3 = inlined_call_operand.vmem [shape: bf16[2,9,16,64], index: 3, kind: output, shape index: {}]
  %s4 = sld [smem:[#allocation0]]
  $region22: #{dcqn_forward.5} parent=0
    _
  %s6 = ssub.s32 1, %s4
  %s7 = scalar_select 0, %s6, %s4
  // Predicated region
  $region2: #{dcqn_forward.5} parent=0 // pred_check
    _
  $region3: #{dcqn_forward.5} parent=0 // pred_check_branch
    %9 = sbr.rel (0) target = $region5
  $region4: #{dcqn_forward.5} parent=0 // pred_region
    _
  $region5: #{dcqn_forward.5} parent=0 // pred_fallthru
    _
  // Predicated region
  $region6: #{dcqn_forward.5} parent=0 // pred_check
    _
  $region7: #{dcqn_forward.5} parent=0 // pred_check_branch
    %11 = sbr.rel (0) target = $region9
  $region8: #{dcqn_forward.5} parent=0 // pred_region
    _
  $region9: #{dcqn_forward.5} parent=0 // pred_fallthru
    _
  // Predicated region
  $region10: #{dcqn_forward.5} parent=0 // pred_check
    _
  $region11: #{dcqn_forward.5} parent=0 // pred_check_branch
    %13 = sbr.rel (0) target = $region13
  $region12: #{dcqn_forward.5} parent=0 // pred_region
    _
  $region13: #{dcqn_forward.5} parent=0 // pred_fallthru
    _
  %v15 = vld [vmem:[%s0] sm:$0xf]
  %v16 = vld [vmem:[%s0 + $0x4] sm:$0xf]
  %v17 = vld [vmem:[%s0 + $0xc] sm:$0xf]
  %v18 = vld [vmem:[%s0 + $0x10] sm:$0xf]
  %v19 = vld [vmem:[%s0 + $0x18] sm:$0xf]
  %v20 = vld [vmem:[%s0 + $0x1c] sm:$0xf]
  %v21 = vld [vmem:[%s0 + $0x24] sm:$0xf]
  %v22 = vld [vmem:[%s0 + $0x28] sm:$0xf]
  %v23 = vld [vmem:[%s0 + $0x30] sm:$0xf]
  %v24 = vld [vmem:[%s0 + $0x34] sm:$0xf]
  %v25 = vld [vmem:[%s0 + $0x3c] sm:$0xf]
  %v26 = vld [vmem:[%s0 + $0x40] sm:$0xf]
  %v27 = vld [vmem:[%s0 + $0x48] sm:$0xf]
  %v28 = vld [vmem:[%s0 + $0x4c] sm:$0xf]
  %v29 = vld [vmem:[%s0 + $0x54] sm:$0xf]
  %v30 = vld [vmem:[%s0 + $0x58] sm:$0xf]
  %v31 = vld [vmem:[%s0 + $0x60] sm:$0xf]
  %v32 = vld [vmem:[%s0 + $0x64] sm:$0xf]
  %v33 = vld [vmem:[%s0 + $0x78] sm:$0xf]
  %v34 = vld [vmem:[%s0 + $0x7c] sm:$0xf]
  %v35 = vld [vmem:[%s0 + $0x84] sm:$0xf]
  %v36 = vld [vmem:[%s0 + $0x88] sm:$0xf]
  %v37 = vld [vmem:[%s0 + $0x90] sm:$0xf]
  %v38 = vld [vmem:[%s0 + $0x94] sm:$0xf]
  %v39 = vld [vmem:[%s0 + $0x9c] sm:$0xf]
  %v40 = vld [vmem:[%s0 + $0xa0] sm:$0xf]
  %v41 = vld [vmem:[%s0 + $0xa8] sm:$0xf]
  %v42 = vld [vmem:[%s0 + $0xac] sm:$0xf]
  %v43 = vld [vmem:[%s0 + $0xb4] sm:$0xf]
  %v44 = vld [vmem:[%s0 + $0xb8] sm:$0xf]
  %v45 = vld [vmem:[%s0 + $0xc0] sm:$0xf]
  %v46 = vld [vmem:[%s0 + $0xc4] sm:$0xf]
  %v47 = vld [vmem:[%s0 + $0xcc] sm:$0xf]
  %v48 = vld [vmem:[%s0 + $0xd0] sm:$0xf]
  %v49 = vld [vmem:[%s0 + $0xd8] sm:$0xf]
  %v50 = vld [vmem:[%s0 + $0xdc] sm:$0xf]
  %v51 = vld [vmem:[%s0 + $0x8] sm:$0x1]
  %v52 = vld [vmem:[%s0 + $0x14] sm:$0x1]
  %v53 = vld [vmem:[%s0 + $0x20] sm:$0x1]
  %v54 = vld [vmem:[%s0 + $0x2c] sm:$0x1]
  %v55 = vld [vmem:[%s0 + $0x38] sm:$0x1]
  %v56 = vld [vmem:[%s0 + $0x44] sm:$0x1]
  %v57 = vld [vmem:[%s0 + $0x50] sm:$0x1]
  %v58 = vld [vmem:[%s0 + $0x5c] sm:$0x1]
  %v59 = vld [vmem:[%s0 + $0x68] sm:$0x1]
  %v60 = vld [vmem:[%s0 + $0x80] sm:$0x1]
  %v61 = vld [vmem:[%s0 + $0x8c] sm:$0x1]
  %v62 = vld [vmem:[%s0 + $0x98] sm:$0x1]
  %v63 = vld [vmem:[%s0 + $0xa4] sm:$0x1]
  %v64 = vld [vmem:[%s0 + $0xb0] sm:$0x1]
  %v65 = vld [vmem:[%s0 + $0xbc] sm:$0x1]
  %v66 = vld [vmem:[%s0 + $0xc8] sm:$0x1]
  %v67 = vld [vmem:[%s0 + $0xd4] sm:$0x1]
  %v68 = vld [vmem:[%s0 + $0xe0] sm:$0x1]
  %s69 = scalar_lea.vmem %s0, 12
  %v70 = vld [vmem:[%s69] sm:$0xf]
  %v71 = vld [vmem:[%s69 + $0x4] sm:$0xf]
  %v72 = vld [vmem:[%s69 + $0xc] sm:$0xf]
  %v73 = vld [vmem:[%s69 + $0x10] sm:$0xf]
  %v74 = vld [vmem:[%s69 + $0x18] sm:$0xf]
  %v75 = vld [vmem:[%s69 + $0x1c] sm:$0xf]
  %v76 = vld [vmem:[%s69 + $0x24] sm:$0xf]
  %v77 = vld [vmem:[%s69 + $0x28] sm:$0xf]
  %v78 = vld [vmem:[%s69 + $0x30] sm:$0xf]
  %v79 = vld [vmem:[%s69 + $0x34] sm:$0xf]
  %v80 = vld [vmem:[%s69 + $0x3c] sm:$0xf]
  %v81 = vld [vmem:[%s69 + $0x40] sm:$0xf]
  %v82 = vld [vmem:[%s69 + $0x48] sm:$0xf]
  %v83 = vld [vmem:[%s69 + $0x4c] sm:$0xf]
  %v84 = vld [vmem:[%s69 + $0x54] sm:$0xf]
  %v85 = vld [vmem:[%s69 + $0x58] sm:$0xf]
  %v86 = vld [vmem:[%s69 + $0x60] sm:$0xf]
  %v87 = vld [vmem:[%s69 + $0x64] sm:$0xf]
  %v88 = vld [vmem:[%s69 + $0x78] sm:$0xf]
  %v89 = vld [vmem:[%s69 + $0x7c] sm:$0xf]
  %v90 = vld [vmem:[%s69 + $0x84] sm:$0xf]
  %v91 = vld [vmem:[%s69 + $0x88] sm:$0xf]
  %v92 = vld [vmem:[%s69 + $0x90] sm:$0xf]
  %v93 = vld [vmem:[%s69 + $0x94] sm:$0xf]
  %v94 = vld [vmem:[%s69 + $0x9c] sm:$0xf]
  %v95 = vld [vmem:[%s69 + $0xa0] sm:$0xf]
  %v96 = vld [vmem:[%s69 + $0xa8] sm:$0xf]
  %v97 = vld [vmem:[%s69 + $0xac] sm:$0xf]
  %v98 = vld [vmem:[%s69 + $0xb4] sm:$0xf]
  %v99 = vld [vmem:[%s69 + $0xb8] sm:$0xf]
  %v100 = vld [vmem:[%s69 + $0xc0] sm:$0xf]
  %v101 = vld [vmem:[%s69 + $0xc4] sm:$0xf]
  %v102 = vld [vmem:[%s69 + $0xcc] sm:$0xf]
  %v103 = vld [vmem:[%s69 + $0xd0] sm:$0xf]
  %v104 = vld [vmem:[%s69 + $0xd8] sm:$0xf]
  %v105 = vld [vmem:[%s69 + $0xdc] sm:$0xf]
  %v106 = vld [vmem:[%s69 + $0x8] sm:$0x1]
  %v107 = vld [vmem:[%s69 + $0x14] sm:$0x1]
  %v108 = vld [vmem:[%s69 + $0x20] sm:$0x1]
  %v109 = vld [vmem:[%s69 + $0x2c] sm:$0x1]
  %v110 = vld [vmem:[%s69 + $0x38] sm:$0x1]
  %v111 = vld [vmem:[%s69 + $0x44] sm:$0x1]
  %v112 = vld [vmem:[%s69 + $0x50] sm:$0x1]
  %v113 = vld [vmem:[%s69 + $0x5c] sm:$0x1]
  %v114 = vld [vmem:[%s69 + $0x68] sm:$0x1]
  %v115 = vld [vmem:[%s69 + $0x80] sm:$0x1]
  %v116 = vld [vmem:[%s69 + $0x8c] sm:$0x1]
  %v117 = vld [vmem:[%s69 + $0x98] sm:$0x1]
  %v118 = vld [vmem:[%s69 + $0xa4] sm:$0x1]
  %v119 = vld [vmem:[%s69 + $0xb0] sm:$0x1]
  %v120 = vld [vmem:[%s69 + $0xbc] sm:$0x1]
  %v121 = vld [vmem:[%s69 + $0xc8] sm:$0x1]
  %v122 = vld [vmem:[%s69 + $0xd4] sm:$0x1]
  %v123 = vld [vmem:[%s69 + $0xe0] sm:$0x1]
  %v160 = vunpack.c.l.b16 %v15
  %v161 = vunpack.c.l.b16 %v16
  %v162 = vunpack.c.l.b16 %v17
  %v163 = vunpack.c.l.b16 %v18
  %v164 = vunpack.c.l.b16 %v19
  %v165 = vunpack.c.l.b16 %v20
  %v166 = vunpack.c.l.b16 %v21
  %v167 = vunpack.c.l.b16 %v22
  %v168 = vunpack.c.l.b16 %v23
  %v169 = vunpack.c.l.b16 %v24
  %v170 = vunpack.c.l.b16 %v25
  %v171 = vunpack.c.l.b16 %v26
  %v172 = vunpack.c.l.b16 %v27
  %v173 = vunpack.c.l.b16 %v28
  %v174 = vunpack.c.l.b16 %v29
  %v175 = vunpack.c.l.b16 %v30
  %v176 = vunpack.c.l.b16 %v31
  %v177 = vunpack.c.l.b16 %v32
  %v178 = vunpack.c.l.b16 %v33
  %v179 = vunpack.c.l.b16 %v34
  %v180 = vunpack.c.l.b16 %v35
  %v181 = vunpack.c.l.b16 %v36
  %v182 = vunpack.c.l.b16 %v37
  %v183 = vunpack.c.l.b16 %v38
  %v184 = vunpack.c.l.b16 %v39
  %v185 = vunpack.c.l.b16 %v40
  %v186 = vunpack.c.l.b16 %v41
  %v187 = vunpack.c.l.b16 %v42
  %v188 = vunpack.c.l.b16 %v43
  %v189 = vunpack.c.l.b16 %v44
  %v190 = vunpack.c.l.b16 %v45
  %v191 = vunpack.c.l.b16 %v46
  %v192 = vunpack.c.l.b16 %v47
  %v193 = vunpack.c.l.b16 %v48
  %v194 = vunpack.c.l.b16 %v49
  %v195 = vunpack.c.l.b16 %v50
  %v196 = vpack.c.b16 %v161, %v160
  %v197 = vpack.c.b16 %v163, %v162
  %v198 = vpack.c.b16 %v165, %v164
  %v199 = vpack.c.b16 %v167, %v166
  %v200 = vpack.c.b16 %v169, %v168
  %v201 = vpack.c.b16 %v171, %v170
  %v202 = vpack.c.b16 %v173, %v172
  %v203 = vpack.c.b16 %v175, %v174
  %v204 = vpack.c.b16 %v177, %v176
  %v205 = vpack.c.b16 %v179, %v178
  %v206 = vpack.c.b16 %v181, %v180
  %v207 = vpack.c.b16 %v183, %v182
  %v208 = vpack.c.b16 %v185, %v184
  %v209 = vpack.c.b16 %v187, %v186
  %v210 = vpack.c.b16 %v189, %v188
  %v211 = vpack.c.b16 %v191, %v190
  %v212 = vpack.c.b16 %v193, %v192
  %v213 = vpack.c.b16 %v195, %v194
  %v250 = vunpack.c.l.b16 %v51
  %v251 = vunpack.c.l.b16 %v52
  %v252 = vunpack.c.l.b16 %v53
  %v253 = vunpack.c.l.b16 %v54
  %v254 = vunpack.c.l.b16 %v55
  %v255 = vunpack.c.l.b16 %v56
  %v256 = vunpack.c.l.b16 %v57
  %v257 = vunpack.c.l.b16 %v58
  %v258 = vunpack.c.l.b16 %v59
  %v259 = vunpack.c.l.b16 %v60
  %v260 = vunpack.c.l.b16 %v61
  %v261 = vunpack.c.l.b16 %v62
  %v262 = vunpack.c.l.b16 %v63
  %v263 = vunpack.c.l.b16 %v64
  %v264 = vunpack.c.l.b16 %v65
  %v265 = vunpack.c.l.b16 %v66
  %v266 = vunpack.c.l.b16 %v67
  %v267 = vunpack.c.l.b16 %v68
  %v268 = vpack.c.b16 %v250, %v250
  %v269 = vpack.c.b16 %v251, %v251
  %v270 = vpack.c.b16 %v252, %v252
  %v271 = vpack.c.b16 %v253, %v253
  %v272 = vpack.c.b16 %v254, %v254
  %v273 = vpack.c.b16 %v255, %v255
  %v274 = vpack.c.b16 %v256, %v256
  %v275 = vpack.c.b16 %v257, %v257
  %v276 = vpack.c.b16 %v258, %v258
  %v277 = vpack.c.b16 %v259, %v259
  %v278 = vpack.c.b16 %v260, %v260
  %v279 = vpack.c.b16 %v261, %v261
  %v280 = vpack.c.b16 %v262, %v262
  %v281 = vpack.c.b16 %v263, %v263
  %v282 = vpack.c.b16 %v264, %v264
  %v283 = vpack.c.b16 %v265, %v265
  %v284 = vpack.c.b16 %v266, %v266
  %v285 = vpack.c.b16 %v267, %v267
  %vm286 = vsmask.f32 7424
  %v288 = vshrl.u32 %v196, 16
  %v290 = vshll.u32 %v196, 16
  %v292 = vrot.slane %v290, 1
  %v293 = vor.u32 %v288, %v292
  %v295 = vshll.u32 %v268, 16
  %v297 = vrot.slane %v295, 1
  %v298 = vsel %vm286, %v293, %v297
  %v300 = vshrl.u32 %v197, 16
  %v302 = vshll.u32 %v197, 16
  %v304 = vrot.slane %v302, 1
  %v305 = vor.u32 %v300, %v304
  %v307 = vshll.u32 %v269, 16
  %v309 = vrot.slane %v307, 1
  %v310 = vsel %vm286, %v305, %v309
  %v312 = vshrl.u32 %v198, 16
  %v314 = vshll.u32 %v198, 16
  %v316 = vrot.slane %v314, 1
  %v317 = vor.u32 %v312, %v316
  %v319 = vshll.u32 %v270, 16
  %v321 = vrot.slane %v319, 1
  %v322 = vsel %vm286, %v317, %v321
  %v324 = vshrl.u32 %v199, 16
  %v326 = vshll.u32 %v199, 16
  %v328 = vrot.slane %v326, 1
  %v329 = vor.u32 %v324, %v328
  %v331 = vshll.u32 %v271, 16
  %v333 = vrot.slane %v331, 1
  %v334 = vsel %vm286, %v329, %v333
  %v336 = vshrl.u32 %v200, 16
  %v338 = vshll.u32 %v200, 16
  %v340 = vrot.slane %v338, 1
  %v341 = vor.u32 %v336, %v340
  %v343 = vshll.u32 %v272, 16
  %v345 = vrot.slane %v343, 1
  %v346 = vsel %vm286, %v341, %v345
  %v348 = vshrl.u32 %v201, 16
  %v350 = vshll.u32 %v201, 16
  %v352 = vrot.slane %v350, 1
  %v353 = vor.u32 %v348, %v352
  %v355 = vshll.u32 %v273, 16
  %v357 = vrot.slane %v355, 1
  %v358 = vsel %vm286, %v353, %v357
  %v360 = vshrl.u32 %v202, 16
  %v362 = vshll.u32 %v202, 16
  %v364 = vrot.slane %v362, 1
  %v365 = vor.u32 %v360, %v364
  %v367 = vshll.u32 %v274, 16
  %v369 = vrot.slane %v367, 1
  %v370 = vsel %vm286, %v365, %v369
  %v372 = vshrl.u32 %v203, 16
  %v374 = vshll.u32 %v203, 16
  %v376 = vrot.slane %v374, 1
  %v377 = vor.u32 %v372, %v376
  %v379 = vshll.u32 %v275, 16
  %v381 = vrot.slane %v379, 1
  %v382 = vsel %vm286, %v377, %v381
  %v384 = vshrl.u32 %v204, 16
  %v386 = vshll.u32 %v204, 16
  %v388 = vrot.slane %v386, 1
  %v389 = vor.u32 %v384, %v388
  %v391 = vshll.u32 %v276, 16
  %v393 = vrot.slane %v391, 1
  %v394 = vsel %vm286, %v389, %v393
  %v396 = vshrl.u32 %v205, 16
  %v398 = vshll.u32 %v205, 16
  %v400 = vrot.slane %v398, 1
  %v401 = vor.u32 %v396, %v400
  %v403 = vshll.u32 %v277, 16
  %v405 = vrot.slane %v403, 1
  %v406 = vsel %vm286, %v401, %v405
  %v408 = vshrl.u32 %v206, 16
  %v410 = vshll.u32 %v206, 16
  %v412 = vrot.slane %v410, 1
  %v413 = vor.u32 %v408, %v412
  %v415 = vshll.u32 %v278, 16
  %v417 = vrot.slane %v415, 1
  %v418 = vsel %vm286, %v413, %v417
  %v420 = vshrl.u32 %v207, 16
  %v422 = vshll.u32 %v207, 16
  %v424 = vrot.slane %v422, 1
  %v425 = vor.u32 %v420, %v424
  %v427 = vshll.u32 %v279, 16
  %v429 = vrot.slane %v427, 1
  %v430 = vsel %vm286, %v425, %v429
  %v432 = vshrl.u32 %v208, 16
  %v434 = vshll.u32 %v208, 16
  %v436 = vrot.slane %v434, 1
  %v437 = vor.u32 %v432, %v436
  %v439 = vshll.u32 %v280, 16
  %v441 = vrot.slane %v439, 1
  %v442 = vsel %vm286, %v437, %v441
  %v444 = vshrl.u32 %v209, 16
  %v446 = vshll.u32 %v209, 16
  %v448 = vrot.slane %v446, 1
  %v449 = vor.u32 %v444, %v448
  %v451 = vshll.u32 %v281, 16
  %v453 = vrot.slane %v451, 1
  %v454 = vsel %vm286, %v449, %v453
  %v456 = vshrl.u32 %v210, 16
  %v458 = vshll.u32 %v210, 16
  %v460 = vrot.slane %v458, 1
  %v461 = vor.u32 %v456, %v460
  %v463 = vshll.u32 %v282, 16
  %v465 = vrot.slane %v463, 1
  %v466 = vsel %vm286, %v461, %v465
  %v468 = vshrl.u32 %v211, 16
  %v470 = vshll.u32 %v211, 16
  %v472 = vrot.slane %v470, 1
  %v473 = vor.u32 %v468, %v472
  %v475 = vshll.u32 %v283, 16
  %v477 = vrot.slane %v475, 1
  %v478 = vsel %vm286, %v473, %v477
  %v480 = vshrl.u32 %v212, 16
  %v482 = vshll.u32 %v212, 16
  %v484 = vrot.slane %v482, 1
  %v485 = vor.u32 %v480, %v484
  %v487 = vshll.u32 %v284, 16
  %v489 = vrot.slane %v487, 1
  %v490 = vsel %vm286, %v485, %v489
  %v492 = vshrl.u32 %v213, 16
  %v494 = vshll.u32 %v213, 16
  %v496 = vrot.slane %v494, 1
  %v497 = vor.u32 %v492, %v496
  %v499 = vshll.u32 %v285, 16
  %v501 = vrot.slane %v499, 1
  %v502 = vsel %vm286, %v497, %v501
  %v557 = vunpack.c.l.b16 %v70
  %v558 = vunpack.c.l.b16 %v71
  %v559 = vunpack.c.l.b16 %v72
  %v560 = vunpack.c.l.b16 %v73
  %v561 = vunpack.c.l.b16 %v74
  %v562 = vunpack.c.l.b16 %v75
  %v563 = vunpack.c.l.b16 %v76
  %v564 = vunpack.c.l.b16 %v77
  %v565 = vunpack.c.l.b16 %v78
  %v566 = vunpack.c.l.b16 %v79
  %v567 = vunpack.c.l.b16 %v80
  %v568 = vunpack.c.l.b16 %v81
  %v569 = vunpack.c.l.b16 %v82
  %v570 = vunpack.c.l.b16 %v83
  %v571 = vunpack.c.l.b16 %v84
  %v572 = vunpack.c.l.b16 %v85
  %v573 = vunpack.c.l.b16 %v86
  %v574 = vunpack.c.l.b16 %v87
  %v575 = vunpack.c.l.b16 %v88
  %v576 = vunpack.c.l.b16 %v89
  %v577 = vunpack.c.l.b16 %v90
  %v578 = vunpack.c.l.b16 %v91
  %v579 = vunpack.c.l.b16 %v92
  %v580 = vunpack.c.l.b16 %v93
  %v581 = vunpack.c.l.b16 %v94
  %v582 = vunpack.c.l.b16 %v95
  %v583 = vunpack.c.l.b16 %v96
  %v584 = vunpack.c.l.b16 %v97
  %v585 = vunpack.c.l.b16 %v98
  %v586 = vunpack.c.l.b16 %v99
  %v587 = vunpack.c.l.b16 %v100
  %v588 = vunpack.c.l.b16 %v101
  %v589 = vunpack.c.l.b16 %v102
  %v590 = vunpack.c.l.b16 %v103
  %v591 = vunpack.c.l.b16 %v104
  %v592 = vunpack.c.l.b16 %v105
  %v593 = vpack.c.b16 %v558, %v557
  %v594 = vpack.c.b16 %v560, %v559
  %v595 = vpack.c.b16 %v562, %v561
  %v596 = vpack.c.b16 %v564, %v563
  %v597 = vpack.c.b16 %v566, %v565
  %v598 = vpack.c.b16 %v568, %v567
  %v599 = vpack.c.b16 %v570, %v569
  %v600 = vpack.c.b16 %v572, %v571
  %v601 = vpack.c.b16 %v574, %v573
  %v602 = vpack.c.b16 %v576, %v575
  %v603 = vpack.c.b16 %v578, %v577
  %v604 = vpack.c.b16 %v580, %v579
  %v605 = vpack.c.b16 %v582, %v581
  %v606 = vpack.c.b16 %v584, %v583
  %v607 = vpack.c.b16 %v586, %v585
  %v608 = vpack.c.b16 %v588, %v587
  %v609 = vpack.c.b16 %v590, %v589
  %v610 = vpack.c.b16 %v592, %v591
  %v647 = vunpack.c.l.b16 %v106
  %v648 = vunpack.c.l.b16 %v107
  %v649 = vunpack.c.l.b16 %v108
  %v650 = vunpack.c.l.b16 %v109
  %v651 = vunpack.c.l.b16 %v110
  %v652 = vunpack.c.l.b16 %v111
  %v653 = vunpack.c.l.b16 %v112
  %v654 = vunpack.c.l.b16 %v113
  %v655 = vunpack.c.l.b16 %v114
  %v656 = vunpack.c.l.b16 %v115
  %v657 = vunpack.c.l.b16 %v116
  %v658 = vunpack.c.l.b16 %v117
  %v659 = vunpack.c.l.b16 %v118
  %v660 = vunpack.c.l.b16 %v119
  %v661 = vunpack.c.l.b16 %v120
  %v662 = vunpack.c.l.b16 %v121
  %v663 = vunpack.c.l.b16 %v122
  %v664 = vunpack.c.l.b16 %v123
  %v665 = vpack.c.b16 %v647, %v647
  %v666 = vpack.c.b16 %v648, %v648
  %v667 = vpack.c.b16 %v649, %v649
  %v668 = vpack.c.b16 %v650, %v650
  %v669 = vpack.c.b16 %v651, %v651
  %v670 = vpack.c.b16 %v652, %v652
  %v671 = vpack.c.b16 %v653, %v653
  %v672 = vpack.c.b16 %v654, %v654
  %v673 = vpack.c.b16 %v655, %v655
  %v674 = vpack.c.b16 %v656, %v656
  %v675 = vpack.c.b16 %v657, %v657
  %v676 = vpack.c.b16 %v658, %v658
  %v677 = vpack.c.b16 %v659, %v659
  %v678 = vpack.c.b16 %v660, %v660
  %v679 = vpack.c.b16 %v661, %v661
  %v680 = vpack.c.b16 %v662, %v662
  %v681 = vpack.c.b16 %v663, %v663
  %v682 = vpack.c.b16 %v664, %v664
  %v684 = vshrl.u32 %v593, 16
  %v686 = vshll.u32 %v593, 16
  %v688 = vrot.slane %v686, 1
  %v689 = vor.u32 %v684, %v688
  %v691 = vshll.u32 %v665, 16
  %v693 = vrot.slane %v691, 1
  %v694 = vsel %vm286, %v689, %v693
  %v696 = vshrl.u32 %v594, 16
  %v698 = vshll.u32 %v594, 16
  %v700 = vrot.slane %v698, 1
  %v701 = vor.u32 %v696, %v700
  %v703 = vshll.u32 %v666, 16
  %v705 = vrot.slane %v703, 1
  %v706 = vsel %vm286, %v701, %v705
  %v708 = vshrl.u32 %v595, 16
  %v710 = vshll.u32 %v595, 16
  %v712 = vrot.slane %v710, 1
  %v713 = vor.u32 %v708, %v712
  %v715 = vshll.u32 %v667, 16
  %v717 = vrot.slane %v715, 1
  %v718 = vsel %vm286, %v713, %v717
  %v720 = vshrl.u32 %v596, 16
  %v722 = vshll.u32 %v596, 16
  %v724 = vrot.slane %v722, 1
  %v725 = vor.u32 %v720, %v724
  %v727 = vshll.u32 %v668, 16
  %v729 = vrot.slane %v727, 1
  %v730 = vsel %vm286, %v725, %v729
  %v732 = vshrl.u32 %v597, 16
  %v734 = vshll.u32 %v597, 16
  %v736 = vrot.slane %v734, 1
  %v737 = vor.u32 %v732, %v736
  %v739 = vshll.u32 %v669, 16
  %v741 = vrot.slane %v739, 1
  %v742 = vsel %vm286, %v737, %v741
  %v744 = vshrl.u32 %v598, 16
  %v746 = vshll.u32 %v598, 16
  %v748 = vrot.slane %v746, 1
  %v749 = vor.u32 %v744, %v748
  %v751 = vshll.u32 %v670, 16
  %v753 = vrot.slane %v751, 1
  %v754 = vsel %vm286, %v749, %v753
  %v756 = vshrl.u32 %v599, 16
  %v758 = vshll.u32 %v599, 16
  %v760 = vrot.slane %v758, 1
  %v761 = vor.u32 %v756, %v760
  %v763 = vshll.u32 %v671, 16
  %v765 = vrot.slane %v763, 1
  %v766 = vsel %vm286, %v761, %v765
  %v768 = vshrl.u32 %v600, 16
  %v770 = vshll.u32 %v600, 16
  %v772 = vrot.slane %v770, 1
  %v773 = vor.u32 %v768, %v772
  %v775 = vshll.u32 %v672, 16
  %v777 = vrot.slane %v775, 1
  %v778 = vsel %vm286, %v773, %v777
  %v780 = vshrl.u32 %v601, 16
  %v782 = vshll.u32 %v601, 16
  %v784 = vrot.slane %v782, 1
  %v785 = vor.u32 %v780, %v784
  %v787 = vshll.u32 %v673, 16
  %v789 = vrot.slane %v787, 1
  %v790 = vsel %vm286, %v785, %v789
  %v792 = vshrl.u32 %v602, 16
  %v794 = vshll.u32 %v602, 16
  %v796 = vrot.slane %v794, 1
  %v797 = vor.u32 %v792, %v796
  %v799 = vshll.u32 %v674, 16
  %v801 = vrot.slane %v799, 1
  %v802 = vsel %vm286, %v797, %v801
  %v804 = vshrl.u32 %v603, 16
  %v806 = vshll.u32 %v603, 16
  %v808 = vrot.slane %v806, 1
  %v809 = vor.u32 %v804, %v808
  %v811 = vshll.u32 %v675, 16
  %v813 = vrot.slane %v811, 1
  %v814 = vsel %vm286, %v809, %v813
  %v816 = vshrl.u32 %v604, 16
  %v818 = vshll.u32 %v604, 16
  %v820 = vrot.slane %v818, 1
  %v821 = vor.u32 %v816, %v820
  %v823 = vshll.u32 %v676, 16
  %v825 = vrot.slane %v823, 1
  %v826 = vsel %vm286, %v821, %v825
  %v828 = vshrl.u32 %v605, 16
  %v830 = vshll.u32 %v605, 16
  %v832 = vrot.slane %v830, 1
  %v833 = vor.u32 %v828, %v832
  %v835 = vshll.u32 %v677, 16
  %v837 = vrot.slane %v835, 1
  %v838 = vsel %vm286, %v833, %v837
  %v840 = vshrl.u32 %v606, 16
  %v842 = vshll.u32 %v606, 16
  %v844 = vrot.slane %v842, 1
  %v845 = vor.u32 %v840, %v844
  %v847 = vshll.u32 %v678, 16
  %v849 = vrot.slane %v847, 1
  %v850 = vsel %vm286, %v845, %v849
  %v852 = vshrl.u32 %v607, 16
  %v854 = vshll.u32 %v607, 16
  %v856 = vrot.slane %v854, 1
  %v857 = vor.u32 %v852, %v856
  %v859 = vshll.u32 %v679, 16
  %v861 = vrot.slane %v859, 1
  %v862 = vsel %vm286, %v857, %v861
  %v864 = vshrl.u32 %v608, 16
  %v866 = vshll.u32 %v608, 16
  %v868 = vrot.slane %v866, 1
  %v869 = vor.u32 %v864, %v868
  %v871 = vshll.u32 %v680, 16
  %v873 = vrot.slane %v871, 1
  %v874 = vsel %vm286, %v869, %v873
  %v876 = vshrl.u32 %v609, 16
  %v878 = vshll.u32 %v609, 16
  %v880 = vrot.slane %v878, 1
  %v881 = vor.u32 %v876, %v880
  %v883 = vshll.u32 %v681, 16
  %v885 = vrot.slane %v883, 1
  %v886 = vsel %vm286, %v881, %v885
  %v888 = vshrl.u32 %v610, 16
  %v890 = vshll.u32 %v610, 16
  %v892 = vrot.slane %v890, 1
  %v893 = vor.u32 %v888, %v892
  %v895 = vshll.u32 %v682, 16
  %v897 = vrot.slane %v895, 1
  %v898 = vsel %vm286, %v893, %v897
  %v917 = vld [vmem:[%s1] sm:$0xf]
  %v918 = vld [vmem:[%s1 + $0x4] sm:$0xf]
  %v919 = vld [vmem:[%s1 + $0x8] sm:$0xf]
  %v920 = vld [vmem:[%s1 + $0xc] sm:$0xf]
  %v921 = vld [vmem:[%s1 + $0x10] sm:$0xf]
  %v922 = vld [vmem:[%s1 + $0x14] sm:$0xf]
  %v923 = vld [vmem:[%s1 + $0x18] sm:$0xf]
  %v924 = vld [vmem:[%s1 + $0x1c] sm:$0xf]
  %v925 = vld [vmem:[%s1 + $0x20] sm:$0xf]
  %v926 = vld [vmem:[%s1 + $0x24] sm:$0xf]
  %v927 = vld [vmem:[%s1 + $0x28] sm:$0xf]
  %v928 = vld [vmem:[%s1 + $0x2c] sm:$0xf]
  %v929 = vld [vmem:[%s1 + $0x30] sm:$0xf]
  %v930 = vld [vmem:[%s1 + $0x34] sm:$0xf]
  %v931 = vld [vmem:[%s1 + $0x38] sm:$0xf]
  %v932 = vld [vmem:[%s1 + $0x3c] sm:$0xf]
  %v933 = vld [vmem:[%s1 + $0x40] sm:$0xf]
  %v934 = vld [vmem:[%s1 + $0x44] sm:$0xf]
  %v935 = vld [vmem:[%s1 + $0x48] sm:$0xf]
  %v936 = vld [vmem:[%s1 + $0x4c] sm:$0xf]
  %v937 = vld [vmem:[%s1 + $0x50] sm:$0xf]
  %v938 = vld [vmem:[%s1 + $0x54] sm:$0xf]
  %v939 = vld [vmem:[%s1 + $0x58] sm:$0xf]
  %v940 = vld [vmem:[%s1 + $0x5c] sm:$0xf]
  %v941 = vld [vmem:[%s1 + $0x60] sm:$0xf]
  %v942 = vld [vmem:[%s1 + $0x64] sm:$0xf]
  %v943 = vld [vmem:[%s1 + $0x68] sm:$0xf]
  %v944 = vld [vmem:[%s1 + $0x6c] sm:$0xf]
  %v945 = vld [vmem:[%s1 + $0x70] sm:$0xf]
  %v946 = vld [vmem:[%s1 + $0x74] sm:$0xf]
  %v947 = vld [vmem:[%s1 + $0x78] sm:$0xf]
  %v948 = vld [vmem:[%s1 + $0x7c] sm:$0xf]
  %v949 = vld [vmem:[%s1 + $0x80] sm:$0xf]
  %v950 = vld [vmem:[%s1 + $0x84] sm:$0xf]
  %v951 = vld [vmem:[%s1 + $0x88] sm:$0xf]
  %v952 = vld [vmem:[%s1 + $0x8c] sm:$0xf]
  %v953 = vld [vmem:[%s1 + $0x90] sm:$0xf]
  %v954 = vld [vmem:[%s1 + $0x94] sm:$0xf]
  %v955 = vld [vmem:[%s1 + $0x98] sm:$0xf]
  %v956 = vld [vmem:[%s1 + $0x9c] sm:$0xf]
  %v957 = vld [vmem:[%s1 + $0xa0] sm:$0xf]
  %v958 = vld [vmem:[%s1 + $0xa4] sm:$0xf]
  %v959 = vld [vmem:[%s1 + $0xa8] sm:$0xf]
  %v960 = vld [vmem:[%s1 + $0xac] sm:$0xf]
  %v961 = vld [vmem:[%s1 + $0xb0] sm:$0xf]
  %v962 = vld [vmem:[%s1 + $0xb4] sm:$0xf]
  %v963 = vld [vmem:[%s1 + $0xb8] sm:$0xf]
  %v964 = vld [vmem:[%s1 + $0xbc] sm:$0xf]
  %v965 = vld [vmem:[%s1 + $0xc0] sm:$0xf]
  %v966 = vld [vmem:[%s1 + $0xc4] sm:$0xf]
  %v967 = vld [vmem:[%s1 + $0xc8] sm:$0xf]
  %v968 = vld [vmem:[%s1 + $0xcc] sm:$0xf]
  %v969 = vld [vmem:[%s1 + $0xd0] sm:$0xf]
  %v970 = vld [vmem:[%s1 + $0xd4] sm:$0xf]
  %v971 = vld [vmem:[%s1 + $0xd8] sm:$0xf]
  %v972 = vld [vmem:[%s1 + $0xdc] sm:$0xf]
  %v973 = vld [vmem:[%s1 + $0xe0] sm:$0xf]
  %v974 = vld [vmem:[%s1 + $0xe4] sm:$0xf]
  %v975 = vld [vmem:[%s1 + $0xe8] sm:$0xf]
  %v976 = vld [vmem:[%s1 + $0xec] sm:$0xf]
  %v977 = vld [vmem:[%s1 + $0xf0] sm:$0xf]
  %v978 = vld [vmem:[%s1 + $0xf4] sm:$0xf]
  %v979 = vld [vmem:[%s1 + $0xf8] sm:$0xf]
  %v980 = vld [vmem:[%s1 + $0xfc] sm:$0xf]
  %v981 = vld [vmem:[%s2] sm:$0x1]
  %v983 = vlaneseq
  %v984 = vshrl.u32 %v983, 7
  %v985 = vsub.s32 0, %v984
  %v986 = vrot.slane %v981, %v985
  %v1052 = vunpack.c.l.b16 %v917
  %v1053 = vunpack.c.l.b16 %v918
  %v1054 = vunpack.c.l.b16 %v919
  %v1055 = vunpack.c.l.b16 %v920
  %v1056 = vunpack.c.l.b16 %v921
  %v1057 = vunpack.c.l.b16 %v922
  %v1058 = vunpack.c.l.b16 %v923
  %v1059 = vunpack.c.l.b16 %v924
  %v1060 = vunpack.c.l.b16 %v925
  %v1061 = vunpack.c.l.b16 %v926
  %v1062 = vunpack.c.l.b16 %v927
  %v1063 = vunpack.c.l.b16 %v928
  %v1064 = vunpack.c.l.b16 %v929
  %v1065 = vunpack.c.l.b16 %v930
  %v1066 = vunpack.c.l.b16 %v931
  %v1067 = vunpack.c.l.b16 %v932
  %v1068 = vunpack.c.l.b16 %v933
  %v1069 = vunpack.c.l.b16 %v934
  %v1070 = vunpack.c.l.b16 %v935
  %v1071 = vunpack.c.l.b16 %v936
  %v1072 = vunpack.c.l.b16 %v937
  %v1073 = vunpack.c.l.b16 %v938
  %v1074 = vunpack.c.l.b16 %v939
  %v1075 = vunpack.c.l.b16 %v940
  %v1076 = vunpack.c.l.b16 %v941
  %v1077 = vunpack.c.l.b16 %v942
  %v1078 = vunpack.c.l.b16 %v943
  %v1079 = vunpack.c.l.b16 %v944
  %v1080 = vunpack.c.l.b16 %v945
  %v1081 = vunpack.c.l.b16 %v946
  %v1082 = vunpack.c.l.b16 %v947
  %v1083 = vunpack.c.l.b16 %v948
  %v1084 = vunpack.c.l.b16 %v949
  %v1085 = vunpack.c.l.b16 %v950
  %v1086 = vunpack.c.l.b16 %v951
  %v1087 = vunpack.c.l.b16 %v952
  %v1088 = vunpack.c.l.b16 %v953
  %v1089 = vunpack.c.l.b16 %v954
  %v1090 = vunpack.c.l.b16 %v955
  %v1091 = vunpack.c.l.b16 %v956
  %v1092 = vunpack.c.l.b16 %v957
  %v1093 = vunpack.c.l.b16 %v958
  %v1094 = vunpack.c.l.b16 %v959
  %v1095 = vunpack.c.l.b16 %v960
  %v1096 = vunpack.c.l.b16 %v961
  %v1097 = vunpack.c.l.b16 %v962
  %v1098 = vunpack.c.l.b16 %v963
  %v1099 = vunpack.c.l.b16 %v964
  %v1100 = vunpack.c.l.b16 %v965
  %v1101 = vunpack.c.l.b16 %v966
  %v1102 = vunpack.c.l.b16 %v967
  %v1103 = vunpack.c.l.b16 %v968
  %v1104 = vunpack.c.l.b16 %v969
  %v1105 = vunpack.c.l.b16 %v970
  %v1106 = vunpack.c.l.b16 %v971
  %v1107 = vunpack.c.l.b16 %v972
  %v1108 = vunpack.c.l.b16 %v973
  %v1109 = vunpack.c.l.b16 %v974
  %v1110 = vunpack.c.l.b16 %v975
  %v1111 = vunpack.c.l.b16 %v976
  %v1112 = vunpack.c.l.b16 %v977
  %v1113 = vunpack.c.l.b16 %v978
  %v1114 = vunpack.c.l.b16 %v979
  %v1115 = vunpack.c.l.b16 %v980
  %v1116 = vpack.c.b16 %v1053, %v1052
  %v1117 = vpack.c.b16 %v1055, %v1054
  %v1118 = vpack.c.b16 %v1057, %v1056
  %v1119 = vpack.c.b16 %v1059, %v1058
  %v1120 = vpack.c.b16 %v1061, %v1060
  %v1121 = vpack.c.b16 %v1063, %v1062
  %v1122 = vpack.c.b16 %v1065, %v1064
  %v1123 = vpack.c.b16 %v1067, %v1066
  %v1124 = vpack.c.b16 %v1069, %v1068
  %v1125 = vpack.c.b16 %v1071, %v1070
  %v1126 = vpack.c.b16 %v1073, %v1072
  %v1127 = vpack.c.b16 %v1075, %v1074
  %v1128 = vpack.c.b16 %v1077, %v1076
  %v1129 = vpack.c.b16 %v1079, %v1078
  %v1130 = vpack.c.b16 %v1081, %v1080
  %v1131 = vpack.c.b16 %v1083, %v1082
  %v1132 = vpack.c.b16 %v1085, %v1084
  %v1133 = vpack.c.b16 %v1087, %v1086
  %v1134 = vpack.c.b16 %v1089, %v1088
  %v1135 = vpack.c.b16 %v1091, %v1090
  %v1136 = vpack.c.b16 %v1093, %v1092
  %v1137 = vpack.c.b16 %v1095, %v1094
  %v1138 = vpack.c.b16 %v1097, %v1096
  %v1139 = vpack.c.b16 %v1099, %v1098
  %v1140 = vpack.c.b16 %v1101, %v1100
  %v1141 = vpack.c.b16 %v1103, %v1102
  %v1142 = vpack.c.b16 %v1105, %v1104
  %v1143 = vpack.c.b16 %v1107, %v1106
  %v1144 = vpack.c.b16 %v1109, %v1108
  %v1145 = vpack.c.b16 %v1111, %v1110
  %v1146 = vpack.c.b16 %v1113, %v1112
  %v1147 = vpack.c.b16 %v1115, %v1114
  %1180 = vmatprep.subr.bf16.mxu0 0
  %1181 = vmatpush1.bf16.msra.mxu0 %v1116
  %1182 = vmatprep.subr.bf16.mxu0 0
  %1183 = vmatpush1.bf16.msra.mxu0 %v1117
  %1184 = vmatprep.subr.bf16.mxu0 0
  %1185 = vmatpush1.bf16.msra.mxu0 %v1118
  %1186 = vmatprep.subr.bf16.mxu0 0
  %1187 = vmatpush1.bf16.msra.mxu0 %v1119
  %1188 = vmatprep.subr.bf16.mxu0 0
  %1189 = vmatpush1.bf16.msra.mxu0 %v1120
  %1190 = vmatprep.subr.bf16.mxu0 0
  %1191 = vmatpush1.bf16.msra.mxu0 %v1121
  %1192 = vmatprep.subr.bf16.mxu0 0
  %1193 = vmatpush1.bf16.msra.mxu0 %v1122
  %1194 = vmatprep.subr.bf16.mxu0 0
  %1195 = vmatpush1.bf16.msra.mxu0 %v1123
  %1196 = vmatprep.subr.bf16.mxu0 0
  %1197 = vmatpush1.bf16.msra.mxu0 %v1124
  %1198 = vmatprep.subr.bf16.mxu0 0
  %1199 = vmatpush1.bf16.msra.mxu0 %v1125
  %1200 = vmatprep.subr.bf16.mxu0 0
  %1201 = vmatpush1.bf16.msra.mxu0 %v1126
  %1202 = vmatprep.subr.bf16.mxu0 0
  %1203 = vmatpush1.bf16.msra.mxu0 %v1127
  %1204 = vmatprep.subr.bf16.mxu0 0
  %1205 = vmatpush1.bf16.msra.mxu0 %v1128
  %1206 = vmatprep.subr.bf16.mxu0 0
  %1207 = vmatpush1.bf16.msra.mxu0 %v1129
  %1208 = vmatprep.subr.bf16.mxu0 0
  %1209 = vmatpush1.bf16.msra.mxu0 %v1130
  %1210 = vmatprep.subr.bf16.mxu0 0
  %1211 = vmatpush1.bf16.msra.mxu0 %v1131
  %1212 = vmatprep.mubr.bf16.mxu0 %v298
  %1213 = vmatmul.mubr.bf16.gmra.mrb[0].mxu0 %v196
  %v1214 = vpop.f32.mrb[0].mxu0
  %v1215 = vadd.f32 %v986, %v1214
  %v1216 = vpop.f32.mrb[0].mxu0
  %v1217 = vpop.f32.mrb[0].mxu0
  %v1218 = vadd.f32 %v986, %v1217
  %v1219 = vpop.f32.mrb[0].mxu0
  %1220 = vmatprep.mubr.bf16.mxu0 %v310
  %1221 = vmatmul.mubr.bf16.gmra.mrb[0].mxu0 %v197
  %v1222 = vpop.f32.mrb[0].mxu0
  %v1223 = vadd.f32 %v986, %v1222
  %v1224 = vpop.f32.mrb[0].mxu0
  %v1225 = vpop.f32.mrb[0].mxu0
  %v1226 = vadd.f32 %v986, %v1225
  %v1227 = vpop.f32.mrb[0].mxu0
  %1228 = vmatprep.mubr.bf16.mxu0 %v322
  %1229 = vmatmul.mubr.bf16.gmra.mrb[0].mxu0 %v198
  %v1230 = vpop.f32.mrb[0].mxu0
  %v1231 = vadd.f32 %v986, %v1230
  %v1232 = vpop.f32.mrb[0].mxu0
  %v1233 = vpop.f32.mrb[0].mxu0
  %v1234 = vadd.f32 %v986, %v1233
  %v1235 = vpop.f32.mrb[0].mxu0
  %1236 = vmatprep.mubr.bf16.mxu0 %v334
  %1237 = vmatmul.mubr.bf16.gmra.mrb[0].mxu0 %v199
  %v1238 = vpop.f32.mrb[0].mxu0
  %v1239 = vadd.f32 %v986, %v1238
  %v1240 = vpop.f32.mrb[0].mxu0
  %v1241 = vpop.f32.mrb[0].mxu0
  %v1242 = vadd.f32 %v986, %v1241
  %v1243 = vpop.f32.mrb[0].mxu0
  %1244 = vmatprep.mubr.bf16.mxu0 %v346
  %1245 = vmatmul.mubr.bf16.gmra.mrb[0].mxu0 %v200
  %v1246 = vpop.f32.mrb[0].mxu0
  %v1247 = vadd.f32 %v986, %v1246
  %v1248 = vpop.f32.mrb[0].mxu0
  %v1249 = vpop.f32.mrb[0].mxu0
  %v1250 = vadd.f32 %v986, %v1249
  %v1251 = vpop.f32.mrb[0].mxu0
  %1252 = vmatprep.mubr.bf16.mxu0 %v358
  %1253 = vmatmul.mubr.bf16.gmra.mrb[0].mxu0 %v201
  %v1254 = vpop.f32.mrb[0].mxu0
  %v1255 = vadd.f32 %v986, %v1254
  %v1256 = vpop.f32.mrb[0].mxu0
  %v1257 = vpop.f32.mrb[0].mxu0
  %v1258 = vadd.f32 %v986, %v1257
  %v1259 = vpop.f32.mrb[0].mxu0
  %1260 = vmatprep.mubr.bf16.mxu0 %v370
  %1261 = vmatmul.mubr.bf16.gmra.mrb[0].mxu0 %v202
  %v1262 = vpop.f32.mrb[0].mxu0
  %v1263 = vadd.f32 %v986, %v1262
  %v1264 = vpop.f32.mrb[0].mxu0
  %v1265 = vpop.f32.mrb[0].mxu0
  %v1266 = vadd.f32 %v986, %v1265
  %v1267 = vpop.f32.mrb[0].mxu0
  %1268 = vmatprep.mubr.bf16.mxu0 %v382
  %1269 = vmatmul.mubr.bf16.gmra.mrb[0].mxu0 %v203
  %v1270 = vpop.f32.mrb[0].mxu0
  %v1271 = vadd.f32 %v986, %v1270
  %v1272 = vpop.f32.mrb[0].mxu0
  %v1273 = vpop.f32.mrb[0].mxu0
  %v1274 = vadd.f32 %v986, %v1273
  %v1275 = vpop.f32.mrb[0].mxu0
  %1276 = vmatprep.mubr.bf16.mxu0 %v394
  %1277 = vmatmul.mubr.bf16.gmra.mrb[0].mxu0 %v204
  %v1278 = vpop.f32.mrb[0].mxu0
  %v1279 = vadd.f32 %v986, %v1278
  %v1280 = vpop.f32.mrb[0].mxu0
  %v1281 = vpop.f32.mrb[0].mxu0
  %v1282 = vadd.f32 %v986, %v1281
  %v1283 = vpop.f32.mrb[0].mxu0
  %1284 = vmatprep.mubr.bf16.mxu0 %v406
  %1285 = vmatmul.mubr.bf16.gmra.mrb[0].mxu0 %v205
  %v1286 = vpop.f32.mrb[0].mxu0
  %v1287 = vadd.f32 %v986, %v1286
  %v1288 = vpop.f32.mrb[0].mxu0
  %v1289 = vpop.f32.mrb[0].mxu0
  %v1290 = vadd.f32 %v986, %v1289
  %v1291 = vpop.f32.mrb[0].mxu0
  %1292 = vmatprep.mubr.bf16.mxu0 %v418
  %1293 = vmatmul.mubr.bf16.gmra.mrb[0].mxu0 %v206
  %v1294 = vpop.f32.mrb[0].mxu0
  %v1295 = vadd.f32 %v986, %v1294
  %v1296 = vpop.f32.mrb[0].mxu0
  %v1297 = vpop.f32.mrb[0].mxu0
  %v1298 = vadd.f32 %v986, %v1297
  %v1299 = vpop.f32.mrb[0].mxu0
  %1300 = vmatprep.mubr.bf16.mxu0 %v430
  %1301 = vmatmul.mubr.bf16.gmra.mrb[0].mxu0 %v207
  %v1302 = vpop.f32.mrb[0].mxu0
  %v1303 = vadd.f32 %v986, %v1302
  %v1304 = vpop.f32.mrb[0].mxu0
  %v1305 = vpop.f32.mrb[0].mxu0
  %v1306 = vadd.f32 %v986, %v1305
  %v1307 = vpop.f32.mrb[0].mxu0
  %1308 = vmatprep.mubr.bf16.mxu0 %v442
  %1309 = vmatmul.mubr.bf16.gmra.mrb[0].mxu0 %v208
  %v1310 = vpop.f32.mrb[0].mxu0
  %v1311 = vadd.f32 %v986, %v1310
  %v1312 = vpop.f32.mrb[0].mxu0
  %v1313 = vpop.f32.mrb[0].mxu0
  %v1314 = vadd.f32 %v986, %v1313
  %v1315 = vpop.f32.mrb[0].mxu0
  %1316 = vmatprep.mubr.bf16.mxu0 %v454
  %1317 = vmatmul.mubr.bf16.gmra.mrb[0].mxu0 %v209
  %v1318 = vpop.f32.mrb[0].mxu0
  %v1319 = vadd.f32 %v986, %v1318
  %v1320 = vpop.f32.mrb[0].mxu0
  %v1321 = vpop.f32.mrb[0].mxu0
  %v1322 = vadd.f32 %v986, %v1321
  %v1323 = vpop.f32.mrb[0].mxu0
  %1324 = vmatprep.mubr.bf16.mxu0 %v466
  %1325 = vmatmul.mubr.bf16.gmra.mrb[0].mxu0 %v210
  %v1326 = vpop.f32.mrb[0].mxu0
  %v1327 = vadd.f32 %v986, %v1326
  %v1328 = vpop.f32.mrb[0].mxu0
  %v1329 = vpop.f32.mrb[0].mxu0
  %v1330 = vadd.f32 %v986, %v1329
  %v1331 = vpop.f32.mrb[0].mxu0
  %1332 = vmatprep.mubr.bf16.mxu0 %v478
  %1333 = vmatmul.mubr.bf16.gmra.mrb[0].mxu0 %v211
  %v1334 = vpop.f32.mrb[0].mxu0
  %v1335 = vadd.f32 %v986, %v1334
  %v1336 = vpop.f32.mrb[0].mxu0
  %v1337 = vpop.f32.mrb[0].mxu0
  %v1338 = vadd.f32 %v986, %v1337
  %v1339 = vpop.f32.mrb[0].mxu0
  %1340 = vmatprep.mubr.bf16.mxu0 %v490
  %1341 = vmatmul.mubr.bf16.gmra.mrb[0].mxu0 %v212
  %v1342 = vpop.f32.mrb[0].mxu0
  %v1343 = vadd.f32 %v986, %v1342
  %v1344 = vpop.f32.mrb[0].mxu0
  %v1345 = vpop.f32.mrb[0].mxu0
  %v1346 = vadd.f32 %v986, %v1345
  %v1347 = vpop.f32.mrb[0].mxu0
  %1348 = vmatprep.mubr.bf16.mxu0 %v502
  %1349 = vmatmul.mubr.bf16.gmra.mrb[0].mxu0 %v213
  %v1350 = vpop.f32.mrb[0].mxu0
  %v1351 = vadd.f32 %v986, %v1350
  %v1352 = vpop.f32.mrb[0].mxu0
  %v1353 = vpop.f32.mrb[0].mxu0
  %v1354 = vadd.f32 %v986, %v1353
  %v1355 = vpop.f32.mrb[0].mxu0
  %1356 = vdwg.mxu0
  %1357 = vmatprep.subr.bf16.mxu0 0
  %1358 = vmatpush1.bf16.msra.mxu0 %v1132
  %1359 = vmatprep.subr.bf16.mxu0 0
  %1360 = vmatpush1.bf16.msra.mxu0 %v1133
  %1361 = vmatprep.subr.bf16.mxu0 0
  %1362 = vmatpush1.bf16.msra.mxu0 %v1134
  %1363 = vmatprep.subr.bf16.mxu0 0
  %1364 = vmatpush1.bf16.msra.mxu0 %v1135
  %1365 = vmatprep.subr.bf16.mxu0 0
  %1366 = vmatpush1.bf16.msra.mxu0 %v1136
  %1367 = vmatprep.subr.bf16.mxu0 0
  %1368 = vmatpush1.bf16.msra.mxu0 %v1137
  %1369 = vmatprep.subr.bf16.mxu0 0
  %1370 = vmatpush1.bf16.msra.mxu0 %v1138
  %1371 = vmatprep.subr.bf16.mxu0 0
  %1372 = vmatpush1.bf16.msra.mxu0 %v1139
  %1373 = vmatprep.subr.bf16.mxu0 0
  %1374 = vmatpush1.bf16.msra.mxu0 %v1140
  %1375 = vmatprep.subr.bf16.mxu0 0
  %1376 = vmatpush1.bf16.msra.mxu0 %v1141
  %1377 = vmatprep.subr.bf16.mxu0 0
  %1378 = vmatpush1.bf16.msra.mxu0 %v1142
  %1379 = vmatprep.subr.bf16.mxu0 0
  %1380 = vmatpush1.bf16.msra.mxu0 %v1143
  %1381 = vmatprep.subr.bf16.mxu0 0
  %1382 = vmatpush1.bf16.msra.mxu0 %v1144
  %1383 = vmatprep.subr.bf16.mxu0 0
  %1384 = vmatpush1.bf16.msra.mxu0 %v1145
  %1385 = vmatprep.subr.bf16.mxu0 0
  %1386 = vmatpush1.bf16.msra.mxu0 %v1146
  %1387 = vmatprep.subr.bf16.mxu0 0
  %1388 = vmatpush1.bf16.msra.mxu0 %v1147
  %1389 = vmatprep.mubr.bf16.mxu0 %v694
  %1390 = vmatmul.mubr.bf16.gmra.mrb[0].mxu0 %v593
  %v1391 = vpop.f32.mrb[0].mxu0
  %v1392 = vadd.f32 %v1215, %v1391
  %v1393 = vpop.f32.mrb[0].mxu0
  %v1394 = vpop.f32.mrb[0].mxu0
  %v1395 = vadd.f32 %v1218, %v1394
  %v1396 = vpop.f32.mrb[0].mxu0
  %1397 = vmatprep.mubr.bf16.mxu0 %v706
  %1398 = vmatmul.mubr.bf16.gmra.mrb[0].mxu0 %v594
  %v1399 = vpop.f32.mrb[0].mxu0
  %v1400 = vadd.f32 %v1223, %v1399
  %v1401 = vpop.f32.mrb[0].mxu0
  %v1402 = vpop.f32.mrb[0].mxu0
  %v1403 = vadd.f32 %v1226, %v1402
  %v1404 = vpop.f32.mrb[0].mxu0
  %1405 = vmatprep.mubr.bf16.mxu0 %v718
  %1406 = vmatmul.mubr.bf16.gmra.mrb[0].mxu0 %v595
  %v1407 = vpop.f32.mrb[0].mxu0
  %v1408 = vadd.f32 %v1231, %v1407
  %v1409 = vpop.f32.mrb[0].mxu0
  %v1410 = vpop.f32.mrb[0].mxu0
  %v1411 = vadd.f32 %v1234, %v1410
  %v1412 = vpop.f32.mrb[0].mxu0
  %1413 = vmatprep.mubr.bf16.mxu0 %v730
  %1414 = vmatmul.mubr.bf16.gmra.mrb[0].mxu0 %v596
  %v1415 = vpop.f32.mrb[0].mxu0
  %v1416 = vadd.f32 %v1239, %v1415
  %v1417 = vpop.f32.mrb[0].mxu0
  %v1418 = vpop.f32.mrb[0].mxu0
  %v1419 = vadd.f32 %v1242, %v1418
  %v1420 = vpop.f32.mrb[0].mxu0
  %1421 = vmatprep.mubr.bf16.mxu0 %v742
  %1422 = vmatmul.mubr.bf16.gmra.mrb[0].mxu0 %v597
  %v1423 = vpop.f32.mrb[0].mxu0
  %v1424 = vadd.f32 %v1247, %v1423
  %v1425 = vpop.f32.mrb[0].mxu0
  %v1426 = vpop.f32.mrb[0].mxu0
  %v1427 = vadd.f32 %v1250, %v1426
  %v1428 = vpop.f32.mrb[0].mxu0
  %1429 = vmatprep.mubr.bf16.mxu0 %v754
  %1430 = vmatmul.mubr.bf16.gmra.mrb[0].mxu0 %v598
  %v1431 = vpop.f32.mrb[0].mxu0
  %v1432 = vadd.f32 %v1255, %v1431
  %v1433 = vpop.f32.mrb[0].mxu0
  %v1434 = vpop.f32.mrb[0].mxu0
  %v1435 = vadd.f32 %v1258, %v1434
  %v1436 = vpop.f32.mrb[0].mxu0
  %1437 = vmatprep.mubr.bf16.mxu0 %v766
  %1438 = vmatmul.mubr.bf16.gmra.mrb[0].mxu0 %v599
  %v1439 = vpop.f32.mrb[0].mxu0
  %v1440 = vadd.f32 %v1263, %v1439
  %v1441 = vpop.f32.mrb[0].mxu0
  %v1442 = vpop.f32.mrb[0].mxu0
  %v1443 = vadd.f32 %v1266, %v1442
  %v1444 = vpop.f32.mrb[0].mxu0
  %1445 = vmatprep.mubr.bf16.mxu0 %v778
  %1446 = vmatmul.mubr.bf16.gmra.mrb[0].mxu0 %v600
  %v1447 = vpop.f32.mrb[0].mxu0
  %v1448 = vadd.f32 %v1271, %v1447
  %v1449 = vpop.f32.mrb[0].mxu0
  %v1450 = vpop.f32.mrb[0].mxu0
  %v1451 = vadd.f32 %v1274, %v1450
  %v1452 = vpop.f32.mrb[0].mxu0
  %1453 = vmatprep.mubr.bf16.mxu0 %v790
  %1454 = vmatmul.mubr.bf16.gmra.mrb[0].mxu0 %v601
  %v1455 = vpop.f32.mrb[0].mxu0
  %v1456 = vadd.f32 %v1279, %v1455
  %v1457 = vpop.f32.mrb[0].mxu0
  %v1458 = vpop.f32.mrb[0].mxu0
  %v1459 = vadd.f32 %v1282, %v1458
  %v1460 = vpop.f32.mrb[0].mxu0
  %1461 = vmatprep.mubr.bf16.mxu0 %v802
  %1462 = vmatmul.mubr.bf16.gmra.mrb[0].mxu0 %v602
  %v1463 = vpop.f32.mrb[0].mxu0
  %v1464 = vadd.f32 %v1287, %v1463
  %v1465 = vpop.f32.mrb[0].mxu0
  %v1466 = vpop.f32.mrb[0].mxu0
  %v1467 = vadd.f32 %v1290, %v1466
  %v1468 = vpop.f32.mrb[0].mxu0
  %1469 = vmatprep.mubr.bf16.mxu0 %v814
  %1470 = vmatmul.mubr.bf16.gmra.mrb[0].mxu0 %v603
  %v1471 = vpop.f32.mrb[0].mxu0
  %v1472 = vadd.f32 %v1295, %v1471
  %v1473 = vpop.f32.mrb[0].mxu0
  %v1474 = vpop.f32.mrb[0].mxu0
  %v1475 = vadd.f32 %v1298, %v1474
  %v1476 = vpop.f32.mrb[0].mxu0
  %1477 = vmatprep.mubr.bf16.mxu0 %v826
  %1478 = vmatmul.mubr.bf16.gmra.mrb[0].mxu0 %v604
  %v1479 = vpop.f32.mrb[0].mxu0
  %v1480 = vadd.f32 %v1303, %v1479
  %v1481 = vpop.f32.mrb[0].mxu0
  %v1482 = vpop.f32.mrb[0].mxu0
  %v1483 = vadd.f32 %v1306, %v1482
  %v1484 = vpop.f32.mrb[0].mxu0
  %1485 = vmatprep.mubr.bf16.mxu0 %v838
  %1486 = vmatmul.mubr.bf16.gmra.mrb[0].mxu0 %v605
  %v1487 = vpop.f32.mrb[0].mxu0
  %v1488 = vadd.f32 %v1311, %v1487
  %v1489 = vpop.f32.mrb[0].mxu0
  %v1490 = vpop.f32.mrb[0].mxu0
  %v1491 = vadd.f32 %v1314, %v1490
  %v1492 = vpop.f32.mrb[0].mxu0
  %1493 = vmatprep.mubr.bf16.mxu0 %v850
  %1494 = vmatmul.mubr.bf16.gmra.mrb[0].mxu0 %v606
  %v1495 = vpop.f32.mrb[0].mxu0
  %v1496 = vadd.f32 %v1319, %v1495
  %v1497 = vpop.f32.mrb[0].mxu0
  %v1498 = vpop.f32.mrb[0].mxu0
  %v1499 = vadd.f32 %v1322, %v1498
  %v1500 = vpop.f32.mrb[0].mxu0
  %1501 = vmatprep.mubr.bf16.mxu0 %v862
  %1502 = vmatmul.mubr.bf16.gmra.mrb[0].mxu0 %v607
  %v1503 = vpop.f32.mrb[0].mxu0
  %v1504 = vadd.f32 %v1327, %v1503
  %v1505 = vpop.f32.mrb[0].mxu0
  %v1506 = vpop.f32.mrb[0].mxu0
  %v1507 = vadd.f32 %v1330, %v1506
  %v1508 = vpop.f32.mrb[0].mxu0
  %1509 = vmatprep.mubr.bf16.mxu0 %v874
  %1510 = vmatmul.mubr.bf16.gmra.mrb[0].mxu0 %v608
  %v1511 = vpop.f32.mrb[0].mxu0
  %v1512 = vadd.f32 %v1335, %v1511
  %v1513 = vpop.f32.mrb[0].mxu0
  %v1514 = vpop.f32.mrb[0].mxu0
  %v1515 = vadd.f32 %v1338, %v1514
  %v1516 = vpop.f32.mrb[0].mxu0
  %1517 = vmatprep.mubr.bf16.mxu0 %v886
  %1518 = vmatmul.mubr.bf16.gmra.mrb[0].mxu0 %v609
  %v1519 = vpop.f32.mrb[0].mxu0
  %v1520 = vadd.f32 %v1343, %v1519
  %v1521 = vpop.f32.mrb[0].mxu0
  %v1522 = vpop.f32.mrb[0].mxu0
  %v1523 = vadd.f32 %v1346, %v1522
  %v1524 = vpop.f32.mrb[0].mxu0
  %1525 = vmatprep.mubr.bf16.mxu0 %v898
  %1526 = vmatmul.mubr.bf16.gmra.mrb[0].mxu0 %v610
  %v1527 = vpop.f32.mrb[0].mxu0
  %v1528 = vadd.f32 %v1351, %v1527
  %v1529 = vpop.f32.mrb[0].mxu0
  %v1530 = vpop.f32.mrb[0].mxu0
  %v1531 = vadd.f32 %v1354, %v1530
  %v1532 = vpop.f32.mrb[0].mxu0
  %1533 = vdwg.mxu0
  %v1534 = vmax.f32 %v1392, 0.0
  %v1535 = vmax.f32 %v1395, 0.0
  %v1536 = vmax.f32 %v1400, 0.0
  %v1537 = vmax.f32 %v1403, 0.0
  %v1538 = vmax.f32 %v1408, 0.0
  %v1539 = vmax.f32 %v1411, 0.0
  %v1540 = vmax.f32 %v1416, 0.0
  %v1541 = vmax.f32 %v1419, 0.0
  %v1542 = vmax.f32 %v1424, 0.0
  %v1543 = vmax.f32 %v1427, 0.0
  %v1544 = vmax.f32 %v1432, 0.0
  %v1545 = vmax.f32 %v1435, 0.0
  %v1546 = vmax.f32 %v1440, 0.0
  %v1547 = vmax.f32 %v1443, 0.0
  %v1548 = vmax.f32 %v1448, 0.0
  %v1549 = vmax.f32 %v1451, 0.0
  %v1550 = vmax.f32 %v1456, 0.0
  %v1551 = vmax.f32 %v1459, 0.0
  %v1552 = vmax.f32 %v1464, 0.0
  %v1553 = vmax.f32 %v1467, 0.0
  %v1554 = vmax.f32 %v1472, 0.0
  %v1555 = vmax.f32 %v1475, 0.0
  %v1556 = vmax.f32 %v1480, 0.0
  %v1557 = vmax.f32 %v1483, 0.0
  %v1558 = vmax.f32 %v1488, 0.0
  %v1559 = vmax.f32 %v1491, 0.0
  %v1560 = vmax.f32 %v1496, 0.0
  %v1561 = vmax.f32 %v1499, 0.0
  %v1562 = vmax.f32 %v1504, 0.0
  %v1563 = vmax.f32 %v1507, 0.0
  %v1564 = vmax.f32 %v1512, 0.0
  %v1565 = vmax.f32 %v1515, 0.0
  %v1566 = vmax.f32 %v1520, 0.0
  %v1567 = vmax.f32 %v1523, 0.0
  %v1568 = vmax.f32 %v1528, 0.0
  %v1569 = vmax.f32 %v1531, 0.0
  %v1570 = vpack.c.bf16 %v1535, %v1534
  %v1571 = vpack.c.bf16 %v1537, %v1536
  %v1572 = vpack.c.bf16 %v1539, %v1538
  %v1573 = vpack.c.bf16 %v1541, %v1540
  %v1574 = vpack.c.bf16 %v1543, %v1542
  %v1575 = vpack.c.bf16 %v1545, %v1544
  %v1576 = vpack.c.bf16 %v1547, %v1546
  %v1577 = vpack.c.bf16 %v1549, %v1548
  %v1578 = vpack.c.bf16 %v1551, %v1550
  %v1579 = vpack.c.bf16 %v1553, %v1552
  %v1580 = vpack.c.bf16 %v1555, %v1554
  %v1581 = vpack.c.bf16 %v1557, %v1556
  %v1582 = vpack.c.bf16 %v1559, %v1558
  %v1583 = vpack.c.bf16 %v1561, %v1560
  %v1584 = vpack.c.bf16 %v1563, %v1562
  %v1585 = vpack.c.bf16 %v1565, %v1564
  %v1586 = vpack.c.bf16 %v1567, %v1566
  %v1587 = vpack.c.bf16 %v1569, %v1568
  %v1606 = vunpack.c.l.b16 %v1570
  %v1607 = vunpack.c.h.b16 %v1570
  %v1608 = vunpack.c.l.b16 %v1571
  %v1609 = vunpack.c.h.b16 %v1571
  %v1610 = vunpack.c.l.b16 %v1572
  %v1611 = vunpack.c.h.b16 %v1572
  %v1612 = vunpack.c.l.b16 %v1573
  %v1613 = vunpack.c.h.b16 %v1573
  %v1614 = vunpack.c.l.b16 %v1574
  %v1615 = vunpack.c.h.b16 %v1574
  %v1616 = vunpack.c.l.b16 %v1575
  %v1617 = vunpack.c.h.b16 %v1575
  %v1618 = vunpack.c.l.b16 %v1576
  %v1619 = vunpack.c.h.b16 %v1576
  %v1620 = vunpack.c.l.b16 %v1577
  %v1621 = vunpack.c.h.b16 %v1577
  %v1622 = vunpack.c.l.b16 %v1578
  %v1623 = vunpack.c.h.b16 %v1578
  %v1624 = vunpack.c.l.b16 %v1579
  %v1625 = vunpack.c.h.b16 %v1579
  %v1626 = vunpack.c.l.b16 %v1580
  %v1627 = vunpack.c.h.b16 %v1580
  %v1628 = vunpack.c.l.b16 %v1581
  %v1629 = vunpack.c.h.b16 %v1581
  %v1630 = vunpack.c.l.b16 %v1582
  %v1631 = vunpack.c.h.b16 %v1582
  %v1632 = vunpack.c.l.b16 %v1583
  %v1633 = vunpack.c.h.b16 %v1583
  %v1634 = vunpack.c.l.b16 %v1584
  %v1635 = vunpack.c.h.b16 %v1584
  %v1636 = vunpack.c.l.b16 %v1585
  %v1637 = vunpack.c.h.b16 %v1585
  %v1638 = vunpack.c.l.b16 %v1586
  %v1639 = vunpack.c.h.b16 %v1586
  %v1640 = vunpack.c.l.b16 %v1587
  %v1641 = vunpack.c.h.b16 %v1587
  %v1642 = vpack.c.b16 %v1606, %v1606
  %v1643 = vpack.c.b16 %v1607, %v1607
  %v1644 = vpack.c.b16 %v1608, %v1608
  %v1645 = vpack.c.b16 %v1609, %v1609
  %v1646 = vpack.c.b16 %v1610, %v1610
  %v1647 = vpack.c.b16 %v1611, %v1611
  %v1648 = vpack.c.b16 %v1612, %v1612
  %v1649 = vpack.c.b16 %v1613, %v1613
  %v1650 = vpack.c.b16 %v1614, %v1614
  %v1651 = vpack.c.b16 %v1615, %v1615
  %v1652 = vpack.c.b16 %v1616, %v1616
  %v1653 = vpack.c.b16 %v1617, %v1617
  %v1654 = vpack.c.b16 %v1618, %v1618
  %v1655 = vpack.c.b16 %v1619, %v1619
  %v1656 = vpack.c.b16 %v1620, %v1620
  %v1657 = vpack.c.b16 %v1621, %v1621
  %v1658 = vpack.c.b16 %v1622, %v1622
  %v1659 = vpack.c.b16 %v1623, %v1623
  %v1660 = vpack.c.b16 %v1624, %v1624
  %v1661 = vpack.c.b16 %v1625, %v1625
  %v1662 = vpack.c.b16 %v1626, %v1626
  %v1663 = vpack.c.b16 %v1627, %v1627
  %v1664 = vpack.c.b16 %v1628, %v1628
  %v1665 = vpack.c.b16 %v1629, %v1629
  %v1666 = vpack.c.b16 %v1630, %v1630
  %v1667 = vpack.c.b16 %v1631, %v1631
  %v1668 = vpack.c.b16 %v1632, %v1632
  %v1669 = vpack.c.b16 %v1633, %v1633
  %v1670 = vpack.c.b16 %v1634, %v1634
  %v1671 = vpack.c.b16 %v1635, %v1635
  %v1672 = vpack.c.b16 %v1636, %v1636
  %v1673 = vpack.c.b16 %v1637, %v1637
  %v1674 = vpack.c.b16 %v1638, %v1638
  %v1675 = vpack.c.b16 %v1639, %v1639
  %v1676 = vpack.c.b16 %v1640, %v1640
  %v1677 = vpack.c.b16 %v1641, %v1641
  %vm1714 = vcmask 519168
  %1715 = vst.msk [vmem:[%s3] sm:$0xf] %vm1714, %v1642
  %1716 = vst.msk [vmem:[%s3 + $0x4] sm:$0xf] %vm1714, %v1643
  %1717 = vst.msk [vmem:[%s3 + $0x8] sm:$0xf] %vm1714, %v1644
  %1718 = vst.msk [vmem:[%s3 + $0xc] sm:$0xf] %vm1714, %v1645
  %1719 = vst.msk [vmem:[%s3 + $0x10] sm:$0xf] %vm1714, %v1646
  %1720 = vst.msk [vmem:[%s3 + $0x14] sm:$0xf] %vm1714, %v1647
  %1721 = vst.msk [vmem:[%s3 + $0x18] sm:$0xf] %vm1714, %v1648
  %1722 = vst.msk [vmem:[%s3 + $0x1c] sm:$0xf] %vm1714, %v1649
  %1723 = vst.msk [vmem:[%s3 + $0x20] sm:$0xf] %vm1714, %v1650
  %1724 = vst.msk [vmem:[%s3 + $0x24] sm:$0xf] %vm1714, %v1651
  %1725 = vst.msk [vmem:[%s3 + $0x28] sm:$0xf] %vm1714, %v1652
  %1726 = vst.msk [vmem:[%s3 + $0x2c] sm:$0xf] %vm1714, %v1653
  %1727 = vst.msk [vmem:[%s3 + $0x30] sm:$0xf] %vm1714, %v1654
  %1728 = vst.msk [vmem:[%s3 + $0x34] sm:$0xf] %vm1714, %v1655
  %1729 = vst.msk [vmem:[%s3 + $0x38] sm:$0xf] %vm1714, %v1656
  %1730 = vst.msk [vmem:[%s3 + $0x3c] sm:$0xf] %vm1714, %v1657
  %1731 = vst.msk [vmem:[%s3 + $0x40] sm:$0xf] %vm1714, %v1658
  %1732 = vst.msk [vmem:[%s3 + $0x44] sm:$0xf] %vm1714, %v1659
  %1733 = vst.msk [vmem:[%s3 + $0x48] sm:$0xf] %vm1714, %v1660
  %1734 = vst.msk [vmem:[%s3 + $0x4c] sm:$0xf] %vm1714, %v1661
  %1735 = vst.msk [vmem:[%s3 + $0x50] sm:$0xf] %vm1714, %v1662
  %1736 = vst.msk [vmem:[%s3 + $0x54] sm:$0xf] %vm1714, %v1663
  %1737 = vst.msk [vmem:[%s3 + $0x58] sm:$0xf] %vm1714, %v1664
  %1738 = vst.msk [vmem:[%s3 + $0x5c] sm:$0xf] %vm1714, %v1665
  %1739 = vst.msk [vmem:[%s3 + $0x60] sm:$0xf] %vm1714, %v1666
  %1740 = vst.msk [vmem:[%s3 + $0x64] sm:$0xf] %vm1714, %v1667
  %1741 = vst.msk [vmem:[%s3 + $0x68] sm:$0xf] %vm1714, %v1668
  %1742 = vst.msk [vmem:[%s3 + $0x6c] sm:$0xf] %vm1714, %v1669
  %1743 = vst.msk [vmem:[%s3 + $0x70] sm:$0xf] %vm1714, %v1670
  %1744 = vst.msk [vmem:[%s3 + $0x74] sm:$0xf] %vm1714, %v1671
  %1745 = vst.msk [vmem:[%s3 + $0x78] sm:$0xf] %vm1714, %v1672
  %1746 = vst.msk [vmem:[%s3 + $0x7c] sm:$0xf] %vm1714, %v1673
  %1747 = vst.msk [vmem:[%s3 + $0x80] sm:$0xf] %vm1714, %v1674
  %1748 = vst.msk [vmem:[%s3 + $0x84] sm:$0xf] %vm1714, %v1675
  %1749 = vst.msk [vmem:[%s3 + $0x88] sm:$0xf] %vm1714, %v1676
  %1750 = vst.msk [vmem:[%s3 + $0x8c] sm:$0xf] %vm1714, %v1677
  // Predicated region
  $region14: #{dcqn_forward.5} parent=0 // pred_check
    _
  $region15: #{dcqn_forward.5} parent=0 // pred_check_branch
    %1752 = sbr.rel (0) target = $region17
  $region16: #{dcqn_forward.5} parent=0 // pred_region
    _
  $region17: #{dcqn_forward.5} parent=0 // pred_fallthru
    _
  // Predicated region
  $region18: #{dcqn_forward.5} parent=0 // pred_check
    _
  $region19: #{dcqn_forward.5} parent=0 // pred_check_branch
    %1754 = sbr.rel (0) target = $region21
  $region20: #{dcqn_forward.5} parent=0 // pred_region
    _
  $region21: #{dcqn_forward.5} parent=0 // pred_fallthru
    _

// kernel: dcqn_forward.6
$region0: #{dcqn_forward.6}
  #allocation0 [shape = 'u32[]', space=smem, size = 0x4, offset = 0x4, fixed_abs, tag = 'smem constant byte address 0x4 - core index']
  #allocation1 [shape = 'u32[144,128]{1,0:T(1,128)}', space=vmem, size = 0x12000, scoped, tag = 'internal scratch']
  %s0 = inlined_call_operand.vmem [shape: bf16[2,9,16,64], index: 0, kind: input, shape index: {}]
  %s1 = inlined_call_operand.vmem [shape: bf16[576,64], index: 1, kind: input, shape index: {}]
  %s2 = inlined_call_operand.vmem [shape: f32[1,64], index: 2, kind: input, shape index: {}]
  %s3 = inlined_call_operand.vmem [shape: bf16[2,7,8,64], index: 3, kind: output, shape index: {}]
  %s4 = sld [smem:[#allocation0]]
  $region22: #{dcqn_forward.6} parent=0
    _
  %s6 = ssub.s32 1, %s4
  %s7 = scalar_select 0, %s6, %s4
  // Predicated region
  $region2: #{dcqn_forward.6} parent=0 // pred_check
    _
  $region3: #{dcqn_forward.6} parent=0 // pred_check_branch
    %9 = sbr.rel (0) target = $region5
  $region4: #{dcqn_forward.6} parent=0 // pred_region
    _
  $region5: #{dcqn_forward.6} parent=0 // pred_fallthru
    _
  // Predicated region
  $region6: #{dcqn_forward.6} parent=0 // pred_check
    _
  $region7: #{dcqn_forward.6} parent=0 // pred_check_branch
    %11 = sbr.rel (0) target = $region9
  $region8: #{dcqn_forward.6} parent=0 // pred_region
    _
  $region9: #{dcqn_forward.6} parent=0 // pred_fallthru
    _
  // Predicated region
  $region10: #{dcqn_forward.6} parent=0 // pred_check
    _
  $region11: #{dcqn_forward.6} parent=0 // pred_check_branch
    %13 = sbr.rel (0) target = $region13
  $region12: #{dcqn_forward.6} parent=0 // pred_region
    _
  $region13: #{dcqn_forward.6} parent=0 // pred_fallthru
    _
  %v15 = vld [vmem:[%s0] sm:$0xf]
  %v16 = vld [vmem:[%s0 + $0x8] sm:$0xf]
  %v17 = vld [vmem:[%s0 + $0x10] sm:$0xf]
  %v18 = vld [vmem:[%s0 + $0x18] sm:$0xf]
  %v19 = vld [vmem:[%s0 + $0x20] sm:$0xf]
  %v20 = vld [vmem:[%s0 + $0x28] sm:$0xf]
  %v21 = vld [vmem:[%s0 + $0x30] sm:$0xf]
  %v22 = vld [vmem:[%s0 + $0x48] sm:$0xf]
  %v23 = vld [vmem:[%s0 + $0x50] sm:$0xf]
  %v24 = vld [vmem:[%s0 + $0x58] sm:$0xf]
  %v25 = vld [vmem:[%s0 + $0x60] sm:$0xf]
  %v26 = vld [vmem:[%s0 + $0x68] sm:$0xf]
  %v27 = vld [vmem:[%s0 + $0x70] sm:$0xf]
  %v28 = vld [vmem:[%s0 + $0x78] sm:$0xf]
  %v29 = vld [vmem:[%s0 + $0x4] sm:$0x1]
  %v30 = vld [vmem:[%s0 + $0xc] sm:$0x1]
  %v31 = vld [vmem:[%s0 + $0x14] sm:$0x1]
  %v32 = vld [vmem:[%s0 + $0x1c] sm:$0x1]
  %v33 = vld [vmem:[%s0 + $0x24] sm:$0x1]
  %v34 = vld [vmem:[%s0 + $0x2c] sm:$0x1]
  %v35 = vld [vmem:[%s0 + $0x34] sm:$0x1]
  %v36 = vld [vmem:[%s0 + $0x4c] sm:$0x1]
  %v37 = vld [vmem:[%s0 + $0x54] sm:$0x1]
  %v38 = vld [vmem:[%s0 + $0x5c] sm:$0x1]
  %v39 = vld [vmem:[%s0 + $0x64] sm:$0x1]
  %v40 = vld [vmem:[%s0 + $0x6c] sm:$0x1]
  %v41 = vld [vmem:[%s0 + $0x74] sm:$0x1]
  %v42 = vld [vmem:[%s0 + $0x7c] sm:$0x1]
  %v43 = vld [vmem:[%s0] sm:$0xe]
  %v44 = vld [vmem:[%s0 + $0x8] sm:$0xe]
  %v45 = vld [vmem:[%s0 + $0x10] sm:$0xe]
  %v46 = vld [vmem:[%s0 + $0x18] sm:$0xe]
  %v47 = vld [vmem:[%s0 + $0x20] sm:$0xe]
  %v48 = vld [vmem:[%s0 + $0x28] sm:$0xe]
  %v49 = vld [vmem:[%s0 + $0x30] sm:$0xe]
  %v50 = vld [vmem:[%s0 + $0x48] sm:$0xe]
  %v51 = vld [vmem:[%s0 + $0x50] sm:$0xe]
  %v52 = vld [vmem:[%s0 + $0x58] sm:$0xe]
  %v53 = vld [vmem:[%s0 + $0x60] sm:$0xe]
  %v54 = vld [vmem:[%s0 + $0x68] sm:$0xe]
  %v55 = vld [vmem:[%s0 + $0x70] sm:$0xe]
  %v56 = vld [vmem:[%s0 + $0x78] sm:$0xe]
  %s57 = scalar_lea.vmem %s0, 8
  %v58 = vld [vmem:[%s57] sm:$0xf]
  %v59 = vld [vmem:[%s57 + $0x8] sm:$0xf]
  %v60 = vld [vmem:[%s57 + $0x10] sm:$0xf]
  %v61 = vld [vmem:[%s57 + $0x18] sm:$0xf]
  %v62 = vld [vmem:[%s57 + $0x20] sm:$0xf]
  %v63 = vld [vmem:[%s57 + $0x28] sm:$0xf]
  %v64 = vld [vmem:[%s57 + $0x30] sm:$0xf]
  %v65 = vld [vmem:[%s57 + $0x48] sm:$0xf]
  %v66 = vld [vmem:[%s57 + $0x50] sm:$0xf]
  %v67 = vld [vmem:[%s57 + $0x58] sm:$0xf]
  %v68 = vld [vmem:[%s57 + $0x60] sm:$0xf]
  %v69 = vld [vmem:[%s57 + $0x68] sm:$0xf]
  %v70 = vld [vmem:[%s57 + $0x70] sm:$0xf]
  %v71 = vld [vmem:[%s57 + $0x78] sm:$0xf]
  %v72 = vld [vmem:[%s57 + $0x4] sm:$0x1]
  %v73 = vld [vmem:[%s57 + $0xc] sm:$0x1]
  %v74 = vld [vmem:[%s57 + $0x14] sm:$0x1]
  %v75 = vld [vmem:[%s57 + $0x1c] sm:$0x1]
  %v76 = vld [vmem:[%s57 + $0x24] sm:$0x1]
  %v77 = vld [vmem:[%s57 + $0x2c] sm:$0x1]
  %v78 = vld [vmem:[%s57 + $0x34] sm:$0x1]
  %v79 = vld [vmem:[%s57 + $0x4c] sm:$0x1]
  %v80 = vld [vmem:[%s57 + $0x54] sm:$0x1]
  %v81 = vld [vmem:[%s57 + $0x5c] sm:$0x1]
  %v82 = vld [vmem:[%s57 + $0x64] sm:$0x1]
  %v83 = vld [vmem:[%s57 + $0x6c] sm:$0x1]
  %v84 = vld [vmem:[%s57 + $0x74] sm:$0x1]
  %v85 = vld [vmem:[%s57 + $0x7c] sm:$0x1]
  %v86 = vld [vmem:[%s57] sm:$0xe]
  %v87 = vld [vmem:[%s57 + $0x8] sm:$0xe]
  %v88 = vld [vmem:[%s57 + $0x10] sm:$0xe]
  %v89 = vld [vmem:[%s57 + $0x18] sm:$0xe]
  %v90 = vld [vmem:[%s57 + $0x20] sm:$0xe]
  %v91 = vld [vmem:[%s57 + $0x28] sm:$0xe]
  %v92 = vld [vmem:[%s57 + $0x30] sm:$0xe]
  %v93 = vld [vmem:[%s57 + $0x48] sm:$0xe]
  %v94 = vld [vmem:[%s57 + $0x50] sm:$0xe]
  %v95 = vld [vmem:[%s57 + $0x58] sm:$0xe]
  %v96 = vld [vmem:[%s57 + $0x60] sm:$0xe]
  %v97 = vld [vmem:[%s57 + $0x68] sm:$0xe]
  %v98 = vld [vmem:[%s57 + $0x70] sm:$0xe]
  %v99 = vld [vmem:[%s57 + $0x78] sm:$0xe]
  %s100 = scalar_lea.vmem %s0, 16
  %v101 = vld [vmem:[%s100] sm:$0xf]
  %v102 = vld [vmem:[%s100 + $0x8] sm:$0xf]
  %v103 = vld [vmem:[%s100 + $0x10] sm:$0xf]
  %v104 = vld [vmem:[%s100 + $0x18] sm:$0xf]
  %v105 = vld [vmem:[%s100 + $0x20] sm:$0xf]
  %v106 = vld [vmem:[%s100 + $0x28] sm:$0xf]
  %v107 = vld [vmem:[%s100 + $0x30] sm:$0xf]
  %v108 = vld [vmem:[%s100 + $0x48] sm:$0xf]
  %v109 = vld [vmem:[%s100 + $0x50] sm:$0xf]
  %v110 = vld [vmem:[%s100 + $0x58] sm:$0xf]
  %v111 = vld [vmem:[%s100 + $0x60] sm:$0xf]
  %v112 = vld [vmem:[%s100 + $0x68] sm:$0xf]
  %v113 = vld [vmem:[%s100 + $0x70] sm:$0xf]
  %v114 = vld [vmem:[%s100 + $0x78] sm:$0xf]
  %v115 = vld [vmem:[%s100 + $0x4] sm:$0x1]
  %v116 = vld [vmem:[%s100 + $0xc] sm:$0x1]
  %v117 = vld [vmem:[%s100 + $0x14] sm:$0x1]
  %v118 = vld [vmem:[%s100 + $0x1c] sm:$0x1]
  %v119 = vld [vmem:[%s100 + $0x24] sm:$0x1]
  %v120 = vld [vmem:[%s100 + $0x2c] sm:$0x1]
  %v121 = vld [vmem:[%s100 + $0x34] sm:$0x1]
  %v122 = vld [vmem:[%s100 + $0x4c] sm:$0x1]
  %v123 = vld [vmem:[%s100 + $0x54] sm:$0x1]
  %v124 = vld [vmem:[%s100 + $0x5c] sm:$0x1]
  %v125 = vld [vmem:[%s100 + $0x64] sm:$0x1]
  %v126 = vld [vmem:[%s100 + $0x6c] sm:$0x1]
  %v127 = vld [vmem:[%s100 + $0x74] sm:$0x1]
  %v128 = vld [vmem:[%s100 + $0x7c] sm:$0x1]
  %v129 = vld [vmem:[%s100] sm:$0xe]
  %v130 = vld [vmem:[%s100 + $0x8] sm:$0xe]
  %v131 = vld [vmem:[%s100 + $0x10] sm:$0xe]
  %v132 = vld [vmem:[%s100 + $0x18] sm:$0xe]
  %v133 = vld [vmem:[%s100 + $0x20] sm:$0xe]
  %v134 = vld [vmem:[%s100 + $0x28] sm:$0xe]
  %v135 = vld [vmem:[%s100 + $0x30] sm:$0xe]
  %v136 = vld [vmem:[%s100 + $0x48] sm:$0xe]
  %v137 = vld [vmem:[%s100 + $0x50] sm:$0xe]
  %v138 = vld [vmem:[%s100 + $0x58] sm:$0xe]
  %v139 = vld [vmem:[%s100 + $0x60] sm:$0xe]
  %v140 = vld [vmem:[%s100 + $0x68] sm:$0xe]
  %v141 = vld [vmem:[%s100 + $0x70] sm:$0xe]
  %v142 = vld [vmem:[%s100 + $0x78] sm:$0xe]
  %v171 = vunpack.c.l.b16 %v15
  %v172 = vunpack.c.l.b16 %v29
  %v173 = vunpack.c.l.b16 %v16
  %v174 = vunpack.c.l.b16 %v30
  %v175 = vunpack.c.l.b16 %v17
  %v176 = vunpack.c.l.b16 %v31
  %v177 = vunpack.c.l.b16 %v18
  %v178 = vunpack.c.l.b16 %v32
  %v179 = vunpack.c.l.b16 %v19
  %v180 = vunpack.c.l.b16 %v33
  %v181 = vunpack.c.l.b16 %v20
  %v182 = vunpack.c.l.b16 %v34
  %v183 = vunpack.c.l.b16 %v21
  %v184 = vunpack.c.l.b16 %v35
  %v185 = vunpack.c.l.b16 %v22
  %v186 = vunpack.c.l.b16 %v36
  %v187 = vunpack.c.l.b16 %v23
  %v188 = vunpack.c.l.b16 %v37
  %v189 = vunpack.c.l.b16 %v24
  %v190 = vunpack.c.l.b16 %v38
  %v191 = vunpack.c.l.b16 %v25
  %v192 = vunpack.c.l.b16 %v39
  %v193 = vunpack.c.l.b16 %v26
  %v194 = vunpack.c.l.b16 %v40
  %v195 = vunpack.c.l.b16 %v27
  %v196 = vunpack.c.l.b16 %v41
  %v197 = vunpack.c.l.b16 %v28
  %v198 = vunpack.c.l.b16 %v42
  %v199 = vpack.c.b16 %v172, %v171
  %v200 = vpack.c.b16 %v174, %v173
  %v201 = vpack.c.b16 %v176, %v175
  %v202 = vpack.c.b16 %v178, %v177
  %v203 = vpack.c.b16 %v180, %v179
  %v204 = vpack.c.b16 %v182, %v181
  %v205 = vpack.c.b16 %v184, %v183
  %v206 = vpack.c.b16 %v186, %v185
  %v207 = vpack.c.b16 %v188, %v187
  %v208 = vpack.c.b16 %v190, %v189
  %v209 = vpack.c.b16 %v192, %v191
  %v210 = vpack.c.b16 %v194, %v193
  %v211 = vpack.c.b16 %v196, %v195
  %v212 = vpack.c.b16 %v198, %v197
  %v214 = vshrl.u32 %v199, 16
  %v216 = vshll.u32 %v199, 16
  %v218 = vrot.slane %v216, 1
  %v219 = vor.u32 %v214, %v218
  %v221 = vshrl.u32 %v200, 16
  %v223 = vshll.u32 %v200, 16
  %v225 = vrot.slane %v223, 1
  %v226 = vor.u32 %v221, %v225
  %v228 = vshrl.u32 %v201, 16
  %v230 = vshll.u32 %v201, 16
  %v232 = vrot.slane %v230, 1
  %v233 = vor.u32 %v228, %v232
  %v235 = vshrl.u32 %v202, 16
  %v237 = vshll.u32 %v202, 16
  %v239 = vrot.slane %v237, 1
  %v240 = vor.u32 %v235, %v239
  %v242 = vshrl.u32 %v203, 16
  %v244 = vshll.u32 %v203, 16
  %v246 = vrot.slane %v244, 1
  %v247 = vor.u32 %v242, %v246
  %v249 = vshrl.u32 %v204, 16
  %v251 = vshll.u32 %v204, 16
  %v253 = vrot.slane %v251, 1
  %v254 = vor.u32 %v249, %v253
  %v256 = vshrl.u32 %v205, 16
  %v258 = vshll.u32 %v205, 16
  %v260 = vrot.slane %v258, 1
  %v261 = vor.u32 %v256, %v260
  %v263 = vshrl.u32 %v206, 16
  %v265 = vshll.u32 %v206, 16
  %v267 = vrot.slane %v265, 1
  %v268 = vor.u32 %v263, %v267
  %v270 = vshrl.u32 %v207, 16
  %v272 = vshll.u32 %v207, 16
  %v274 = vrot.slane %v272, 1
  %v275 = vor.u32 %v270, %v274
  %v277 = vshrl.u32 %v208, 16
  %v279 = vshll.u32 %v208, 16
  %v281 = vrot.slane %v279, 1
  %v282 = vor.u32 %v277, %v281
  %v284 = vshrl.u32 %v209, 16
  %v286 = vshll.u32 %v209, 16
  %v288 = vrot.slane %v286, 1
  %v289 = vor.u32 %v284, %v288
  %v291 = vshrl.u32 %v210, 16
  %v293 = vshll.u32 %v210, 16
  %v295 = vrot.slane %v293, 1
  %v296 = vor.u32 %v291, %v295
  %v298 = vshrl.u32 %v211, 16
  %v300 = vshll.u32 %v211, 16
  %v302 = vrot.slane %v300, 1
  %v303 = vor.u32 %v298, %v302
  %v305 = vshrl.u32 %v212, 16
  %v307 = vshll.u32 %v212, 16
  %v309 = vrot.slane %v307, 1
  %v310 = vor.u32 %v305, %v309
  %311 = vrot.lane.b32.xlu0 %v219, 64
  %v312 = vpop.permute.xlu0 %311
  %313 = vrot.lane.b32.xlu0 %v226, 64
  %v314 = vpop.permute.xlu0 %313
  %315 = vrot.lane.b32.xlu0 %v233, 64
  %v316 = vpop.permute.xlu0 %315
  %317 = vrot.lane.b32.xlu0 %v240, 64
  %v318 = vpop.permute.xlu0 %317
  %319 = vrot.lane.b32.xlu0 %v247, 64
  %v320 = vpop.permute.xlu0 %319
  %321 = vrot.lane.b32.xlu0 %v254, 64
  %v322 = vpop.permute.xlu0 %321
  %323 = vrot.lane.b32.xlu0 %v261, 64
  %v324 = vpop.permute.xlu0 %323
  %325 = vrot.lane.b32.xlu0 %v268, 64
  %v326 = vpop.permute.xlu0 %325
  %327 = vrot.lane.b32.xlu0 %v275, 64
  %v328 = vpop.permute.xlu0 %327
  %329 = vrot.lane.b32.xlu0 %v282, 64
  %v330 = vpop.permute.xlu0 %329
  %331 = vrot.lane.b32.xlu0 %v289, 64
  %v332 = vpop.permute.xlu0 %331
  %333 = vrot.lane.b32.xlu0 %v296, 64
  %v334 = vpop.permute.xlu0 %333
  %335 = vrot.lane.b32.xlu0 %v303, 64
  %v336 = vpop.permute.xlu0 %335
  %337 = vrot.lane.b32.xlu0 %v310, 64
  %v338 = vpop.permute.xlu0 %337
  %v353 = vunpack.c.l.b16 %v43
  %v354 = vunpack.c.l.b16 %v44
  %v355 = vunpack.c.l.b16 %v45
  %v356 = vunpack.c.l.b16 %v46
  %v357 = vunpack.c.l.b16 %v47
  %v358 = vunpack.c.l.b16 %v48
  %v359 = vunpack.c.l.b16 %v49
  %v360 = vunpack.c.l.b16 %v50
  %v361 = vunpack.c.l.b16 %v51
  %v362 = vunpack.c.l.b16 %v52
  %v363 = vunpack.c.l.b16 %v53
  %v364 = vunpack.c.l.b16 %v54
  %v365 = vunpack.c.l.b16 %v55
  %v366 = vunpack.c.l.b16 %v56
  %v367 = vpack.c.b16 %v172, %v353
  %v368 = vpack.c.b16 %v174, %v354
  %v369 = vpack.c.b16 %v176, %v355
  %v370 = vpack.c.b16 %v178, %v356
  %v371 = vpack.c.b16 %v180, %v357
  %v372 = vpack.c.b16 %v182, %v358
  %v373 = vpack.c.b16 %v184, %v359
  %v374 = vpack.c.b16 %v186, %v360
  %v375 = vpack.c.b16 %v188, %v361
  %v376 = vpack.c.b16 %v190, %v362
  %v377 = vpack.c.b16 %v192, %v363
  %v378 = vpack.c.b16 %v194, %v364
  %v379 = vpack.c.b16 %v196, %v365
  %v380 = vpack.c.b16 %v198, %v366
  %v381 = vrot.slane %v367, 1
  %v382 = vrot.slane %v368, 1
  %v383 = vrot.slane %v369, 1
  %v384 = vrot.slane %v370, 1
  %v385 = vrot.slane %v371, 1
  %v386 = vrot.slane %v372, 1
  %v387 = vrot.slane %v373, 1
  %v388 = vrot.slane %v374, 1
  %v389 = vrot.slane %v375, 1
  %v390 = vrot.slane %v376, 1
  %v391 = vrot.slane %v377, 1
  %v392 = vrot.slane %v378, 1
  %v393 = vrot.slane %v379, 1
  %v394 = vrot.slane %v380, 1
  %v409 = vunpack.c.l.b16 %v58
  %v410 = vunpack.c.l.b16 %v59
  %v411 = vunpack.c.l.b16 %v60
  %v412 = vunpack.c.l.b16 %v61
  %v413 = vunpack.c.l.b16 %v62
  %v414 = vunpack.c.l.b16 %v63
  %v415 = vunpack.c.l.b16 %v64
  %v416 = vunpack.c.l.b16 %v65
  %v417 = vunpack.c.l.b16 %v66
  %v418 = vunpack.c.l.b16 %v67
  %v419 = vunpack.c.l.b16 %v68
  %v420 = vunpack.c.l.b16 %v69
  %v421 = vunpack.c.l.b16 %v70
  %v422 = vunpack.c.l.b16 %v71
  %v423 = vpack.c.b16 %v409, %v409
  %v424 = vpack.c.b16 %v410, %v410
  %v425 = vpack.c.b16 %v411, %v411
  %v426 = vpack.c.b16 %v412, %v412
  %v427 = vpack.c.b16 %v413, %v413
  %v428 = vpack.c.b16 %v414, %v414
  %v429 = vpack.c.b16 %v415, %v415
  %v430 = vpack.c.b16 %v416, %v416
  %v431 = vpack.c.b16 %v417, %v417
  %v432 = vpack.c.b16 %v418, %v418
  %v433 = vpack.c.b16 %v419, %v419
  %v434 = vpack.c.b16 %v420, %v420
  %v435 = vpack.c.b16 %v421, %v421
  %v436 = vpack.c.b16 %v422, %v422
  %437 = vrot.lane.b32.xlu0 %v423, 64
  %v438 = vpop.permute.xlu0 %437
  %439 = vrot.lane.b32.xlu0 %v424, 64
  %v440 = vpop.permute.xlu0 %439
  %441 = vrot.lane.b32.xlu0 %v425, 64
  %v442 = vpop.permute.xlu0 %441
  %443 = vrot.lane.b32.xlu0 %v426, 64
  %v444 = vpop.permute.xlu0 %443
  %445 = vrot.lane.b32.xlu0 %v427, 64
  %v446 = vpop.permute.xlu0 %445
  %447 = vrot.lane.b32.xlu0 %v428, 64
  %v448 = vpop.permute.xlu0 %447
  %449 = vrot.lane.b32.xlu0 %v429, 64
  %v450 = vpop.permute.xlu0 %449
  %451 = vrot.lane.b32.xlu0 %v430, 64
  %v452 = vpop.permute.xlu0 %451
  %453 = vrot.lane.b32.xlu0 %v431, 64
  %v454 = vpop.permute.xlu0 %453
  %455 = vrot.lane.b32.xlu0 %v432, 64
  %v456 = vpop.permute.xlu0 %455
  %457 = vrot.lane.b32.xlu0 %v433, 64
  %v458 = vpop.permute.xlu0 %457
  %459 = vrot.lane.b32.xlu0 %v434, 64
  %v460 = vpop.permute.xlu0 %459
  %461 = vrot.lane.b32.xlu0 %v435, 64
  %v462 = vpop.permute.xlu0 %461
  %463 = vrot.lane.b32.xlu0 %v436, 64
  %v464 = vpop.permute.xlu0 %463
  %v479 = vunpack.c.l.b16 %v72
  %v480 = vunpack.c.l.b16 %v73
  %v481 = vunpack.c.l.b16 %v74
  %v482 = vunpack.c.l.b16 %v75
  %v483 = vunpack.c.l.b16 %v76
  %v484 = vunpack.c.l.b16 %v77
  %v485 = vunpack.c.l.b16 %v78
  %v486 = vunpack.c.l.b16 %v79
  %v487 = vunpack.c.l.b16 %v80
  %v488 = vunpack.c.l.b16 %v81
  %v489 = vunpack.c.l.b16 %v82
  %v490 = vunpack.c.l.b16 %v83
  %v491 = vunpack.c.l.b16 %v84
  %v492 = vunpack.c.l.b16 %v85
  %v493 = vpack.c.b16 %v479, %v409
  %v494 = vpack.c.b16 %v480, %v410
  %v495 = vpack.c.b16 %v481, %v411
  %v496 = vpack.c.b16 %v482, %v412
  %v497 = vpack.c.b16 %v483, %v413
  %v498 = vpack.c.b16 %v484, %v414
  %v499 = vpack.c.b16 %v485, %v415
  %v500 = vpack.c.b16 %v486, %v416
  %v501 = vpack.c.b16 %v487, %v417
  %v502 = vpack.c.b16 %v488, %v418
  %v503 = vpack.c.b16 %v489, %v419
  %v504 = vpack.c.b16 %v490, %v420
  %v505 = vpack.c.b16 %v491, %v421
  %v506 = vpack.c.b16 %v492, %v422
  %v508 = vshrl.u32 %v493, 16
  %v510 = vshll.u32 %v493, 16
  %v512 = vrot.slane %v510, 1
  %v513 = vor.u32 %v508, %v512
  %v515 = vshrl.u32 %v494, 16
  %v517 = vshll.u32 %v494, 16
  %v519 = vrot.slane %v517, 1
  %v520 = vor.u32 %v515, %v519
  %v522 = vshrl.u32 %v495, 16
  %v524 = vshll.u32 %v495, 16
  %v526 = vrot.slane %v524, 1
  %v527 = vor.u32 %v522, %v526
  %v529 = vshrl.u32 %v496, 16
  %v531 = vshll.u32 %v496, 16
  %v533 = vrot.slane %v531, 1
  %v534 = vor.u32 %v529, %v533
  %v536 = vshrl.u32 %v497, 16
  %v538 = vshll.u32 %v497, 16
  %v540 = vrot.slane %v538, 1
  %v541 = vor.u32 %v536, %v540
  %v543 = vshrl.u32 %v498, 16
  %v545 = vshll.u32 %v498, 16
  %v547 = vrot.slane %v545, 1
  %v548 = vor.u32 %v543, %v547
  %v550 = vshrl.u32 %v499, 16
  %v552 = vshll.u32 %v499, 16
  %v554 = vrot.slane %v552, 1
  %v555 = vor.u32 %v550, %v554
  %v557 = vshrl.u32 %v500, 16
  %v559 = vshll.u32 %v500, 16
  %v561 = vrot.slane %v559, 1
  %v562 = vor.u32 %v557, %v561
  %v564 = vshrl.u32 %v501, 16
  %v566 = vshll.u32 %v501, 16
  %v568 = vrot.slane %v566, 1
  %v569 = vor.u32 %v564, %v568
  %v571 = vshrl.u32 %v502, 16
  %v573 = vshll.u32 %v502, 16
  %v575 = vrot.slane %v573, 1
  %v576 = vor.u32 %v571, %v575
  %v578 = vshrl.u32 %v503, 16
  %v580 = vshll.u32 %v503, 16
  %v582 = vrot.slane %v580, 1
  %v583 = vor.u32 %v578, %v582
  %v585 = vshrl.u32 %v504, 16
  %v587 = vshll.u32 %v504, 16
  %v589 = vrot.slane %v587, 1
  %v590 = vor.u32 %v585, %v589
  %v592 = vshrl.u32 %v505, 16
  %v594 = vshll.u32 %v505, 16
  %v596 = vrot.slane %v594, 1
  %v597 = vor.u32 %v592, %v596
  %v599 = vshrl.u32 %v506, 16
  %v601 = vshll.u32 %v506, 16
  %v603 = vrot.slane %v601, 1
  %v604 = vor.u32 %v599, %v603
  %v619 = vunpack.c.l.b16 %v86
  %v620 = vunpack.c.l.b16 %v87
  %v621 = vunpack.c.l.b16 %v88
  %v622 = vunpack.c.l.b16 %v89
  %v623 = vunpack.c.l.b16 %v90
  %v624 = vunpack.c.l.b16 %v91
  %v625 = vunpack.c.l.b16 %v92
  %v626 = vunpack.c.l.b16 %v93
  %v627 = vunpack.c.l.b16 %v94
  %v628 = vunpack.c.l.b16 %v95
  %v629 = vunpack.c.l.b16 %v96
  %v630 = vunpack.c.l.b16 %v97
  %v631 = vunpack.c.l.b16 %v98
  %v632 = vunpack.c.l.b16 %v99
  %v633 = vpack.c.b16 %v479, %v619
  %v634 = vpack.c.b16 %v480, %v620
  %v635 = vpack.c.b16 %v481, %v621
  %v636 = vpack.c.b16 %v482, %v622
  %v637 = vpack.c.b16 %v483, %v623
  %v638 = vpack.c.b16 %v484, %v624
  %v639 = vpack.c.b16 %v485, %v625
  %v640 = vpack.c.b16 %v486, %v626
  %v641 = vpack.c.b16 %v487, %v627
  %v642 = vpack.c.b16 %v488, %v628
  %v643 = vpack.c.b16 %v489, %v629
  %v644 = vpack.c.b16 %v490, %v630
  %v645 = vpack.c.b16 %v491, %v631
  %v646 = vpack.c.b16 %v492, %v632
  %v647 = vrot.slane %v633, 1
  %v648 = vrot.slane %v634, 1
  %v649 = vrot.slane %v635, 1
  %v650 = vrot.slane %v636, 1
  %v651 = vrot.slane %v637, 1
  %v652 = vrot.slane %v638, 1
  %v653 = vrot.slane %v639, 1
  %v654 = vrot.slane %v640, 1
  %v655 = vrot.slane %v641, 1
  %v656 = vrot.slane %v642, 1
  %v657 = vrot.slane %v643, 1
  %v658 = vrot.slane %v644, 1
  %v659 = vrot.slane %v645, 1
  %v660 = vrot.slane %v646, 1
  %661 = vrot.lane.b32.xlu0 %v647, 64
  %v662 = vpop.permute.xlu0 %661
  %663 = vrot.lane.b32.xlu0 %v648, 64
  %v664 = vpop.permute.xlu0 %663
  %665 = vrot.lane.b32.xlu0 %v649, 64
  %v666 = vpop.permute.xlu0 %665
  %667 = vrot.lane.b32.xlu0 %v650, 64
  %v668 = vpop.permute.xlu0 %667
  %669 = vrot.lane.b32.xlu0 %v651, 64
  %v670 = vpop.permute.xlu0 %669
  %671 = vrot.lane.b32.xlu0 %v652, 64
  %v672 = vpop.permute.xlu0 %671
  %673 = vrot.lane.b32.xlu0 %v653, 64
  %v674 = vpop.permute.xlu0 %673
  %675 = vrot.lane.b32.xlu0 %v654, 64
  %v676 = vpop.permute.xlu0 %675
  %677 = vrot.lane.b32.xlu0 %v655, 64
  %v678 = vpop.permute.xlu0 %677
  %679 = vrot.lane.b32.xlu0 %v656, 64
  %v680 = vpop.permute.xlu0 %679
  %681 = vrot.lane.b32.xlu0 %v657, 64
  %v682 = vpop.permute.xlu0 %681
  %683 = vrot.lane.b32.xlu0 %v658, 64
  %v684 = vpop.permute.xlu0 %683
  %685 = vrot.lane.b32.xlu0 %v659, 64
  %v686 = vpop.permute.xlu0 %685
  %687 = vrot.lane.b32.xlu0 %v660, 64
  %v688 = vpop.permute.xlu0 %687
  %v717 = vunpack.c.l.b16 %v101
  %v718 = vunpack.c.l.b16 %v115
  %v719 = vunpack.c.l.b16 %v102
  %v720 = vunpack.c.l.b16 %v116
  %v721 = vunpack.c.l.b16 %v103
  %v722 = vunpack.c.l.b16 %v117
  %v723 = vunpack.c.l.b16 %v104
  %v724 = vunpack.c.l.b16 %v118
  %v725 = vunpack.c.l.b16 %v105
  %v726 = vunpack.c.l.b16 %v119
  %v727 = vunpack.c.l.b16 %v106
  %v728 = vunpack.c.l.b16 %v120
  %v729 = vunpack.c.l.b16 %v107
  %v730 = vunpack.c.l.b16 %v121
  %v731 = vunpack.c.l.b16 %v108
  %v732 = vunpack.c.l.b16 %v122
  %v733 = vunpack.c.l.b16 %v109
  %v734 = vunpack.c.l.b16 %v123
  %v735 = vunpack.c.l.b16 %v110
  %v736 = vunpack.c.l.b16 %v124
  %v737 = vunpack.c.l.b16 %v111
  %v738 = vunpack.c.l.b16 %v125
  %v739 = vunpack.c.l.b16 %v112
  %v740 = vunpack.c.l.b16 %v126
  %v741 = vunpack.c.l.b16 %v113
  %v742 = vunpack.c.l.b16 %v127
  %v743 = vunpack.c.l.b16 %v114
  %v744 = vunpack.c.l.b16 %v128
  %v745 = vpack.c.b16 %v718, %v717
  %v746 = vpack.c.b16 %v720, %v719
  %v747 = vpack.c.b16 %v722, %v721
  %v748 = vpack.c.b16 %v724, %v723
  %v749 = vpack.c.b16 %v726, %v725
  %v750 = vpack.c.b16 %v728, %v727
  %v751 = vpack.c.b16 %v730, %v729
  %v752 = vpack.c.b16 %v732, %v731
  %v753 = vpack.c.b16 %v734, %v733
  %v754 = vpack.c.b16 %v736, %v735
  %v755 = vpack.c.b16 %v738, %v737
  %v756 = vpack.c.b16 %v740, %v739
  %v757 = vpack.c.b16 %v742, %v741
  %v758 = vpack.c.b16 %v744, %v743
  %v760 = vshrl.u32 %v745, 16
  %v762 = vshll.u32 %v745, 16
  %v764 = vrot.slane %v762, 1
  %v765 = vor.u32 %v760, %v764
  %v767 = vshrl.u32 %v746, 16
  %v769 = vshll.u32 %v746, 16
  %v771 = vrot.slane %v769, 1
  %v772 = vor.u32 %v767, %v771
  %v774 = vshrl.u32 %v747, 16
  %v776 = vshll.u32 %v747, 16
  %v778 = vrot.slane %v776, 1
  %v779 = vor.u32 %v774, %v778
  %v781 = vshrl.u32 %v748, 16
  %v783 = vshll.u32 %v748, 16
  %v785 = vrot.slane %v783, 1
  %v786 = vor.u32 %v781, %v785
  %v788 = vshrl.u32 %v749, 16
  %v790 = vshll.u32 %v749, 16
  %v792 = vrot.slane %v790, 1
  %v793 = vor.u32 %v788, %v792
  %v795 = vshrl.u32 %v750, 16
  %v797 = vshll.u32 %v750, 16
  %v799 = vrot.slane %v797, 1
  %v800 = vor.u32 %v795, %v799
  %v802 = vshrl.u32 %v751, 16
  %v804 = vshll.u32 %v751, 16
  %v806 = vrot.slane %v804, 1
  %v807 = vor.u32 %v802, %v806
  %v809 = vshrl.u32 %v752, 16
  %v811 = vshll.u32 %v752, 16
  %v813 = vrot.slane %v811, 1
  %v814 = vor.u32 %v809, %v813
  %v816 = vshrl.u32 %v753, 16
  %v818 = vshll.u32 %v753, 16
  %v820 = vrot.slane %v818, 1
  %v821 = vor.u32 %v816, %v820
  %v823 = vshrl.u32 %v754, 16
  %v825 = vshll.u32 %v754, 16
  %v827 = vrot.slane %v825, 1
  %v828 = vor.u32 %v823, %v827
  %v830 = vshrl.u32 %v755, 16
  %v832 = vshll.u32 %v755, 16
  %v834 = vrot.slane %v832, 1
  %v835 = vor.u32 %v830, %v834
  %v837 = vshrl.u32 %v756, 16
  %v839 = vshll.u32 %v756, 16
  %v841 = vrot.slane %v839, 1
  %v842 = vor.u32 %v837, %v841
  %v844 = vshrl.u32 %v757, 16
  %v846 = vshll.u32 %v757, 16
  %v848 = vrot.slane %v846, 1
  %v849 = vor.u32 %v844, %v848
  %v851 = vshrl.u32 %v758, 16
  %v853 = vshll.u32 %v758, 16
  %v855 = vrot.slane %v853, 1
  %v856 = vor.u32 %v851, %v855
  %857 = vrot.lane.b32.xlu0 %v765, 64
  %v858 = vpop.permute.xlu0 %857
  %859 = vrot.lane.b32.xlu0 %v772, 64
  %v860 = vpop.permute.xlu0 %859
  %861 = vrot.lane.b32.xlu0 %v779, 64
  %v862 = vpop.permute.xlu0 %861
  %863 = vrot.lane.b32.xlu0 %v786, 64
  %v864 = vpop.permute.xlu0 %863
  %865 = vrot.lane.b32.xlu0 %v793, 64
  %v866 = vpop.permute.xlu0 %865
  %867 = vrot.lane.b32.xlu0 %v800, 64
  %v868 = vpop.permute.xlu0 %867
  %869 = vrot.lane.b32.xlu0 %v807, 64
  %v870 = vpop.permute.xlu0 %869
  %871 = vrot.lane.b32.xlu0 %v814, 64
  %v872 = vpop.permute.xlu0 %871
  %873 = vrot.lane.b32.xlu0 %v821, 64
  %v874 = vpop.permute.xlu0 %873
  %875 = vrot.lane.b32.xlu0 %v828, 64
  %v876 = vpop.permute.xlu0 %875
  %877 = vrot.lane.b32.xlu0 %v835, 64
  %v878 = vpop.permute.xlu0 %877
  %879 = vrot.lane.b32.xlu0 %v842, 64
  %v880 = vpop.permute.xlu0 %879
  %881 = vrot.lane.b32.xlu0 %v849, 64
  %v882 = vpop.permute.xlu0 %881
  %883 = vrot.lane.b32.xlu0 %v856, 64
  %v884 = vpop.permute.xlu0 %883
  %v899 = vunpack.c.l.b16 %v129
  %v900 = vunpack.c.l.b16 %v130
  %v901 = vunpack.c.l.b16 %v131
  %v902 = vunpack.c.l.b16 %v132
  %v903 = vunpack.c.l.b16 %v133
  %v904 = vunpack.c.l.b16 %v134
  %v905 = vunpack.c.l.b16 %v135
  %v906 = vunpack.c.l.b16 %v136
  %v907 = vunpack.c.l.b16 %v137
  %v908 = vunpack.c.l.b16 %v138
  %v909 = vunpack.c.l.b16 %v139
  %v910 = vunpack.c.l.b16 %v140
  %v911 = vunpack.c.l.b16 %v141
  %v912 = vunpack.c.l.b16 %v142
  %v913 = vpack.c.b16 %v718, %v899
  %v914 = vpack.c.b16 %v720, %v900
  %v915 = vpack.c.b16 %v722, %v901
  %v916 = vpack.c.b16 %v724, %v902
  %v917 = vpack.c.b16 %v726, %v903
  %v918 = vpack.c.b16 %v728, %v904
  %v919 = vpack.c.b16 %v730, %v905
  %v920 = vpack.c.b16 %v732, %v906
  %v921 = vpack.c.b16 %v734, %v907
  %v922 = vpack.c.b16 %v736, %v908
  %v923 = vpack.c.b16 %v738, %v909
  %v924 = vpack.c.b16 %v740, %v910
  %v925 = vpack.c.b16 %v742, %v911
  %v926 = vpack.c.b16 %v744, %v912
  %v927 = vrot.slane %v913, 1
  %v928 = vrot.slane %v914, 1
  %v929 = vrot.slane %v915, 1
  %v930 = vrot.slane %v916, 1
  %v931 = vrot.slane %v917, 1
  %v932 = vrot.slane %v918, 1
  %v933 = vrot.slane %v919, 1
  %v934 = vrot.slane %v920, 1
  %v935 = vrot.slane %v921, 1
  %v936 = vrot.slane %v922, 1
  %v937 = vrot.slane %v923, 1
  %v938 = vrot.slane %v924, 1
  %v939 = vrot.slane %v925, 1
  %v940 = vrot.slane %v926, 1
  %vm941 = vcmask 523264
  %v944 = vsel %vm941, %v15, %v312
  %v947 = vsel %vm941, %v16, %v314
  %v950 = vsel %vm941, %v17, %v316
  %v953 = vsel %vm941, %v18, %v318
  %v956 = vsel %vm941, %v19, %v320
  %v959 = vsel %vm941, %v20, %v322
  %v962 = vsel %vm941, %v21, %v324
  %v965 = vsel %vm941, %v22, %v326
  %v968 = vsel %vm941, %v23, %v328
  %v971 = vsel %vm941, %v24, %v330
  %v974 = vsel %vm941, %v25, %v332
  %v977 = vsel %vm941, %v26, %v334
  %v980 = vsel %vm941, %v27, %v336
  %v983 = vsel %vm941, %v28, %v338
  %v986 = vsel %vm941, %v381, %v438
  %v989 = vsel %vm941, %v382, %v440
  %v992 = vsel %vm941, %v383, %v442
  %v995 = vsel %vm941, %v384, %v444
  %v998 = vsel %vm941, %v385, %v446
  %v1001 = vsel %vm941, %v386, %v448
  %v1004 = vsel %vm941, %v387, %v450
  %v1007 = vsel %vm941, %v388, %v452
  %v1010 = vsel %vm941, %v389, %v454
  %v1013 = vsel %vm941, %v390, %v456
  %v1016 = vsel %vm941, %v391, %v458
  %v1019 = vsel %vm941, %v392, %v460
  %v1022 = vsel %vm941, %v393, %v462
  %v1025 = vsel %vm941, %v394, %v464
  %v1028 = vsel %vm941, %v513, %v662
  %v1031 = vsel %vm941, %v520, %v664
  %v1034 = vsel %vm941, %v527, %v666
  %v1037 = vsel %vm941, %v534, %v668
  %v1040 = vsel %vm941, %v541, %v670
  %v1043 = vsel %vm941, %v548, %v672
  %v1046 = vsel %vm941, %v555, %v674
  %v1049 = vsel %vm941, %v562, %v676
  %v1052 = vsel %vm941, %v569, %v678
  %v1055 = vsel %vm941, %v576, %v680
  %v1058 = vsel %vm941, %v583, %v682
  %v1061 = vsel %vm941, %v590, %v684
  %v1064 = vsel %vm941, %v597, %v686
  %v1067 = vsel %vm941, %v604, %v688
  %v1070 = vsel %vm941, %v101, %v858
  %v1073 = vsel %vm941, %v102, %v860
  %v1076 = vsel %vm941, %v103, %v862
  %v1079 = vsel %vm941, %v104, %v864
  %v1082 = vsel %vm941, %v105, %v866
  %v1085 = vsel %vm941, %v106, %v868
  %v1088 = vsel %vm941, %v107, %v870
  %v1091 = vsel %vm941, %v108, %v872
  %v1094 = vsel %vm941, %v109, %v874
  %v1097 = vsel %vm941, %v110, %v876
  %v1100 = vsel %vm941, %v111, %v878
  %v1103 = vsel %vm941, %v112, %v880
  %v1106 = vsel %vm941, %v113, %v882
  %v1109 = vsel %vm941, %v114, %v884
  %v1166 = vunpack.c.l.b16 %v944
  %v1167 = vunpack.c.l.b16 %v986
  %v1168 = vunpack.c.l.b16 %v1028
  %v1169 = vunpack.c.l.b16 %v1070
  %v1170 = vunpack.c.l.b16 %v927
  %v1171 = vunpack.c.l.b16 %v947
  %v1172 = vunpack.c.l.b16 %v989
  %v1173 = vunpack.c.l.b16 %v1031
  %v1174 = vunpack.c.l.b16 %v1073
  %v1175 = vunpack.c.l.b16 %v928
  %v1176 = vunpack.c.l.b16 %v950
  %v1177 = vunpack.c.l.b16 %v992
  %v1178 = vunpack.c.l.b16 %v1034
  %v1179 = vunpack.c.l.b16 %v1076
  %v1180 = vunpack.c.l.b16 %v929
  %v1181 = vunpack.c.l.b16 %v953
  %v1182 = vunpack.c.l.b16 %v995
  %v1183 = vunpack.c.l.b16 %v1037
  %v1184 = vunpack.c.l.b16 %v1079
  %v1185 = vunpack.c.l.b16 %v930
  %v1186 = vunpack.c.l.b16 %v956
  %v1187 = vunpack.c.l.b16 %v998
  %v1188 = vunpack.c.l.b16 %v1040
  %v1189 = vunpack.c.l.b16 %v1082
  %v1190 = vunpack.c.l.b16 %v931
  %v1191 = vunpack.c.l.b16 %v959
  %v1192 = vunpack.c.l.b16 %v1001
  %v1193 = vunpack.c.l.b16 %v1043
  %v1194 = vunpack.c.l.b16 %v1085
  %v1195 = vunpack.c.l.b16 %v932
  %v1196 = vunpack.c.l.b16 %v962
  %v1197 = vunpack.c.l.b16 %v1004
  %v1198 = vunpack.c.l.b16 %v1046
  %v1199 = vunpack.c.l.b16 %v1088
  %v1200 = vunpack.c.l.b16 %v933
  %v1201 = vunpack.c.l.b16 %v965
  %v1202 = vunpack.c.l.b16 %v1007
  %v1203 = vunpack.c.l.b16 %v1049
  %v1204 = vunpack.c.l.b16 %v1091
  %v1205 = vunpack.c.l.b16 %v934
  %v1206 = vunpack.c.l.b16 %v968
  %v1207 = vunpack.c.l.b16 %v1010
  %v1208 = vunpack.c.l.b16 %v1052
  %v1209 = vunpack.c.l.b16 %v1094
  %v1210 = vunpack.c.l.b16 %v935
  %v1211 = vunpack.c.l.b16 %v971
  %v1212 = vunpack.c.l.b16 %v1013
  %v1213 = vunpack.c.l.b16 %v1055
  %v1214 = vunpack.c.l.b16 %v1097
  %v1215 = vunpack.c.l.b16 %v936
  %v1216 = vunpack.c.l.b16 %v974
  %v1217 = vunpack.c.l.b16 %v1016
  %v1218 = vunpack.c.l.b16 %v1058
  %v1219 = vunpack.c.l.b16 %v1100
  %v1220 = vunpack.c.l.b16 %v937
  %v1221 = vunpack.c.l.b16 %v977
  %v1222 = vunpack.c.l.b16 %v1019
  %v1223 = vunpack.c.l.b16 %v1061
  %v1224 = vunpack.c.l.b16 %v1103
  %v1225 = vunpack.c.l.b16 %v938
  %v1226 = vunpack.c.l.b16 %v980
  %v1227 = vunpack.c.l.b16 %v1022
  %v1228 = vunpack.c.l.b16 %v1064
  %v1229 = vunpack.c.l.b16 %v1106
  %v1230 = vunpack.c.l.b16 %v939
  %v1231 = vunpack.c.l.b16 %v983
  %v1232 = vunpack.c.l.b16 %v1025
  %v1233 = vunpack.c.l.b16 %v1067
  %v1234 = vunpack.c.l.b16 %v1109
  %v1235 = vunpack.c.l.b16 %v940
  %v1236 = vld [vmem:[%s1] sm:$0xf]
  %v1237 = vld [vmem:[%s1 + $0x4] sm:$0xf]
  %v1238 = vld [vmem:[%s1 + $0x8] sm:$0xf]
  %v1239 = vld [vmem:[%s1 + $0xc] sm:$0xf]
  %v1240 = vld [vmem:[%s1 + $0x10] sm:$0xf]
  %v1241 = vld [vmem:[%s1 + $0x14] sm:$0xf]
  %v1242 = vld [vmem:[%s1 + $0x18] sm:$0xf]
  %v1243 = vld [vmem:[%s1 + $0x1c] sm:$0xf]
  %v1244 = vld [vmem:[%s1 + $0x20] sm:$0xf]
  %v1245 = vld [vmem:[%s1 + $0x24] sm:$0xf]
  %v1246 = vld [vmem:[%s1 + $0x28] sm:$0xf]
  %v1247 = vld [vmem:[%s1 + $0x2c] sm:$0xf]
  %v1248 = vld [vmem:[%s1 + $0x30] sm:$0xf]
  %v1249 = vld [vmem:[%s1 + $0x34] sm:$0xf]
  %v1250 = vld [vmem:[%s1 + $0x38] sm:$0xf]
  %v1251 = vld [vmem:[%s1 + $0x3c] sm:$0xf]
  %v1252 = vld [vmem:[%s1 + $0x40] sm:$0xf]
  %v1253 = vld [vmem:[%s1 + $0x44] sm:$0xf]
  %v1254 = vld [vmem:[%s1 + $0x48] sm:$0xf]
  %v1255 = vld [vmem:[%s1 + $0x4c] sm:$0xf]
  %v1256 = vld [vmem:[%s1 + $0x50] sm:$0xf]
  %v1257 = vld [vmem:[%s1 + $0x54] sm:$0xf]
  %v1258 = vld [vmem:[%s1 + $0x58] sm:$0xf]
  %v1259 = vld [vmem:[%s1 + $0x5c] sm:$0xf]
  %v1260 = vld [vmem:[%s1 + $0x60] sm:$0xf]
  %v1261 = vld [vmem:[%s1 + $0x64] sm:$0xf]
  %v1262 = vld [vmem:[%s1 + $0x68] sm:$0xf]
  %v1263 = vld [vmem:[%s1 + $0x6c] sm:$0xf]
  %v1264 = vld [vmem:[%s1 + $0x70] sm:$0xf]
  %v1265 = vld [vmem:[%s1 + $0x74] sm:$0xf]
  %v1266 = vld [vmem:[%s1 + $0x78] sm:$0xf]
  %v1267 = vld [vmem:[%s1 + $0x7c] sm:$0xf]
  %v1268 = vld [vmem:[%s1 + $0x80] sm:$0xf]
  %v1269 = vld [vmem:[%s1 + $0x84] sm:$0xf]
  %v1270 = vld [vmem:[%s1 + $0x88] sm:$0xf]
  %v1271 = vld [vmem:[%s1 + $0x8c] sm:$0xf]
  %v1272 = vld [vmem:[%s1 + $0x90] sm:$0xf]
  %v1273 = vld [vmem:[%s1 + $0x94] sm:$0xf]
  %v1274 = vld [vmem:[%s1 + $0x98] sm:$0xf]
  %v1275 = vld [vmem:[%s1 + $0x9c] sm:$0xf]
  %v1276 = vld [vmem:[%s1 + $0xa0] sm:$0xf]
  %v1277 = vld [vmem:[%s1 + $0xa4] sm:$0xf]
  %v1278 = vld [vmem:[%s1 + $0xa8] sm:$0xf]
  %v1279 = vld [vmem:[%s1 + $0xac] sm:$0xf]
  %v1280 = vld [vmem:[%s1 + $0xb0] sm:$0xf]
  %v1281 = vld [vmem:[%s1 + $0xb4] sm:$0xf]
  %v1282 = vld [vmem:[%s1 + $0xb8] sm:$0xf]
  %v1283 = vld [vmem:[%s1 + $0xbc] sm:$0xf]
  %v1284 = vld [vmem:[%s1 + $0xc0] sm:$0xf]
  %v1285 = vld [vmem:[%s1 + $0xc4] sm:$0xf]
  %v1286 = vld [vmem:[%s1 + $0xc8] sm:$0xf]
  %v1287 = vld [vmem:[%s1 + $0xcc] sm:$0xf]
  %v1288 = vld [vmem:[%s1 + $0xd0] sm:$0xf]
  %v1289 = vld [vmem:[%s1 + $0xd4] sm:$0xf]
  %v1290 = vld [vmem:[%s1 + $0xd8] sm:$0xf]
  %v1291 = vld [vmem:[%s1 + $0xdc] sm:$0xf]
  %v1292 = vld [vmem:[%s1 + $0xe0] sm:$0xf]
  %v1293 = vld [vmem:[%s1 + $0xe4] sm:$0xf]
  %v1294 = vld [vmem:[%s1 + $0xe8] sm:$0xf]
  %v1295 = vld [vmem:[%s1 + $0xec] sm:$0xf]
  %v1296 = vld [vmem:[%s1 + $0xf0] sm:$0xf]
  %v1297 = vld [vmem:[%s1 + $0xf4] sm:$0xf]
  %v1298 = vld [vmem:[%s1 + $0xf8] sm:$0xf]
  %v1299 = vld [vmem:[%s1 + $0xfc] sm:$0xf]
  %v1300 = vld [vmem:[%s1 + $0x100] sm:$0xf]
  %v1301 = vld [vmem:[%s1 + $0x104] sm:$0xf]
  %v1302 = vld [vmem:[%s1 + $0x108] sm:$0xf]
  %v1303 = vld [vmem:[%s1 + $0x10c] sm:$0xf]
  %v1304 = vld [vmem:[%s1 + $0x110] sm:$0xf]
  %v1305 = vld [vmem:[%s1 + $0x114] sm:$0xf]
  %v1306 = vld [vmem:[%s1 + $0x118] sm:$0xf]
  %v1307 = vld [vmem:[%s1 + $0x11c] sm:$0xf]
  %v1308 = vld [vmem:[%s2] sm:$0x1]
  %v1310 = vlaneseq
  %v1311 = vshrl.u32 %v1310, 7
  %v1312 = vsub.s32 0, %v1311
  %v1313 = vrot.slane %v1308, %v1312
  %v1315 = vpack.c.b16 %v1171, %v1166
  %v1316 = vpack.c.b16 %v1172, %v1167
  %v1317 = vpack.c.b16 %v1173, %v1168
  %v1318 = vpack.c.b16 %v1174, %v1169
  %v1319 = vpack.c.b16 %v1175, %v1170
  %v1320 = vpack.c.b16 %v1181, %v1176
  %v1321 = vpack.c.b16 %v1182, %v1177
  %v1322 = vpack.c.b16 %v1183, %v1178
  %v1323 = vpack.c.b16 %v1184, %v1179
  %v1324 = vpack.c.b16 %v1185, %v1180
  %v1325 = vpack.c.b16 %v1191, %v1186
  %v1326 = vpack.c.b16 %v1192, %v1187
  %v1327 = vpack.c.b16 %v1193, %v1188
  %v1328 = vpack.c.b16 %v1194, %v1189
  %v1329 = vpack.c.b16 %v1195, %v1190
  %v1330 = vpack.c.b16 %v1201, %v1196
  %v1331 = vpack.c.b16 %v1202, %v1197
  %v1332 = vpack.c.b16 %v1203, %v1198
  %v1333 = vpack.c.b16 %v1204, %v1199
  %v1334 = vpack.c.b16 %v1205, %v1200
  %v1335 = vpack.c.b16 %v1211, %v1206
  %v1336 = vpack.c.b16 %v1212, %v1207
  %v1337 = vpack.c.b16 %v1213, %v1208
  %v1338 = vpack.c.b16 %v1214, %v1209
  %v1339 = vpack.c.b16 %v1215, %v1210
  %v1340 = vpack.c.b16 %v1221, %v1216
  %v1341 = vpack.c.b16 %v1222, %v1217
  %v1342 = vpack.c.b16 %v1223, %v1218
  %v1343 = vpack.c.b16 %v1224, %v1219
  %v1344 = vpack.c.b16 %v1225, %v1220
  %v1345 = vpack.c.b16 %v1231, %v1226
  %v1346 = vpack.c.b16 %v1232, %v1227
  %v1347 = vpack.c.b16 %v1233, %v1228
  %v1348 = vpack.c.b16 %v1234, %v1229
  %v1349 = vpack.c.b16 %v1235, %v1230
  %v1450 = vunpack.c.l.b16 %v1236
  %v1451 = vunpack.c.l.b16 %v1237
  %v1452 = vunpack.c.l.b16 %v1238
  %v1453 = vunpack.c.l.b16 %v1239
  %v1454 = vunpack.c.l.b16 %v1240
  %v1455 = vunpack.c.l.b16 %v1241
  %v1456 = vunpack.c.l.b16 %v1242
  %v1457 = vunpack.c.l.b16 %v1243
  %v1458 = vunpack.c.l.b16 %v1244
  %v1459 = vunpack.c.l.b16 %v1245
  %v1460 = vunpack.c.l.b16 %v1246
  %v1461 = vunpack.c.l.b16 %v1247
  %v1462 = vunpack.c.l.b16 %v1248
  %v1463 = vunpack.c.l.b16 %v1249
  %v1464 = vunpack.c.l.b16 %v1250
  %v1465 = vunpack.c.l.b16 %v1251
  %v1466 = vunpack.c.l.b16 %v1252
  %v1467 = vunpack.c.l.b16 %v1253
  %v1468 = vunpack.c.l.b16 %v1254
  %v1469 = vunpack.c.l.b16 %v1255
  %v1470 = vunpack.c.l.b16 %v1256
  %v1471 = vunpack.c.l.b16 %v1257
  %v1472 = vunpack.c.l.b16 %v1258
  %v1473 = vunpack.c.l.b16 %v1259
  %v1474 = vunpack.c.l.b16 %v1260
  %v1475 = vunpack.c.l.b16 %v1261
  %v1476 = vunpack.c.l.b16 %v1262
  %v1477 = vunpack.c.l.b16 %v1263
  %v1478 = vunpack.c.l.b16 %v1264
  %v1479 = vunpack.c.l.b16 %v1265
  %v1480 = vunpack.c.l.b16 %v1266
  %v1481 = vunpack.c.l.b16 %v1267
  %v1482 = vunpack.c.l.b16 %v1268
  %v1483 = vunpack.c.l.b16 %v1269
  %v1484 = vunpack.c.l.b16 %v1270
  %v1485 = vunpack.c.l.b16 %v1271
  %v1486 = vunpack.c.l.b16 %v1272
  %v1487 = vunpack.c.l.b16 %v1273
  %v1488 = vunpack.c.l.b16 %v1274
  %v1489 = vunpack.c.l.b16 %v1275
  %v1490 = vunpack.c.l.b16 %v1276
  %v1491 = vunpack.c.l.b16 %v1277
  %v1492 = vunpack.c.l.b16 %v1278
  %v1493 = vunpack.c.l.b16 %v1279
  %v1494 = vunpack.c.l.b16 %v1280
  %v1495 = vunpack.c.l.b16 %v1281
  %v1496 = vunpack.c.l.b16 %v1282
  %v1497 = vunpack.c.l.b16 %v1283
  %v1498 = vunpack.c.l.b16 %v1284
  %v1499 = vunpack.c.l.b16 %v1285
  %v1500 = vunpack.c.l.b16 %v1286
  %v1501 = vunpack.c.l.b16 %v1287
  %v1502 = vunpack.c.l.b16 %v1288
  %v1503 = vunpack.c.l.b16 %v1289
  %v1504 = vunpack.c.l.b16 %v1290
  %v1505 = vunpack.c.l.b16 %v1291
  %v1506 = vunpack.c.l.b16 %v1292
  %v1507 = vunpack.c.l.b16 %v1293
  %v1508 = vunpack.c.l.b16 %v1294
  %v1509 = vunpack.c.l.b16 %v1295
  %v1510 = vunpack.c.l.b16 %v1296
  %v1511 = vunpack.c.l.b16 %v1297
  %v1512 = vunpack.c.l.b16 %v1298
  %v1513 = vunpack.c.l.b16 %v1299
  %v1514 = vunpack.c.l.b16 %v1300
  %v1515 = vunpack.c.l.b16 %v1301
  %v1516 = vunpack.c.l.b16 %v1302
  %v1517 = vunpack.c.l.b16 %v1303
  %v1518 = vunpack.c.l.b16 %v1304
  %v1519 = vunpack.c.l.b16 %v1305
  %v1520 = vunpack.c.l.b16 %v1306
  %v1521 = vunpack.c.l.b16 %v1307
  %v1522 = vpack.c.b16 %v1451, %v1450
  %v1523 = vpack.c.b16 %v1453, %v1452
  %v1524 = vpack.c.b16 %v1455, %v1454
  %v1525 = vpack.c.b16 %v1457, %v1456
  %v1526 = vpack.c.b16 %v1459, %v1458
  %v1527 = vpack.c.b16 %v1461, %v1460
  %v1528 = vpack.c.b16 %v1463, %v1462
  %v1529 = vpack.c.b16 %v1465, %v1464
  %v1530 = vpack.c.b16 %v1467, %v1466
  %v1531 = vpack.c.b16 %v1469, %v1468
  %v1532 = vpack.c.b16 %v1471, %v1470
  %v1533 = vpack.c.b16 %v1473, %v1472
  %v1534 = vpack.c.b16 %v1475, %v1474
  %v1535 = vpack.c.b16 %v1477, %v1476
  %v1536 = vpack.c.b16 %v1479, %v1478
  %v1537 = vpack.c.b16 %v1481, %v1480
  %v1538 = vpack.c.b16 %v1483, %v1482
  %v1539 = vpack.c.b16 %v1485, %v1484
  %v1540 = vpack.c.b16 %v1487, %v1486
  %v1541 = vpack.c.b16 %v1489, %v1488
  %v1542 = vpack.c.b16 %v1491, %v1490
  %v1543 = vpack.c.b16 %v1493, %v1492
  %v1544 = vpack.c.b16 %v1495, %v1494
  %v1545 = vpack.c.b16 %v1497, %v1496
  %v1546 = vpack.c.b16 %v1499, %v1498
  %v1547 = vpack.c.b16 %v1501, %v1500
  %v1548 = vpack.c.b16 %v1503, %v1502
  %v1549 = vpack.c.b16 %v1505, %v1504
  %v1550 = vpack.c.b16 %v1507, %v1506
  %v1551 = vpack.c.b16 %v1509, %v1508
  %v1552 = vpack.c.b16 %v1511, %v1510
  %v1553 = vpack.c.b16 %v1513, %v1512
  %v1554 = vpack.c.b16 %v1515, %v1514
  %v1555 = vpack.c.b16 %v1517, %v1516
  %v1556 = vpack.c.b16 %v1519, %v1518
  %v1557 = vpack.c.b16 %v1521, %v1520
  %v1595 = vsel %vm941, %v1319, 0
  %v1598 = vsel %vm941, %v1324, 0
  %v1601 = vsel %vm941, %v1329, 0
  %v1604 = vsel %vm941, %v1334, 0
  %v1607 = vsel %vm941, %v1339, 0
  %v1610 = vsel %vm941, %v1344, 0
  %v1613 = vsel %vm941, %v1349, 0
  %1615 = vmatprep.subr.bf16.mxu0 0
  %1616 = vmatpush1.bf16.msra.mxu0 %v1522
  %1617 = vmatprep.subr.bf16.mxu0 0
  %1618 = vmatpush1.bf16.msra.mxu0 %v1523
  %1619 = vmatprep.subr.bf16.mxu0 0
  %1620 = vmatpush1.bf16.msra.mxu0 %v1524
  %1621 = vmatprep.subr.bf16.mxu0 0
  %1622 = vmatpush1.bf16.msra.mxu0 %v1525
  %1623 = vmatprep.subr.bf16.mxu0 0
  %1624 = vmatpush1.bf16.msra.mxu0 %v1526
  %1625 = vmatprep.subr.bf16.mxu0 0
  %1626 = vmatpush1.bf16.msra.mxu0 %v1527
  %1627 = vmatprep.subr.bf16.mxu0 0
  %1628 = vmatpush1.bf16.msra.mxu0 %v1528
  %1629 = vmatprep.subr.bf16.mxu0 0
  %1630 = vmatpush1.bf16.msra.mxu0 %v1529
  %1631 = vmatprep.subr.bf16.mxu0 0
  %1632 = vmatpush1.bf16.msra.mxu0 %v1530
  %1633 = vmatprep.subr.bf16.mxu0 0
  %1634 = vmatpush1.bf16.msra.mxu0 %v1531
  %1635 = vmatprep.subr.bf16.mxu0 0
  %1636 = vmatpush1.bf16.msra.mxu0 %v1532
  %1637 = vmatprep.subr.bf16.mxu0 0
  %1638 = vmatpush1.bf16.msra.mxu0 %v1533
  %1639 = vmatprep.subr.bf16.mxu0 0
  %1640 = vmatpush1.bf16.msra.mxu0 %v1534
  %1641 = vmatprep.subr.bf16.mxu0 0
  %1642 = vmatpush1.bf16.msra.mxu0 %v1535
  %1643 = vmatprep.subr.bf16.mxu0 0
  %1644 = vmatpush1.bf16.msra.mxu0 %v1536
  %1645 = vmatprep.subr.bf16.mxu0 0
  %1646 = vmatpush1.bf16.msra.mxu0 %v1537
  %1647 = vmatprep.mubr.bf16.mxu0 %v1316
  %1648 = vmatmul.mubr.bf16.gmra.mrb[0].mxu0 %v1315
  %v1649 = vpop.f32.mrb[0].mxu0
  %v1650 = vadd.f32 %v1313, %v1649
  %v1651 = vpop.f32.mrb[0].mxu0
  %v1652 = vpop.f32.mrb[0].mxu0
  %v1653 = vadd.f32 %v1313, %v1652
  %v1654 = vpop.f32.mrb[0].mxu0
  %1655 = vmatprep.mubr.bf16.mxu0 %v1321
  %1656 = vmatmul.mubr.bf16.gmra.mrb[0].mxu0 %v1320
  %v1657 = vpop.f32.mrb[0].mxu0
  %v1658 = vadd.f32 %v1313, %v1657
  %v1659 = vpop.f32.mrb[0].mxu0
  %v1660 = vpop.f32.mrb[0].mxu0
  %v1661 = vadd.f32 %v1313, %v1660
  %v1662 = vpop.f32.mrb[0].mxu0
  %1663 = vmatprep.mubr.bf16.mxu0 %v1326
  %1664 = vmatmul.mubr.bf16.gmra.mrb[0].mxu0 %v1325
  %v1665 = vpop.f32.mrb[0].mxu0
  %v1666 = vadd.f32 %v1313, %v1665
  %v1667 = vpop.f32.mrb[0].mxu0
  %v1668 = vpop.f32.mrb[0].mxu0
  %v1669 = vadd.f32 %v1313, %v1668
  %v1670 = vpop.f32.mrb[0].mxu0
  %1671 = vmatprep.mubr.bf16.mxu0 %v1331
  %1672 = vmatmul.mubr.bf16.gmra.mrb[0].mxu0 %v1330
  %v1673 = vpop.f32.mrb[0].mxu0
  %v1674 = vadd.f32 %v1313, %v1673
  %v1675 = vpop.f32.mrb[0].mxu0
  %v1676 = vpop.f32.mrb[0].mxu0
  %v1677 = vadd.f32 %v1313, %v1676
  %v1678 = vpop.f32.mrb[0].mxu0
  %1679 = vmatprep.mubr.bf16.mxu0 %v1336
  %1680 = vmatmul.mubr.bf16.gmra.mrb[0].mxu0 %v1335
  %v1681 = vpop.f32.mrb[0].mxu0
  %v1682 = vadd.f32 %v1313, %v1681
  %v1683 = vpop.f32.mrb[0].mxu0
  %v1684 = vpop.f32.mrb[0].mxu0
  %v1685 = vadd.f32 %v1313, %v1684
  %v1686 = vpop.f32.mrb[0].mxu0
  %1687 = vmatprep.mubr.bf16.mxu0 %v1341
  %1688 = vmatmul.mubr.bf16.gmra.mrb[0].mxu0 %v1340
  %v1689 = vpop.f32.mrb[0].mxu0
  %v1690 = vadd.f32 %v1313, %v1689
  %v1691 = vpop.f32.mrb[0].mxu0
  %v1692 = vpop.f32.mrb[0].mxu0
  %v1693 = vadd.f32 %v1313, %v1692
  %v1694 = vpop.f32.mrb[0].mxu0
  %1695 = vmatprep.mubr.bf16.mxu0 %v1346
  %1696 = vmatmul.mubr.bf16.gmra.mrb[0].mxu0 %v1345
  %v1697 = vpop.f32.mrb[0].mxu0
  %v1698 = vadd.f32 %v1313, %v1697
  %v1699 = vpop.f32.mrb[0].mxu0
  %v1700 = vpop.f32.mrb[0].mxu0
  %v1701 = vadd.f32 %v1313, %v1700
  %v1702 = vpop.f32.mrb[0].mxu0
  %1703 = vdwg.mxu0
  %1704 = vmatprep.subr.bf16.mxu0 0
  %1705 = vmatpush1.bf16.msra.mxu0 %v1538
  %1706 = vmatprep.subr.bf16.mxu0 0
  %1707 = vmatpush1.bf16.msra.mxu0 %v1539
  %1708 = vmatprep.subr.bf16.mxu0 0
  %1709 = vmatpush1.bf16.msra.mxu0 %v1540
  %1710 = vmatprep.subr.bf16.mxu0 0
  %1711 = vmatpush1.bf16.msra.mxu0 %v1541
  %1712 = vmatprep.subr.bf16.mxu0 0
  %1713 = vmatpush1.bf16.msra.mxu0 %v1542
  %1714 = vmatprep.subr.bf16.mxu0 0
  %1715 = vmatpush1.bf16.msra.mxu0 %v1543
  %1716 = vmatprep.subr.bf16.mxu0 0
  %1717 = vmatpush1.bf16.msra.mxu0 %v1544
  %1718 = vmatprep.subr.bf16.mxu0 0
  %1719 = vmatpush1.bf16.msra.mxu0 %v1545
  %1720 = vmatprep.subr.bf16.mxu0 0
  %1721 = vmatpush1.bf16.msra.mxu0 %v1546
  %1722 = vmatprep.subr.bf16.mxu0 0
  %1723 = vmatpush1.bf16.msra.mxu0 %v1547
  %1724 = vmatprep.subr.bf16.mxu0 0
  %1725 = vmatpush1.bf16.msra.mxu0 %v1548
  %1726 = vmatprep.subr.bf16.mxu0 0
  %1727 = vmatpush1.bf16.msra.mxu0 %v1549
  %1728 = vmatprep.subr.bf16.mxu0 0
  %1729 = vmatpush1.bf16.msra.mxu0 %v1550
  %1730 = vmatprep.subr.bf16.mxu0 0
  %1731 = vmatpush1.bf16.msra.mxu0 %v1551
  %1732 = vmatprep.subr.bf16.mxu0 0
  %1733 = vmatpush1.bf16.msra.mxu0 %v1552
  %1734 = vmatprep.subr.bf16.mxu0 0
  %1735 = vmatpush1.bf16.msra.mxu0 %v1553
  %1736 = vmatprep.mubr.bf16.mxu0 %v1318
  %1737 = vmatmul.mubr.bf16.gmra.mrb[0].mxu0 %v1317
  %v1738 = vpop.f32.mrb[0].mxu0
  %v1739 = vadd.f32 %v1650, %v1738
  %v1740 = vpop.f32.mrb[0].mxu0
  %v1741 = vpop.f32.mrb[0].mxu0
  %v1742 = vadd.f32 %v1653, %v1741
  %v1743 = vpop.f32.mrb[0].mxu0
  %1744 = vmatprep.mubr.bf16.mxu0 %v1323
  %1745 = vmatmul.mubr.bf16.gmra.mrb[0].mxu0 %v1322
  %v1746 = vpop.f32.mrb[0].mxu0
  %v1747 = vadd.f32 %v1658, %v1746
  %v1748 = vpop.f32.mrb[0].mxu0
  %v1749 = vpop.f32.mrb[0].mxu0
  %v1750 = vadd.f32 %v1661, %v1749
  %v1751 = vpop.f32.mrb[0].mxu0
  %1752 = vmatprep.mubr.bf16.mxu0 %v1328
  %1753 = vmatmul.mubr.bf16.gmra.mrb[0].mxu0 %v1327
  %v1754 = vpop.f32.mrb[0].mxu0
  %v1755 = vadd.f32 %v1666, %v1754
  %v1756 = vpop.f32.mrb[0].mxu0
  %v1757 = vpop.f32.mrb[0].mxu0
  %v1758 = vadd.f32 %v1669, %v1757
  %v1759 = vpop.f32.mrb[0].mxu0
  %1760 = vmatprep.mubr.bf16.mxu0 %v1333
  %1761 = vmatmul.mubr.bf16.gmra.mrb[0].mxu0 %v1332
  %v1762 = vpop.f32.mrb[0].mxu0
  %v1763 = vadd.f32 %v1674, %v1762
  %v1764 = vpop.f32.mrb[0].mxu0
  %v1765 = vpop.f32.mrb[0].mxu0
  %v1766 = vadd.f32 %v1677, %v1765
  %v1767 = vpop.f32.mrb[0].mxu0
  %1768 = vmatprep.mubr.bf16.mxu0 %v1338
  %1769 = vmatmul.mubr.bf16.gmra.mrb[0].mxu0 %v1337
  %v1770 = vpop.f32.mrb[0].mxu0
  %v1771 = vadd.f32 %v1682, %v1770
  %v1772 = vpop.f32.mrb[0].mxu0
  %v1773 = vpop.f32.mrb[0].mxu0
  %v1774 = vadd.f32 %v1685, %v1773
  %v1775 = vpop.f32.mrb[0].mxu0
  %1776 = vmatprep.mubr.bf16.mxu0 %v1343
  %1777 = vmatmul.mubr.bf16.gmra.mrb[0].mxu0 %v1342
  %v1778 = vpop.f32.mrb[0].mxu0
  %v1779 = vadd.f32 %v1690, %v1778
  %v1780 = vpop.f32.mrb[0].mxu0
  %v1781 = vpop.f32.mrb[0].mxu0
  %v1782 = vadd.f32 %v1693, %v1781
  %v1783 = vpop.f32.mrb[0].mxu0
  %1784 = vmatprep.mubr.bf16.mxu0 %v1348
  %1785 = vmatmul.mubr.bf16.gmra.mrb[0].mxu0 %v1347
  %v1786 = vpop.f32.mrb[0].mxu0
  %v1787 = vadd.f32 %v1698, %v1786
  %v1788 = vpop.f32.mrb[0].mxu0
  %v1789 = vpop.f32.mrb[0].mxu0
  %v1790 = vadd.f32 %v1701, %v1789
  %v1791 = vpop.f32.mrb[0].mxu0
  %1792 = vdwg.mxu0
  %1793 = vmatprep.subr.bf16.mxu0 0
  %1794 = vmatpush1.bf16.msra.mxu0 %v1554
  %1795 = vmatprep.subr.bf16.mxu0 0
  %1796 = vmatpush1.bf16.msra.mxu0 %v1555
  %1797 = vmatprep.subr.bf16.mxu0 0
  %1798 = vmatpush1.bf16.msra.mxu0 %v1556
  %1799 = vmatprep.subr.bf16.mxu0 0
  %1800 = vmatpush1.bf16.msra.mxu0 %v1557
  %1801 = vmatprep.subr.bf16.mxu0 0
  %1802 = vmatpush1.bf16.msra.mxu0 0
  %1803 = vmatprep.subr.bf16.mxu0 0
  %1804 = vmatpush1.bf16.msra.mxu0 0
  %1805 = vmatprep.subr.bf16.mxu0 0
  %1806 = vmatpush1.bf16.msra.mxu0 0
  %1807 = vmatprep.subr.bf16.mxu0 0
  %1808 = vmatpush1.bf16.msra.mxu0 0
  %1809 = vmatprep.subr.bf16.mxu0 0
  %1810 = vmatpush1.bf16.msra.mxu0 0
  %1811 = vmatprep.subr.bf16.mxu0 0
  %1812 = vmatpush1.bf16.msra.mxu0 0
  %1813 = vmatprep.subr.bf16.mxu0 0
  %1814 = vmatpush1.bf16.msra.mxu0 0
  %1815 = vmatprep.subr.bf16.mxu0 0
  %1816 = vmatpush1.bf16.msra.mxu0 0
  %1817 = vmatprep.subr.bf16.mxu0 0
  %1818 = vmatpush1.bf16.msra.mxu0 0
  %1819 = vmatprep.subr.bf16.mxu0 0
  %1820 = vmatpush1.bf16.msra.mxu0 0
  %1821 = vmatprep.subr.bf16.mxu0 0
  %1822 = vmatpush1.bf16.msra.mxu0 0
  %1823 = vmatprep.subr.bf16.mxu0 0
  %1824 = vmatpush1.bf16.msra.mxu0 0
  %1825 = vmatprep.mubr.bf16.mxu0 0
  %1826 = vmatmul.mubr.bf16.gmra.mrb[0].mxu0 %v1595
  %v1827 = vpop.f32.mrb[0].mxu0
  %v1828 = vadd.f32 %v1739, %v1827
  %v1829 = vpop.f32.mrb[0].mxu0
  %v1830 = vpop.f32.mrb[0].mxu0
  %v1831 = vadd.f32 %v1742, %v1830
  %v1832 = vpop.f32.mrb[0].mxu0
  %1833 = vmatprep.mubr.bf16.mxu0 0
  %1834 = vmatmul.mubr.bf16.gmra.mrb[0].mxu0 %v1598
  %v1835 = vpop.f32.mrb[0].mxu0
  %v1836 = vadd.f32 %v1747, %v1835
  %v1837 = vpop.f32.mrb[0].mxu0
  %v1838 = vpop.f32.mrb[0].mxu0
  %v1839 = vadd.f32 %v1750, %v1838
  %v1840 = vpop.f32.mrb[0].mxu0
  %1841 = vmatprep.mubr.bf16.mxu0 0
  %1842 = vmatmul.mubr.bf16.gmra.mrb[0].mxu0 %v1601
  %v1843 = vpop.f32.mrb[0].mxu0
  %v1844 = vadd.f32 %v1755, %v1843
  %v1845 = vpop.f32.mrb[0].mxu0
  %v1846 = vpop.f32.mrb[0].mxu0
  %v1847 = vadd.f32 %v1758, %v1846
  %v1848 = vpop.f32.mrb[0].mxu0
  %1849 = vmatprep.mubr.bf16.mxu0 0
  %1850 = vmatmul.mubr.bf16.gmra.mrb[0].mxu0 %v1604
  %v1851 = vpop.f32.mrb[0].mxu0
  %v1852 = vadd.f32 %v1763, %v1851
  %v1853 = vpop.f32.mrb[0].mxu0
  %v1854 = vpop.f32.mrb[0].mxu0
  %v1855 = vadd.f32 %v1766, %v1854
  %v1856 = vpop.f32.mrb[0].mxu0
  %1857 = vmatprep.mubr.bf16.mxu0 0
  %1858 = vmatmul.mubr.bf16.gmra.mrb[0].mxu0 %v1607
  %v1859 = vpop.f32.mrb[0].mxu0
  %v1860 = vadd.f32 %v1771, %v1859
  %v1861 = vpop.f32.mrb[0].mxu0
  %v1862 = vpop.f32.mrb[0].mxu0
  %v1863 = vadd.f32 %v1774, %v1862
  %v1864 = vpop.f32.mrb[0].mxu0
  %1865 = vmatprep.mubr.bf16.mxu0 0
  %1866 = vmatmul.mubr.bf16.gmra.mrb[0].mxu0 %v1610
  %v1867 = vpop.f32.mrb[0].mxu0
  %v1868 = vadd.f32 %v1779, %v1867
  %v1869 = vpop.f32.mrb[0].mxu0
  %v1870 = vpop.f32.mrb[0].mxu0
  %v1871 = vadd.f32 %v1782, %v1870
  %v1872 = vpop.f32.mrb[0].mxu0
  %1873 = vmatprep.mubr.bf16.mxu0 0
  %1874 = vmatmul.mubr.bf16.gmra.mrb[0].mxu0 %v1613
  %v1875 = vpop.f32.mrb[0].mxu0
  %v1876 = vadd.f32 %v1787, %v1875
  %v1877 = vpop.f32.mrb[0].mxu0
  %v1878 = vpop.f32.mrb[0].mxu0
  %v1879 = vadd.f32 %v1790, %v1878
  %v1880 = vpop.f32.mrb[0].mxu0
  %1881 = vdwg.mxu0
  %v1882 = vmax.f32 %v1828, 0.0
  %v1883 = vmax.f32 %v1831, 0.0
  %v1884 = vmax.f32 %v1836, 0.0
  %v1885 = vmax.f32 %v1839, 0.0
  %v1886 = vmax.f32 %v1844, 0.0
  %v1887 = vmax.f32 %v1847, 0.0
  %v1888 = vmax.f32 %v1852, 0.0
  %v1889 = vmax.f32 %v1855, 0.0
  %v1890 = vmax.f32 %v1860, 0.0
  %v1891 = vmax.f32 %v1863, 0.0
  %v1892 = vmax.f32 %v1868, 0.0
  %v1893 = vmax.f32 %v1871, 0.0
  %v1894 = vmax.f32 %v1876, 0.0
  %v1895 = vmax.f32 %v1879, 0.0
  %v1896 = vpack.c.bf16 %v1882, %v1882
  %v1897 = vpack.c.bf16 %v1883, %v1883
  %v1898 = vpack.c.bf16 %v1884, %v1884
  %v1899 = vpack.c.bf16 %v1885, %v1885
  %v1900 = vpack.c.bf16 %v1886, %v1886
  %v1901 = vpack.c.bf16 %v1887, %v1887
  %v1902 = vpack.c.bf16 %v1888, %v1888
  %v1903 = vpack.c.bf16 %v1889, %v1889
  %v1904 = vpack.c.bf16 %v1890, %v1890
  %v1905 = vpack.c.bf16 %v1891, %v1891
  %v1906 = vpack.c.bf16 %v1892, %v1892
  %v1907 = vpack.c.bf16 %v1893, %v1893
  %v1908 = vpack.c.bf16 %v1894, %v1894
  %v1909 = vpack.c.bf16 %v1895, %v1895
  %vm1910 = vcmask 519168
  %1911 = vst.msk [vmem:[%s3] sm:$0xf] %vm1910, %v1896
  %1912 = vst.msk [vmem:[%s3 + $0x4] sm:$0xf] %vm1910, %v1897
  %1913 = vst.msk [vmem:[%s3 + $0x8] sm:$0xf] %vm1910, %v1898
  %1914 = vst.msk [vmem:[%s3 + $0xc] sm:$0xf] %vm1910, %v1899
  %1915 = vst.msk [vmem:[%s3 + $0x10] sm:$0xf] %vm1910, %v1900
  %1916 = vst.msk [vmem:[%s3 + $0x14] sm:$0xf] %vm1910, %v1901
  %1917 = vst.msk [vmem:[%s3 + $0x18] sm:$0xf] %vm1910, %v1902
  %1918 = vst.msk [vmem:[%s3 + $0x1c] sm:$0xf] %vm1910, %v1903
  %1919 = vst.msk [vmem:[%s3 + $0x20] sm:$0xf] %vm1910, %v1904
  %1920 = vst.msk [vmem:[%s3 + $0x24] sm:$0xf] %vm1910, %v1905
  %1921 = vst.msk [vmem:[%s3 + $0x28] sm:$0xf] %vm1910, %v1906
  %1922 = vst.msk [vmem:[%s3 + $0x2c] sm:$0xf] %vm1910, %v1907
  %1923 = vst.msk [vmem:[%s3 + $0x30] sm:$0xf] %vm1910, %v1908
  %1924 = vst.msk [vmem:[%s3 + $0x34] sm:$0xf] %vm1910, %v1909
  // Predicated region
  $region14: #{dcqn_forward.6} parent=0 // pred_check
    _
  $region15: #{dcqn_forward.6} parent=0 // pred_check_branch
    %1926 = sbr.rel (0) target = $region17
  $region16: #{dcqn_forward.6} parent=0 // pred_region
    _
  $region17: #{dcqn_forward.6} parent=0 // pred_fallthru
    _
  // Predicated region
  $region18: #{dcqn_forward.6} parent=0 // pred_check
    _
  $region19: #{dcqn_forward.6} parent=0 // pred_check_branch
    %1928 = sbr.rel (0) target = $region21
  $region20: #{dcqn_forward.6} parent=0 // pred_region
    _
  $region21: #{dcqn_forward.6} parent=0 // pred_fallthru
    _

// kernel: dcqn_forward.7
$region0: #{dcqn_forward.7}
  #allocation0 [shape = 'u32[]', space=smem, size = 0x4, offset = 0x4, fixed_abs, tag = 'smem constant byte address 0x4 - core index']
  #allocation1 [shape = 'u32[144,128]{1,0:T(1,128)}', space=vmem, size = 0x12000, scoped, tag = 'internal scratch']
  %s0 = inlined_call_operand.vmem [shape: bf16[8,3136], index: 0, kind: input, shape index: {}]
  %s1 = inlined_call_operand.vmem [shape: bf16[3136,512], index: 1, kind: input, shape index: {}]
  %s2 = inlined_call_operand.vmem [shape: f32[1,512], index: 2, kind: input, shape index: {}]
  %s3 = inlined_call_operand.vmem [shape: bf16[512,128], index: 3, kind: input, shape index: {}]
  %s4 = inlined_call_operand.vmem [shape: f32[1,128], index: 4, kind: input, shape index: {}]
  %s5 = inlined_call_operand.vmem [shape: f32[8,128], index: 5, kind: output, shape index: {}]
  %s6 = sld [smem:[#allocation0]]
  $region30: #{dcqn_forward.7} parent=0
    _
  %s8 = ssub.s32 1, %s6
  %s9 = scalar_select 0, %s8, %s6
  // Predicated region
  $region2: #{dcqn_forward.7} parent=0 // pred_check
    _
  $region3: #{dcqn_forward.7} parent=0 // pred_check_branch
    %11 = sbr.rel (0) target = $region5
  $region4: #{dcqn_forward.7} parent=0 // pred_region
    _
  $region5: #{dcqn_forward.7} parent=0 // pred_fallthru
    _
  // Predicated region
  $region6: #{dcqn_forward.7} parent=0 // pred_check
    _
  $region7: #{dcqn_forward.7} parent=0 // pred_check_branch
    %13 = sbr.rel (0) target = $region9
  $region8: #{dcqn_forward.7} parent=0 // pred_region
    _
  $region9: #{dcqn_forward.7} parent=0 // pred_fallthru
    _
  // Predicated region
  $region10: #{dcqn_forward.7} parent=0 // pred_check
    _
  $region11: #{dcqn_forward.7} parent=0 // pred_check_branch
    %15 = sbr.rel (0) target = $region13
  $region12: #{dcqn_forward.7} parent=0 // pred_region
    _
  $region13: #{dcqn_forward.7} parent=0 // pred_fallthru
    _
  // Predicated region
  $region14: #{dcqn_forward.7} parent=0 // pred_check
    _
  $region15: #{dcqn_forward.7} parent=0 // pred_check_branch
    %17 = sbr.rel (0) target = $region17
  $region16: #{dcqn_forward.7} parent=0 // pred_region
    _
  $region17: #{dcqn_forward.7} parent=0 // pred_fallthru
    _
  // Predicated region
  $region18: #{dcqn_forward.7} parent=0 // pred_check
    _
  $region19: #{dcqn_forward.7} parent=0 // pred_check_branch
    %19 = sbr.rel (0) target = $region21
  $region20: #{dcqn_forward.7} parent=0 // pred_region
    _
  $region21: #{dcqn_forward.7} parent=0 // pred_fallthru
    _
  %v21 = vld [vmem:[%s0] sm:$0xff]
  %v22 = vld [vmem:[%s0 + $0x8] sm:$0xff]
  %v23 = vld [vmem:[%s0 + $0x10] sm:$0xff]
  %v24 = vld [vmem:[%s0 + $0x18] sm:$0xff]
  %v25 = vld [vmem:[%s0 + $0x20] sm:$0xff]
  %v26 = vld [vmem:[%s0 + $0x28] sm:$0xff]
  %v27 = vld [vmem:[%s0 + $0x30] sm:$0xff]
  %v28 = vld [vmem:[%s0 + $0x38] sm:$0xff]
  %v29 = vld [vmem:[%s0 + $0x40] sm:$0xff]
  %v30 = vld [vmem:[%s0 + $0x48] sm:$0xff]
  %v31 = vld [vmem:[%s0 + $0x50] sm:$0xff]
  %v32 = vld [vmem:[%s0 + $0x58] sm:$0xff]
  %v33 = vld [vmem:[%s0 + $0x60] sm:$0xf]
  %v34 = vld [vmem:[%s1] sm:$0xff]
  %v35 = vld [vmem:[%s1 + $0x8] sm:$0xff]
  %v36 = vld [vmem:[%s1 + $0x10] sm:$0xff]
  %v37 = vld [vmem:[%s1 + $0x18] sm:$0xff]
  %v38 = vld [vmem:[%s1 + $0x20] sm:$0xff]
  %v39 = vld [vmem:[%s1 + $0x28] sm:$0xff]
  %v40 = vld [vmem:[%s1 + $0x30] sm:$0xff]
  %v41 = vld [vmem:[%s1 + $0x38] sm:$0xff]
  %v42 = vld [vmem:[%s1 + $0x40] sm:$0xff]
  %v43 = vld [vmem:[%s1 + $0x48] sm:$0xff]
  %v44 = vld [vmem:[%s1 + $0x50] sm:$0xff]
  %v45 = vld [vmem:[%s1 + $0x58] sm:$0xff]
  %v46 = vld [vmem:[%s1 + $0x60] sm:$0xff]
  %v47 = vld [vmem:[%s1 + $0x68] sm:$0xff]
  %v48 = vld [vmem:[%s1 + $0x70] sm:$0xff]
  %v49 = vld [vmem:[%s1 + $0x78] sm:$0xff]
  %v50 = vld [vmem:[%s1 + $0x80] sm:$0xff]
  %v51 = vld [vmem:[%s1 + $0x88] sm:$0xff]
  %v52 = vld [vmem:[%s1 + $0x90] sm:$0xff]
  %v53 = vld [vmem:[%s1 + $0x98] sm:$0xff]
  %v54 = vld [vmem:[%s1 + $0xa0] sm:$0xff]
  %v55 = vld [vmem:[%s1 + $0xa8] sm:$0xff]
  %v56 = vld [vmem:[%s1 + $0xb0] sm:$0xff]
  %v57 = vld [vmem:[%s1 + $0xb8] sm:$0xff]
  %v58 = vld [vmem:[%s1 + $0xc0] sm:$0xff]
  %v59 = vld [vmem:[%s1 + $0xc8] sm:$0xff]
  %v60 = vld [vmem:[%s1 + $0xd0] sm:$0xff]
  %v61 = vld [vmem:[%s1 + $0xd8] sm:$0xff]
  %v62 = vld [vmem:[%s1 + $0xe0] sm:$0xff]
  %v63 = vld [vmem:[%s1 + $0xe8] sm:$0xff]
  %v64 = vld [vmem:[%s1 + $0xf0] sm:$0xff]
  %v65 = vld [vmem:[%s1 + $0xf8] sm:$0xff]
  %v66 = vld [vmem:[%s1 + $0x100] sm:$0xff]
  %v67 = vld [vmem:[%s1 + $0x108] sm:$0xff]
  %v68 = vld [vmem:[%s1 + $0x110] sm:$0xff]
  %v69 = vld [vmem:[%s1 + $0x118] sm:$0xff]
  %v70 = vld [vmem:[%s1 + $0x120] sm:$0xff]
  %v71 = vld [vmem:[%s1 + $0x128] sm:$0xff]
  %v72 = vld [vmem:[%s1 + $0x130] sm:$0xff]
  %v73 = vld [vmem:[%s1 + $0x138] sm:$0xff]
  %v74 = vld [vmem:[%s1 + $0x140] sm:$0xff]
  %v75 = vld [vmem:[%s1 + $0x148] sm:$0xff]
  %v76 = vld [vmem:[%s1 + $0x150] sm:$0xff]
  %v77 = vld [vmem:[%s1 + $0x158] sm:$0xff]
  %v78 = vld [vmem:[%s1 + $0x160] sm:$0xff]
  %v79 = vld [vmem:[%s1 + $0x168] sm:$0xff]
  %v80 = vld [vmem:[%s1 + $0x170] sm:$0xff]
  %v81 = vld [vmem:[%s1 + $0x178] sm:$0xff]
  %v82 = vld [vmem:[%s1 + $0x180] sm:$0xff]
  %v83 = vld [vmem:[%s1 + $0x188] sm:$0xff]
  %v84 = vld [vmem:[%s1 + $0x190] sm:$0xff]
  %v85 = vld [vmem:[%s1 + $0x198] sm:$0xff]
  %v86 = vld [vmem:[%s1 + $0x1a0] sm:$0xff]
  %v87 = vld [vmem:[%s1 + $0x1a8] sm:$0xff]
  %v88 = vld [vmem:[%s1 + $0x1b0] sm:$0xff]
  %v89 = vld [vmem:[%s1 + $0x1b8] sm:$0xff]
  %v90 = vld [vmem:[%s1 + $0x1c0] sm:$0xff]
  %v91 = vld [vmem:[%s1 + $0x1c8] sm:$0xff]
  %v92 = vld [vmem:[%s1 + $0x1d0] sm:$0xff]
  %v93 = vld [vmem:[%s1 + $0x1d8] sm:$0xff]
  %v94 = vld [vmem:[%s1 + $0x1e0] sm:$0xff]
  %v95 = vld [vmem:[%s1 + $0x1e8] sm:$0xff]
  %v96 = vld [vmem:[%s1 + $0x1f0] sm:$0xff]
  %v97 = vld [vmem:[%s1 + $0x1f8] sm:$0xff]
  %v98 = vld [vmem:[%s1 + $0x200] sm:$0xff]
  %v99 = vld [vmem:[%s1 + $0x208] sm:$0xff]
  %v100 = vld [vmem:[%s1 + $0x210] sm:$0xff]
  %v101 = vld [vmem:[%s1 + $0x218] sm:$0xff]
  %v102 = vld [vmem:[%s1 + $0x220] sm:$0xff]
  %v103 = vld [vmem:[%s1 + $0x228] sm:$0xff]
  %v104 = vld [vmem:[%s1 + $0x230] sm:$0xff]
  %v105 = vld [vmem:[%s1 + $0x238] sm:$0xff]
  %v106 = vld [vmem:[%s1 + $0x240] sm:$0xff]
  %v107 = vld [vmem:[%s1 + $0x248] sm:$0xff]
  %v108 = vld [vmem:[%s1 + $0x250] sm:$0xff]
  %v109 = vld [vmem:[%s1 + $0x258] sm:$0xff]
  %v110 = vld [vmem:[%s1 + $0x260] sm:$0xff]
  %v111 = vld [vmem:[%s1 + $0x268] sm:$0xff]
  %v112 = vld [vmem:[%s1 + $0x270] sm:$0xff]
  %v113 = vld [vmem:[%s1 + $0x278] sm:$0xff]
  %v114 = vld [vmem:[%s1 + $0x280] sm:$0xff]
  %v115 = vld [vmem:[%s1 + $0x288] sm:$0xff]
  %v116 = vld [vmem:[%s1 + $0x290] sm:$0xff]
  %v117 = vld [vmem:[%s1 + $0x298] sm:$0xff]
  %v118 = vld [vmem:[%s1 + $0x2a0] sm:$0xff]
  %v119 = vld [vmem:[%s1 + $0x2a8] sm:$0xff]
  %v120 = vld [vmem:[%s1 + $0x2b0] sm:$0xff]
  %v121 = vld [vmem:[%s1 + $0x2b8] sm:$0xff]
  %v122 = vld [vmem:[%s1 + $0x2c0] sm:$0xff]
  %v123 = vld [vmem:[%s1 + $0x2c8] sm:$0xff]
  %v124 = vld [vmem:[%s1 + $0x2d0] sm:$0xff]
  %v125 = vld [vmem:[%s1 + $0x2d8] sm:$0xff]
  %v126 = vld [vmem:[%s1 + $0x2e0] sm:$0xff]
  %v127 = vld [vmem:[%s1 + $0x2e8] sm:$0xff]
  %v128 = vld [vmem:[%s1 + $0x2f0] sm:$0xff]
  %v129 = vld [vmem:[%s1 + $0x2f8] sm:$0xff]
  %v130 = vld [vmem:[%s1 + $0x300] sm:$0xff]
  %v131 = vld [vmem:[%s1 + $0x308] sm:$0xff]
  %v132 = vld [vmem:[%s1 + $0x310] sm:$0xff]
  %v133 = vld [vmem:[%s1 + $0x318] sm:$0xff]
  %v134 = vld [vmem:[%s1 + $0x320] sm:$0xff]
  %v135 = vld [vmem:[%s1 + $0x328] sm:$0xff]
  %v136 = vld [vmem:[%s1 + $0x330] sm:$0xff]
  %v137 = vld [vmem:[%s1 + $0x338] sm:$0xff]
  %v138 = vld [vmem:[%s1 + $0x340] sm:$0xff]
  %v139 = vld [vmem:[%s1 + $0x348] sm:$0xff]
  %v140 = vld [vmem:[%s1 + $0x350] sm:$0xff]
  %v141 = vld [vmem:[%s1 + $0x358] sm:$0xff]
  %v142 = vld [vmem:[%s1 + $0x360] sm:$0xff]
  %v143 = vld [vmem:[%s1 + $0x368] sm:$0xff]
  %v144 = vld [vmem:[%s1 + $0x370] sm:$0xff]
  %v145 = vld [vmem:[%s1 + $0x378] sm:$0xff]
  %v146 = vld [vmem:[%s1 + $0x380] sm:$0xff]
  %v147 = vld [vmem:[%s1 + $0x388] sm:$0xff]
  %v148 = vld [vmem:[%s1 + $0x390] sm:$0xff]
  %v149 = vld [vmem:[%s1 + $0x398] sm:$0xff]
  %v150 = vld [vmem:[%s1 + $0x3a0] sm:$0xff]
  %v151 = vld [vmem:[%s1 + $0x3a8] sm:$0xff]
  %v152 = vld [vmem:[%s1 + $0x3b0] sm:$0xff]
  %v153 = vld [vmem:[%s1 + $0x3b8] sm:$0xff]
  %v154 = vld [vmem:[%s1 + $0x3c0] sm:$0xff]
  %v155 = vld [vmem:[%s1 + $0x3c8] sm:$0xff]
  %v156 = vld [vmem:[%s1 + $0x3d0] sm:$0xff]
  %v157 = vld [vmem:[%s1 + $0x3d8] sm:$0xff]
  %v158 = vld [vmem:[%s1 + $0x3e0] sm:$0xff]
  %v159 = vld [vmem:[%s1 + $0x3e8] sm:$0xff]
  %v160 = vld [vmem:[%s1 + $0x3f0] sm:$0xff]
  %v161 = vld [vmem:[%s1 + $0x3f8] sm:$0xff]
  %v162 = vld [vmem:[%s1 + $0x400] sm:$0xff]
  %v163 = vld [vmem:[%s1 + $0x408] sm:$0xff]
  %v164 = vld [vmem:[%s1 + $0x410] sm:$0xff]
  %v165 = vld [vmem:[%s1 + $0x418] sm:$0xff]
  %v166 = vld [vmem:[%s1 + $0x420] sm:$0xff]
  %v167 = vld [vmem:[%s1 + $0x428] sm:$0xff]
  %v168 = vld [vmem:[%s1 + $0x430] sm:$0xff]
  %v169 = vld [vmem:[%s1 + $0x438] sm:$0xff]
  %v170 = vld [vmem:[%s1 + $0x440] sm:$0xff]
  %v171 = vld [vmem:[%s1 + $0x448] sm:$0xff]
  %v172 = vld [vmem:[%s1 + $0x450] sm:$0xff]
  %v173 = vld [vmem:[%s1 + $0x458] sm:$0xff]
  %v174 = vld [vmem:[%s1 + $0x460] sm:$0xff]
  %v175 = vld [vmem:[%s1 + $0x468] sm:$0xff]
  %v176 = vld [vmem:[%s1 + $0x470] sm:$0xff]
  %v177 = vld [vmem:[%s1 + $0x478] sm:$0xff]
  %v178 = vld [vmem:[%s1 + $0x480] sm:$0xff]
  %v179 = vld [vmem:[%s1 + $0x488] sm:$0xff]
  %v180 = vld [vmem:[%s1 + $0x490] sm:$0xff]
  %v181 = vld [vmem:[%s1 + $0x498] sm:$0xff]
  %v182 = vld [vmem:[%s1 + $0x4a0] sm:$0xff]
  %v183 = vld [vmem:[%s1 + $0x4a8] sm:$0xff]
  %v184 = vld [vmem:[%s1 + $0x4b0] sm:$0xff]
  %v185 = vld [vmem:[%s1 + $0x4b8] sm:$0xff]
  %v186 = vld [vmem:[%s1 + $0x4c0] sm:$0xff]
  %v187 = vld [vmem:[%s1 + $0x4c8] sm:$0xff]
  %v188 = vld [vmem:[%s1 + $0x4d0] sm:$0xff]
  %v189 = vld [vmem:[%s1 + $0x4d8] sm:$0xff]
  %v190 = vld [vmem:[%s1 + $0x4e0] sm:$0xff]
  %v191 = vld [vmem:[%s1 + $0x4e8] sm:$0xff]
  %v192 = vld [vmem:[%s1 + $0x4f0] sm:$0xff]
  %v193 = vld [vmem:[%s1 + $0x4f8] sm:$0xff]
  %v194 = vld [vmem:[%s1 + $0x500] sm:$0xff]
  %v195 = vld [vmem:[%s1 + $0x508] sm:$0xff]
  %v196 = vld [vmem:[%s1 + $0x510] sm:$0xff]
  %v197 = vld [vmem:[%s1 + $0x518] sm:$0xff]
  %v198 = vld [vmem:[%s1 + $0x520] sm:$0xff]
  %v199 = vld [vmem:[%s1 + $0x528] sm:$0xff]
  %v200 = vld [vmem:[%s1 + $0x530] sm:$0xff]
  %v201 = vld [vmem:[%s1 + $0x538] sm:$0xff]
  %v202 = vld [vmem:[%s1 + $0x540] sm:$0xff]
  %v203 = vld [vmem:[%s1 + $0x548] sm:$0xff]
  %v204 = vld [vmem:[%s1 + $0x550] sm:$0xff]
  %v205 = vld [vmem:[%s1 + $0x558] sm:$0xff]
  %v206 = vld [vmem:[%s1 + $0x560] sm:$0xff]
  %v207 = vld [vmem:[%s1 + $0x568] sm:$0xff]
  %v208 = vld [vmem:[%s1 + $0x570] sm:$0xff]
  %v209 = vld [vmem:[%s1 + $0x578] sm:$0xff]
  %v210 = vld [vmem:[%s1 + $0x580] sm:$0xff]
  %v211 = vld [vmem:[%s1 + $0x588] sm:$0xff]
  %v212 = vld [vmem:[%s1 + $0x590] sm:$0xff]
  %v213 = vld [vmem:[%s1 + $0x598] sm:$0xff]
  %v214 = vld [vmem:[%s1 + $0x5a0] sm:$0xff]
  %v215 = vld [vmem:[%s1 + $0x5a8] sm:$0xff]
  %v216 = vld [vmem:[%s1 + $0x5b0] sm:$0xff]
  %v217 = vld [vmem:[%s1 + $0x5b8] sm:$0xff]
  %v218 = vld [vmem:[%s1 + $0x5c0] sm:$0xff]
  %v219 = vld [vmem:[%s1 + $0x5c8] sm:$0xff]
  %v220 = vld [vmem:[%s1 + $0x5d0] sm:$0xff]
  %v221 = vld [vmem:[%s1 + $0x5d8] sm:$0xff]
  %v222 = vld [vmem:[%s1 + $0x5e0] sm:$0xff]
  %v223 = vld [vmem:[%s1 + $0x5e8] sm:$0xff]
  %v224 = vld [vmem:[%s1 + $0x5f0] sm:$0xff]
  %v225 = vld [vmem:[%s1 + $0x5f8] sm:$0xff]
  %v226 = vld [vmem:[%s1 + $0x600] sm:$0xff]
  %v227 = vld [vmem:[%s1 + $0x608] sm:$0xff]
  %v228 = vld [vmem:[%s1 + $0x610] sm:$0xff]
  %v229 = vld [vmem:[%s1 + $0x618] sm:$0xff]
  %v230 = vld [vmem:[%s1 + $0x620] sm:$0xff]
  %v231 = vld [vmem:[%s1 + $0x628] sm:$0xff]
  %v232 = vld [vmem:[%s1 + $0x630] sm:$0xff]
  %v233 = vld [vmem:[%s1 + $0x638] sm:$0xff]
  %v234 = vld [vmem:[%s1 + $0x640] sm:$0xff]
  %v235 = vld [vmem:[%s1 + $0x648] sm:$0xff]
  %v236 = vld [vmem:[%s1 + $0x650] sm:$0xff]
  %v237 = vld [vmem:[%s1 + $0x658] sm:$0xff]
  %v238 = vld [vmem:[%s1 + $0x660] sm:$0xff]
  %v239 = vld [vmem:[%s1 + $0x668] sm:$0xff]
  %v240 = vld [vmem:[%s1 + $0x670] sm:$0xff]
  %v241 = vld [vmem:[%s1 + $0x678] sm:$0xff]
  %v242 = vld [vmem:[%s1 + $0x680] sm:$0xff]
  %v243 = vld [vmem:[%s1 + $0x688] sm:$0xff]
  %v244 = vld [vmem:[%s1 + $0x690] sm:$0xff]
  %v245 = vld [vmem:[%s1 + $0x698] sm:$0xff]
  %v246 = vld [vmem:[%s1 + $0x6a0] sm:$0xff]
  %v247 = vld [vmem:[%s1 + $0x6a8] sm:$0xff]
  %v248 = vld [vmem:[%s1 + $0x6b0] sm:$0xff]
  %v249 = vld [vmem:[%s1 + $0x6b8] sm:$0xff]
  %v250 = vld [vmem:[%s1 + $0x6c0] sm:$0xff]
  %v251 = vld [vmem:[%s1 + $0x6c8] sm:$0xff]
  %v252 = vld [vmem:[%s1 + $0x6d0] sm:$0xff]
  %v253 = vld [vmem:[%s1 + $0x6d8] sm:$0xff]
  %v254 = vld [vmem:[%s1 + $0x6e0] sm:$0xff]
  %v255 = vld [vmem:[%s1 + $0x6e8] sm:$0xff]
  %v256 = vld [vmem:[%s1 + $0x6f0] sm:$0xff]
  %v257 = vld [vmem:[%s1 + $0x6f8] sm:$0xff]
  %v258 = vld [vmem:[%s1 + $0x700] sm:$0xff]
  %v259 = vld [vmem:[%s1 + $0x708] sm:$0xff]
  %v260 = vld [vmem:[%s1 + $0x710] sm:$0xff]
  %v261 = vld [vmem:[%s1 + $0x718] sm:$0xff]
  %v262 = vld [vmem:[%s1 + $0x720] sm:$0xff]
  %v263 = vld [vmem:[%s1 + $0x728] sm:$0xff]
  %v264 = vld [vmem:[%s1 + $0x730] sm:$0xff]
  %v265 = vld [vmem:[%s1 + $0x738] sm:$0xff]
  %v266 = vld [vmem:[%s1 + $0x740] sm:$0xff]
  %v267 = vld [vmem:[%s1 + $0x748] sm:$0xff]
  %v268 = vld [vmem:[%s1 + $0x750] sm:$0xff]
  %v269 = vld [vmem:[%s1 + $0x758] sm:$0xff]
  %v270 = vld [vmem:[%s1 + $0x760] sm:$0xff]
  %v271 = vld [vmem:[%s1 + $0x768] sm:$0xff]
  %v272 = vld [vmem:[%s1 + $0x770] sm:$0xff]
  %v273 = vld [vmem:[%s1 + $0x778] sm:$0xff]
  %v274 = vld [vmem:[%s1 + $0x780] sm:$0xff]
  %v275 = vld [vmem:[%s1 + $0x788] sm:$0xff]
  %v276 = vld [vmem:[%s1 + $0x790] sm:$0xff]
  %v277 = vld [vmem:[%s1 + $0x798] sm:$0xff]
  %v278 = vld [vmem:[%s1 + $0x7a0] sm:$0xff]
  %v279 = vld [vmem:[%s1 + $0x7a8] sm:$0xff]
  %v280 = vld [vmem:[%s1 + $0x7b0] sm:$0xff]
  %v281 = vld [vmem:[%s1 + $0x7b8] sm:$0xff]
  %v282 = vld [vmem:[%s1 + $0x7c0] sm:$0xff]
  %v283 = vld [vmem:[%s1 + $0x7c8] sm:$0xff]
  %v284 = vld [vmem:[%s1 + $0x7d0] sm:$0xff]
  %v285 = vld [vmem:[%s1 + $0x7d8] sm:$0xff]
  %v286 = vld [vmem:[%s1 + $0x7e0] sm:$0xff]
  %v287 = vld [vmem:[%s1 + $0x7e8] sm:$0xff]
  %v288 = vld [vmem:[%s1 + $0x7f0] sm:$0xff]
  %v289 = vld [vmem:[%s1 + $0x7f8] sm:$0xff]
  %v290 = vld [vmem:[%s1 + $0x800] sm:$0xff]
  %v291 = vld [vmem:[%s1 + $0x808] sm:$0xff]
  %v292 = vld [vmem:[%s1 + $0x810] sm:$0xff]
  %v293 = vld [vmem:[%s1 + $0x818] sm:$0xff]
  %v294 = vld [vmem:[%s1 + $0x820] sm:$0xff]
  %v295 = vld [vmem:[%s1 + $0x828] sm:$0xff]
  %v296 = vld [vmem:[%s1 + $0x830] sm:$0xff]
  %v297 = vld [vmem:[%s1 + $0x838] sm:$0xff]
  %v298 = vld [vmem:[%s1 + $0x840] sm:$0xff]
  %v299 = vld [vmem:[%s1 + $0x848] sm:$0xff]
  %v300 = vld [vmem:[%s1 + $0x850] sm:$0xff]
  %v301 = vld [vmem:[%s1 + $0x858] sm:$0xff]
  %v302 = vld [vmem:[%s1 + $0x860] sm:$0xff]
  %v303 = vld [vmem:[%s1 + $0x868] sm:$0xff]
  %v304 = vld [vmem:[%s1 + $0x870] sm:$0xff]
  %v305 = vld [vmem:[%s1 + $0x878] sm:$0xff]
  %v306 = vld [vmem:[%s1 + $0x880] sm:$0xff]
  %v307 = vld [vmem:[%s1 + $0x888] sm:$0xff]
  %v308 = vld [vmem:[%s1 + $0x890] sm:$0xff]
  %v309 = vld [vmem:[%s1 + $0x898] sm:$0xff]
  %v310 = vld [vmem:[%s1 + $0x8a0] sm:$0xff]
  %v311 = vld [vmem:[%s1 + $0x8a8] sm:$0xff]
  %v312 = vld [vmem:[%s1 + $0x8b0] sm:$0xff]
  %v313 = vld [vmem:[%s1 + $0x8b8] sm:$0xff]
  %v314 = vld [vmem:[%s1 + $0x8c0] sm:$0xff]
  %v315 = vld [vmem:[%s1 + $0x8c8] sm:$0xff]
  %v316 = vld [vmem:[%s1 + $0x8d0] sm:$0xff]
  %v317 = vld [vmem:[%s1 + $0x8d8] sm:$0xff]
  %v318 = vld [vmem:[%s1 + $0x8e0] sm:$0xff]
  %v319 = vld [vmem:[%s1 + $0x8e8] sm:$0xff]
  %v320 = vld [vmem:[%s1 + $0x8f0] sm:$0xff]
  %v321 = vld [vmem:[%s1 + $0x8f8] sm:$0xff]
  %v322 = vld [vmem:[%s1 + $0x900] sm:$0xff]
  %v323 = vld [vmem:[%s1 + $0x908] sm:$0xff]
  %v324 = vld [vmem:[%s1 + $0x910] sm:$0xff]
  %v325 = vld [vmem:[%s1 + $0x918] sm:$0xff]
  %v326 = vld [vmem:[%s1 + $0x920] sm:$0xff]
  %v327 = vld [vmem:[%s1 + $0x928] sm:$0xff]
  %v328 = vld [vmem:[%s1 + $0x930] sm:$0xff]
  %v329 = vld [vmem:[%s1 + $0x938] sm:$0xff]
  %v330 = vld [vmem:[%s1 + $0x940] sm:$0xff]
  %v331 = vld [vmem:[%s1 + $0x948] sm:$0xff]
  %v332 = vld [vmem:[%s1 + $0x950] sm:$0xff]
  %v333 = vld [vmem:[%s1 + $0x958] sm:$0xff]
  %v334 = vld [vmem:[%s1 + $0x960] sm:$0xff]
  %v335 = vld [vmem:[%s1 + $0x968] sm:$0xff]
  %v336 = vld [vmem:[%s1 + $0x970] sm:$0xff]
  %v337 = vld [vmem:[%s1 + $0x978] sm:$0xff]
  %v338 = vld [vmem:[%s1 + $0x980] sm:$0xff]
  %v339 = vld [vmem:[%s1 + $0x988] sm:$0xff]
  %v340 = vld [vmem:[%s1 + $0x990] sm:$0xff]
  %v341 = vld [vmem:[%s1 + $0x998] sm:$0xff]
  %v342 = vld [vmem:[%s1 + $0x9a0] sm:$0xff]
  %v343 = vld [vmem:[%s1 + $0x9a8] sm:$0xff]
  %v344 = vld [vmem:[%s1 + $0x9b0] sm:$0xff]
  %v345 = vld [vmem:[%s1 + $0x9b8] sm:$0xff]
  %v346 = vld [vmem:[%s1 + $0x9c0] sm:$0xff]
  %v347 = vld [vmem:[%s1 + $0x9c8] sm:$0xff]
  %v348 = vld [vmem:[%s1 + $0x9d0] sm:$0xff]
  %v349 = vld [vmem:[%s1 + $0x9d8] sm:$0xff]
  %v350 = vld [vmem:[%s1 + $0x9e0] sm:$0xff]
  %v351 = vld [vmem:[%s1 + $0x9e8] sm:$0xff]
  %v352 = vld [vmem:[%s1 + $0x9f0] sm:$0xff]
  %v353 = vld [vmem:[%s1 + $0x9f8] sm:$0xff]
  %v354 = vld [vmem:[%s1 + $0xa00] sm:$0xff]
  %v355 = vld [vmem:[%s1 + $0xa08] sm:$0xff]
  %v356 = vld [vmem:[%s1 + $0xa10] sm:$0xff]
  %v357 = vld [vmem:[%s1 + $0xa18] sm:$0xff]
  %v358 = vld [vmem:[%s1 + $0xa20] sm:$0xff]
  %v359 = vld [vmem:[%s1 + $0xa28] sm:$0xff]
  %v360 = vld [vmem:[%s1 + $0xa30] sm:$0xff]
  %v361 = vld [vmem:[%s1 + $0xa38] sm:$0xff]
  %v362 = vld [vmem:[%s1 + $0xa40] sm:$0xff]
  %v363 = vld [vmem:[%s1 + $0xa48] sm:$0xff]
  %v364 = vld [vmem:[%s1 + $0xa50] sm:$0xff]
  %v365 = vld [vmem:[%s1 + $0xa58] sm:$0xff]
  %v366 = vld [vmem:[%s1 + $0xa60] sm:$0xff]
  %v367 = vld [vmem:[%s1 + $0xa68] sm:$0xff]
  %v368 = vld [vmem:[%s1 + $0xa70] sm:$0xff]
  %v369 = vld [vmem:[%s1 + $0xa78] sm:$0xff]
  %v370 = vld [vmem:[%s1 + $0xa80] sm:$0xff]
  %v371 = vld [vmem:[%s1 + $0xa88] sm:$0xff]
  %v372 = vld [vmem:[%s1 + $0xa90] sm:$0xff]
  %v373 = vld [vmem:[%s1 + $0xa98] sm:$0xff]
  %v374 = vld [vmem:[%s1 + $0xaa0] sm:$0xff]
  %v375 = vld [vmem:[%s1 + $0xaa8] sm:$0xff]
  %v376 = vld [vmem:[%s1 + $0xab0] sm:$0xff]
  %v377 = vld [vmem:[%s1 + $0xab8] sm:$0xff]
  %v378 = vld [vmem:[%s1 + $0xac0] sm:$0xff]
  %v379 = vld [vmem:[%s1 + $0xac8] sm:$0xff]
  %v380 = vld [vmem:[%s1 + $0xad0] sm:$0xff]
  %v381 = vld [vmem:[%s1 + $0xad8] sm:$0xff]
  %v382 = vld [vmem:[%s1 + $0xae0] sm:$0xff]
  %v383 = vld [vmem:[%s1 + $0xae8] sm:$0xff]
  %v384 = vld [vmem:[%s1 + $0xaf0] sm:$0xff]
  %v385 = vld [vmem:[%s1 + $0xaf8] sm:$0xff]
  %v386 = vld [vmem:[%s1 + $0xb00] sm:$0xff]
  %v387 = vld [vmem:[%s1 + $0xb08] sm:$0xff]
  %v388 = vld [vmem:[%s1 + $0xb10] sm:$0xff]
  %v389 = vld [vmem:[%s1 + $0xb18] sm:$0xff]
  %v390 = vld [vmem:[%s1 + $0xb20] sm:$0xff]
  %v391 = vld [vmem:[%s1 + $0xb28] sm:$0xff]
  %v392 = vld [vmem:[%s1 + $0xb30] sm:$0xff]
  %v393 = vld [vmem:[%s1 + $0xb38] sm:$0xff]
  %v394 = vld [vmem:[%s1 + $0xb40] sm:$0xff]
  %v395 = vld [vmem:[%s1 + $0xb48] sm:$0xff]
  %v396 = vld [vmem:[%s1 + $0xb50] sm:$0xff]
  %v397 = vld [vmem:[%s1 + $0xb58] sm:$0xff]
  %v398 = vld [vmem:[%s1 + $0xb60] sm:$0xff]
  %v399 = vld [vmem:[%s1 + $0xb68] sm:$0xff]
  %v400 = vld [vmem:[%s1 + $0xb70] sm:$0xff]
  %v401 = vld [vmem:[%s1 + $0xb78] sm:$0xff]
  %v402 = vld [vmem:[%s1 + $0xb80] sm:$0xff]
  %v403 = vld [vmem:[%s1 + $0xb88] sm:$0xff]
  %v404 = vld [vmem:[%s1 + $0xb90] sm:$0xff]
  %v405 = vld [vmem:[%s1 + $0xb98] sm:$0xff]
  %v406 = vld [vmem:[%s1 + $0xba0] sm:$0xff]
  %v407 = vld [vmem:[%s1 + $0xba8] sm:$0xff]
  %v408 = vld [vmem:[%s1 + $0xbb0] sm:$0xff]
  %v409 = vld [vmem:[%s1 + $0xbb8] sm:$0xff]
  %v410 = vld [vmem:[%s1 + $0xbc0] sm:$0xff]
  %v411 = vld [vmem:[%s1 + $0xbc8] sm:$0xff]
  %v412 = vld [vmem:[%s1 + $0xbd0] sm:$0xff]
  %v413 = vld [vmem:[%s1 + $0xbd8] sm:$0xff]
  %v414 = vld [vmem:[%s1 + $0xbe0] sm:$0xff]
  %v415 = vld [vmem:[%s1 + $0xbe8] sm:$0xff]
  %v416 = vld [vmem:[%s1 + $0xbf0] sm:$0xff]
  %v417 = vld [vmem:[%s1 + $0xbf8] sm:$0xff]
  %v418 = vld [vmem:[%s1 + $0xc00] sm:$0xff]
  %v419 = vld [vmem:[%s1 + $0xc08] sm:$0xff]
  %v420 = vld [vmem:[%s1 + $0xc10] sm:$0xff]
  %v421 = vld [vmem:[%s1 + $0xc18] sm:$0xff]
  %v422 = vld [vmem:[%s1 + $0xc20] sm:$0xff]
  %v423 = vld [vmem:[%s1 + $0xc28] sm:$0xff]
  %v424 = vld [vmem:[%s1 + $0xc30] sm:$0xff]
  %v425 = vld [vmem:[%s1 + $0xc38] sm:$0xff]
  %v426 = vld [vmem:[%s1 + $0xc40] sm:$0xff]
  %v427 = vld [vmem:[%s1 + $0xc48] sm:$0xff]
  %v428 = vld [vmem:[%s1 + $0xc50] sm:$0xff]
  %v429 = vld [vmem:[%s1 + $0xc58] sm:$0xff]
  %v430 = vld [vmem:[%s1 + $0xc60] sm:$0xff]
  %v431 = vld [vmem:[%s1 + $0xc68] sm:$0xff]
  %v432 = vld [vmem:[%s1 + $0xc70] sm:$0xff]
  %v433 = vld [vmem:[%s1 + $0xc78] sm:$0xff]
  %v434 = vld [vmem:[%s1 + $0xc80] sm:$0xff]
  %v435 = vld [vmem:[%s1 + $0xc88] sm:$0xff]
  %v436 = vld [vmem:[%s1 + $0xc90] sm:$0xff]
  %v437 = vld [vmem:[%s1 + $0xc98] sm:$0xff]
  %v438 = vld [vmem:[%s1 + $0xca0] sm:$0xff]
  %v439 = vld [vmem:[%s1 + $0xca8] sm:$0xff]
  %v440 = vld [vmem:[%s1 + $0xcb0] sm:$0xff]
  %v441 = vld [vmem:[%s1 + $0xcb8] sm:$0xff]
  %v442 = vld [vmem:[%s1 + $0xcc0] sm:$0xff]
  %v443 = vld [vmem:[%s1 + $0xcc8] sm:$0xff]
  %v444 = vld [vmem:[%s1 + $0xcd0] sm:$0xff]
  %v445 = vld [vmem:[%s1 + $0xcd8] sm:$0xff]
  %v446 = vld [vmem:[%s1 + $0xce0] sm:$0xff]
  %v447 = vld [vmem:[%s1 + $0xce8] sm:$0xff]
  %v448 = vld [vmem:[%s1 + $0xcf0] sm:$0xff]
  %v449 = vld [vmem:[%s1 + $0xcf8] sm:$0xff]
  %v450 = vld [vmem:[%s1 + $0xd00] sm:$0xff]
  %v451 = vld [vmem:[%s1 + $0xd08] sm:$0xff]
  %v452 = vld [vmem:[%s1 + $0xd10] sm:$0xff]
  %v453 = vld [vmem:[%s1 + $0xd18] sm:$0xff]
  %v454 = vld [vmem:[%s1 + $0xd20] sm:$0xff]
  %v455 = vld [vmem:[%s1 + $0xd28] sm:$0xff]
  %v456 = vld [vmem:[%s1 + $0xd30] sm:$0xff]
  %v457 = vld [vmem:[%s1 + $0xd38] sm:$0xff]
  %v458 = vld [vmem:[%s1 + $0xd40] sm:$0xff]
  %v459 = vld [vmem:[%s1 + $0xd48] sm:$0xff]
  %v460 = vld [vmem:[%s1 + $0xd50] sm:$0xff]
  %v461 = vld [vmem:[%s1 + $0xd58] sm:$0xff]
  %v462 = vld [vmem:[%s1 + $0xd60] sm:$0xff]
  %v463 = vld [vmem:[%s1 + $0xd68] sm:$0xff]
  %v464 = vld [vmem:[%s1 + $0xd70] sm:$0xff]
  %v465 = vld [vmem:[%s1 + $0xd78] sm:$0xff]
  %v466 = vld [vmem:[%s1 + $0xd80] sm:$0xff]
  %v467 = vld [vmem:[%s1 + $0xd88] sm:$0xff]
  %v468 = vld [vmem:[%s1 + $0xd90] sm:$0xff]
  %v469 = vld [vmem:[%s1 + $0xd98] sm:$0xff]
  %v470 = vld [vmem:[%s1 + $0xda0] sm:$0xff]
  %v471 = vld [vmem:[%s1 + $0xda8] sm:$0xff]
  %v472 = vld [vmem:[%s1 + $0xdb0] sm:$0xff]
  %v473 = vld [vmem:[%s1 + $0xdb8] sm:$0xff]
  %v474 = vld [vmem:[%s1 + $0xdc0] sm:$0xff]
  %v475 = vld [vmem:[%s1 + $0xdc8] sm:$0xff]
  %v476 = vld [vmem:[%s1 + $0xdd0] sm:$0xff]
  %v477 = vld [vmem:[%s1 + $0xdd8] sm:$0xff]
  %v478 = vld [vmem:[%s1 + $0xde0] sm:$0xff]
  %v479 = vld [vmem:[%s1 + $0xde8] sm:$0xff]
  %v480 = vld [vmem:[%s1 + $0xdf0] sm:$0xff]
  %v481 = vld [vmem:[%s1 + $0xdf8] sm:$0xff]
  %v482 = vld [vmem:[%s1 + $0xe00] sm:$0xff]
  %v483 = vld [vmem:[%s1 + $0xe08] sm:$0xff]
  %v484 = vld [vmem:[%s1 + $0xe10] sm:$0xff]
  %v485 = vld [vmem:[%s1 + $0xe18] sm:$0xff]
  %v486 = vld [vmem:[%s1 + $0xe20] sm:$0xff]
  %v487 = vld [vmem:[%s1 + $0xe28] sm:$0xff]
  %v488 = vld [vmem:[%s1 + $0xe30] sm:$0xff]
  %v489 = vld [vmem:[%s1 + $0xe38] sm:$0xff]
  %v490 = vld [vmem:[%s1 + $0xe40] sm:$0xff]
  %v491 = vld [vmem:[%s1 + $0xe48] sm:$0xff]
  %v492 = vld [vmem:[%s1 + $0xe50] sm:$0xff]
  %v493 = vld [vmem:[%s1 + $0xe58] sm:$0xff]
  %v494 = vld [vmem:[%s1 + $0xe60] sm:$0xff]
  %v495 = vld [vmem:[%s1 + $0xe68] sm:$0xff]
  %v496 = vld [vmem:[%s1 + $0xe70] sm:$0xff]
  %v497 = vld [vmem:[%s1 + $0xe78] sm:$0xff]
  %v498 = vld [vmem:[%s1 + $0xe80] sm:$0xff]
  %v499 = vld [vmem:[%s1 + $0xe88] sm:$0xff]
  %v500 = vld [vmem:[%s1 + $0xe90] sm:$0xff]
  %v501 = vld [vmem:[%s1 + $0xe98] sm:$0xff]
  %v502 = vld [vmem:[%s1 + $0xea0] sm:$0xff]
  %v503 = vld [vmem:[%s1 + $0xea8] sm:$0xff]
  %v504 = vld [vmem:[%s1 + $0xeb0] sm:$0xff]
  %v505 = vld [vmem:[%s1 + $0xeb8] sm:$0xff]
  %v506 = vld [vmem:[%s1 + $0xec0] sm:$0xff]
  %v507 = vld [vmem:[%s1 + $0xec8] sm:$0xff]
  %v508 = vld [vmem:[%s1 + $0xed0] sm:$0xff]
  %v509 = vld [vmem:[%s1 + $0xed8] sm:$0xff]
  %v510 = vld [vmem:[%s1 + $0xee0] sm:$0xff]
  %v511 = vld [vmem:[%s1 + $0xee8] sm:$0xff]
  %v512 = vld [vmem:[%s1 + $0xef0] sm:$0xff]
  %v513 = vld [vmem:[%s1 + $0xef8] sm:$0xff]
  %v514 = vld [vmem:[%s1 + $0xf00] sm:$0xff]
  %v515 = vld [vmem:[%s1 + $0xf08] sm:$0xff]
  %v516 = vld [vmem:[%s1 + $0xf10] sm:$0xff]
  %v517 = vld [vmem:[%s1 + $0xf18] sm:$0xff]
  %v518 = vld [vmem:[%s1 + $0xf20] sm:$0xff]
  %v519 = vld [vmem:[%s1 + $0xf28] sm:$0xff]
  %v520 = vld [vmem:[%s1 + $0xf30] sm:$0xff]
  %v521 = vld [vmem:[%s1 + $0xf38] sm:$0xff]
  %v522 = vld [vmem:[%s1 + $0xf40] sm:$0xff]
  %v523 = vld [vmem:[%s1 + $0xf48] sm:$0xff]
  %v524 = vld [vmem:[%s1 + $0xf50] sm:$0xff]
  %v525 = vld [vmem:[%s1 + $0xf58] sm:$0xff]
  %v526 = vld [vmem:[%s1 + $0xf60] sm:$0xff]
  %v527 = vld [vmem:[%s1 + $0xf68] sm:$0xff]
  %v528 = vld [vmem:[%s1 + $0xf70] sm:$0xff]
  %v529 = vld [vmem:[%s1 + $0xf78] sm:$0xff]
  %v530 = vld [vmem:[%s1 + $0xf80] sm:$0xff]
  %v531 = vld [vmem:[%s1 + $0xf88] sm:$0xff]
  %v532 = vld [vmem:[%s1 + $0xf90] sm:$0xff]
  %v533 = vld [vmem:[%s1 + $0xf98] sm:$0xff]
  %v534 = vld [vmem:[%s1 + $0xfa0] sm:$0xff]
  %v535 = vld [vmem:[%s1 + $0xfa8] sm:$0xff]
  %v536 = vld [vmem:[%s1 + $0xfb0] sm:$0xff]
  %v537 = vld [vmem:[%s1 + $0xfb8] sm:$0xff]
  %v538 = vld [vmem:[%s1 + $0xfc0] sm:$0xff]
  %v539 = vld [vmem:[%s1 + $0xfc8] sm:$0xff]
  %v540 = vld [vmem:[%s1 + $0xfd0] sm:$0xff]
  %v541 = vld [vmem:[%s1 + $0xfd8] sm:$0xff]
  %v542 = vld [vmem:[%s1 + $0xfe0] sm:$0xff]
  %v543 = vld [vmem:[%s1 + $0xfe8] sm:$0xff]
  %v544 = vld [vmem:[%s1 + $0xff0] sm:$0xff]
  %v545 = vld [vmem:[%s1 + $0xff8] sm:$0xff]
  %v546 = vld [vmem:[%s1 + $0x1000] sm:$0xff]
  %v547 = vld [vmem:[%s1 + $0x1008] sm:$0xff]
  %v548 = vld [vmem:[%s1 + $0x1010] sm:$0xff]
  %v549 = vld [vmem:[%s1 + $0x1018] sm:$0xff]
  %v550 = vld [vmem:[%s1 + $0x1020] sm:$0xff]
  %v551 = vld [vmem:[%s1 + $0x1028] sm:$0xff]
  %v552 = vld [vmem:[%s1 + $0x1030] sm:$0xff]
  %v553 = vld [vmem:[%s1 + $0x1038] sm:$0xff]
  %v554 = vld [vmem:[%s1 + $0x1040] sm:$0xff]
  %v555 = vld [vmem:[%s1 + $0x1048] sm:$0xff]
  %v556 = vld [vmem:[%s1 + $0x1050] sm:$0xff]
  %v557 = vld [vmem:[%s1 + $0x1058] sm:$0xff]
  %v558 = vld [vmem:[%s1 + $0x1060] sm:$0xff]
  %v559 = vld [vmem:[%s1 + $0x1068] sm:$0xff]
  %v560 = vld [vmem:[%s1 + $0x1070] sm:$0xff]
  %v561 = vld [vmem:[%s1 + $0x1078] sm:$0xff]
  %v562 = vld [vmem:[%s1 + $0x1080] sm:$0xff]
  %v563 = vld [vmem:[%s1 + $0x1088] sm:$0xff]
  %v564 = vld [vmem:[%s1 + $0x1090] sm:$0xff]
  %v565 = vld [vmem:[%s1 + $0x1098] sm:$0xff]
  %v566 = vld [vmem:[%s1 + $0x10a0] sm:$0xff]
  %v567 = vld [vmem:[%s1 + $0x10a8] sm:$0xff]
  %v568 = vld [vmem:[%s1 + $0x10b0] sm:$0xff]
  %v569 = vld [vmem:[%s1 + $0x10b8] sm:$0xff]
  %v570 = vld [vmem:[%s1 + $0x10c0] sm:$0xff]
  %v571 = vld [vmem:[%s1 + $0x10c8] sm:$0xff]
  %v572 = vld [vmem:[%s1 + $0x10d0] sm:$0xff]
  %v573 = vld [vmem:[%s1 + $0x10d8] sm:$0xff]
  %v574 = vld [vmem:[%s1 + $0x10e0] sm:$0xff]
  %v575 = vld [vmem:[%s1 + $0x10e8] sm:$0xff]
  %v576 = vld [vmem:[%s1 + $0x10f0] sm:$0xff]
  %v577 = vld [vmem:[%s1 + $0x10f8] sm:$0xff]
  %v578 = vld [vmem:[%s1 + $0x1100] sm:$0xff]
  %v579 = vld [vmem:[%s1 + $0x1108] sm:$0xff]
  %v580 = vld [vmem:[%s1 + $0x1110] sm:$0xff]
  %v581 = vld [vmem:[%s1 + $0x1118] sm:$0xff]
  %v582 = vld [vmem:[%s1 + $0x1120] sm:$0xff]
  %v583 = vld [vmem:[%s1 + $0x1128] sm:$0xff]
  %v584 = vld [vmem:[%s1 + $0x1130] sm:$0xff]
  %v585 = vld [vmem:[%s1 + $0x1138] sm:$0xff]
  %v586 = vld [vmem:[%s1 + $0x1140] sm:$0xff]
  %v587 = vld [vmem:[%s1 + $0x1148] sm:$0xff]
  %v588 = vld [vmem:[%s1 + $0x1150] sm:$0xff]
  %v589 = vld [vmem:[%s1 + $0x1158] sm:$0xff]
  %v590 = vld [vmem:[%s1 + $0x1160] sm:$0xff]
  %v591 = vld [vmem:[%s1 + $0x1168] sm:$0xff]
  %v592 = vld [vmem:[%s1 + $0x1170] sm:$0xff]
  %v593 = vld [vmem:[%s1 + $0x1178] sm:$0xff]
  %v594 = vld [vmem:[%s1 + $0x1180] sm:$0xff]
  %v595 = vld [vmem:[%s1 + $0x1188] sm:$0xff]
  %v596 = vld [vmem:[%s1 + $0x1190] sm:$0xff]
  %v597 = vld [vmem:[%s1 + $0x1198] sm:$0xff]
  %v598 = vld [vmem:[%s1 + $0x11a0] sm:$0xff]
  %v599 = vld [vmem:[%s1 + $0x11a8] sm:$0xff]
  %v600 = vld [vmem:[%s1 + $0x11b0] sm:$0xff]
  %v601 = vld [vmem:[%s1 + $0x11b8] sm:$0xff]
  %v602 = vld [vmem:[%s1 + $0x11c0] sm:$0xff]
  %v603 = vld [vmem:[%s1 + $0x11c8] sm:$0xff]
  %v604 = vld [vmem:[%s1 + $0x11d0] sm:$0xff]
  %v605 = vld [vmem:[%s1 + $0x11d8] sm:$0xff]
  %v606 = vld [vmem:[%s1 + $0x11e0] sm:$0xff]
  %v607 = vld [vmem:[%s1 + $0x11e8] sm:$0xff]
  %v608 = vld [vmem:[%s1 + $0x11f0] sm:$0xff]
  %v609 = vld [vmem:[%s1 + $0x11f8] sm:$0xff]
  %v610 = vld [vmem:[%s1 + $0x1200] sm:$0xff]
  %v611 = vld [vmem:[%s1 + $0x1208] sm:$0xff]
  %v612 = vld [vmem:[%s1 + $0x1210] sm:$0xff]
  %v613 = vld [vmem:[%s1 + $0x1218] sm:$0xff]
  %v614 = vld [vmem:[%s1 + $0x1220] sm:$0xff]
  %v615 = vld [vmem:[%s1 + $0x1228] sm:$0xff]
  %v616 = vld [vmem:[%s1 + $0x1230] sm:$0xff]
  %v617 = vld [vmem:[%s1 + $0x1238] sm:$0xff]
  %v618 = vld [vmem:[%s1 + $0x1240] sm:$0xff]
  %v619 = vld [vmem:[%s1 + $0x1248] sm:$0xff]
  %v620 = vld [vmem:[%s1 + $0x1250] sm:$0xff]
  %v621 = vld [vmem:[%s1 + $0x1258] sm:$0xff]
  %v622 = vld [vmem:[%s1 + $0x1260] sm:$0xff]
  %v623 = vld [vmem:[%s1 + $0x1268] sm:$0xff]
  %v624 = vld [vmem:[%s1 + $0x1270] sm:$0xff]
  %v625 = vld [vmem:[%s1 + $0x1278] sm:$0xff]
  %v626 = vld [vmem:[%s1 + $0x1280] sm:$0xff]
  %v627 = vld [vmem:[%s1 + $0x1288] sm:$0xff]
  %v628 = vld [vmem:[%s1 + $0x1290] sm:$0xff]
  %v629 = vld [vmem:[%s1 + $0x1298] sm:$0xff]
  %v630 = vld [vmem:[%s1 + $0x12a0] sm:$0xff]
  %v631 = vld [vmem:[%s1 + $0x12a8] sm:$0xff]
  %v632 = vld [vmem:[%s1 + $0x12b0] sm:$0xff]
  %v633 = vld [vmem:[%s1 + $0x12b8] sm:$0xff]
  %v634 = vld [vmem:[%s1 + $0x12c0] sm:$0xff]
  %v635 = vld [vmem:[%s1 + $0x12c8] sm:$0xff]
  %v636 = vld [vmem:[%s1 + $0x12d0] sm:$0xff]
  %v637 = vld [vmem:[%s1 + $0x12d8] sm:$0xff]
  %v638 = vld [vmem:[%s1 + $0x12e0] sm:$0xff]
  %v639 = vld [vmem:[%s1 + $0x12e8] sm:$0xff]
  %v640 = vld [vmem:[%s1 + $0x12f0] sm:$0xff]
  %v641 = vld [vmem:[%s1 + $0x12f8] sm:$0xff]
  %v642 = vld [vmem:[%s1 + $0x1300] sm:$0xff]
  %v643 = vld [vmem:[%s1 + $0x1308] sm:$0xff]
  %v644 = vld [vmem:[%s1 + $0x1310] sm:$0xff]
  %v645 = vld [vmem:[%s1 + $0x1318] sm:$0xff]
  %v646 = vld [vmem:[%s1 + $0x1320] sm:$0xff]
  %v647 = vld [vmem:[%s1 + $0x1328] sm:$0xff]
  %v648 = vld [vmem:[%s1 + $0x1330] sm:$0xff]
  %v649 = vld [vmem:[%s1 + $0x1338] sm:$0xff]
  %v650 = vld [vmem:[%s1 + $0x1340] sm:$0xff]
  %v651 = vld [vmem:[%s1 + $0x1348] sm:$0xff]
  %v652 = vld [vmem:[%s1 + $0x1350] sm:$0xff]
  %v653 = vld [vmem:[%s1 + $0x1358] sm:$0xff]
  %v654 = vld [vmem:[%s1 + $0x1360] sm:$0xff]
  %v655 = vld [vmem:[%s1 + $0x1368] sm:$0xff]
  %v656 = vld [vmem:[%s1 + $0x1370] sm:$0xff]
  %v657 = vld [vmem:[%s1 + $0x1378] sm:$0xff]
  %v658 = vld [vmem:[%s1 + $0x1380] sm:$0xff]
  %v659 = vld [vmem:[%s1 + $0x1388] sm:$0xff]
  %v660 = vld [vmem:[%s1 + $0x1390] sm:$0xff]
  %v661 = vld [vmem:[%s1 + $0x1398] sm:$0xff]
  %v662 = vld [vmem:[%s1 + $0x13a0] sm:$0xff]
  %v663 = vld [vmem:[%s1 + $0x13a8] sm:$0xff]
  %v664 = vld [vmem:[%s1 + $0x13b0] sm:$0xff]
  %v665 = vld [vmem:[%s1 + $0x13b8] sm:$0xff]
  %v666 = vld [vmem:[%s1 + $0x13c0] sm:$0xff]
  %v667 = vld [vmem:[%s1 + $0x13c8] sm:$0xff]
  %v668 = vld [vmem:[%s1 + $0x13d0] sm:$0xff]
  %v669 = vld [vmem:[%s1 + $0x13d8] sm:$0xff]
  %v670 = vld [vmem:[%s1 + $0x13e0] sm:$0xff]
  %v671 = vld [vmem:[%s1 + $0x13e8] sm:$0xff]
  %v672 = vld [vmem:[%s1 + $0x13f0] sm:$0xff]
  %v673 = vld [vmem:[%s1 + $0x13f8] sm:$0xff]
  %v674 = vld [vmem:[%s1 + $0x1400] sm:$0xff]
  %v675 = vld [vmem:[%s1 + $0x1408] sm:$0xff]
  %v676 = vld [vmem:[%s1 + $0x1410] sm:$0xff]
  %v677 = vld [vmem:[%s1 + $0x1418] sm:$0xff]
  %v678 = vld [vmem:[%s1 + $0x1420] sm:$0xff]
  %v679 = vld [vmem:[%s1 + $0x1428] sm:$0xff]
  %v680 = vld [vmem:[%s1 + $0x1430] sm:$0xff]
  %v681 = vld [vmem:[%s1 + $0x1438] sm:$0xff]
  %v682 = vld [vmem:[%s1 + $0x1440] sm:$0xff]
  %v683 = vld [vmem:[%s1 + $0x1448] sm:$0xff]
  %v684 = vld [vmem:[%s1 + $0x1450] sm:$0xff]
  %v685 = vld [vmem:[%s1 + $0x1458] sm:$0xff]
  %v686 = vld [vmem:[%s1 + $0x1460] sm:$0xff]
  %v687 = vld [vmem:[%s1 + $0x1468] sm:$0xff]
  %v688 = vld [vmem:[%s1 + $0x1470] sm:$0xff]
  %v689 = vld [vmem:[%s1 + $0x1478] sm:$0xff]
  %v690 = vld [vmem:[%s1 + $0x1480] sm:$0xff]
  %v691 = vld [vmem:[%s1 + $0x1488] sm:$0xff]
  %v692 = vld [vmem:[%s1 + $0x1490] sm:$0xff]
  %v693 = vld [vmem:[%s1 + $0x1498] sm:$0xff]
  %v694 = vld [vmem:[%s1 + $0x14a0] sm:$0xff]
  %v695 = vld [vmem:[%s1 + $0x14a8] sm:$0xff]
  %v696 = vld [vmem:[%s1 + $0x14b0] sm:$0xff]
  %v697 = vld [vmem:[%s1 + $0x14b8] sm:$0xff]
  %v698 = vld [vmem:[%s1 + $0x14c0] sm:$0xff]
  %v699 = vld [vmem:[%s1 + $0x14c8] sm:$0xff]
  %v700 = vld [vmem:[%s1 + $0x14d0] sm:$0xff]
  %v701 = vld [vmem:[%s1 + $0x14d8] sm:$0xff]
  %v702 = vld [vmem:[%s1 + $0x14e0] sm:$0xff]
  %v703 = vld [vmem:[%s1 + $0x14e8] sm:$0xff]
  %v704 = vld [vmem:[%s1 + $0x14f0] sm:$0xff]
  %v705 = vld [vmem:[%s1 + $0x14f8] sm:$0xff]
  %v706 = vld [vmem:[%s1 + $0x1500] sm:$0xff]
  %v707 = vld [vmem:[%s1 + $0x1508] sm:$0xff]
  %v708 = vld [vmem:[%s1 + $0x1510] sm:$0xff]
  %v709 = vld [vmem:[%s1 + $0x1518] sm:$0xff]
  %v710 = vld [vmem:[%s1 + $0x1520] sm:$0xff]
  %v711 = vld [vmem:[%s1 + $0x1528] sm:$0xff]
  %v712 = vld [vmem:[%s1 + $0x1530] sm:$0xff]
  %v713 = vld [vmem:[%s1 + $0x1538] sm:$0xff]
  %v714 = vld [vmem:[%s1 + $0x1540] sm:$0xff]
  %v715 = vld [vmem:[%s1 + $0x1548] sm:$0xff]
  %v716 = vld [vmem:[%s1 + $0x1550] sm:$0xff]
  %v717 = vld [vmem:[%s1 + $0x1558] sm:$0xff]
  %v718 = vld [vmem:[%s1 + $0x1560] sm:$0xff]
  %v719 = vld [vmem:[%s1 + $0x1568] sm:$0xff]
  %v720 = vld [vmem:[%s1 + $0x1570] sm:$0xff]
  %v721 = vld [vmem:[%s1 + $0x1578] sm:$0xff]
  %v722 = vld [vmem:[%s1 + $0x1580] sm:$0xff]
  %v723 = vld [vmem:[%s1 + $0x1588] sm:$0xff]
  %v724 = vld [vmem:[%s1 + $0x1590] sm:$0xff]
  %v725 = vld [vmem:[%s1 + $0x1598] sm:$0xff]
  %v726 = vld [vmem:[%s1 + $0x15a0] sm:$0xff]
  %v727 = vld [vmem:[%s1 + $0x15a8] sm:$0xff]
  %v728 = vld [vmem:[%s1 + $0x15b0] sm:$0xff]
  %v729 = vld [vmem:[%s1 + $0x15b8] sm:$0xff]
  %v730 = vld [vmem:[%s1 + $0x15c0] sm:$0xff]
  %v731 = vld [vmem:[%s1 + $0x15c8] sm:$0xff]
  %v732 = vld [vmem:[%s1 + $0x15d0] sm:$0xff]
  %v733 = vld [vmem:[%s1 + $0x15d8] sm:$0xff]
  %v734 = vld [vmem:[%s1 + $0x15e0] sm:$0xff]
  %v735 = vld [vmem:[%s1 + $0x15e8] sm:$0xff]
  %v736 = vld [vmem:[%s1 + $0x15f0] sm:$0xff]
  %v737 = vld [vmem:[%s1 + $0x15f8] sm:$0xff]
  %v738 = vld [vmem:[%s1 + $0x1600] sm:$0xff]
  %v739 = vld [vmem:[%s1 + $0x1608] sm:$0xff]
  %v740 = vld [vmem:[%s1 + $0x1610] sm:$0xff]
  %v741 = vld [vmem:[%s1 + $0x1618] sm:$0xff]
  %v742 = vld [vmem:[%s1 + $0x1620] sm:$0xff]
  %v743 = vld [vmem:[%s1 + $0x1628] sm:$0xff]
  %v744 = vld [vmem:[%s1 + $0x1630] sm:$0xff]
  %v745 = vld [vmem:[%s1 + $0x1638] sm:$0xff]
  %v746 = vld [vmem:[%s1 + $0x1640] sm:$0xff]
  %v747 = vld [vmem:[%s1 + $0x1648] sm:$0xff]
  %v748 = vld [vmem:[%s1 + $0x1650] sm:$0xff]
  %v749 = vld [vmem:[%s1 + $0x1658] sm:$0xff]
  %v750 = vld [vmem:[%s1 + $0x1660] sm:$0xff]
  %v751 = vld [vmem:[%s1 + $0x1668] sm:$0xff]
  %v752 = vld [vmem:[%s1 + $0x1670] sm:$0xff]
  %v753 = vld [vmem:[%s1 + $0x1678] sm:$0xff]
  %v754 = vld [vmem:[%s1 + $0x1680] sm:$0xff]
  %v755 = vld [vmem:[%s1 + $0x1688] sm:$0xff]
  %v756 = vld [vmem:[%s1 + $0x1690] sm:$0xff]
  %v757 = vld [vmem:[%s1 + $0x1698] sm:$0xff]
  %v758 = vld [vmem:[%s1 + $0x16a0] sm:$0xff]
  %v759 = vld [vmem:[%s1 + $0x16a8] sm:$0xff]
  %v760 = vld [vmem:[%s1 + $0x16b0] sm:$0xff]
  %v761 = vld [vmem:[%s1 + $0x16b8] sm:$0xff]
  %v762 = vld [vmem:[%s1 + $0x16c0] sm:$0xff]
  %v763 = vld [vmem:[%s1 + $0x16c8] sm:$0xff]
  %v764 = vld [vmem:[%s1 + $0x16d0] sm:$0xff]
  %v765 = vld [vmem:[%s1 + $0x16d8] sm:$0xff]
  %v766 = vld [vmem:[%s1 + $0x16e0] sm:$0xff]
  %v767 = vld [vmem:[%s1 + $0x16e8] sm:$0xff]
  %v768 = vld [vmem:[%s1 + $0x16f0] sm:$0xff]
  %v769 = vld [vmem:[%s1 + $0x16f8] sm:$0xff]
  %v770 = vld [vmem:[%s1 + $0x1700] sm:$0xff]
  %v771 = vld [vmem:[%s1 + $0x1708] sm:$0xff]
  %v772 = vld [vmem:[%s1 + $0x1710] sm:$0xff]
  %v773 = vld [vmem:[%s1 + $0x1718] sm:$0xff]
  %v774 = vld [vmem:[%s1 + $0x1720] sm:$0xff]
  %v775 = vld [vmem:[%s1 + $0x1728] sm:$0xff]
  %v776 = vld [vmem:[%s1 + $0x1730] sm:$0xff]
  %v777 = vld [vmem:[%s1 + $0x1738] sm:$0xff]
  %v778 = vld [vmem:[%s1 + $0x1740] sm:$0xff]
  %v779 = vld [vmem:[%s1 + $0x1748] sm:$0xff]
  %v780 = vld [vmem:[%s1 + $0x1750] sm:$0xff]
  %v781 = vld [vmem:[%s1 + $0x1758] sm:$0xff]
  %v782 = vld [vmem:[%s1 + $0x1760] sm:$0xff]
  %v783 = vld [vmem:[%s1 + $0x1768] sm:$0xff]
  %v784 = vld [vmem:[%s1 + $0x1770] sm:$0xff]
  %v785 = vld [vmem:[%s1 + $0x1778] sm:$0xff]
  %v786 = vld [vmem:[%s1 + $0x1780] sm:$0xff]
  %v787 = vld [vmem:[%s1 + $0x1788] sm:$0xff]
  %v788 = vld [vmem:[%s1 + $0x1790] sm:$0xff]
  %v789 = vld [vmem:[%s1 + $0x1798] sm:$0xff]
  %v790 = vld [vmem:[%s1 + $0x17a0] sm:$0xff]
  %v791 = vld [vmem:[%s1 + $0x17a8] sm:$0xff]
  %v792 = vld [vmem:[%s1 + $0x17b0] sm:$0xff]
  %v793 = vld [vmem:[%s1 + $0x17b8] sm:$0xff]
  %v794 = vld [vmem:[%s1 + $0x17c0] sm:$0xff]
  %v795 = vld [vmem:[%s1 + $0x17c8] sm:$0xff]
  %v796 = vld [vmem:[%s1 + $0x17d0] sm:$0xff]
  %v797 = vld [vmem:[%s1 + $0x17d8] sm:$0xff]
  %v798 = vld [vmem:[%s1 + $0x17e0] sm:$0xff]
  %v799 = vld [vmem:[%s1 + $0x17e8] sm:$0xff]
  %v800 = vld [vmem:[%s1 + $0x17f0] sm:$0xff]
  %v801 = vld [vmem:[%s1 + $0x17f8] sm:$0xff]
  %v802 = vld [vmem:[%s1 + $0x1800] sm:$0xff]
  %v803 = vld [vmem:[%s1 + $0x1808] sm:$0xff]
  %v804 = vld [vmem:[%s1 + $0x1810] sm:$0xff]
  %v805 = vld [vmem:[%s1 + $0x1818] sm:$0xff]
  %v806 = vld [vmem:[%s1 + $0x1820] sm:$0xff]
  %v807 = vld [vmem:[%s1 + $0x1828] sm:$0xff]
  %v808 = vld [vmem:[%s1 + $0x1830] sm:$0xff]
  %v809 = vld [vmem:[%s1 + $0x1838] sm:$0xff]
  %v810 = vld [vmem:[%s1 + $0x1840] sm:$0xff]
  %v811 = vld [vmem:[%s1 + $0x1848] sm:$0xff]
  %v812 = vld [vmem:[%s1 + $0x1850] sm:$0xff]
  %v813 = vld [vmem:[%s1 + $0x1858] sm:$0xff]
  %v814 = vld [vmem:[%s1 + $0x1860] sm:$0xff]
  %v815 = vld [vmem:[%s1 + $0x1868] sm:$0xff]
  %v816 = vld [vmem:[%s1 + $0x1870] sm:$0xff]
  %v817 = vld [vmem:[%s1 + $0x1878] sm:$0xff]
  %v818 = vld [vmem:[%s2] sm:$0xf]
  %v820 = vlaneseq
  %v821 = vshrl.u32 %v820, 7
  %v822 = vsub.s32 0, %v821
  %v823 = vrot.slane %v818, %v822
  %v824 = vlaneseq
  %v825 = vshrl.u32 %v824, 7
  %v826 = vsub.s32 1, %v825
  %v827 = vrot.slane %v818, %v826
  %v828 = vlaneseq
  %v829 = vshrl.u32 %v828, 7
  %v830 = vsub.s32 2, %v829
  %v831 = vrot.slane %v818, %v830
  %v832 = vlaneseq
  %v833 = vshrl.u32 %v832, 7
  %v834 = vsub.s32 3, %v833
  %v835 = vrot.slane %v818, %v834
  %v853 = vunpack.c.l.b16 %v21
  %v854 = vunpack.c.h.b16 %v21
  %v855 = vunpack.c.l.b16 %v22
  %v856 = vunpack.c.h.b16 %v22
  %v857 = vunpack.c.l.b16 %v23
  %v858 = vunpack.c.h.b16 %v23
  %v859 = vunpack.c.l.b16 %v24
  %v860 = vunpack.c.h.b16 %v24
  %v861 = vunpack.c.l.b16 %v25
  %v862 = vunpack.c.h.b16 %v25
  %v863 = vunpack.c.l.b16 %v26
  %v864 = vunpack.c.h.b16 %v26
  %v865 = vunpack.c.l.b16 %v27
  %v866 = vunpack.c.h.b16 %v27
  %v867 = vunpack.c.l.b16 %v28
  %v868 = vunpack.c.h.b16 %v28
  %v869 = vunpack.c.l.b16 %v29
  %v870 = vunpack.c.h.b16 %v29
  %v871 = vunpack.c.l.b16 %v30
  %v872 = vunpack.c.h.b16 %v30
  %v873 = vunpack.c.l.b16 %v31
  %v874 = vunpack.c.h.b16 %v31
  %v875 = vunpack.c.l.b16 %v32
  %v876 = vunpack.c.h.b16 %v32
  %v877 = vunpack.c.l.b16 %v33
  %v878 = vpack.c.b16 %v853, %v853
  %v879 = vpack.c.b16 %v854, %v854
  %v880 = vpack.c.b16 %v855, %v855
  %v881 = vpack.c.b16 %v856, %v856
  %v882 = vpack.c.b16 %v857, %v857
  %v883 = vpack.c.b16 %v858, %v858
  %v884 = vpack.c.b16 %v859, %v859
  %v885 = vpack.c.b16 %v860, %v860
  %v886 = vpack.c.b16 %v861, %v861
  %v887 = vpack.c.b16 %v862, %v862
  %v888 = vpack.c.b16 %v863, %v863
  %v889 = vpack.c.b16 %v864, %v864
  %v890 = vpack.c.b16 %v865, %v865
  %v891 = vpack.c.b16 %v866, %v866
  %v892 = vpack.c.b16 %v867, %v867
  %v893 = vpack.c.b16 %v868, %v868
  %v894 = vpack.c.b16 %v869, %v869
  %v895 = vpack.c.b16 %v870, %v870
  %v896 = vpack.c.b16 %v871, %v871
  %v897 = vpack.c.b16 %v872, %v872
  %v898 = vpack.c.b16 %v873, %v873
  %v899 = vpack.c.b16 %v874, %v874
  %v900 = vpack.c.b16 %v875, %v875
  %v901 = vpack.c.b16 %v876, %v876
  %v902 = vpack.c.b16 %v877, %v877
  %v1711 = vunpack.c.l.b16 %v34
  %v1712 = vunpack.c.h.b16 %v34
  %v1713 = vunpack.c.l.b16 %v35
  %v1714 = vunpack.c.h.b16 %v35
  %v1715 = vunpack.c.l.b16 %v36
  %v1716 = vunpack.c.h.b16 %v36
  %v1717 = vunpack.c.l.b16 %v37
  %v1718 = vunpack.c.h.b16 %v37
  %v1719 = vunpack.c.l.b16 %v38
  %v1720 = vunpack.c.h.b16 %v38
  %v1721 = vunpack.c.l.b16 %v39
  %v1722 = vunpack.c.h.b16 %v39
  %v1723 = vunpack.c.l.b16 %v40
  %v1724 = vunpack.c.h.b16 %v40
  %v1725 = vunpack.c.l.b16 %v41
  %v1726 = vunpack.c.h.b16 %v41
  %v1727 = vunpack.c.l.b16 %v42
  %v1728 = vunpack.c.h.b16 %v42
  %v1729 = vunpack.c.l.b16 %v43
  %v1730 = vunpack.c.h.b16 %v43
  %v1731 = vunpack.c.l.b16 %v44
  %v1732 = vunpack.c.h.b16 %v44
  %v1733 = vunpack.c.l.b16 %v45
  %v1734 = vunpack.c.h.b16 %v45
  %v1735 = vunpack.c.l.b16 %v46
  %v1736 = vunpack.c.h.b16 %v46
  %v1737 = vunpack.c.l.b16 %v47
  %v1738 = vunpack.c.h.b16 %v47
  %v1739 = vunpack.c.l.b16 %v48
  %v1740 = vunpack.c.h.b16 %v48
  %v1741 = vunpack.c.l.b16 %v49
  %v1742 = vunpack.c.h.b16 %v49
  %v1743 = vunpack.c.l.b16 %v50
  %v1744 = vunpack.c.h.b16 %v50
  %v1745 = vunpack.c.l.b16 %v51
  %v1746 = vunpack.c.h.b16 %v51
  %v1747 = vunpack.c.l.b16 %v52
  %v1748 = vunpack.c.h.b16 %v52
  %v1749 = vunpack.c.l.b16 %v53
  %v1750 = vunpack.c.h.b16 %v53
  %v1751 = vunpack.c.l.b16 %v54
  %v1752 = vunpack.c.h.b16 %v54
  %v1753 = vunpack.c.l.b16 %v55
  %v1754 = vunpack.c.h.b16 %v55
  %v1755 = vunpack.c.l.b16 %v56
  %v1756 = vunpack.c.h.b16 %v56
  %v1757 = vunpack.c.l.b16 %v57
  %v1758 = vunpack.c.h.b16 %v57
  %v1759 = vunpack.c.l.b16 %v58
  %v1760 = vunpack.c.h.b16 %v58
  %v1761 = vunpack.c.l.b16 %v59
  %v1762 = vunpack.c.h.b16 %v59
  %v1763 = vunpack.c.l.b16 %v60
  %v1764 = vunpack.c.h.b16 %v60
  %v1765 = vunpack.c.l.b16 %v61
  %v1766 = vunpack.c.h.b16 %v61
  %v1767 = vunpack.c.l.b16 %v62
  %v1768 = vunpack.c.h.b16 %v62
  %v1769 = vunpack.c.l.b16 %v63
  %v1770 = vunpack.c.h.b16 %v63
  %v1771 = vunpack.c.l.b16 %v64
  %v1772 = vunpack.c.h.b16 %v64
  %v1773 = vunpack.c.l.b16 %v65
  %v1774 = vunpack.c.h.b16 %v65
  %v1775 = vunpack.c.l.b16 %v66
  %v1776 = vunpack.c.h.b16 %v66
  %v1777 = vunpack.c.l.b16 %v67
  %v1778 = vunpack.c.h.b16 %v67
  %v1779 = vunpack.c.l.b16 %v68
  %v1780 = vunpack.c.h.b16 %v68
  %v1781 = vunpack.c.l.b16 %v69
  %v1782 = vunpack.c.h.b16 %v69
  %v1783 = vunpack.c.l.b16 %v70
  %v1784 = vunpack.c.h.b16 %v70
  %v1785 = vunpack.c.l.b16 %v71
  %v1786 = vunpack.c.h.b16 %v71
  %v1787 = vunpack.c.l.b16 %v72
  %v1788 = vunpack.c.h.b16 %v72
  %v1789 = vunpack.c.l.b16 %v73
  %v1790 = vunpack.c.h.b16 %v73
  %v1791 = vunpack.c.l.b16 %v74
  %v1792 = vunpack.c.h.b16 %v74
  %v1793 = vunpack.c.l.b16 %v75
  %v1794 = vunpack.c.h.b16 %v75
  %v1795 = vunpack.c.l.b16 %v76
  %v1796 = vunpack.c.h.b16 %v76
  %v1797 = vunpack.c.l.b16 %v77
  %v1798 = vunpack.c.h.b16 %v77
  %v1799 = vunpack.c.l.b16 %v78
  %v1800 = vunpack.c.h.b16 %v78
  %v1801 = vunpack.c.l.b16 %v79
  %v1802 = vunpack.c.h.b16 %v79
  %v1803 = vunpack.c.l.b16 %v80
  %v1804 = vunpack.c.h.b16 %v80
  %v1805 = vunpack.c.l.b16 %v81
  %v1806 = vunpack.c.h.b16 %v81
  %v1807 = vunpack.c.l.b16 %v82
  %v1808 = vunpack.c.h.b16 %v82
  %v1809 = vunpack.c.l.b16 %v83
  %v1810 = vunpack.c.h.b16 %v83
  %v1811 = vunpack.c.l.b16 %v84
  %v1812 = vunpack.c.h.b16 %v84
  %v1813 = vunpack.c.l.b16 %v85
  %v1814 = vunpack.c.h.b16 %v85
  %v1815 = vunpack.c.l.b16 %v86
  %v1816 = vunpack.c.h.b16 %v86
  %v1817 = vunpack.c.l.b16 %v87
  %v1818 = vunpack.c.h.b16 %v87
  %v1819 = vunpack.c.l.b16 %v88
  %v1820 = vunpack.c.h.b16 %v88
  %v1821 = vunpack.c.l.b16 %v89
  %v1822 = vunpack.c.h.b16 %v89
  %v1823 = vunpack.c.l.b16 %v90
  %v1824 = vunpack.c.h.b16 %v90
  %v1825 = vunpack.c.l.b16 %v91
  %v1826 = vunpack.c.h.b16 %v91
  %v1827 = vunpack.c.l.b16 %v92
  %v1828 = vunpack.c.h.b16 %v92
  %v1829 = vunpack.c.l.b16 %v93
  %v1830 = vunpack.c.h.b16 %v93
  %v1831 = vunpack.c.l.b16 %v94
  %v1832 = vunpack.c.h.b16 %v94
  %v1833 = vunpack.c.l.b16 %v95
  %v1834 = vunpack.c.h.b16 %v95
  %v1835 = vunpack.c.l.b16 %v96
  %v1836 = vunpack.c.h.b16 %v96
  %v1837 = vunpack.c.l.b16 %v97
  %v1838 = vunpack.c.h.b16 %v97
  %v1839 = vunpack.c.l.b16 %v98
  %v1840 = vunpack.c.h.b16 %v98
  %v1841 = vunpack.c.l.b16 %v99
  %v1842 = vunpack.c.h.b16 %v99
  %v1843 = vunpack.c.l.b16 %v100
  %v1844 = vunpack.c.h.b16 %v100
  %v1845 = vunpack.c.l.b16 %v101
  %v1846 = vunpack.c.h.b16 %v101
  %v1847 = vunpack.c.l.b16 %v102
  %v1848 = vunpack.c.h.b16 %v102
  %v1849 = vunpack.c.l.b16 %v103
  %v1850 = vunpack.c.h.b16 %v103
  %v1851 = vunpack.c.l.b16 %v104
  %v1852 = vunpack.c.h.b16 %v104
  %v1853 = vunpack.c.l.b16 %v105
  %v1854 = vunpack.c.h.b16 %v105
  %v1855 = vunpack.c.l.b16 %v106
  %v1856 = vunpack.c.h.b16 %v106
  %v1857 = vunpack.c.l.b16 %v107
  %v1858 = vunpack.c.h.b16 %v107
  %v1859 = vunpack.c.l.b16 %v108
  %v1860 = vunpack.c.h.b16 %v108
  %v1861 = vunpack.c.l.b16 %v109
  %v1862 = vunpack.c.h.b16 %v109
  %v1863 = vunpack.c.l.b16 %v110
  %v1864 = vunpack.c.h.b16 %v110
  %v1865 = vunpack.c.l.b16 %v111
  %v1866 = vunpack.c.h.b16 %v111
  %v1867 = vunpack.c.l.b16 %v112
  %v1868 = vunpack.c.h.b16 %v112
  %v1869 = vunpack.c.l.b16 %v113
  %v1870 = vunpack.c.h.b16 %v113
  %v1871 = vunpack.c.l.b16 %v114
  %v1872 = vunpack.c.h.b16 %v114
  %v1873 = vunpack.c.l.b16 %v115
  %v1874 = vunpack.c.h.b16 %v115
  %v1875 = vunpack.c.l.b16 %v116
  %v1876 = vunpack.c.h.b16 %v116
  %v1877 = vunpack.c.l.b16 %v117
  %v1878 = vunpack.c.h.b16 %v117
  %v1879 = vunpack.c.l.b16 %v118
  %v1880 = vunpack.c.h.b16 %v118
  %v1881 = vunpack.c.l.b16 %v119
  %v1882 = vunpack.c.h.b16 %v119
  %v1883 = vunpack.c.l.b16 %v120
  %v1884 = vunpack.c.h.b16 %v120
  %v1885 = vunpack.c.l.b16 %v121
  %v1886 = vunpack.c.h.b16 %v121
  %v1887 = vunpack.c.l.b16 %v122
  %v1888 = vunpack.c.h.b16 %v122
  %v1889 = vunpack.c.l.b16 %v123
  %v1890 = vunpack.c.h.b16 %v123
  %v1891 = vunpack.c.l.b16 %v124
  %v1892 = vunpack.c.h.b16 %v124
  %v1893 = vunpack.c.l.b16 %v125
  %v1894 = vunpack.c.h.b16 %v125
  %v1895 = vunpack.c.l.b16 %v126
  %v1896 = vunpack.c.h.b16 %v126
  %v1897 = vunpack.c.l.b16 %v127
  %v1898 = vunpack.c.h.b16 %v127
  %v1899 = vunpack.c.l.b16 %v128
  %v1900 = vunpack.c.h.b16 %v128
  %v1901 = vunpack.c.l.b16 %v129
  %v1902 = vunpack.c.h.b16 %v129
  %v1903 = vunpack.c.l.b16 %v130
  %v1904 = vunpack.c.h.b16 %v130
  %v1905 = vunpack.c.l.b16 %v131
  %v1906 = vunpack.c.h.b16 %v131
  %v1907 = vunpack.c.l.b16 %v132
  %v1908 = vunpack.c.h.b16 %v132
  %v1909 = vunpack.c.l.b16 %v133
  %v1910 = vunpack.c.h.b16 %v133
  %v1911 = vunpack.c.l.b16 %v134
  %v1912 = vunpack.c.h.b16 %v134
  %v1913 = vunpack.c.l.b16 %v135
  %v1914 = vunpack.c.h.b16 %v135
  %v1915 = vunpack.c.l.b16 %v136
  %v1916 = vunpack.c.h.b16 %v136
  %v1917 = vunpack.c.l.b16 %v137
  %v1918 = vunpack.c.h.b16 %v137
  %v1919 = vunpack.c.l.b16 %v138
  %v1920 = vunpack.c.h.b16 %v138
  %v1921 = vunpack.c.l.b16 %v139
  %v1922 = vunpack.c.h.b16 %v139
  %v1923 = vunpack.c.l.b16 %v140
  %v1924 = vunpack.c.h.b16 %v140
  %v1925 = vunpack.c.l.b16 %v141
  %v1926 = vunpack.c.h.b16 %v141
  %v1927 = vunpack.c.l.b16 %v142
  %v1928 = vunpack.c.h.b16 %v142
  %v1929 = vunpack.c.l.b16 %v143
  %v1930 = vunpack.c.h.b16 %v143
  %v1931 = vunpack.c.l.b16 %v144
  %v1932 = vunpack.c.h.b16 %v144
  %v1933 = vunpack.c.l.b16 %v145
  %v1934 = vunpack.c.h.b16 %v145
  %v1935 = vunpack.c.l.b16 %v146
  %v1936 = vunpack.c.h.b16 %v146
  %v1937 = vunpack.c.l.b16 %v147
  %v1938 = vunpack.c.h.b16 %v147
  %v1939 = vunpack.c.l.b16 %v148
  %v1940 = vunpack.c.h.b16 %v148
  %v1941 = vunpack.c.l.b16 %v149
  %v1942 = vunpack.c.h.b16 %v149
  %v1943 = vunpack.c.l.b16 %v150
  %v1944 = vunpack.c.h.b16 %v150
  %v1945 = vunpack.c.l.b16 %v151
  %v1946 = vunpack.c.h.b16 %v151
  %v1947 = vunpack.c.l.b16 %v152
  %v1948 = vunpack.c.h.b16 %v152
  %v1949 = vunpack.c.l.b16 %v153
  %v1950 = vunpack.c.h.b16 %v153
  %v1951 = vunpack.c.l.b16 %v154
  %v1952 = vunpack.c.h.b16 %v154
  %v1953 = vunpack.c.l.b16 %v155
  %v1954 = vunpack.c.h.b16 %v155
  %v1955 = vunpack.c.l.b16 %v156
  %v1956 = vunpack.c.h.b16 %v156
  %v1957 = vunpack.c.l.b16 %v157
  %v1958 = vunpack.c.h.b16 %v157
  %v1959 = vunpack.c.l.b16 %v158
  %v1960 = vunpack.c.h.b16 %v158
  %v1961 = vunpack.c.l.b16 %v159
  %v1962 = vunpack.c.h.b16 %v159
  %v1963 = vunpack.c.l.b16 %v160
  %v1964 = vunpack.c.h.b16 %v160
  %v1965 = vunpack.c.l.b16 %v161
  %v1966 = vunpack.c.h.b16 %v161
  %v1967 = vunpack.c.l.b16 %v162
  %v1968 = vunpack.c.h.b16 %v162
  %v1969 = vunpack.c.l.b16 %v163
  %v1970 = vunpack.c.h.b16 %v163
  %v1971 = vunpack.c.l.b16 %v164
  %v1972 = vunpack.c.h.b16 %v164
  %v1973 = vunpack.c.l.b16 %v165
  %v1974 = vunpack.c.h.b16 %v165
  %v1975 = vunpack.c.l.b16 %v166
  %v1976 = vunpack.c.h.b16 %v166
  %v1977 = vunpack.c.l.b16 %v167
  %v1978 = vunpack.c.h.b16 %v167
  %v1979 = vunpack.c.l.b16 %v168
  %v1980 = vunpack.c.h.b16 %v168
  %v1981 = vunpack.c.l.b16 %v169
  %v1982 = vunpack.c.h.b16 %v169
  %v1983 = vunpack.c.l.b16 %v170
  %v1984 = vunpack.c.h.b16 %v170
  %v1985 = vunpack.c.l.b16 %v171
  %v1986 = vunpack.c.h.b16 %v171
  %v1987 = vunpack.c.l.b16 %v172
  %v1988 = vunpack.c.h.b16 %v172
  %v1989 = vunpack.c.l.b16 %v173
  %v1990 = vunpack.c.h.b16 %v173
  %v1991 = vunpack.c.l.b16 %v174
  %v1992 = vunpack.c.h.b16 %v174
  %v1993 = vunpack.c.l.b16 %v175
  %v1994 = vunpack.c.h.b16 %v175
  %v1995 = vunpack.c.l.b16 %v176
  %v1996 = vunpack.c.h.b16 %v176
  %v1997 = vunpack.c.l.b16 %v177
  %v1998 = vunpack.c.h.b16 %v177
  %v1999 = vunpack.c.l.b16 %v178
  %v2000 = vunpack.c.h.b16 %v178
  %v2001 = vunpack.c.l.b16 %v179
  %v2002 = vunpack.c.h.b16 %v179
  %v2003 = vunpack.c.l.b16 %v180
  %v2004 = vunpack.c.h.b16 %v180
  %v2005 = vunpack.c.l.b16 %v181
  %v2006 = vunpack.c.h.b16 %v181
  %v2007 = vunpack.c.l.b16 %v182
  %v2008 = vunpack.c.h.b16 %v182
  %v2009 = vunpack.c.l.b16 %v183
  %v2010 = vunpack.c.h.b16 %v183
  %v2011 = vunpack.c.l.b16 %v184
  %v2012 = vunpack.c.h.b16 %v184
  %v2013 = vunpack.c.l.b16 %v185
  %v2014 = vunpack.c.h.b16 %v185
  %v2015 = vunpack.c.l.b16 %v186
  %v2016 = vunpack.c.h.b16 %v186
  %v2017 = vunpack.c.l.b16 %v187
  %v2018 = vunpack.c.h.b16 %v187
  %v2019 = vunpack.c.l.b16 %v188
  %v2020 = vunpack.c.h.b16 %v188
  %v2021 = vunpack.c.l.b16 %v189
  %v2022 = vunpack.c.h.b16 %v189
  %v2023 = vunpack.c.l.b16 %v190
  %v2024 = vunpack.c.h.b16 %v190
  %v2025 = vunpack.c.l.b16 %v191
  %v2026 = vunpack.c.h.b16 %v191
  %v2027 = vunpack.c.l.b16 %v192
  %v2028 = vunpack.c.h.b16 %v192
  %v2029 = vunpack.c.l.b16 %v193
  %v2030 = vunpack.c.h.b16 %v193
  %v2031 = vunpack.c.l.b16 %v194
  %v2032 = vunpack.c.h.b16 %v194
  %v2033 = vunpack.c.l.b16 %v195
  %v2034 = vunpack.c.h.b16 %v195
  %v2035 = vunpack.c.l.b16 %v196
  %v2036 = vunpack.c.h.b16 %v196
  %v2037 = vunpack.c.l.b16 %v197
  %v2038 = vunpack.c.h.b16 %v197
  %v2039 = vunpack.c.l.b16 %v198
  %v2040 = vunpack.c.h.b16 %v198
  %v2041 = vunpack.c.l.b16 %v199
  %v2042 = vunpack.c.h.b16 %v199
  %v2043 = vunpack.c.l.b16 %v200
  %v2044 = vunpack.c.h.b16 %v200
  %v2045 = vunpack.c.l.b16 %v201
  %v2046 = vunpack.c.h.b16 %v201
  %v2047 = vunpack.c.l.b16 %v202
  %v2048 = vunpack.c.h.b16 %v202
  %v2049 = vunpack.c.l.b16 %v203
  %v2050 = vunpack.c.h.b16 %v203
  %v2051 = vunpack.c.l.b16 %v204
  %v2052 = vunpack.c.h.b16 %v204
  %v2053 = vunpack.c.l.b16 %v205
  %v2054 = vunpack.c.h.b16 %v205
  %v2055 = vunpack.c.l.b16 %v206
  %v2056 = vunpack.c.h.b16 %v206
  %v2057 = vunpack.c.l.b16 %v207
  %v2058 = vunpack.c.h.b16 %v207
  %v2059 = vunpack.c.l.b16 %v208
  %v2060 = vunpack.c.h.b16 %v208
  %v2061 = vunpack.c.l.b16 %v209
  %v2062 = vunpack.c.h.b16 %v209
  %v2063 = vunpack.c.l.b16 %v210
  %v2064 = vunpack.c.h.b16 %v210
  %v2065 = vunpack.c.l.b16 %v211
  %v2066 = vunpack.c.h.b16 %v211
  %v2067 = vunpack.c.l.b16 %v212
  %v2068 = vunpack.c.h.b16 %v212
  %v2069 = vunpack.c.l.b16 %v213
  %v2070 = vunpack.c.h.b16 %v213
  %v2071 = vunpack.c.l.b16 %v214
  %v2072 = vunpack.c.h.b16 %v214
  %v2073 = vunpack.c.l.b16 %v215
  %v2074 = vunpack.c.h.b16 %v215
  %v2075 = vunpack.c.l.b16 %v216
  %v2076 = vunpack.c.h.b16 %v216
  %v2077 = vunpack.c.l.b16 %v217
  %v2078 = vunpack.c.h.b16 %v217
  %v2079 = vunpack.c.l.b16 %v218
  %v2080 = vunpack.c.h.b16 %v218
  %v2081 = vunpack.c.l.b16 %v219
  %v2082 = vunpack.c.h.b16 %v219
  %v2083 = vunpack.c.l.b16 %v220
  %v2084 = vunpack.c.h.b16 %v220
  %v2085 = vunpack.c.l.b16 %v221
  %v2086 = vunpack.c.h.b16 %v221
  %v2087 = vunpack.c.l.b16 %v222
  %v2088 = vunpack.c.h.b16 %v222
  %v2089 = vunpack.c.l.b16 %v223
  %v2090 = vunpack.c.h.b16 %v223
  %v2091 = vunpack.c.l.b16 %v224
  %v2092 = vunpack.c.h.b16 %v224
  %v2093 = vunpack.c.l.b16 %v225
  %v2094 = vunpack.c.h.b16 %v225
  %v2095 = vunpack.c.l.b16 %v226
  %v2096 = vunpack.c.h.b16 %v226
  %v2097 = vunpack.c.l.b16 %v227
  %v2098 = vunpack.c.h.b16 %v227
  %v2099 = vunpack.c.l.b16 %v228
  %v2100 = vunpack.c.h.b16 %v228
  %v2101 = vunpack.c.l.b16 %v229
  %v2102 = vunpack.c.h.b16 %v229
  %v2103 = vunpack.c.l.b16 %v230
  %v2104 = vunpack.c.h.b16 %v230
  %v2105 = vunpack.c.l.b16 %v231
  %v2106 = vunpack.c.h.b16 %v231
  %v2107 = vunpack.c.l.b16 %v232
  %v2108 = vunpack.c.h.b16 %v232
  %v2109 = vunpack.c.l.b16 %v233
  %v2110 = vunpack.c.h.b16 %v233
  %v2111 = vunpack.c.l.b16 %v234
  %v2112 = vunpack.c.h.b16 %v234
  %v2113 = vunpack.c.l.b16 %v235
  %v2114 = vunpack.c.h.b16 %v235
  %v2115 = vunpack.c.l.b16 %v236
  %v2116 = vunpack.c.h.b16 %v236
  %v2117 = vunpack.c.l.b16 %v237
  %v2118 = vunpack.c.h.b16 %v237
  %v2119 = vunpack.c.l.b16 %v238
  %v2120 = vunpack.c.h.b16 %v238
  %v2121 = vunpack.c.l.b16 %v239
  %v2122 = vunpack.c.h.b16 %v239
  %v2123 = vunpack.c.l.b16 %v240
  %v2124 = vunpack.c.h.b16 %v240
  %v2125 = vunpack.c.l.b16 %v241
  %v2126 = vunpack.c.h.b16 %v241
  %v2127 = vunpack.c.l.b16 %v242
  %v2128 = vunpack.c.h.b16 %v242
  %v2129 = vunpack.c.l.b16 %v243
  %v2130 = vunpack.c.h.b16 %v243
  %v2131 = vunpack.c.l.b16 %v244
  %v2132 = vunpack.c.h.b16 %v244
  %v2133 = vunpack.c.l.b16 %v245
  %v2134 = vunpack.c.h.b16 %v245
  %v2135 = vunpack.c.l.b16 %v246
  %v2136 = vunpack.c.h.b16 %v246
  %v2137 = vunpack.c.l.b16 %v247
  %v2138 = vunpack.c.h.b16 %v247
  %v2139 = vunpack.c.l.b16 %v248
  %v2140 = vunpack.c.h.b16 %v248
  %v2141 = vunpack.c.l.b16 %v249
  %v2142 = vunpack.c.h.b16 %v249
  %v2143 = vunpack.c.l.b16 %v250
  %v2144 = vunpack.c.h.b16 %v250
  %v2145 = vunpack.c.l.b16 %v251
  %v2146 = vunpack.c.h.b16 %v251
  %v2147 = vunpack.c.l.b16 %v252
  %v2148 = vunpack.c.h.b16 %v252
  %v2149 = vunpack.c.l.b16 %v253
  %v2150 = vunpack.c.h.b16 %v253
  %v2151 = vunpack.c.l.b16 %v254
  %v2152 = vunpack.c.h.b16 %v254
  %v2153 = vunpack.c.l.b16 %v255
  %v2154 = vunpack.c.h.b16 %v255
  %v2155 = vunpack.c.l.b16 %v256
  %v2156 = vunpack.c.h.b16 %v256
  %v2157 = vunpack.c.l.b16 %v257
  %v2158 = vunpack.c.h.b16 %v257
  %v2159 = vunpack.c.l.b16 %v258
  %v2160 = vunpack.c.h.b16 %v258
  %v2161 = vunpack.c.l.b16 %v259
  %v2162 = vunpack.c.h.b16 %v259
  %v2163 = vunpack.c.l.b16 %v260
  %v2164 = vunpack.c.h.b16 %v260
  %v2165 = vunpack.c.l.b16 %v261
  %v2166 = vunpack.c.h.b16 %v261
  %v2167 = vunpack.c.l.b16 %v262
  %v2168 = vunpack.c.h.b16 %v262
  %v2169 = vunpack.c.l.b16 %v263
  %v2170 = vunpack.c.h.b16 %v263
  %v2171 = vunpack.c.l.b16 %v264
  %v2172 = vunpack.c.h.b16 %v264
  %v2173 = vunpack.c.l.b16 %v265
  %v2174 = vunpack.c.h.b16 %v265
  %v2175 = vunpack.c.l.b16 %v266
  %v2176 = vunpack.c.h.b16 %v266
  %v2177 = vunpack.c.l.b16 %v267
  %v2178 = vunpack.c.h.b16 %v267
  %v2179 = vunpack.c.l.b16 %v268
  %v2180 = vunpack.c.h.b16 %v268
  %v2181 = vunpack.c.l.b16 %v269
  %v2182 = vunpack.c.h.b16 %v269
  %v2183 = vunpack.c.l.b16 %v270
  %v2184 = vunpack.c.h.b16 %v270
  %v2185 = vunpack.c.l.b16 %v271
  %v2186 = vunpack.c.h.b16 %v271
  %v2187 = vunpack.c.l.b16 %v272
  %v2188 = vunpack.c.h.b16 %v272
  %v2189 = vunpack.c.l.b16 %v273
  %v2190 = vunpack.c.h.b16 %v273
  %v2191 = vunpack.c.l.b16 %v274
  %v2192 = vunpack.c.h.b16 %v274
  %v2193 = vunpack.c.l.b16 %v275
  %v2194 = vunpack.c.h.b16 %v275
  %v2195 = vunpack.c.l.b16 %v276
  %v2196 = vunpack.c.h.b16 %v276
  %v2197 = vunpack.c.l.b16 %v277
  %v2198 = vunpack.c.h.b16 %v277
  %v2199 = vunpack.c.l.b16 %v278
  %v2200 = vunpack.c.h.b16 %v278
  %v2201 = vunpack.c.l.b16 %v279
  %v2202 = vunpack.c.h.b16 %v279
  %v2203 = vunpack.c.l.b16 %v280
  %v2204 = vunpack.c.h.b16 %v280
  %v2205 = vunpack.c.l.b16 %v281
  %v2206 = vunpack.c.h.b16 %v281
  %v2207 = vunpack.c.l.b16 %v282
  %v2208 = vunpack.c.h.b16 %v282
  %v2209 = vunpack.c.l.b16 %v283
  %v2210 = vunpack.c.h.b16 %v283
  %v2211 = vunpack.c.l.b16 %v284
  %v2212 = vunpack.c.h.b16 %v284
  %v2213 = vunpack.c.l.b16 %v285
  %v2214 = vunpack.c.h.b16 %v285
  %v2215 = vunpack.c.l.b16 %v286
  %v2216 = vunpack.c.h.b16 %v286
  %v2217 = vunpack.c.l.b16 %v287
  %v2218 = vunpack.c.h.b16 %v287
  %v2219 = vunpack.c.l.b16 %v288
  %v2220 = vunpack.c.h.b16 %v288
  %v2221 = vunpack.c.l.b16 %v289
  %v2222 = vunpack.c.h.b16 %v289
  %v2223 = vunpack.c.l.b16 %v290
  %v2224 = vunpack.c.h.b16 %v290
  %v2225 = vunpack.c.l.b16 %v291
  %v2226 = vunpack.c.h.b16 %v291
  %v2227 = vunpack.c.l.b16 %v292
  %v2228 = vunpack.c.h.b16 %v292
  %v2229 = vunpack.c.l.b16 %v293
  %v2230 = vunpack.c.h.b16 %v293
  %v2231 = vunpack.c.l.b16 %v294
  %v2232 = vunpack.c.h.b16 %v294
  %v2233 = vunpack.c.l.b16 %v295
  %v2234 = vunpack.c.h.b16 %v295
  %v2235 = vunpack.c.l.b16 %v296
  %v2236 = vunpack.c.h.b16 %v296
  %v2237 = vunpack.c.l.b16 %v297
  %v2238 = vunpack.c.h.b16 %v297
  %v2239 = vunpack.c.l.b16 %v298
  %v2240 = vunpack.c.h.b16 %v298
  %v2241 = vunpack.c.l.b16 %v299
  %v2242 = vunpack.c.h.b16 %v299
  %v2243 = vunpack.c.l.b16 %v300
  %v2244 = vunpack.c.h.b16 %v300
  %v2245 = vunpack.c.l.b16 %v301
  %v2246 = vunpack.c.h.b16 %v301
  %v2247 = vunpack.c.l.b16 %v302
  %v2248 = vunpack.c.h.b16 %v302
  %v2249 = vunpack.c.l.b16 %v303
  %v2250 = vunpack.c.h.b16 %v303
  %v2251 = vunpack.c.l.b16 %v304
  %v2252 = vunpack.c.h.b16 %v304
  %v2253 = vunpack.c.l.b16 %v305
  %v2254 = vunpack.c.h.b16 %v305
  %v2255 = vunpack.c.l.b16 %v306
  %v2256 = vunpack.c.h.b16 %v306
  %v2257 = vunpack.c.l.b16 %v307
  %v2258 = vunpack.c.h.b16 %v307
  %v2259 = vunpack.c.l.b16 %v308
  %v2260 = vunpack.c.h.b16 %v308
  %v2261 = vunpack.c.l.b16 %v309
  %v2262 = vunpack.c.h.b16 %v309
  %v2263 = vunpack.c.l.b16 %v310
  %v2264 = vunpack.c.h.b16 %v310
  %v2265 = vunpack.c.l.b16 %v311
  %v2266 = vunpack.c.h.b16 %v311
  %v2267 = vunpack.c.l.b16 %v312
  %v2268 = vunpack.c.h.b16 %v312
  %v2269 = vunpack.c.l.b16 %v313
  %v2270 = vunpack.c.h.b16 %v313
  %v2271 = vunpack.c.l.b16 %v314
  %v2272 = vunpack.c.h.b16 %v314
  %v2273 = vunpack.c.l.b16 %v315
  %v2274 = vunpack.c.h.b16 %v315
  %v2275 = vunpack.c.l.b16 %v316
  %v2276 = vunpack.c.h.b16 %v316
  %v2277 = vunpack.c.l.b16 %v317
  %v2278 = vunpack.c.h.b16 %v317
  %v2279 = vunpack.c.l.b16 %v318
  %v2280 = vunpack.c.h.b16 %v318
  %v2281 = vunpack.c.l.b16 %v319
  %v2282 = vunpack.c.h.b16 %v319
  %v2283 = vunpack.c.l.b16 %v320
  %v2284 = vunpack.c.h.b16 %v320
  %v2285 = vunpack.c.l.b16 %v321
  %v2286 = vunpack.c.h.b16 %v321
  %v2287 = vunpack.c.l.b16 %v322
  %v2288 = vunpack.c.h.b16 %v322
  %v2289 = vunpack.c.l.b16 %v323
  %v2290 = vunpack.c.h.b16 %v323
  %v2291 = vunpack.c.l.b16 %v324
  %v2292 = vunpack.c.h.b16 %v324
  %v2293 = vunpack.c.l.b16 %v325
  %v2294 = vunpack.c.h.b16 %v325
  %v2295 = vunpack.c.l.b16 %v326
  %v2296 = vunpack.c.h.b16 %v326
  %v2297 = vunpack.c.l.b16 %v327
  %v2298 = vunpack.c.h.b16 %v327
  %v2299 = vunpack.c.l.b16 %v328
  %v2300 = vunpack.c.h.b16 %v328
  %v2301 = vunpack.c.l.b16 %v329
  %v2302 = vunpack.c.h.b16 %v329
  %v2303 = vunpack.c.l.b16 %v330
  %v2304 = vunpack.c.h.b16 %v330
  %v2305 = vunpack.c.l.b16 %v331
  %v2306 = vunpack.c.h.b16 %v331
  %v2307 = vunpack.c.l.b16 %v332
  %v2308 = vunpack.c.h.b16 %v332
  %v2309 = vunpack.c.l.b16 %v333
  %v2310 = vunpack.c.h.b16 %v333
  %v2311 = vunpack.c.l.b16 %v334
  %v2312 = vunpack.c.h.b16 %v334
  %v2313 = vunpack.c.l.b16 %v335
  %v2314 = vunpack.c.h.b16 %v335
  %v2315 = vunpack.c.l.b16 %v336
  %v2316 = vunpack.c.h.b16 %v336
  %v2317 = vunpack.c.l.b16 %v337
  %v2318 = vunpack.c.h.b16 %v337
  %v2319 = vunpack.c.l.b16 %v338
  %v2320 = vunpack.c.h.b16 %v338
  %v2321 = vunpack.c.l.b16 %v339
  %v2322 = vunpack.c.h.b16 %v339
  %v2323 = vunpack.c.l.b16 %v340
  %v2324 = vunpack.c.h.b16 %v340
  %v2325 = vunpack.c.l.b16 %v341
  %v2326 = vunpack.c.h.b16 %v341
  %v2327 = vunpack.c.l.b16 %v342
  %v2328 = vunpack.c.h.b16 %v342
  %v2329 = vunpack.c.l.b16 %v343
  %v2330 = vunpack.c.h.b16 %v343
  %v2331 = vunpack.c.l.b16 %v344
  %v2332 = vunpack.c.h.b16 %v344
  %v2333 = vunpack.c.l.b16 %v345
  %v2334 = vunpack.c.h.b16 %v345
  %v2335 = vunpack.c.l.b16 %v346
  %v2336 = vunpack.c.h.b16 %v346
  %v2337 = vunpack.c.l.b16 %v347
  %v2338 = vunpack.c.h.b16 %v347
  %v2339 = vunpack.c.l.b16 %v348
  %v2340 = vunpack.c.h.b16 %v348
  %v2341 = vunpack.c.l.b16 %v349
  %v2342 = vunpack.c.h.b16 %v349
  %v2343 = vunpack.c.l.b16 %v350
  %v2344 = vunpack.c.h.b16 %v350
  %v2345 = vunpack.c.l.b16 %v351
  %v2346 = vunpack.c.h.b16 %v351
  %v2347 = vunpack.c.l.b16 %v352
  %v2348 = vunpack.c.h.b16 %v352
  %v2349 = vunpack.c.l.b16 %v353
  %v2350 = vunpack.c.h.b16 %v353
  %v2351 = vunpack.c.l.b16 %v354
  %v2352 = vunpack.c.h.b16 %v354
  %v2353 = vunpack.c.l.b16 %v355
  %v2354 = vunpack.c.h.b16 %v355
  %v2355 = vunpack.c.l.b16 %v356
  %v2356 = vunpack.c.h.b16 %v356
  %v2357 = vunpack.c.l.b16 %v357
  %v2358 = vunpack.c.h.b16 %v357
  %v2359 = vunpack.c.l.b16 %v358
  %v2360 = vunpack.c.h.b16 %v358
  %v2361 = vunpack.c.l.b16 %v359
  %v2362 = vunpack.c.h.b16 %v359
  %v2363 = vunpack.c.l.b16 %v360
  %v2364 = vunpack.c.h.b16 %v360
  %v2365 = vunpack.c.l.b16 %v361
  %v2366 = vunpack.c.h.b16 %v361
  %v2367 = vunpack.c.l.b16 %v362
  %v2368 = vunpack.c.h.b16 %v362
  %v2369 = vunpack.c.l.b16 %v363
  %v2370 = vunpack.c.h.b16 %v363
  %v2371 = vunpack.c.l.b16 %v364
  %v2372 = vunpack.c.h.b16 %v364
  %v2373 = vunpack.c.l.b16 %v365
  %v2374 = vunpack.c.h.b16 %v365
  %v2375 = vunpack.c.l.b16 %v366
  %v2376 = vunpack.c.h.b16 %v366
  %v2377 = vunpack.c.l.b16 %v367
  %v2378 = vunpack.c.h.b16 %v367
  %v2379 = vunpack.c.l.b16 %v368
  %v2380 = vunpack.c.h.b16 %v368
  %v2381 = vunpack.c.l.b16 %v369
  %v2382 = vunpack.c.h.b16 %v369
  %v2383 = vunpack.c.l.b16 %v370
  %v2384 = vunpack.c.h.b16 %v370
  %v2385 = vunpack.c.l.b16 %v371
  %v2386 = vunpack.c.h.b16 %v371
  %v2387 = vunpack.c.l.b16 %v372
  %v2388 = vunpack.c.h.b16 %v372
  %v2389 = vunpack.c.l.b16 %v373
  %v2390 = vunpack.c.h.b16 %v373
  %v2391 = vunpack.c.l.b16 %v374
  %v2392 = vunpack.c.h.b16 %v374
  %v2393 = vunpack.c.l.b16 %v375
  %v2394 = vunpack.c.h.b16 %v375
  %v2395 = vunpack.c.l.b16 %v376
  %v2396 = vunpack.c.h.b16 %v376
  %v2397 = vunpack.c.l.b16 %v377
  %v2398 = vunpack.c.h.b16 %v377
  %v2399 = vunpack.c.l.b16 %v378
  %v2400 = vunpack.c.h.b16 %v378
  %v2401 = vunpack.c.l.b16 %v379
  %v2402 = vunpack.c.h.b16 %v379
  %v2403 = vunpack.c.l.b16 %v380
  %v2404 = vunpack.c.h.b16 %v380
  %v2405 = vunpack.c.l.b16 %v381
  %v2406 = vunpack.c.h.b16 %v381
  %v2407 = vunpack.c.l.b16 %v382
  %v2408 = vunpack.c.h.b16 %v382
  %v2409 = vunpack.c.l.b16 %v383
  %v2410 = vunpack.c.h.b16 %v383
  %v2411 = vunpack.c.l.b16 %v384
  %v2412 = vunpack.c.h.b16 %v384
  %v2413 = vunpack.c.l.b16 %v385
  %v2414 = vunpack.c.h.b16 %v385
  %v2415 = vunpack.c.l.b16 %v386
  %v2416 = vunpack.c.h.b16 %v386
  %v2417 = vunpack.c.l.b16 %v387
  %v2418 = vunpack.c.h.b16 %v387
  %v2419 = vunpack.c.l.b16 %v388
  %v2420 = vunpack.c.h.b16 %v388
  %v2421 = vunpack.c.l.b16 %v389
  %v2422 = vunpack.c.h.b16 %v389
  %v2423 = vunpack.c.l.b16 %v390
  %v2424 = vunpack.c.h.b16 %v390
  %v2425 = vunpack.c.l.b16 %v391
  %v2426 = vunpack.c.h.b16 %v391
  %v2427 = vunpack.c.l.b16 %v392
  %v2428 = vunpack.c.h.b16 %v392
  %v2429 = vunpack.c.l.b16 %v393
  %v2430 = vunpack.c.h.b16 %v393
  %v2431 = vunpack.c.l.b16 %v394
  %v2432 = vunpack.c.h.b16 %v394
  %v2433 = vunpack.c.l.b16 %v395
  %v2434 = vunpack.c.h.b16 %v395
  %v2435 = vunpack.c.l.b16 %v396
  %v2436 = vunpack.c.h.b16 %v396
  %v2437 = vunpack.c.l.b16 %v397
  %v2438 = vunpack.c.h.b16 %v397
  %v2439 = vunpack.c.l.b16 %v398
  %v2440 = vunpack.c.h.b16 %v398
  %v2441 = vunpack.c.l.b16 %v399
  %v2442 = vunpack.c.h.b16 %v399
  %v2443 = vunpack.c.l.b16 %v400
  %v2444 = vunpack.c.h.b16 %v400
  %v2445 = vunpack.c.l.b16 %v401
  %v2446 = vunpack.c.h.b16 %v401
  %v2447 = vunpack.c.l.b16 %v402
  %v2448 = vunpack.c.h.b16 %v402
  %v2449 = vunpack.c.l.b16 %v403
  %v2450 = vunpack.c.h.b16 %v403
  %v2451 = vunpack.c.l.b16 %v404
  %v2452 = vunpack.c.h.b16 %v404
  %v2453 = vunpack.c.l.b16 %v405
  %v2454 = vunpack.c.h.b16 %v405
  %v2455 = vunpack.c.l.b16 %v406
  %v2456 = vunpack.c.h.b16 %v406
  %v2457 = vunpack.c.l.b16 %v407
  %v2458 = vunpack.c.h.b16 %v407
  %v2459 = vunpack.c.l.b16 %v408
  %v2460 = vunpack.c.h.b16 %v408
  %v2461 = vunpack.c.l.b16 %v409
  %v2462 = vunpack.c.h.b16 %v409
  %v2463 = vunpack.c.l.b16 %v410
  %v2464 = vunpack.c.h.b16 %v410
  %v2465 = vunpack.c.l.b16 %v411
  %v2466 = vunpack.c.h.b16 %v411
  %v2467 = vunpack.c.l.b16 %v412
  %v2468 = vunpack.c.h.b16 %v412
  %v2469 = vunpack.c.l.b16 %v413
  %v2470 = vunpack.c.h.b16 %v413
  %v2471 = vunpack.c.l.b16 %v414
  %v2472 = vunpack.c.h.b16 %v414
  %v2473 = vunpack.c.l.b16 %v415
  %v2474 = vunpack.c.h.b16 %v415
  %v2475 = vunpack.c.l.b16 %v416
  %v2476 = vunpack.c.h.b16 %v416
  %v2477 = vunpack.c.l.b16 %v417
  %v2478 = vunpack.c.h.b16 %v417
  %v2479 = vunpack.c.l.b16 %v418
  %v2480 = vunpack.c.h.b16 %v418
  %v2481 = vunpack.c.l.b16 %v419
  %v2482 = vunpack.c.h.b16 %v419
  %v2483 = vunpack.c.l.b16 %v420
  %v2484 = vunpack.c.h.b16 %v420
  %v2485 = vunpack.c.l.b16 %v421
  %v2486 = vunpack.c.h.b16 %v421
  %v2487 = vunpack.c.l.b16 %v422
  %v2488 = vunpack.c.h.b16 %v422
  %v2489 = vunpack.c.l.b16 %v423
  %v2490 = vunpack.c.h.b16 %v423
  %v2491 = vunpack.c.l.b16 %v424
  %v2492 = vunpack.c.h.b16 %v424
  %v2493 = vunpack.c.l.b16 %v425
  %v2494 = vunpack.c.h.b16 %v425
  %v2495 = vunpack.c.l.b16 %v426
  %v2496 = vunpack.c.h.b16 %v426
  %v2497 = vunpack.c.l.b16 %v427
  %v2498 = vunpack.c.h.b16 %v427
  %v2499 = vunpack.c.l.b16 %v428
  %v2500 = vunpack.c.h.b16 %v428
  %v2501 = vunpack.c.l.b16 %v429
  %v2502 = vunpack.c.h.b16 %v429
  %v2503 = vunpack.c.l.b16 %v430
  %v2504 = vunpack.c.h.b16 %v430
  %v2505 = vunpack.c.l.b16 %v431
  %v2506 = vunpack.c.h.b16 %v431
  %v2507 = vunpack.c.l.b16 %v432
  %v2508 = vunpack.c.h.b16 %v432
  %v2509 = vunpack.c.l.b16 %v433
  %v2510 = vunpack.c.h.b16 %v433
  %v2511 = vunpack.c.l.b16 %v434
  %v2512 = vunpack.c.h.b16 %v434
  %v2513 = vunpack.c.l.b16 %v435
  %v2514 = vunpack.c.h.b16 %v435
  %v2515 = vunpack.c.l.b16 %v436
  %v2516 = vunpack.c.h.b16 %v436
  %v2517 = vunpack.c.l.b16 %v437
  %v2518 = vunpack.c.h.b16 %v437
  %v2519 = vunpack.c.l.b16 %v438
  %v2520 = vunpack.c.h.b16 %v438
  %v2521 = vunpack.c.l.b16 %v439
  %v2522 = vunpack.c.h.b16 %v439
  %v2523 = vunpack.c.l.b16 %v440
  %v2524 = vunpack.c.h.b16 %v440
  %v2525 = vunpack.c.l.b16 %v441
  %v2526 = vunpack.c.h.b16 %v441
  %v2527 = vunpack.c.l.b16 %v442
  %v2528 = vunpack.c.h.b16 %v442
  %v2529 = vunpack.c.l.b16 %v443
  %v2530 = vunpack.c.h.b16 %v443
  %v2531 = vunpack.c.l.b16 %v444
  %v2532 = vunpack.c.h.b16 %v444
  %v2533 = vunpack.c.l.b16 %v445
  %v2534 = vunpack.c.h.b16 %v445
  %v2535 = vunpack.c.l.b16 %v446
  %v2536 = vunpack.c.h.b16 %v446
  %v2537 = vunpack.c.l.b16 %v447
  %v2538 = vunpack.c.h.b16 %v447
  %v2539 = vunpack.c.l.b16 %v448
  %v2540 = vunpack.c.h.b16 %v448
  %v2541 = vunpack.c.l.b16 %v449
  %v2542 = vunpack.c.h.b16 %v449
  %v2543 = vunpack.c.l.b16 %v450
  %v2544 = vunpack.c.h.b16 %v450
  %v2545 = vunpack.c.l.b16 %v451
  %v2546 = vunpack.c.h.b16 %v451
  %v2547 = vunpack.c.l.b16 %v452
  %v2548 = vunpack.c.h.b16 %v452
  %v2549 = vunpack.c.l.b16 %v453
  %v2550 = vunpack.c.h.b16 %v453
  %v2551 = vunpack.c.l.b16 %v454
  %v2552 = vunpack.c.h.b16 %v454
  %v2553 = vunpack.c.l.b16 %v455
  %v2554 = vunpack.c.h.b16 %v455
  %v2555 = vunpack.c.l.b16 %v456
  %v2556 = vunpack.c.h.b16 %v456
  %v2557 = vunpack.c.l.b16 %v457
  %v2558 = vunpack.c.h.b16 %v457
  %v2559 = vunpack.c.l.b16 %v458
  %v2560 = vunpack.c.h.b16 %v458
  %v2561 = vunpack.c.l.b16 %v459
  %v2562 = vunpack.c.h.b16 %v459
  %v2563 = vunpack.c.l.b16 %v460
  %v2564 = vunpack.c.h.b16 %v460
  %v2565 = vunpack.c.l.b16 %v461
  %v2566 = vunpack.c.h.b16 %v461
  %v2567 = vunpack.c.l.b16 %v462
  %v2568 = vunpack.c.h.b16 %v462
  %v2569 = vunpack.c.l.b16 %v463
  %v2570 = vunpack.c.h.b16 %v463
  %v2571 = vunpack.c.l.b16 %v464
  %v2572 = vunpack.c.h.b16 %v464
  %v2573 = vunpack.c.l.b16 %v465
  %v2574 = vunpack.c.h.b16 %v465
  %v2575 = vunpack.c.l.b16 %v466
  %v2576 = vunpack.c.h.b16 %v466
  %v2577 = vunpack.c.l.b16 %v467
  %v2578 = vunpack.c.h.b16 %v467
  %v2579 = vunpack.c.l.b16 %v468
  %v2580 = vunpack.c.h.b16 %v468
  %v2581 = vunpack.c.l.b16 %v469
  %v2582 = vunpack.c.h.b16 %v469
  %v2583 = vunpack.c.l.b16 %v470
  %v2584 = vunpack.c.h.b16 %v470
  %v2585 = vunpack.c.l.b16 %v471
  %v2586 = vunpack.c.h.b16 %v471
  %v2587 = vunpack.c.l.b16 %v472
  %v2588 = vunpack.c.h.b16 %v472
  %v2589 = vunpack.c.l.b16 %v473
  %v2590 = vunpack.c.h.b16 %v473
  %v2591 = vunpack.c.l.b16 %v474
  %v2592 = vunpack.c.h.b16 %v474
  %v2593 = vunpack.c.l.b16 %v475
  %v2594 = vunpack.c.h.b16 %v475
  %v2595 = vunpack.c.l.b16 %v476
  %v2596 = vunpack.c.h.b16 %v476
  %v2597 = vunpack.c.l.b16 %v477
  %v2598 = vunpack.c.h.b16 %v477
  %v2599 = vunpack.c.l.b16 %v478
  %v2600 = vunpack.c.h.b16 %v478
  %v2601 = vunpack.c.l.b16 %v479
  %v2602 = vunpack.c.h.b16 %v479
  %v2603 = vunpack.c.l.b16 %v480
  %v2604 = vunpack.c.h.b16 %v480
  %v2605 = vunpack.c.l.b16 %v481
  %v2606 = vunpack.c.h.b16 %v481
  %v2607 = vunpack.c.l.b16 %v482
  %v2608 = vunpack.c.h.b16 %v482
  %v2609 = vunpack.c.l.b16 %v483
  %v2610 = vunpack.c.h.b16 %v483
  %v2611 = vunpack.c.l.b16 %v484
  %v2612 = vunpack.c.h.b16 %v484
  %v2613 = vunpack.c.l.b16 %v485
  %v2614 = vunpack.c.h.b16 %v485
  %v2615 = vunpack.c.l.b16 %v486
  %v2616 = vunpack.c.h.b16 %v486
  %v2617 = vunpack.c.l.b16 %v487
  %v2618 = vunpack.c.h.b16 %v487
  %v2619 = vunpack.c.l.b16 %v488
  %v2620 = vunpack.c.h.b16 %v488
  %v2621 = vunpack.c.l.b16 %v489
  %v2622 = vunpack.c.h.b16 %v489
  %v2623 = vunpack.c.l.b16 %v490
  %v2624 = vunpack.c.h.b16 %v490
  %v2625 = vunpack.c.l.b16 %v491
  %v2626 = vunpack.c.h.b16 %v491
  %v2627 = vunpack.c.l.b16 %v492
  %v2628 = vunpack.c.h.b16 %v492
  %v2629 = vunpack.c.l.b16 %v493
  %v2630 = vunpack.c.h.b16 %v493
  %v2631 = vunpack.c.l.b16 %v494
  %v2632 = vunpack.c.h.b16 %v494
  %v2633 = vunpack.c.l.b16 %v495
  %v2634 = vunpack.c.h.b16 %v495
  %v2635 = vunpack.c.l.b16 %v496
  %v2636 = vunpack.c.h.b16 %v496
  %v2637 = vunpack.c.l.b16 %v497
  %v2638 = vunpack.c.h.b16 %v497
  %v2639 = vunpack.c.l.b16 %v498
  %v2640 = vunpack.c.h.b16 %v498
  %v2641 = vunpack.c.l.b16 %v499
  %v2642 = vunpack.c.h.b16 %v499
  %v2643 = vunpack.c.l.b16 %v500
  %v2644 = vunpack.c.h.b16 %v500
  %v2645 = vunpack.c.l.b16 %v501
  %v2646 = vunpack.c.h.b16 %v501
  %v2647 = vunpack.c.l.b16 %v502
  %v2648 = vunpack.c.h.b16 %v502
  %v2649 = vunpack.c.l.b16 %v503
  %v2650 = vunpack.c.h.b16 %v503
  %v2651 = vunpack.c.l.b16 %v504
  %v2652 = vunpack.c.h.b16 %v504
  %v2653 = vunpack.c.l.b16 %v505
  %v2654 = vunpack.c.h.b16 %v505
  %v2655 = vunpack.c.l.b16 %v506
  %v2656 = vunpack.c.h.b16 %v506
  %v2657 = vunpack.c.l.b16 %v507
  %v2658 = vunpack.c.h.b16 %v507
  %v2659 = vunpack.c.l.b16 %v508
  %v2660 = vunpack.c.h.b16 %v508
  %v2661 = vunpack.c.l.b16 %v509
  %v2662 = vunpack.c.h.b16 %v509
  %v2663 = vunpack.c.l.b16 %v510
  %v2664 = vunpack.c.h.b16 %v510
  %v2665 = vunpack.c.l.b16 %v511
  %v2666 = vunpack.c.h.b16 %v511
  %v2667 = vunpack.c.l.b16 %v512
  %v2668 = vunpack.c.h.b16 %v512
  %v2669 = vunpack.c.l.b16 %v513
  %v2670 = vunpack.c.h.b16 %v513
  %v2671 = vunpack.c.l.b16 %v514
  %v2672 = vunpack.c.h.b16 %v514
  %v2673 = vunpack.c.l.b16 %v515
  %v2674 = vunpack.c.h.b16 %v515
  %v2675 = vunpack.c.l.b16 %v516
  %v2676 = vunpack.c.h.b16 %v516
  %v2677 = vunpack.c.l.b16 %v517
  %v2678 = vunpack.c.h.b16 %v517
  %v2679 = vunpack.c.l.b16 %v518
  %v2680 = vunpack.c.h.b16 %v518
  %v2681 = vunpack.c.l.b16 %v519
  %v2682 = vunpack.c.h.b16 %v519
  %v2683 = vunpack.c.l.b16 %v520
  %v2684 = vunpack.c.h.b16 %v520
  %v2685 = vunpack.c.l.b16 %v521
  %v2686 = vunpack.c.h.b16 %v521
  %v2687 = vunpack.c.l.b16 %v522
  %v2688 = vunpack.c.h.b16 %v522
  %v2689 = vunpack.c.l.b16 %v523
  %v2690 = vunpack.c.h.b16 %v523
  %v2691 = vunpack.c.l.b16 %v524
  %v2692 = vunpack.c.h.b16 %v524
  %v2693 = vunpack.c.l.b16 %v525
  %v2694 = vunpack.c.h.b16 %v525
  %v2695 = vunpack.c.l.b16 %v526
  %v2696 = vunpack.c.h.b16 %v526
  %v2697 = vunpack.c.l.b16 %v527
  %v2698 = vunpack.c.h.b16 %v527
  %v2699 = vunpack.c.l.b16 %v528
  %v2700 = vunpack.c.h.b16 %v528
  %v2701 = vunpack.c.l.b16 %v529
  %v2702 = vunpack.c.h.b16 %v529
  %v2703 = vunpack.c.l.b16 %v530
  %v2704 = vunpack.c.h.b16 %v530
  %v2705 = vunpack.c.l.b16 %v531
  %v2706 = vunpack.c.h.b16 %v531
  %v2707 = vunpack.c.l.b16 %v532
  %v2708 = vunpack.c.h.b16 %v532
  %v2709 = vunpack.c.l.b16 %v533
  %v2710 = vunpack.c.h.b16 %v533
  %v2711 = vunpack.c.l.b16 %v534
  %v2712 = vunpack.c.h.b16 %v534
  %v2713 = vunpack.c.l.b16 %v535
  %v2714 = vunpack.c.h.b16 %v535
  %v2715 = vunpack.c.l.b16 %v536
  %v2716 = vunpack.c.h.b16 %v536
  %v2717 = vunpack.c.l.b16 %v537
  %v2718 = vunpack.c.h.b16 %v537
  %v2719 = vunpack.c.l.b16 %v538
  %v2720 = vunpack.c.h.b16 %v538
  %v2721 = vunpack.c.l.b16 %v539
  %v2722 = vunpack.c.h.b16 %v539
  %v2723 = vunpack.c.l.b16 %v540
  %v2724 = vunpack.c.h.b16 %v540
  %v2725 = vunpack.c.l.b16 %v541
  %v2726 = vunpack.c.h.b16 %v541
  %v2727 = vunpack.c.l.b16 %v542
  %v2728 = vunpack.c.h.b16 %v542
  %v2729 = vunpack.c.l.b16 %v543
  %v2730 = vunpack.c.h.b16 %v543
  %v2731 = vunpack.c.l.b16 %v544
  %v2732 = vunpack.c.h.b16 %v544
  %v2733 = vunpack.c.l.b16 %v545
  %v2734 = vunpack.c.h.b16 %v545
  %v2735 = vunpack.c.l.b16 %v546
  %v2736 = vunpack.c.h.b16 %v546
  %v2737 = vunpack.c.l.b16 %v547
  %v2738 = vunpack.c.h.b16 %v547
  %v2739 = vunpack.c.l.b16 %v548
  %v2740 = vunpack.c.h.b16 %v548
  %v2741 = vunpack.c.l.b16 %v549
  %v2742 = vunpack.c.h.b16 %v549
  %v2743 = vunpack.c.l.b16 %v550
  %v2744 = vunpack.c.h.b16 %v550
  %v2745 = vunpack.c.l.b16 %v551
  %v2746 = vunpack.c.h.b16 %v551
  %v2747 = vunpack.c.l.b16 %v552
  %v2748 = vunpack.c.h.b16 %v552
  %v2749 = vunpack.c.l.b16 %v553
  %v2750 = vunpack.c.h.b16 %v553
  %v2751 = vunpack.c.l.b16 %v554
  %v2752 = vunpack.c.h.b16 %v554
  %v2753 = vunpack.c.l.b16 %v555
  %v2754 = vunpack.c.h.b16 %v555
  %v2755 = vunpack.c.l.b16 %v556
  %v2756 = vunpack.c.h.b16 %v556
  %v2757 = vunpack.c.l.b16 %v557
  %v2758 = vunpack.c.h.b16 %v557
  %v2759 = vunpack.c.l.b16 %v558
  %v2760 = vunpack.c.h.b16 %v558
  %v2761 = vunpack.c.l.b16 %v559
  %v2762 = vunpack.c.h.b16 %v559
  %v2763 = vunpack.c.l.b16 %v560
  %v2764 = vunpack.c.h.b16 %v560
  %v2765 = vunpack.c.l.b16 %v561
  %v2766 = vunpack.c.h.b16 %v561
  %v2767 = vunpack.c.l.b16 %v562
  %v2768 = vunpack.c.h.b16 %v562
  %v2769 = vunpack.c.l.b16 %v563
  %v2770 = vunpack.c.h.b16 %v563
  %v2771 = vunpack.c.l.b16 %v564
  %v2772 = vunpack.c.h.b16 %v564
  %v2773 = vunpack.c.l.b16 %v565
  %v2774 = vunpack.c.h.b16 %v565
  %v2775 = vunpack.c.l.b16 %v566
  %v2776 = vunpack.c.h.b16 %v566
  %v2777 = vunpack.c.l.b16 %v567
  %v2778 = vunpack.c.h.b16 %v567
  %v2779 = vunpack.c.l.b16 %v568
  %v2780 = vunpack.c.h.b16 %v568
  %v2781 = vunpack.c.l.b16 %v569
  %v2782 = vunpack.c.h.b16 %v569
  %v2783 = vunpack.c.l.b16 %v570
  %v2784 = vunpack.c.h.b16 %v570
  %v2785 = vunpack.c.l.b16 %v571
  %v2786 = vunpack.c.h.b16 %v571
  %v2787 = vunpack.c.l.b16 %v572
  %v2788 = vunpack.c.h.b16 %v572
  %v2789 = vunpack.c.l.b16 %v573
  %v2790 = vunpack.c.h.b16 %v573
  %v2791 = vunpack.c.l.b16 %v574
  %v2792 = vunpack.c.h.b16 %v574
  %v2793 = vunpack.c.l.b16 %v575
  %v2794 = vunpack.c.h.b16 %v575
  %v2795 = vunpack.c.l.b16 %v576
  %v2796 = vunpack.c.h.b16 %v576
  %v2797 = vunpack.c.l.b16 %v577
  %v2798 = vunpack.c.h.b16 %v577
  %v2799 = vunpack.c.l.b16 %v578
  %v2800 = vunpack.c.h.b16 %v578
  %v2801 = vunpack.c.l.b16 %v579
  %v2802 = vunpack.c.h.b16 %v579
  %v2803 = vunpack.c.l.b16 %v580
  %v2804 = vunpack.c.h.b16 %v580
  %v2805 = vunpack.c.l.b16 %v581
  %v2806 = vunpack.c.h.b16 %v581
  %v2807 = vunpack.c.l.b16 %v582
  %v2808 = vunpack.c.h.b16 %v582
  %v2809 = vunpack.c.l.b16 %v583
  %v2810 = vunpack.c.h.b16 %v583
  %v2811 = vunpack.c.l.b16 %v584
  %v2812 = vunpack.c.h.b16 %v584
  %v2813 = vunpack.c.l.b16 %v585
  %v2814 = vunpack.c.h.b16 %v585
  %v2815 = vunpack.c.l.b16 %v586
  %v2816 = vunpack.c.h.b16 %v586
  %v2817 = vunpack.c.l.b16 %v587
  %v2818 = vunpack.c.h.b16 %v587
  %v2819 = vunpack.c.l.b16 %v588
  %v2820 = vunpack.c.h.b16 %v588
  %v2821 = vunpack.c.l.b16 %v589
  %v2822 = vunpack.c.h.b16 %v589
  %v2823 = vunpack.c.l.b16 %v590
  %v2824 = vunpack.c.h.b16 %v590
  %v2825 = vunpack.c.l.b16 %v591
  %v2826 = vunpack.c.h.b16 %v591
  %v2827 = vunpack.c.l.b16 %v592
  %v2828 = vunpack.c.h.b16 %v592
  %v2829 = vunpack.c.l.b16 %v593
  %v2830 = vunpack.c.h.b16 %v593
  %v2831 = vunpack.c.l.b16 %v594
  %v2832 = vunpack.c.h.b16 %v594
  %v2833 = vunpack.c.l.b16 %v595
  %v2834 = vunpack.c.h.b16 %v595
  %v2835 = vunpack.c.l.b16 %v596
  %v2836 = vunpack.c.h.b16 %v596
  %v2837 = vunpack.c.l.b16 %v597
  %v2838 = vunpack.c.h.b16 %v597
  %v2839 = vunpack.c.l.b16 %v598
  %v2840 = vunpack.c.h.b16 %v598
  %v2841 = vunpack.c.l.b16 %v599
  %v2842 = vunpack.c.h.b16 %v599
  %v2843 = vunpack.c.l.b16 %v600
  %v2844 = vunpack.c.h.b16 %v600
  %v2845 = vunpack.c.l.b16 %v601
  %v2846 = vunpack.c.h.b16 %v601
  %v2847 = vunpack.c.l.b16 %v602
  %v2848 = vunpack.c.h.b16 %v602
  %v2849 = vunpack.c.l.b16 %v603
  %v2850 = vunpack.c.h.b16 %v603
  %v2851 = vunpack.c.l.b16 %v604
  %v2852 = vunpack.c.h.b16 %v604
  %v2853 = vunpack.c.l.b16 %v605
  %v2854 = vunpack.c.h.b16 %v605
  %v2855 = vunpack.c.l.b16 %v606
  %v2856 = vunpack.c.h.b16 %v606
  %v2857 = vunpack.c.l.b16 %v607
  %v2858 = vunpack.c.h.b16 %v607
  %v2859 = vunpack.c.l.b16 %v608
  %v2860 = vunpack.c.h.b16 %v608
  %v2861 = vunpack.c.l.b16 %v609
  %v2862 = vunpack.c.h.b16 %v609
  %v2863 = vunpack.c.l.b16 %v610
  %v2864 = vunpack.c.h.b16 %v610
  %v2865 = vunpack.c.l.b16 %v611
  %v2866 = vunpack.c.h.b16 %v611
  %v2867 = vunpack.c.l.b16 %v612
  %v2868 = vunpack.c.h.b16 %v612
  %v2869 = vunpack.c.l.b16 %v613
  %v2870 = vunpack.c.h.b16 %v613
  %v2871 = vunpack.c.l.b16 %v614
  %v2872 = vunpack.c.h.b16 %v614
  %v2873 = vunpack.c.l.b16 %v615
  %v2874 = vunpack.c.h.b16 %v615
  %v2875 = vunpack.c.l.b16 %v616
  %v2876 = vunpack.c.h.b16 %v616
  %v2877 = vunpack.c.l.b16 %v617
  %v2878 = vunpack.c.h.b16 %v617
  %v2879 = vunpack.c.l.b16 %v618
  %v2880 = vunpack.c.h.b16 %v618
  %v2881 = vunpack.c.l.b16 %v619
  %v2882 = vunpack.c.h.b16 %v619
  %v2883 = vunpack.c.l.b16 %v620
  %v2884 = vunpack.c.h.b16 %v620
  %v2885 = vunpack.c.l.b16 %v621
  %v2886 = vunpack.c.h.b16 %v621
  %v2887 = vunpack.c.l.b16 %v622
  %v2888 = vunpack.c.h.b16 %v622
  %v2889 = vunpack.c.l.b16 %v623
  %v2890 = vunpack.c.h.b16 %v623
  %v2891 = vunpack.c.l.b16 %v624
  %v2892 = vunpack.c.h.b16 %v624
  %v2893 = vunpack.c.l.b16 %v625
  %v2894 = vunpack.c.h.b16 %v625
  %v2895 = vunpack.c.l.b16 %v626
  %v2896 = vunpack.c.h.b16 %v626
  %v2897 = vunpack.c.l.b16 %v627
  %v2898 = vunpack.c.h.b16 %v627
  %v2899 = vunpack.c.l.b16 %v628
  %v2900 = vunpack.c.h.b16 %v628
  %v2901 = vunpack.c.l.b16 %v629
  %v2902 = vunpack.c.h.b16 %v629
  %v2903 = vunpack.c.l.b16 %v630
  %v2904 = vunpack.c.h.b16 %v630
  %v2905 = vunpack.c.l.b16 %v631
  %v2906 = vunpack.c.h.b16 %v631
  %v2907 = vunpack.c.l.b16 %v632
  %v2908 = vunpack.c.h.b16 %v632
  %v2909 = vunpack.c.l.b16 %v633
  %v2910 = vunpack.c.h.b16 %v633
  %v2911 = vunpack.c.l.b16 %v634
  %v2912 = vunpack.c.h.b16 %v634
  %v2913 = vunpack.c.l.b16 %v635
  %v2914 = vunpack.c.h.b16 %v635
  %v2915 = vunpack.c.l.b16 %v636
  %v2916 = vunpack.c.h.b16 %v636
  %v2917 = vunpack.c.l.b16 %v637
  %v2918 = vunpack.c.h.b16 %v637
  %v2919 = vunpack.c.l.b16 %v638
  %v2920 = vunpack.c.h.b16 %v638
  %v2921 = vunpack.c.l.b16 %v639
  %v2922 = vunpack.c.h.b16 %v639
  %v2923 = vunpack.c.l.b16 %v640
  %v2924 = vunpack.c.h.b16 %v640
  %v2925 = vunpack.c.l.b16 %v641
  %v2926 = vunpack.c.h.b16 %v641
  %v2927 = vunpack.c.l.b16 %v642
  %v2928 = vunpack.c.h.b16 %v642
  %v2929 = vunpack.c.l.b16 %v643
  %v2930 = vunpack.c.h.b16 %v643
  %v2931 = vunpack.c.l.b16 %v644
  %v2932 = vunpack.c.h.b16 %v644
  %v2933 = vunpack.c.l.b16 %v645
  %v2934 = vunpack.c.h.b16 %v645
  %v2935 = vunpack.c.l.b16 %v646
  %v2936 = vunpack.c.h.b16 %v646
  %v2937 = vunpack.c.l.b16 %v647
  %v2938 = vunpack.c.h.b16 %v647
  %v2939 = vunpack.c.l.b16 %v648
  %v2940 = vunpack.c.h.b16 %v648
  %v2941 = vunpack.c.l.b16 %v649
  %v2942 = vunpack.c.h.b16 %v649
  %v2943 = vunpack.c.l.b16 %v650
  %v2944 = vunpack.c.h.b16 %v650
  %v2945 = vunpack.c.l.b16 %v651
  %v2946 = vunpack.c.h.b16 %v651
  %v2947 = vunpack.c.l.b16 %v652
  %v2948 = vunpack.c.h.b16 %v652
  %v2949 = vunpack.c.l.b16 %v653
  %v2950 = vunpack.c.h.b16 %v653
  %v2951 = vunpack.c.l.b16 %v654
  %v2952 = vunpack.c.h.b16 %v654
  %v2953 = vunpack.c.l.b16 %v655
  %v2954 = vunpack.c.h.b16 %v655
  %v2955 = vunpack.c.l.b16 %v656
  %v2956 = vunpack.c.h.b16 %v656
  %v2957 = vunpack.c.l.b16 %v657
  %v2958 = vunpack.c.h.b16 %v657
  %v2959 = vunpack.c.l.b16 %v658
  %v2960 = vunpack.c.h.b16 %v658
  %v2961 = vunpack.c.l.b16 %v659
  %v2962 = vunpack.c.h.b16 %v659
  %v2963 = vunpack.c.l.b16 %v660
  %v2964 = vunpack.c.h.b16 %v660
  %v2965 = vunpack.c.l.b16 %v661
  %v2966 = vunpack.c.h.b16 %v661
  %v2967 = vunpack.c.l.b16 %v662
  %v2968 = vunpack.c.h.b16 %v662
  %v2969 = vunpack.c.l.b16 %v663
  %v2970 = vunpack.c.h.b16 %v663
  %v2971 = vunpack.c.l.b16 %v664
  %v2972 = vunpack.c.h.b16 %v664
  %v2973 = vunpack.c.l.b16 %v665
  %v2974 = vunpack.c.h.b16 %v665
  %v2975 = vunpack.c.l.b16 %v666
  %v2976 = vunpack.c.h.b16 %v666
  %v2977 = vunpack.c.l.b16 %v667
  %v2978 = vunpack.c.h.b16 %v667
  %v2979 = vunpack.c.l.b16 %v668
  %v2980 = vunpack.c.h.b16 %v668
  %v2981 = vunpack.c.l.b16 %v669
  %v2982 = vunpack.c.h.b16 %v669
  %v2983 = vunpack.c.l.b16 %v670
  %v2984 = vunpack.c.h.b16 %v670
  %v2985 = vunpack.c.l.b16 %v671
  %v2986 = vunpack.c.h.b16 %v671
  %v2987 = vunpack.c.l.b16 %v672
  %v2988 = vunpack.c.h.b16 %v672
  %v2989 = vunpack.c.l.b16 %v673
  %v2990 = vunpack.c.h.b16 %v673
  %v2991 = vunpack.c.l.b16 %v674
  %v2992 = vunpack.c.h.b16 %v674
  %v2993 = vunpack.c.l.b16 %v675
  %v2994 = vunpack.c.h.b16 %v675
  %v2995 = vunpack.c.l.b16 %v676
  %v2996 = vunpack.c.h.b16 %v676
  %v2997 = vunpack.c.l.b16 %v677
  %v2998 = vunpack.c.h.b16 %v677
  %v2999 = vunpack.c.l.b16 %v678
  %v3000 = vunpack.c.h.b16 %v678
  %v3001 = vunpack.c.l.b16 %v679
  %v3002 = vunpack.c.h.b16 %v679
  %v3003 = vunpack.c.l.b16 %v680
  %v3004 = vunpack.c.h.b16 %v680
  %v3005 = vunpack.c.l.b16 %v681
  %v3006 = vunpack.c.h.b16 %v681
  %v3007 = vunpack.c.l.b16 %v682
  %v3008 = vunpack.c.h.b16 %v682
  %v3009 = vunpack.c.l.b16 %v683
  %v3010 = vunpack.c.h.b16 %v683
  %v3011 = vunpack.c.l.b16 %v684
  %v3012 = vunpack.c.h.b16 %v684
  %v3013 = vunpack.c.l.b16 %v685
  %v3014 = vunpack.c.h.b16 %v685
  %v3015 = vunpack.c.l.b16 %v686
  %v3016 = vunpack.c.h.b16 %v686
  %v3017 = vunpack.c.l.b16 %v687
  %v3018 = vunpack.c.h.b16 %v687
  %v3019 = vunpack.c.l.b16 %v688
  %v3020 = vunpack.c.h.b16 %v688
  %v3021 = vunpack.c.l.b16 %v689
  %v3022 = vunpack.c.h.b16 %v689
  %v3023 = vunpack.c.l.b16 %v690
  %v3024 = vunpack.c.h.b16 %v690
  %v3025 = vunpack.c.l.b16 %v691
  %v3026 = vunpack.c.h.b16 %v691
  %v3027 = vunpack.c.l.b16 %v692
  %v3028 = vunpack.c.h.b16 %v692
  %v3029 = vunpack.c.l.b16 %v693
  %v3030 = vunpack.c.h.b16 %v693
  %v3031 = vunpack.c.l.b16 %v694
  %v3032 = vunpack.c.h.b16 %v694
  %v3033 = vunpack.c.l.b16 %v695
  %v3034 = vunpack.c.h.b16 %v695
  %v3035 = vunpack.c.l.b16 %v696
  %v3036 = vunpack.c.h.b16 %v696
  %v3037 = vunpack.c.l.b16 %v697
  %v3038 = vunpack.c.h.b16 %v697
  %v3039 = vunpack.c.l.b16 %v698
  %v3040 = vunpack.c.h.b16 %v698
  %v3041 = vunpack.c.l.b16 %v699
  %v3042 = vunpack.c.h.b16 %v699
  %v3043 = vunpack.c.l.b16 %v700
  %v3044 = vunpack.c.h.b16 %v700
  %v3045 = vunpack.c.l.b16 %v701
  %v3046 = vunpack.c.h.b16 %v701
  %v3047 = vunpack.c.l.b16 %v702
  %v3048 = vunpack.c.h.b16 %v702
  %v3049 = vunpack.c.l.b16 %v703
  %v3050 = vunpack.c.h.b16 %v703
  %v3051 = vunpack.c.l.b16 %v704
  %v3052 = vunpack.c.h.b16 %v704
  %v3053 = vunpack.c.l.b16 %v705
  %v3054 = vunpack.c.h.b16 %v705
  %v3055 = vunpack.c.l.b16 %v706
  %v3056 = vunpack.c.h.b16 %v706
  %v3057 = vunpack.c.l.b16 %v707
  %v3058 = vunpack.c.h.b16 %v707
  %v3059 = vunpack.c.l.b16 %v708
  %v3060 = vunpack.c.h.b16 %v708
  %v3061 = vunpack.c.l.b16 %v709
  %v3062 = vunpack.c.h.b16 %v709
  %v3063 = vunpack.c.l.b16 %v710
  %v3064 = vunpack.c.h.b16 %v710
  %v3065 = vunpack.c.l.b16 %v711
  %v3066 = vunpack.c.h.b16 %v711
  %v3067 = vunpack.c.l.b16 %v712
  %v3068 = vunpack.c.h.b16 %v712
  %v3069 = vunpack.c.l.b16 %v713
  %v3070 = vunpack.c.h.b16 %v713
  %v3071 = vunpack.c.l.b16 %v714
  %v3072 = vunpack.c.h.b16 %v714
  %v3073 = vunpack.c.l.b16 %v715
  %v3074 = vunpack.c.h.b16 %v715
  %v3075 = vunpack.c.l.b16 %v716
  %v3076 = vunpack.c.h.b16 %v716
  %v3077 = vunpack.c.l.b16 %v717
  %v3078 = vunpack.c.h.b16 %v717
  %v3079 = vunpack.c.l.b16 %v718
  %v3080 = vunpack.c.h.b16 %v718
  %v3081 = vunpack.c.l.b16 %v719
  %v3082 = vunpack.c.h.b16 %v719
  %v3083 = vunpack.c.l.b16 %v720
  %v3084 = vunpack.c.h.b16 %v720
  %v3085 = vunpack.c.l.b16 %v721
  %v3086 = vunpack.c.h.b16 %v721
  %v3087 = vunpack.c.l.b16 %v722
  %v3088 = vunpack.c.h.b16 %v722
  %v3089 = vunpack.c.l.b16 %v723
  %v3090 = vunpack.c.h.b16 %v723
  %v3091 = vunpack.c.l.b16 %v724
  %v3092 = vunpack.c.h.b16 %v724
  %v3093 = vunpack.c.l.b16 %v725
  %v3094 = vunpack.c.h.b16 %v725
  %v3095 = vunpack.c.l.b16 %v726
  %v3096 = vunpack.c.h.b16 %v726
  %v3097 = vunpack.c.l.b16 %v727
  %v3098 = vunpack.c.h.b16 %v727
  %v3099 = vunpack.c.l.b16 %v728
  %v3100 = vunpack.c.h.b16 %v728
  %v3101 = vunpack.c.l.b16 %v729
  %v3102 = vunpack.c.h.b16 %v729
  %v3103 = vunpack.c.l.b16 %v730
  %v3104 = vunpack.c.h.b16 %v730
  %v3105 = vunpack.c.l.b16 %v731
  %v3106 = vunpack.c.h.b16 %v731
  %v3107 = vunpack.c.l.b16 %v732
  %v3108 = vunpack.c.h.b16 %v732
  %v3109 = vunpack.c.l.b16 %v733
  %v3110 = vunpack.c.h.b16 %v733
  %v3111 = vunpack.c.l.b16 %v734
  %v3112 = vunpack.c.h.b16 %v734
  %v3113 = vunpack.c.l.b16 %v735
  %v3114 = vunpack.c.h.b16 %v735
  %v3115 = vunpack.c.l.b16 %v736
  %v3116 = vunpack.c.h.b16 %v736
  %v3117 = vunpack.c.l.b16 %v737
  %v3118 = vunpack.c.h.b16 %v737
  %v3119 = vunpack.c.l.b16 %v738
  %v3120 = vunpack.c.h.b16 %v738
  %v3121 = vunpack.c.l.b16 %v739
  %v3122 = vunpack.c.h.b16 %v739
  %v3123 = vunpack.c.l.b16 %v740
  %v3124 = vunpack.c.h.b16 %v740
  %v3125 = vunpack.c.l.b16 %v741
  %v3126 = vunpack.c.h.b16 %v741
  %v3127 = vunpack.c.l.b16 %v742
  %v3128 = vunpack.c.h.b16 %v742
  %v3129 = vunpack.c.l.b16 %v743
  %v3130 = vunpack.c.h.b16 %v743
  %v3131 = vunpack.c.l.b16 %v744
  %v3132 = vunpack.c.h.b16 %v744
  %v3133 = vunpack.c.l.b16 %v745
  %v3134 = vunpack.c.h.b16 %v745
  %v3135 = vunpack.c.l.b16 %v746
  %v3136 = vunpack.c.h.b16 %v746
  %v3137 = vunpack.c.l.b16 %v747
  %v3138 = vunpack.c.h.b16 %v747
  %v3139 = vunpack.c.l.b16 %v748
  %v3140 = vunpack.c.h.b16 %v748
  %v3141 = vunpack.c.l.b16 %v749
  %v3142 = vunpack.c.h.b16 %v749
  %v3143 = vunpack.c.l.b16 %v750
  %v3144 = vunpack.c.h.b16 %v750
  %v3145 = vunpack.c.l.b16 %v751
  %v3146 = vunpack.c.h.b16 %v751
  %v3147 = vunpack.c.l.b16 %v752
  %v3148 = vunpack.c.h.b16 %v752
  %v3149 = vunpack.c.l.b16 %v753
  %v3150 = vunpack.c.h.b16 %v753
  %v3151 = vunpack.c.l.b16 %v754
  %v3152 = vunpack.c.h.b16 %v754
  %v3153 = vunpack.c.l.b16 %v755
  %v3154 = vunpack.c.h.b16 %v755
  %v3155 = vunpack.c.l.b16 %v756
  %v3156 = vunpack.c.h.b16 %v756
  %v3157 = vunpack.c.l.b16 %v757
  %v3158 = vunpack.c.h.b16 %v757
  %v3159 = vunpack.c.l.b16 %v758
  %v3160 = vunpack.c.h.b16 %v758
  %v3161 = vunpack.c.l.b16 %v759
  %v3162 = vunpack.c.h.b16 %v759
  %v3163 = vunpack.c.l.b16 %v760
  %v3164 = vunpack.c.h.b16 %v760
  %v3165 = vunpack.c.l.b16 %v761
  %v3166 = vunpack.c.h.b16 %v761
  %v3167 = vunpack.c.l.b16 %v762
  %v3168 = vunpack.c.h.b16 %v762
  %v3169 = vunpack.c.l.b16 %v763
  %v3170 = vunpack.c.h.b16 %v763
  %v3171 = vunpack.c.l.b16 %v764
  %v3172 = vunpack.c.h.b16 %v764
  %v3173 = vunpack.c.l.b16 %v765
  %v3174 = vunpack.c.h.b16 %v765
  %v3175 = vunpack.c.l.b16 %v766
  %v3176 = vunpack.c.h.b16 %v766
  %v3177 = vunpack.c.l.b16 %v767
  %v3178 = vunpack.c.h.b16 %v767
  %v3179 = vunpack.c.l.b16 %v768
  %v3180 = vunpack.c.h.b16 %v768
  %v3181 = vunpack.c.l.b16 %v769
  %v3182 = vunpack.c.h.b16 %v769
  %v3183 = vunpack.c.l.b16 %v770
  %v3184 = vunpack.c.h.b16 %v770
  %v3185 = vunpack.c.l.b16 %v771
  %v3186 = vunpack.c.h.b16 %v771
  %v3187 = vunpack.c.l.b16 %v772
  %v3188 = vunpack.c.h.b16 %v772
  %v3189 = vunpack.c.l.b16 %v773
  %v3190 = vunpack.c.h.b16 %v773
  %v3191 = vunpack.c.l.b16 %v774
  %v3192 = vunpack.c.h.b16 %v774
  %v3193 = vunpack.c.l.b16 %v775
  %v3194 = vunpack.c.h.b16 %v775
  %v3195 = vunpack.c.l.b16 %v776
  %v3196 = vunpack.c.h.b16 %v776
  %v3197 = vunpack.c.l.b16 %v777
  %v3198 = vunpack.c.h.b16 %v777
  %v3199 = vunpack.c.l.b16 %v778
  %v3200 = vunpack.c.h.b16 %v778
  %v3201 = vunpack.c.l.b16 %v779
  %v3202 = vunpack.c.h.b16 %v779
  %v3203 = vunpack.c.l.b16 %v780
  %v3204 = vunpack.c.h.b16 %v780
  %v3205 = vunpack.c.l.b16 %v781
  %v3206 = vunpack.c.h.b16 %v781
  %v3207 = vunpack.c.l.b16 %v782
  %v3208 = vunpack.c.h.b16 %v782
  %v3209 = vunpack.c.l.b16 %v783
  %v3210 = vunpack.c.h.b16 %v783
  %v3211 = vunpack.c.l.b16 %v784
  %v3212 = vunpack.c.h.b16 %v784
  %v3213 = vunpack.c.l.b16 %v785
  %v3214 = vunpack.c.h.b16 %v785
  %v3215 = vunpack.c.l.b16 %v786
  %v3216 = vunpack.c.h.b16 %v786
  %v3217 = vunpack.c.l.b16 %v787
  %v3218 = vunpack.c.h.b16 %v787
  %v3219 = vunpack.c.l.b16 %v788
  %v3220 = vunpack.c.h.b16 %v788
  %v3221 = vunpack.c.l.b16 %v789
  %v3222 = vunpack.c.h.b16 %v789
  %v3223 = vunpack.c.l.b16 %v790
  %v3224 = vunpack.c.h.b16 %v790
  %v3225 = vunpack.c.l.b16 %v791
  %v3226 = vunpack.c.h.b16 %v791
  %v3227 = vunpack.c.l.b16 %v792
  %v3228 = vunpack.c.h.b16 %v792
  %v3229 = vunpack.c.l.b16 %v793
  %v3230 = vunpack.c.h.b16 %v793
  %v3231 = vunpack.c.l.b16 %v794
  %v3232 = vunpack.c.h.b16 %v794
  %v3233 = vunpack.c.l.b16 %v795
  %v3234 = vunpack.c.h.b16 %v795
  %v3235 = vunpack.c.l.b16 %v796
  %v3236 = vunpack.c.h.b16 %v796
  %v3237 = vunpack.c.l.b16 %v797
  %v3238 = vunpack.c.h.b16 %v797
  %v3239 = vunpack.c.l.b16 %v798
  %v3240 = vunpack.c.h.b16 %v798
  %v3241 = vunpack.c.l.b16 %v799
  %v3242 = vunpack.c.h.b16 %v799
  %v3243 = vunpack.c.l.b16 %v800
  %v3244 = vunpack.c.h.b16 %v800
  %v3245 = vunpack.c.l.b16 %v801
  %v3246 = vunpack.c.h.b16 %v801
  %v3247 = vunpack.c.l.b16 %v802
  %v3248 = vunpack.c.h.b16 %v802
  %v3249 = vunpack.c.l.b16 %v803
  %v3250 = vunpack.c.h.b16 %v803
  %v3251 = vunpack.c.l.b16 %v804
  %v3252 = vunpack.c.h.b16 %v804
  %v3253 = vunpack.c.l.b16 %v805
  %v3254 = vunpack.c.h.b16 %v805
  %v3255 = vunpack.c.l.b16 %v806
  %v3256 = vunpack.c.h.b16 %v806
  %v3257 = vunpack.c.l.b16 %v807
  %v3258 = vunpack.c.h.b16 %v807
  %v3259 = vunpack.c.l.b16 %v808
  %v3260 = vunpack.c.h.b16 %v808
  %v3261 = vunpack.c.l.b16 %v809
  %v3262 = vunpack.c.h.b16 %v809
  %v3263 = vunpack.c.l.b16 %v810
  %v3264 = vunpack.c.h.b16 %v810
  %v3265 = vunpack.c.l.b16 %v811
  %v3266 = vunpack.c.h.b16 %v811
  %v3267 = vunpack.c.l.b16 %v812
  %v3268 = vunpack.c.h.b16 %v812
  %v3269 = vunpack.c.l.b16 %v813
  %v3270 = vunpack.c.h.b16 %v813
  %v3271 = vunpack.c.l.b16 %v814
  %v3272 = vunpack.c.h.b16 %v814
  %v3273 = vunpack.c.l.b16 %v815
  %v3274 = vunpack.c.h.b16 %v815
  %v3275 = vunpack.c.l.b16 %v816
  %v3276 = vunpack.c.h.b16 %v816
  %v3277 = vunpack.c.l.b16 %v817
  %v3278 = vunpack.c.h.b16 %v817
  %v3279 = vpack.c.b16 %v1715, %v1711
  %v3280 = vpack.c.b16 %v1716, %v1712
  %v3281 = vpack.c.b16 %v1717, %v1713
  %v3282 = vpack.c.b16 %v1718, %v1714
  %v3283 = vpack.c.b16 %v1723, %v1719
  %v3284 = vpack.c.b16 %v1724, %v1720
  %v3285 = vpack.c.b16 %v1725, %v1721
  %v3286 = vpack.c.b16 %v1726, %v1722
  %v3287 = vpack.c.b16 %v1731, %v1727
  %v3288 = vpack.c.b16 %v1732, %v1728
  %v3289 = vpack.c.b16 %v1733, %v1729
  %v3290 = vpack.c.b16 %v1734, %v1730
  %v3291 = vpack.c.b16 %v1739, %v1735
  %v3292 = vpack.c.b16 %v1740, %v1736
  %v3293 = vpack.c.b16 %v1741, %v1737
  %v3294 = vpack.c.b16 %v1742, %v1738
  %v3295 = vpack.c.b16 %v1747, %v1743
  %v3296 = vpack.c.b16 %v1748, %v1744
  %v3297 = vpack.c.b16 %v1749, %v1745
  %v3298 = vpack.c.b16 %v1750, %v1746
  %v3299 = vpack.c.b16 %v1755, %v1751
  %v3300 = vpack.c.b16 %v1756, %v1752
  %v3301 = vpack.c.b16 %v1757, %v1753
  %v3302 = vpack.c.b16 %v1758, %v1754
  %v3303 = vpack.c.b16 %v1763, %v1759
  %v3304 = vpack.c.b16 %v1764, %v1760
  %v3305 = vpack.c.b16 %v1765, %v1761
  %v3306 = vpack.c.b16 %v1766, %v1762
  %v3307 = vpack.c.b16 %v1771, %v1767
  %v3308 = vpack.c.b16 %v1772, %v1768
  %v3309 = vpack.c.b16 %v1773, %v1769
  %v3310 = vpack.c.b16 %v1774, %v1770
  %v3311 = vpack.c.b16 %v1779, %v1775
  %v3312 = vpack.c.b16 %v1780, %v1776
  %v3313 = vpack.c.b16 %v1781, %v1777
  %v3314 = vpack.c.b16 %v1782, %v1778
  %v3315 = vpack.c.b16 %v1787, %v1783
  %v3316 = vpack.c.b16 %v1788, %v1784
  %v3317 = vpack.c.b16 %v1789, %v1785
  %v3318 = vpack.c.b16 %v1790, %v1786
  %v3319 = vpack.c.b16 %v1795, %v1791
  %v3320 = vpack.c.b16 %v1796, %v1792
  %v3321 = vpack.c.b16 %v1797, %v1793
  %v3322 = vpack.c.b16 %v1798, %v1794
  %v3323 = vpack.c.b16 %v1803, %v1799
  %v3324 = vpack.c.b16 %v1804, %v1800
  %v3325 = vpack.c.b16 %v1805, %v1801
  %v3326 = vpack.c.b16 %v1806, %v1802
  %v3327 = vpack.c.b16 %v1811, %v1807
  %v3328 = vpack.c.b16 %v1812, %v1808
  %v3329 = vpack.c.b16 %v1813, %v1809
  %v3330 = vpack.c.b16 %v1814, %v1810
  %v3331 = vpack.c.b16 %v1819, %v1815
  %v3332 = vpack.c.b16 %v1820, %v1816
  %v3333 = vpack.c.b16 %v1821, %v1817
  %v3334 = vpack.c.b16 %v1822, %v1818
  %v3335 = vpack.c.b16 %v1827, %v1823
  %v3336 = vpack.c.b16 %v1828, %v1824
  %v3337 = vpack.c.b16 %v1829, %v1825
  %v3338 = vpack.c.b16 %v1830, %v1826
  %v3339 = vpack.c.b16 %v1835, %v1831
  %v3340 = vpack.c.b16 %v1836, %v1832
  %v3341 = vpack.c.b16 %v1837, %v1833
  %v3342 = vpack.c.b16 %v1838, %v1834
  %v3343 = vpack.c.b16 %v1843, %v1839
  %v3344 = vpack.c.b16 %v1844, %v1840
  %v3345 = vpack.c.b16 %v1845, %v1841
  %v3346 = vpack.c.b16 %v1846, %v1842
  %v3347 = vpack.c.b16 %v1851, %v1847
  %v3348 = vpack.c.b16 %v1852, %v1848
  %v3349 = vpack.c.b16 %v1853, %v1849
  %v3350 = vpack.c.b16 %v1854, %v1850
  %v3351 = vpack.c.b16 %v1859, %v1855
  %v3352 = vpack.c.b16 %v1860, %v1856
  %v3353 = vpack.c.b16 %v1861, %v1857
  %v3354 = vpack.c.b16 %v1862, %v1858
  %v3355 = vpack.c.b16 %v1867, %v1863
  %v3356 = vpack.c.b16 %v1868, %v1864
  %v3357 = vpack.c.b16 %v1869, %v1865
  %v3358 = vpack.c.b16 %v1870, %v1866
  %v3359 = vpack.c.b16 %v1875, %v1871
  %v3360 = vpack.c.b16 %v1876, %v1872
  %v3361 = vpack.c.b16 %v1877, %v1873
  %v3362 = vpack.c.b16 %v1878, %v1874
  %v3363 = vpack.c.b16 %v1883, %v1879
  %v3364 = vpack.c.b16 %v1884, %v1880
  %v3365 = vpack.c.b16 %v1885, %v1881
  %v3366 = vpack.c.b16 %v1886, %v1882
  %v3367 = vpack.c.b16 %v1891, %v1887
  %v3368 = vpack.c.b16 %v1892, %v1888
  %v3369 = vpack.c.b16 %v1893, %v1889
  %v3370 = vpack.c.b16 %v1894, %v1890
  %v3371 = vpack.c.b16 %v1899, %v1895
  %v3372 = vpack.c.b16 %v1900, %v1896
  %v3373 = vpack.c.b16 %v1901, %v1897
  %v3374 = vpack.c.b16 %v1902, %v1898
  %v3375 = vpack.c.b16 %v1907, %v1903
  %v3376 = vpack.c.b16 %v1908, %v1904
  %v3377 = vpack.c.b16 %v1909, %v1905
  %v3378 = vpack.c.b16 %v1910, %v1906
  %v3379 = vpack.c.b16 %v1915, %v1911
  %v3380 = vpack.c.b16 %v1916, %v1912
  %v3381 = vpack.c.b16 %v1917, %v1913
  %v3382 = vpack.c.b16 %v1918, %v1914
  %v3383 = vpack.c.b16 %v1923, %v1919
  %v3384 = vpack.c.b16 %v1924, %v1920
  %v3385 = vpack.c.b16 %v1925, %v1921
  %v3386 = vpack.c.b16 %v1926, %v1922
  %v3387 = vpack.c.b16 %v1931, %v1927
  %v3388 = vpack.c.b16 %v1932, %v1928
  %v3389 = vpack.c.b16 %v1933, %v1929
  %v3390 = vpack.c.b16 %v1934, %v1930
  %v3391 = vpack.c.b16 %v1939, %v1935
  %v3392 = vpack.c.b16 %v1940, %v1936
  %v3393 = vpack.c.b16 %v1941, %v1937
  %v3394 = vpack.c.b16 %v1942, %v1938
  %v3395 = vpack.c.b16 %v1947, %v1943
  %v3396 = vpack.c.b16 %v1948, %v1944
  %v3397 = vpack.c.b16 %v1949, %v1945
  %v3398 = vpack.c.b16 %v1950, %v1946
  %v3399 = vpack.c.b16 %v1955, %v1951
  %v3400 = vpack.c.b16 %v1956, %v1952
  %v3401 = vpack.c.b16 %v1957, %v1953
  %v3402 = vpack.c.b16 %v1958, %v1954
  %v3403 = vpack.c.b16 %v1963, %v1959
  %v3404 = vpack.c.b16 %v1964, %v1960
  %v3405 = vpack.c.b16 %v1965, %v1961
  %v3406 = vpack.c.b16 %v1966, %v1962
  %v3407 = vpack.c.b16 %v1971, %v1967
  %v3408 = vpack.c.b16 %v1972, %v1968
  %v3409 = vpack.c.b16 %v1973, %v1969
  %v3410 = vpack.c.b16 %v1974, %v1970
  %v3411 = vpack.c.b16 %v1979, %v1975
  %v3412 = vpack.c.b16 %v1980, %v1976
  %v3413 = vpack.c.b16 %v1981, %v1977
  %v3414 = vpack.c.b16 %v1982, %v1978
  %v3415 = vpack.c.b16 %v1987, %v1983
  %v3416 = vpack.c.b16 %v1988, %v1984
  %v3417 = vpack.c.b16 %v1989, %v1985
  %v3418 = vpack.c.b16 %v1990, %v1986
  %v3419 = vpack.c.b16 %v1995, %v1991
  %v3420 = vpack.c.b16 %v1996, %v1992
  %v3421 = vpack.c.b16 %v1997, %v1993
  %v3422 = vpack.c.b16 %v1998, %v1994
  %v3423 = vpack.c.b16 %v2003, %v1999
  %v3424 = vpack.c.b16 %v2004, %v2000
  %v3425 = vpack.c.b16 %v2005, %v2001
  %v3426 = vpack.c.b16 %v2006, %v2002
  %v3427 = vpack.c.b16 %v2011, %v2007
  %v3428 = vpack.c.b16 %v2012, %v2008
  %v3429 = vpack.c.b16 %v2013, %v2009
  %v3430 = vpack.c.b16 %v2014, %v2010
  %v3431 = vpack.c.b16 %v2019, %v2015
  %v3432 = vpack.c.b16 %v2020, %v2016
  %v3433 = vpack.c.b16 %v2021, %v2017
  %v3434 = vpack.c.b16 %v2022, %v2018
  %v3435 = vpack.c.b16 %v2027, %v2023
  %v3436 = vpack.c.b16 %v2028, %v2024
  %v3437 = vpack.c.b16 %v2029, %v2025
  %v3438 = vpack.c.b16 %v2030, %v2026
  %v3439 = vpack.c.b16 %v2035, %v2031
  %v3440 = vpack.c.b16 %v2036, %v2032
  %v3441 = vpack.c.b16 %v2037, %v2033
  %v3442 = vpack.c.b16 %v2038, %v2034
  %v3443 = vpack.c.b16 %v2043, %v2039
  %v3444 = vpack.c.b16 %v2044, %v2040
  %v3445 = vpack.c.b16 %v2045, %v2041
  %v3446 = vpack.c.b16 %v2046, %v2042
  %v3447 = vpack.c.b16 %v2051, %v2047
  %v3448 = vpack.c.b16 %v2052, %v2048
  %v3449 = vpack.c.b16 %v2053, %v2049
  %v3450 = vpack.c.b16 %v2054, %v2050
  %v3451 = vpack.c.b16 %v2059, %v2055
  %v3452 = vpack.c.b16 %v2060, %v2056
  %v3453 = vpack.c.b16 %v2061, %v2057
  %v3454 = vpack.c.b16 %v2062, %v2058
  %v3455 = vpack.c.b16 %v2067, %v2063
  %v3456 = vpack.c.b16 %v2068, %v2064
  %v3457 = vpack.c.b16 %v2069, %v2065
  %v3458 = vpack.c.b16 %v2070, %v2066
  %v3459 = vpack.c.b16 %v2075, %v2071
  %v3460 = vpack.c.b16 %v2076, %v2072
  %v3461 = vpack.c.b16 %v2077, %v2073
  %v3462 = vpack.c.b16 %v2078, %v2074
  %v3463 = vpack.c.b16 %v2083, %v2079
  %v3464 = vpack.c.b16 %v2084, %v2080
  %v3465 = vpack.c.b16 %v2085, %v2081
  %v3466 = vpack.c.b16 %v2086, %v2082
  %v3467 = vpack.c.b16 %v2091, %v2087
  %v3468 = vpack.c.b16 %v2092, %v2088
  %v3469 = vpack.c.b16 %v2093, %v2089
  %v3470 = vpack.c.b16 %v2094, %v2090
  %v3471 = vpack.c.b16 %v2099, %v2095
  %v3472 = vpack.c.b16 %v2100, %v2096
  %v3473 = vpack.c.b16 %v2101, %v2097
  %v3474 = vpack.c.b16 %v2102, %v2098
  %v3475 = vpack.c.b16 %v2107, %v2103
  %v3476 = vpack.c.b16 %v2108, %v2104
  %v3477 = vpack.c.b16 %v2109, %v2105
  %v3478 = vpack.c.b16 %v2110, %v2106
  %v3479 = vpack.c.b16 %v2115, %v2111
  %v3480 = vpack.c.b16 %v2116, %v2112
  %v3481 = vpack.c.b16 %v2117, %v2113
  %v3482 = vpack.c.b16 %v2118, %v2114
  %v3483 = vpack.c.b16 %v2123, %v2119
  %v3484 = vpack.c.b16 %v2124, %v2120
  %v3485 = vpack.c.b16 %v2125, %v2121
  %v3486 = vpack.c.b16 %v2126, %v2122
  %v3487 = vpack.c.b16 %v2131, %v2127
  %v3488 = vpack.c.b16 %v2132, %v2128
  %v3489 = vpack.c.b16 %v2133, %v2129
  %v3490 = vpack.c.b16 %v2134, %v2130
  %v3491 = vpack.c.b16 %v2139, %v2135
  %v3492 = vpack.c.b16 %v2140, %v2136
  %v3493 = vpack.c.b16 %v2141, %v2137
  %v3494 = vpack.c.b16 %v2142, %v2138
  %v3495 = vpack.c.b16 %v2147, %v2143
  %v3496 = vpack.c.b16 %v2148, %v2144
  %v3497 = vpack.c.b16 %v2149, %v2145
  %v3498 = vpack.c.b16 %v2150, %v2146
  %v3499 = vpack.c.b16 %v2155, %v2151
  %v3500 = vpack.c.b16 %v2156, %v2152
  %v3501 = vpack.c.b16 %v2157, %v2153
  %v3502 = vpack.c.b16 %v2158, %v2154
  %v3503 = vpack.c.b16 %v2163, %v2159
  %v3504 = vpack.c.b16 %v2164, %v2160
  %v3505 = vpack.c.b16 %v2165, %v2161
  %v3506 = vpack.c.b16 %v2166, %v2162
  %v3507 = vpack.c.b16 %v2171, %v2167
  %v3508 = vpack.c.b16 %v2172, %v2168
  %v3509 = vpack.c.b16 %v2173, %v2169
  %v3510 = vpack.c.b16 %v2174, %v2170
  %v3511 = vpack.c.b16 %v2179, %v2175
  %v3512 = vpack.c.b16 %v2180, %v2176
  %v3513 = vpack.c.b16 %v2181, %v2177
  %v3514 = vpack.c.b16 %v2182, %v2178
  %v3515 = vpack.c.b16 %v2187, %v2183
  %v3516 = vpack.c.b16 %v2188, %v2184
  %v3517 = vpack.c.b16 %v2189, %v2185
  %v3518 = vpack.c.b16 %v2190, %v2186
  %v3519 = vpack.c.b16 %v2195, %v2191
  %v3520 = vpack.c.b16 %v2196, %v2192
  %v3521 = vpack.c.b16 %v2197, %v2193
  %v3522 = vpack.c.b16 %v2198, %v2194
  %v3523 = vpack.c.b16 %v2203, %v2199
  %v3524 = vpack.c.b16 %v2204, %v2200
  %v3525 = vpack.c.b16 %v2205, %v2201
  %v3526 = vpack.c.b16 %v2206, %v2202
  %v3527 = vpack.c.b16 %v2211, %v2207
  %v3528 = vpack.c.b16 %v2212, %v2208
  %v3529 = vpack.c.b16 %v2213, %v2209
  %v3530 = vpack.c.b16 %v2214, %v2210
  %v3531 = vpack.c.b16 %v2219, %v2215
  %v3532 = vpack.c.b16 %v2220, %v2216
  %v3533 = vpack.c.b16 %v2221, %v2217
  %v3534 = vpack.c.b16 %v2222, %v2218
  %v3535 = vpack.c.b16 %v2227, %v2223
  %v3536 = vpack.c.b16 %v2228, %v2224
  %v3537 = vpack.c.b16 %v2229, %v2225
  %v3538 = vpack.c.b16 %v2230, %v2226
  %v3539 = vpack.c.b16 %v2235, %v2231
  %v3540 = vpack.c.b16 %v2236, %v2232
  %v3541 = vpack.c.b16 %v2237, %v2233
  %v3542 = vpack.c.b16 %v2238, %v2234
  %v3543 = vpack.c.b16 %v2243, %v2239
  %v3544 = vpack.c.b16 %v2244, %v2240
  %v3545 = vpack.c.b16 %v2245, %v2241
  %v3546 = vpack.c.b16 %v2246, %v2242
  %v3547 = vpack.c.b16 %v2251, %v2247
  %v3548 = vpack.c.b16 %v2252, %v2248
  %v3549 = vpack.c.b16 %v2253, %v2249
  %v3550 = vpack.c.b16 %v2254, %v2250
  %v3551 = vpack.c.b16 %v2259, %v2255
  %v3552 = vpack.c.b16 %v2260, %v2256
  %v3553 = vpack.c.b16 %v2261, %v2257
  %v3554 = vpack.c.b16 %v2262, %v2258
  %v3555 = vpack.c.b16 %v2267, %v2263
  %v3556 = vpack.c.b16 %v2268, %v2264
  %v3557 = vpack.c.b16 %v2269, %v2265
  %v3558 = vpack.c.b16 %v2270, %v2266
  %v3559 = vpack.c.b16 %v2275, %v2271
  %v3560 = vpack.c.b16 %v2276, %v2272
  %v3561 = vpack.c.b16 %v2277, %v2273
  %v3562 = vpack.c.b16 %v2278, %v2274
  %v3563 = vpack.c.b16 %v2283, %v2279
  %v3564 = vpack.c.b16 %v2284, %v2280
  %v3565 = vpack.c.b16 %v2285, %v2281
  %v3566 = vpack.c.b16 %v2286, %v2282
  %v3567 = vpack.c.b16 %v2291, %v2287
  %v3568 = vpack.c.b16 %v2292, %v2288
  %v3569 = vpack.c.b16 %v2293, %v2289
  %v3570 = vpack.c.b16 %v2294, %v2290
  %v3571 = vpack.c.b16 %v2299, %v2295
  %v3572 = vpack.c.b16 %v2300, %v2296
  %v3573 = vpack.c.b16 %v2301, %v2297
  %v3574 = vpack.c.b16 %v2302, %v2298
  %v3575 = vpack.c.b16 %v2307, %v2303
  %v3576 = vpack.c.b16 %v2308, %v2304
  %v3577 = vpack.c.b16 %v2309, %v2305
  %v3578 = vpack.c.b16 %v2310, %v2306
  %v3579 = vpack.c.b16 %v2315, %v2311
  %v3580 = vpack.c.b16 %v2316, %v2312
  %v3581 = vpack.c.b16 %v2317, %v2313
  %v3582 = vpack.c.b16 %v2318, %v2314
  %v3583 = vpack.c.b16 %v2323, %v2319
  %v3584 = vpack.c.b16 %v2324, %v2320
  %v3585 = vpack.c.b16 %v2325, %v2321
  %v3586 = vpack.c.b16 %v2326, %v2322
  %v3587 = vpack.c.b16 %v2331, %v2327
  %v3588 = vpack.c.b16 %v2332, %v2328
  %v3589 = vpack.c.b16 %v2333, %v2329
  %v3590 = vpack.c.b16 %v2334, %v2330
  %v3591 = vpack.c.b16 %v2339, %v2335
  %v3592 = vpack.c.b16 %v2340, %v2336
  %v3593 = vpack.c.b16 %v2341, %v2337
  %v3594 = vpack.c.b16 %v2342, %v2338
  %v3595 = vpack.c.b16 %v2347, %v2343
  %v3596 = vpack.c.b16 %v2348, %v2344
  %v3597 = vpack.c.b16 %v2349, %v2345
  %v3598 = vpack.c.b16 %v2350, %v2346
  %v3599 = vpack.c.b16 %v2355, %v2351
  %v3600 = vpack.c.b16 %v2356, %v2352
  %v3601 = vpack.c.b16 %v2357, %v2353
  %v3602 = vpack.c.b16 %v2358, %v2354
  %v3603 = vpack.c.b16 %v2363, %v2359
  %v3604 = vpack.c.b16 %v2364, %v2360
  %v3605 = vpack.c.b16 %v2365, %v2361
  %v3606 = vpack.c.b16 %v2366, %v2362
  %v3607 = vpack.c.b16 %v2371, %v2367
  %v3608 = vpack.c.b16 %v2372, %v2368
  %v3609 = vpack.c.b16 %v2373, %v2369
  %v3610 = vpack.c.b16 %v2374, %v2370
  %v3611 = vpack.c.b16 %v2379, %v2375
  %v3612 = vpack.c.b16 %v2380, %v2376
  %v3613 = vpack.c.b16 %v2381, %v2377
  %v3614 = vpack.c.b16 %v2382, %v2378
  %v3615 = vpack.c.b16 %v2387, %v2383
  %v3616 = vpack.c.b16 %v2388, %v2384
  %v3617 = vpack.c.b16 %v2389, %v2385
  %v3618 = vpack.c.b16 %v2390, %v2386
  %v3619 = vpack.c.b16 %v2395, %v2391
  %v3620 = vpack.c.b16 %v2396, %v2392
  %v3621 = vpack.c.b16 %v2397, %v2393
  %v3622 = vpack.c.b16 %v2398, %v2394
  %v3623 = vpack.c.b16 %v2403, %v2399
  %v3624 = vpack.c.b16 %v2404, %v2400
  %v3625 = vpack.c.b16 %v2405, %v2401
  %v3626 = vpack.c.b16 %v2406, %v2402
  %v3627 = vpack.c.b16 %v2411, %v2407
  %v3628 = vpack.c.b16 %v2412, %v2408
  %v3629 = vpack.c.b16 %v2413, %v2409
  %v3630 = vpack.c.b16 %v2414, %v2410
  %v3631 = vpack.c.b16 %v2419, %v2415
  %v3632 = vpack.c.b16 %v2420, %v2416
  %v3633 = vpack.c.b16 %v2421, %v2417
  %v3634 = vpack.c.b16 %v2422, %v2418
  %v3635 = vpack.c.b16 %v2427, %v2423
  %v3636 = vpack.c.b16 %v2428, %v2424
  %v3637 = vpack.c.b16 %v2429, %v2425
  %v3638 = vpack.c.b16 %v2430, %v2426
  %v3639 = vpack.c.b16 %v2435, %v2431
  %v3640 = vpack.c.b16 %v2436, %v2432
  %v3641 = vpack.c.b16 %v2437, %v2433
  %v3642 = vpack.c.b16 %v2438, %v2434
  %v3643 = vpack.c.b16 %v2443, %v2439
  %v3644 = vpack.c.b16 %v2444, %v2440
  %v3645 = vpack.c.b16 %v2445, %v2441
  %v3646 = vpack.c.b16 %v2446, %v2442
  %v3647 = vpack.c.b16 %v2451, %v2447
  %v3648 = vpack.c.b16 %v2452, %v2448
  %v3649 = vpack.c.b16 %v2453, %v2449
  %v3650 = vpack.c.b16 %v2454, %v2450
  %v3651 = vpack.c.b16 %v2459, %v2455
  %v3652 = vpack.c.b16 %v2460, %v2456
  %v3653 = vpack.c.b16 %v2461, %v2457
  %v3654 = vpack.c.b16 %v2462, %v2458
  %v3655 = vpack.c.b16 %v2467, %v2463
  %v3656 = vpack.c.b16 %v2468, %v2464
  %v3657 = vpack.c.b16 %v2469, %v2465
  %v3658 = vpack.c.b16 %v2470, %v2466
  %v3659 = vpack.c.b16 %v2475, %v2471
  %v3660 = vpack.c.b16 %v2476, %v2472
  %v3661 = vpack.c.b16 %v2477, %v2473
  %v3662 = vpack.c.b16 %v2478, %v2474
  %v3663 = vpack.c.b16 %v2483, %v2479
  %v3664 = vpack.c.b16 %v2484, %v2480
  %v3665 = vpack.c.b16 %v2485, %v2481
  %v3666 = vpack.c.b16 %v2486, %v2482
  %v3667 = vpack.c.b16 %v2491, %v2487
  %v3668 = vpack.c.b16 %v2492, %v2488
  %v3669 = vpack.c.b16 %v2493, %v2489
  %v3670 = vpack.c.b16 %v2494, %v2490
  %v3671 = vpack.c.b16 %v2499, %v2495
  %v3672 = vpack.c.b16 %v2500, %v2496
  %v3673 = vpack.c.b16 %v2501, %v2497
  %v3674 = vpack.c.b16 %v2502, %v2498
  %v3675 = vpack.c.b16 %v2507, %v2503
  %v3676 = vpack.c.b16 %v2508, %v2504
  %v3677 = vpack.c.b16 %v2509, %v2505
  %v3678 = vpack.c.b16 %v2510, %v2506
  %v3679 = vpack.c.b16 %v2515, %v2511
  %v3680 = vpack.c.b16 %v2516, %v2512
  %v3681 = vpack.c.b16 %v2517, %v2513
  %v3682 = vpack.c.b16 %v2518, %v2514
  %v3683 = vpack.c.b16 %v2523, %v2519
  %v3684 = vpack.c.b16 %v2524, %v2520
  %v3685 = vpack.c.b16 %v2525, %v2521
  %v3686 = vpack.c.b16 %v2526, %v2522
  %v3687 = vpack.c.b16 %v2531, %v2527
  %v3688 = vpack.c.b16 %v2532, %v2528
  %v3689 = vpack.c.b16 %v2533, %v2529
  %v3690 = vpack.c.b16 %v2534, %v2530
  %v3691 = vpack.c.b16 %v2539, %v2535
  %v3692 = vpack.c.b16 %v2540, %v2536
  %v3693 = vpack.c.b16 %v2541, %v2537
  %v3694 = vpack.c.b16 %v2542, %v2538
  %v3695 = vpack.c.b16 %v2547, %v2543
  %v3696 = vpack.c.b16 %v2548, %v2544
  %v3697 = vpack.c.b16 %v2549, %v2545
  %v3698 = vpack.c.b16 %v2550, %v2546
  %v3699 = vpack.c.b16 %v2555, %v2551
  %v3700 = vpack.c.b16 %v2556, %v2552
  %v3701 = vpack.c.b16 %v2557, %v2553
  %v3702 = vpack.c.b16 %v2558, %v2554
  %v3703 = vpack.c.b16 %v2563, %v2559
  %v3704 = vpack.c.b16 %v2564, %v2560
  %v3705 = vpack.c.b16 %v2565, %v2561
  %v3706 = vpack.c.b16 %v2566, %v2562
  %v3707 = vpack.c.b16 %v2571, %v2567
  %v3708 = vpack.c.b16 %v2572, %v2568
  %v3709 = vpack.c.b16 %v2573, %v2569
  %v3710 = vpack.c.b16 %v2574, %v2570
  %v3711 = vpack.c.b16 %v2579, %v2575
  %v3712 = vpack.c.b16 %v2580, %v2576
  %v3713 = vpack.c.b16 %v2581, %v2577
  %v3714 = vpack.c.b16 %v2582, %v2578
  %v3715 = vpack.c.b16 %v2587, %v2583
  %v3716 = vpack.c.b16 %v2588, %v2584
  %v3717 = vpack.c.b16 %v2589, %v2585
  %v3718 = vpack.c.b16 %v2590, %v2586
  %v3719 = vpack.c.b16 %v2595, %v2591
  %v3720 = vpack.c.b16 %v2596, %v2592
  %v3721 = vpack.c.b16 %v2597, %v2593
  %v3722 = vpack.c.b16 %v2598, %v2594
  %v3723 = vpack.c.b16 %v2603, %v2599
  %v3724 = vpack.c.b16 %v2604, %v2600
  %v3725 = vpack.c.b16 %v2605, %v2601
  %v3726 = vpack.c.b16 %v2606, %v2602
  %v3727 = vpack.c.b16 %v2611, %v2607
  %v3728 = vpack.c.b16 %v2612, %v2608
  %v3729 = vpack.c.b16 %v2613, %v2609
  %v3730 = vpack.c.b16 %v2614, %v2610
  %v3731 = vpack.c.b16 %v2619, %v2615
  %v3732 = vpack.c.b16 %v2620, %v2616
  %v3733 = vpack.c.b16 %v2621, %v2617
  %v3734 = vpack.c.b16 %v2622, %v2618
  %v3735 = vpack.c.b16 %v2627, %v2623
  %v3736 = vpack.c.b16 %v2628, %v2624
  %v3737 = vpack.c.b16 %v2629, %v2625
  %v3738 = vpack.c.b16 %v2630, %v2626
  %v3739 = vpack.c.b16 %v2635, %v2631
  %v3740 = vpack.c.b16 %v2636, %v2632
  %v3741 = vpack.c.b16 %v2637, %v2633
  %v3742 = vpack.c.b16 %v2638, %v2634
  %v3743 = vpack.c.b16 %v2643, %v2639
  %v3744 = vpack.c.b16 %v2644, %v2640
  %v3745 = vpack.c.b16 %v2645, %v2641
  %v3746 = vpack.c.b16 %v2646, %v2642
  %v3747 = vpack.c.b16 %v2651, %v2647
  %v3748 = vpack.c.b16 %v2652, %v2648
  %v3749 = vpack.c.b16 %v2653, %v2649
  %v3750 = vpack.c.b16 %v2654, %v2650
  %v3751 = vpack.c.b16 %v2659, %v2655
  %v3752 = vpack.c.b16 %v2660, %v2656
  %v3753 = vpack.c.b16 %v2661, %v2657
  %v3754 = vpack.c.b16 %v2662, %v2658
  %v3755 = vpack.c.b16 %v2667, %v2663
  %v3756 = vpack.c.b16 %v2668, %v2664
  %v3757 = vpack.c.b16 %v2669, %v2665
  %v3758 = vpack.c.b16 %v2670, %v2666
  %v3759 = vpack.c.b16 %v2675, %v2671
  %v3760 = vpack.c.b16 %v2676, %v2672
  %v3761 = vpack.c.b16 %v2677, %v2673
  %v3762 = vpack.c.b16 %v2678, %v2674
  %v3763 = vpack.c.b16 %v2683, %v2679
  %v3764 = vpack.c.b16 %v2684, %v2680
  %v3765 = vpack.c.b16 %v2685, %v2681
  %v3766 = vpack.c.b16 %v2686, %v2682
  %v3767 = vpack.c.b16 %v2691, %v2687
  %v3768 = vpack.c.b16 %v2692, %v2688
  %v3769 = vpack.c.b16 %v2693, %v2689
  %v3770 = vpack.c.b16 %v2694, %v2690
  %v3771 = vpack.c.b16 %v2699, %v2695
  %v3772 = vpack.c.b16 %v2700, %v2696
  %v3773 = vpack.c.b16 %v2701, %v2697
  %v3774 = vpack.c.b16 %v2702, %v2698
  %v3775 = vpack.c.b16 %v2707, %v2703
  %v3776 = vpack.c.b16 %v2708, %v2704
  %v3777 = vpack.c.b16 %v2709, %v2705
  %v3778 = vpack.c.b16 %v2710, %v2706
  %v3779 = vpack.c.b16 %v2715, %v2711
  %v3780 = vpack.c.b16 %v2716, %v2712
  %v3781 = vpack.c.b16 %v2717, %v2713
  %v3782 = vpack.c.b16 %v2718, %v2714
  %v3783 = vpack.c.b16 %v2723, %v2719
  %v3784 = vpack.c.b16 %v2724, %v2720
  %v3785 = vpack.c.b16 %v2725, %v2721
  %v3786 = vpack.c.b16 %v2726, %v2722
  %v3787 = vpack.c.b16 %v2731, %v2727
  %v3788 = vpack.c.b16 %v2732, %v2728
  %v3789 = vpack.c.b16 %v2733, %v2729
  %v3790 = vpack.c.b16 %v2734, %v2730
  %v3791 = vpack.c.b16 %v2739, %v2735
  %v3792 = vpack.c.b16 %v2740, %v2736
  %v3793 = vpack.c.b16 %v2741, %v2737
  %v3794 = vpack.c.b16 %v2742, %v2738
  %v3795 = vpack.c.b16 %v2747, %v2743
  %v3796 = vpack.c.b16 %v2748, %v2744
  %v3797 = vpack.c.b16 %v2749, %v2745
  %v3798 = vpack.c.b16 %v2750, %v2746
  %v3799 = vpack.c.b16 %v2755, %v2751
  %v3800 = vpack.c.b16 %v2756, %v2752
  %v3801 = vpack.c.b16 %v2757, %v2753
  %v3802 = vpack.c.b16 %v2758, %v2754
  %v3803 = vpack.c.b16 %v2763, %v2759
  %v3804 = vpack.c.b16 %v2764, %v2760
  %v3805 = vpack.c.b16 %v2765, %v2761
  %v3806 = vpack.c.b16 %v2766, %v2762
  %v3807 = vpack.c.b16 %v2771, %v2767
  %v3808 = vpack.c.b16 %v2772, %v2768
  %v3809 = vpack.c.b16 %v2773, %v2769
  %v3810 = vpack.c.b16 %v2774, %v2770
  %v3811 = vpack.c.b16 %v2779, %v2775
  %v3812 = vpack.c.b16 %v2780, %v2776
  %v3813 = vpack.c.b16 %v2781, %v2777
  %v3814 = vpack.c.b16 %v2782, %v2778
  %v3815 = vpack.c.b16 %v2787, %v2783
  %v3816 = vpack.c.b16 %v2788, %v2784
  %v3817 = vpack.c.b16 %v2789, %v2785
  %v3818 = vpack.c.b16 %v2790, %v2786
  %v3819 = vpack.c.b16 %v2795, %v2791
  %v3820 = vpack.c.b16 %v2796, %v2792
  %v3821 = vpack.c.b16 %v2797, %v2793
  %v3822 = vpack.c.b16 %v2798, %v2794
  %v3823 = vpack.c.b16 %v2803, %v2799
  %v3824 = vpack.c.b16 %v2804, %v2800
  %v3825 = vpack.c.b16 %v2805, %v2801
  %v3826 = vpack.c.b16 %v2806, %v2802
  %v3827 = vpack.c.b16 %v2811, %v2807
  %v3828 = vpack.c.b16 %v2812, %v2808
  %v3829 = vpack.c.b16 %v2813, %v2809
  %v3830 = vpack.c.b16 %v2814, %v2810
  %v3831 = vpack.c.b16 %v2819, %v2815
  %v3832 = vpack.c.b16 %v2820, %v2816
  %v3833 = vpack.c.b16 %v2821, %v2817
  %v3834 = vpack.c.b16 %v2822, %v2818
  %v3835 = vpack.c.b16 %v2827, %v2823
  %v3836 = vpack.c.b16 %v2828, %v2824
  %v3837 = vpack.c.b16 %v2829, %v2825
  %v3838 = vpack.c.b16 %v2830, %v2826
  %v3839 = vpack.c.b16 %v2835, %v2831
  %v3840 = vpack.c.b16 %v2836, %v2832
  %v3841 = vpack.c.b16 %v2837, %v2833
  %v3842 = vpack.c.b16 %v2838, %v2834
  %v3843 = vpack.c.b16 %v2843, %v2839
  %v3844 = vpack.c.b16 %v2844, %v2840
  %v3845 = vpack.c.b16 %v2845, %v2841
  %v3846 = vpack.c.b16 %v2846, %v2842
  %v3847 = vpack.c.b16 %v2851, %v2847
  %v3848 = vpack.c.b16 %v2852, %v2848
  %v3849 = vpack.c.b16 %v2853, %v2849
  %v3850 = vpack.c.b16 %v2854, %v2850
  %v3851 = vpack.c.b16 %v2859, %v2855
  %v3852 = vpack.c.b16 %v2860, %v2856
  %v3853 = vpack.c.b16 %v2861, %v2857
  %v3854 = vpack.c.b16 %v2862, %v2858
  %v3855 = vpack.c.b16 %v2867, %v2863
  %v3856 = vpack.c.b16 %v2868, %v2864
  %v3857 = vpack.c.b16 %v2869, %v2865
  %v3858 = vpack.c.b16 %v2870, %v2866
  %v3859 = vpack.c.b16 %v2875, %v2871
  %v3860 = vpack.c.b16 %v2876, %v2872
  %v3861 = vpack.c.b16 %v2877, %v2873
  %v3862 = vpack.c.b16 %v2878, %v2874
  %v3863 = vpack.c.b16 %v2883, %v2879
  %v3864 = vpack.c.b16 %v2884, %v2880
  %v3865 = vpack.c.b16 %v2885, %v2881
  %v3866 = vpack.c.b16 %v2886, %v2882
  %v3867 = vpack.c.b16 %v2891, %v2887
  %v3868 = vpack.c.b16 %v2892, %v2888
  %v3869 = vpack.c.b16 %v2893, %v2889
  %v3870 = vpack.c.b16 %v2894, %v2890
  %v3871 = vpack.c.b16 %v2899, %v2895
  %v3872 = vpack.c.b16 %v2900, %v2896
  %v3873 = vpack.c.b16 %v2901, %v2897
  %v3874 = vpack.c.b16 %v2902, %v2898
  %v3875 = vpack.c.b16 %v2907, %v2903
  %v3876 = vpack.c.b16 %v2908, %v2904
  %v3877 = vpack.c.b16 %v2909, %v2905
  %v3878 = vpack.c.b16 %v2910, %v2906
  %v3879 = vpack.c.b16 %v2915, %v2911
  %v3880 = vpack.c.b16 %v2916, %v2912
  %v3881 = vpack.c.b16 %v2917, %v2913
  %v3882 = vpack.c.b16 %v2918, %v2914
  %v3883 = vpack.c.b16 %v2923, %v2919
  %v3884 = vpack.c.b16 %v2924, %v2920
  %v3885 = vpack.c.b16 %v2925, %v2921
  %v3886 = vpack.c.b16 %v2926, %v2922
  %v3887 = vpack.c.b16 %v2931, %v2927
  %v3888 = vpack.c.b16 %v2932, %v2928
  %v3889 = vpack.c.b16 %v2933, %v2929
  %v3890 = vpack.c.b16 %v2934, %v2930
  %v3891 = vpack.c.b16 %v2939, %v2935
  %v3892 = vpack.c.b16 %v2940, %v2936
  %v3893 = vpack.c.b16 %v2941, %v2937
  %v3894 = vpack.c.b16 %v2942, %v2938
  %v3895 = vpack.c.b16 %v2947, %v2943
  %v3896 = vpack.c.b16 %v2948, %v2944
  %v3897 = vpack.c.b16 %v2949, %v2945
  %v3898 = vpack.c.b16 %v2950, %v2946
  %v3899 = vpack.c.b16 %v2955, %v2951
  %v3900 = vpack.c.b16 %v2956, %v2952
  %v3901 = vpack.c.b16 %v2957, %v2953
  %v3902 = vpack.c.b16 %v2958, %v2954
  %v3903 = vpack.c.b16 %v2963, %v2959
  %v3904 = vpack.c.b16 %v2964, %v2960
  %v3905 = vpack.c.b16 %v2965, %v2961
  %v3906 = vpack.c.b16 %v2966, %v2962
  %v3907 = vpack.c.b16 %v2971, %v2967
  %v3908 = vpack.c.b16 %v2972, %v2968
  %v3909 = vpack.c.b16 %v2973, %v2969
  %v3910 = vpack.c.b16 %v2974, %v2970
  %v3911 = vpack.c.b16 %v2979, %v2975
  %v3912 = vpack.c.b16 %v2980, %v2976
  %v3913 = vpack.c.b16 %v2981, %v2977
  %v3914 = vpack.c.b16 %v2982, %v2978
  %v3915 = vpack.c.b16 %v2987, %v2983
  %v3916 = vpack.c.b16 %v2988, %v2984
  %v3917 = vpack.c.b16 %v2989, %v2985
  %v3918 = vpack.c.b16 %v2990, %v2986
  %v3919 = vpack.c.b16 %v2995, %v2991
  %v3920 = vpack.c.b16 %v2996, %v2992
  %v3921 = vpack.c.b16 %v2997, %v2993
  %v3922 = vpack.c.b16 %v2998, %v2994
  %v3923 = vpack.c.b16 %v3003, %v2999
  %v3924 = vpack.c.b16 %v3004, %v3000
  %v3925 = vpack.c.b16 %v3005, %v3001
  %v3926 = vpack.c.b16 %v3006, %v3002
  %v3927 = vpack.c.b16 %v3011, %v3007
  %v3928 = vpack.c.b16 %v3012, %v3008
  %v3929 = vpack.c.b16 %v3013, %v3009
  %v3930 = vpack.c.b16 %v3014, %v3010
  %v3931 = vpack.c.b16 %v3019, %v3015
  %v3932 = vpack.c.b16 %v3020, %v3016
  %v3933 = vpack.c.b16 %v3021, %v3017
  %v3934 = vpack.c.b16 %v3022, %v3018
  %v3935 = vpack.c.b16 %v3027, %v3023
  %v3936 = vpack.c.b16 %v3028, %v3024
  %v3937 = vpack.c.b16 %v3029, %v3025
  %v3938 = vpack.c.b16 %v3030, %v3026
  %v3939 = vpack.c.b16 %v3035, %v3031
  %v3940 = vpack.c.b16 %v3036, %v3032
  %v3941 = vpack.c.b16 %v3037, %v3033
  %v3942 = vpack.c.b16 %v3038, %v3034
  %v3943 = vpack.c.b16 %v3043, %v3039
  %v3944 = vpack.c.b16 %v3044, %v3040
  %v3945 = vpack.c.b16 %v3045, %v3041
  %v3946 = vpack.c.b16 %v3046, %v3042
  %v3947 = vpack.c.b16 %v3051, %v3047
  %v3948 = vpack.c.b16 %v3052, %v3048
  %v3949 = vpack.c.b16 %v3053, %v3049
  %v3950 = vpack.c.b16 %v3054, %v3050
  %v3951 = vpack.c.b16 %v3059, %v3055
  %v3952 = vpack.c.b16 %v3060, %v3056
  %v3953 = vpack.c.b16 %v3061, %v3057
  %v3954 = vpack.c.b16 %v3062, %v3058
  %v3955 = vpack.c.b16 %v3067, %v3063
  %v3956 = vpack.c.b16 %v3068, %v3064
  %v3957 = vpack.c.b16 %v3069, %v3065
  %v3958 = vpack.c.b16 %v3070, %v3066
  %v3959 = vpack.c.b16 %v3075, %v3071
  %v3960 = vpack.c.b16 %v3076, %v3072
  %v3961 = vpack.c.b16 %v3077, %v3073
  %v3962 = vpack.c.b16 %v3078, %v3074
  %v3963 = vpack.c.b16 %v3083, %v3079
  %v3964 = vpack.c.b16 %v3084, %v3080
  %v3965 = vpack.c.b16 %v3085, %v3081
  %v3966 = vpack.c.b16 %v3086, %v3082
  %v3967 = vpack.c.b16 %v3091, %v3087
  %v3968 = vpack.c.b16 %v3092, %v3088
  %v3969 = vpack.c.b16 %v3093, %v3089
  %v3970 = vpack.c.b16 %v3094, %v3090
  %v3971 = vpack.c.b16 %v3099, %v3095
  %v3972 = vpack.c.b16 %v3100, %v3096
  %v3973 = vpack.c.b16 %v3101, %v3097
  %v3974 = vpack.c.b16 %v3102, %v3098
  %v3975 = vpack.c.b16 %v3107, %v3103
  %v3976 = vpack.c.b16 %v3108, %v3104
  %v3977 = vpack.c.b16 %v3109, %v3105
  %v3978 = vpack.c.b16 %v3110, %v3106
  %v3979 = vpack.c.b16 %v3115, %v3111
  %v3980 = vpack.c.b16 %v3116, %v3112
  %v3981 = vpack.c.b16 %v3117, %v3113
  %v3982 = vpack.c.b16 %v3118, %v3114
  %v3983 = vpack.c.b16 %v3123, %v3119
  %v3984 = vpack.c.b16 %v3124, %v3120
  %v3985 = vpack.c.b16 %v3125, %v3121
  %v3986 = vpack.c.b16 %v3126, %v3122
  %v3987 = vpack.c.b16 %v3131, %v3127
  %v3988 = vpack.c.b16 %v3132, %v3128
  %v3989 = vpack.c.b16 %v3133, %v3129
  %v3990 = vpack.c.b16 %v3134, %v3130
  %v3991 = vpack.c.b16 %v3139, %v3135
  %v3992 = vpack.c.b16 %v3140, %v3136
  %v3993 = vpack.c.b16 %v3141, %v3137
  %v3994 = vpack.c.b16 %v3142, %v3138
  %v3995 = vpack.c.b16 %v3147, %v3143
  %v3996 = vpack.c.b16 %v3148, %v3144
  %v3997 = vpack.c.b16 %v3149, %v3145
  %v3998 = vpack.c.b16 %v3150, %v3146
  %v3999 = vpack.c.b16 %v3155, %v3151
  %v4000 = vpack.c.b16 %v3156, %v3152
  %v4001 = vpack.c.b16 %v3157, %v3153
  %v4002 = vpack.c.b16 %v3158, %v3154
  %v4003 = vpack.c.b16 %v3163, %v3159
  %v4004 = vpack.c.b16 %v3164, %v3160
  %v4005 = vpack.c.b16 %v3165, %v3161
  %v4006 = vpack.c.b16 %v3166, %v3162
  %v4007 = vpack.c.b16 %v3171, %v3167
  %v4008 = vpack.c.b16 %v3172, %v3168
  %v4009 = vpack.c.b16 %v3173, %v3169
  %v4010 = vpack.c.b16 %v3174, %v3170
  %v4011 = vpack.c.b16 %v3179, %v3175
  %v4012 = vpack.c.b16 %v3180, %v3176
  %v4013 = vpack.c.b16 %v3181, %v3177
  %v4014 = vpack.c.b16 %v3182, %v3178
  %v4015 = vpack.c.b16 %v3187, %v3183
  %v4016 = vpack.c.b16 %v3188, %v3184
  %v4017 = vpack.c.b16 %v3189, %v3185
  %v4018 = vpack.c.b16 %v3190, %v3186
  %v4019 = vpack.c.b16 %v3195, %v3191
  %v4020 = vpack.c.b16 %v3196, %v3192
  %v4021 = vpack.c.b16 %v3197, %v3193
  %v4022 = vpack.c.b16 %v3198, %v3194
  %v4023 = vpack.c.b16 %v3203, %v3199
  %v4024 = vpack.c.b16 %v3204, %v3200
  %v4025 = vpack.c.b16 %v3205, %v3201
  %v4026 = vpack.c.b16 %v3206, %v3202
  %v4027 = vpack.c.b16 %v3211, %v3207
  %v4028 = vpack.c.b16 %v3212, %v3208
  %v4029 = vpack.c.b16 %v3213, %v3209
  %v4030 = vpack.c.b16 %v3214, %v3210
  %v4031 = vpack.c.b16 %v3219, %v3215
  %v4032 = vpack.c.b16 %v3220, %v3216
  %v4033 = vpack.c.b16 %v3221, %v3217
  %v4034 = vpack.c.b16 %v3222, %v3218
  %v4035 = vpack.c.b16 %v3227, %v3223
  %v4036 = vpack.c.b16 %v3228, %v3224
  %v4037 = vpack.c.b16 %v3229, %v3225
  %v4038 = vpack.c.b16 %v3230, %v3226
  %v4039 = vpack.c.b16 %v3235, %v3231
  %v4040 = vpack.c.b16 %v3236, %v3232
  %v4041 = vpack.c.b16 %v3237, %v3233
  %v4042 = vpack.c.b16 %v3238, %v3234
  %v4043 = vpack.c.b16 %v3243, %v3239
  %v4044 = vpack.c.b16 %v3244, %v3240
  %v4045 = vpack.c.b16 %v3245, %v3241
  %v4046 = vpack.c.b16 %v3246, %v3242
  %v4047 = vpack.c.b16 %v3251, %v3247
  %v4048 = vpack.c.b16 %v3252, %v3248
  %v4049 = vpack.c.b16 %v3253, %v3249
  %v4050 = vpack.c.b16 %v3254, %v3250
  %v4051 = vpack.c.b16 %v3259, %v3255
  %v4052 = vpack.c.b16 %v3260, %v3256
  %v4053 = vpack.c.b16 %v3261, %v3257
  %v4054 = vpack.c.b16 %v3262, %v3258
  %v4055 = vpack.c.b16 %v3267, %v3263
  %v4056 = vpack.c.b16 %v3268, %v3264
  %v4057 = vpack.c.b16 %v3269, %v3265
  %v4058 = vpack.c.b16 %v3270, %v3266
  %v4059 = vpack.c.b16 %v3275, %v3271
  %v4060 = vpack.c.b16 %v3276, %v3272
  %v4061 = vpack.c.b16 %v3277, %v3273
  %v4062 = vpack.c.b16 %v3278, %v3274
  %vm4847 = vcmask 523264
  %v4849 = vsel %vm4847, %v902, 0
  %4851 = vmatprep.subr.bf16.mxu0 %v3280
  %4852 = vmatpush1.bf16.msra.mxu0 %v3279
  %4853 = vmatprep.subr.bf16.mxu0 %v3284
  %4854 = vmatpush1.bf16.msra.mxu0 %v3283
  %4855 = vmatprep.subr.bf16.mxu0 %v3288
  %4856 = vmatpush1.bf16.msra.mxu0 %v3287
  %4857 = vmatprep.subr.bf16.mxu0 %v3292
  %4858 = vmatpush1.bf16.msra.mxu0 %v3291
  %4859 = vmatprep.subr.bf16.mxu0 %v3296
  %4860 = vmatpush1.bf16.msra.mxu0 %v3295
  %4861 = vmatprep.subr.bf16.mxu0 %v3300
  %4862 = vmatpush1.bf16.msra.mxu0 %v3299
  %4863 = vmatprep.subr.bf16.mxu0 %v3304
  %4864 = vmatpush1.bf16.msra.mxu0 %v3303
  %4865 = vmatprep.subr.bf16.mxu0 %v3308
  %4866 = vmatpush1.bf16.msra.mxu0 %v3307
  %4867 = vmatprep.subr.bf16.mxu0 %v3312
  %4868 = vmatpush1.bf16.msra.mxu0 %v3311
  %4869 = vmatprep.subr.bf16.mxu0 %v3316
  %4870 = vmatpush1.bf16.msra.mxu0 %v3315
  %4871 = vmatprep.subr.bf16.mxu0 %v3320
  %4872 = vmatpush1.bf16.msra.mxu0 %v3319
  %4873 = vmatprep.subr.bf16.mxu0 %v3324
  %4874 = vmatpush1.bf16.msra.mxu0 %v3323
  %4875 = vmatprep.subr.bf16.mxu0 %v3328
  %4876 = vmatpush1.bf16.msra.mxu0 %v3327
  %4877 = vmatprep.subr.bf16.mxu0 %v3332
  %4878 = vmatpush1.bf16.msra.mxu0 %v3331
  %4879 = vmatprep.subr.bf16.mxu0 %v3336
  %4880 = vmatpush1.bf16.msra.mxu0 %v3335
  %4881 = vmatprep.subr.bf16.mxu0 %v3340
  %4882 = vmatpush1.bf16.msra.mxu0 %v3339
  %4883 = vmatprep.mubr.bf16.mxu0 %v879
  %4884 = vmatmul.mubr.bf16.gmra.mrb[0].mxu0 %v878
  %v4885 = vpop.f32.mrb[0].mxu0
  %v4886 = vadd.f32 %v823, %v4885
  %v4887 = vpop.f32.mrb[0].mxu0
  %v4888 = vadd.f32 %v827, %v4887
  %v4889 = vpop.f32.mrb[0].mxu0
  %v4890 = vpop.f32.mrb[0].mxu0
  %4891 = vdwg.mxu0
  %4892 = vmatprep.subr.bf16.mxu0 %v3344
  %4893 = vmatpush1.bf16.msra.mxu0 %v3343
  %4894 = vmatprep.subr.bf16.mxu0 %v3348
  %4895 = vmatpush1.bf16.msra.mxu0 %v3347
  %4896 = vmatprep.subr.bf16.mxu0 %v3352
  %4897 = vmatpush1.bf16.msra.mxu0 %v3351
  %4898 = vmatprep.subr.bf16.mxu0 %v3356
  %4899 = vmatpush1.bf16.msra.mxu0 %v3355
  %4900 = vmatprep.subr.bf16.mxu0 %v3360
  %4901 = vmatpush1.bf16.msra.mxu0 %v3359
  %4902 = vmatprep.subr.bf16.mxu0 %v3364
  %4903 = vmatpush1.bf16.msra.mxu0 %v3363
  %4904 = vmatprep.subr.bf16.mxu0 %v3368
  %4905 = vmatpush1.bf16.msra.mxu0 %v3367
  %4906 = vmatprep.subr.bf16.mxu0 %v3372
  %4907 = vmatpush1.bf16.msra.mxu0 %v3371
  %4908 = vmatprep.subr.bf16.mxu0 %v3376
  %4909 = vmatpush1.bf16.msra.mxu0 %v3375
  %4910 = vmatprep.subr.bf16.mxu0 %v3380
  %4911 = vmatpush1.bf16.msra.mxu0 %v3379
  %4912 = vmatprep.subr.bf16.mxu0 %v3384
  %4913 = vmatpush1.bf16.msra.mxu0 %v3383
  %4914 = vmatprep.subr.bf16.mxu0 %v3388
  %4915 = vmatpush1.bf16.msra.mxu0 %v3387
  %4916 = vmatprep.subr.bf16.mxu0 %v3392
  %4917 = vmatpush1.bf16.msra.mxu0 %v3391
  %4918 = vmatprep.subr.bf16.mxu0 %v3396
  %4919 = vmatpush1.bf16.msra.mxu0 %v3395
  %4920 = vmatprep.subr.bf16.mxu0 %v3400
  %4921 = vmatpush1.bf16.msra.mxu0 %v3399
  %4922 = vmatprep.subr.bf16.mxu0 %v3404
  %4923 = vmatpush1.bf16.msra.mxu0 %v3403
  %4924 = vmatprep.mubr.bf16.mxu0 %v881
  %4925 = vmatmul.mubr.bf16.gmra.mrb[0].mxu0 %v880
  %v4926 = vpop.f32.mrb[0].mxu0
  %v4927 = vadd.f32 %v4886, %v4926
  %v4928 = vpop.f32.mrb[0].mxu0
  %v4929 = vadd.f32 %v4888, %v4928
  %v4930 = vpop.f32.mrb[0].mxu0
  %v4931 = vpop.f32.mrb[0].mxu0
  %4932 = vdwg.mxu0
  %4933 = vmatprep.subr.bf16.mxu0 %v3408
  %4934 = vmatpush1.bf16.msra.mxu0 %v3407
  %4935 = vmatprep.subr.bf16.mxu0 %v3412
  %4936 = vmatpush1.bf16.msra.mxu0 %v3411
  %4937 = vmatprep.subr.bf16.mxu0 %v3416
  %4938 = vmatpush1.bf16.msra.mxu0 %v3415
  %4939 = vmatprep.subr.bf16.mxu0 %v3420
  %4940 = vmatpush1.bf16.msra.mxu0 %v3419
  %4941 = vmatprep.subr.bf16.mxu0 %v3424
  %4942 = vmatpush1.bf16.msra.mxu0 %v3423
  %4943 = vmatprep.subr.bf16.mxu0 %v3428
  %4944 = vmatpush1.bf16.msra.mxu0 %v3427
  %4945 = vmatprep.subr.bf16.mxu0 %v3432
  %4946 = vmatpush1.bf16.msra.mxu0 %v3431
  %4947 = vmatprep.subr.bf16.mxu0 %v3436
  %4948 = vmatpush1.bf16.msra.mxu0 %v3435
  %4949 = vmatprep.subr.bf16.mxu0 %v3440
  %4950 = vmatpush1.bf16.msra.mxu0 %v3439
  %4951 = vmatprep.subr.bf16.mxu0 %v3444
  %4952 = vmatpush1.bf16.msra.mxu0 %v3443
  %4953 = vmatprep.subr.bf16.mxu0 %v3448
  %4954 = vmatpush1.bf16.msra.mxu0 %v3447
  %4955 = vmatprep.subr.bf16.mxu0 %v3452
  %4956 = vmatpush1.bf16.msra.mxu0 %v3451
  %4957 = vmatprep.subr.bf16.mxu0 %v3456
  %4958 = vmatpush1.bf16.msra.mxu0 %v3455
  %4959 = vmatprep.subr.bf16.mxu0 %v3460
  %4960 = vmatpush1.bf16.msra.mxu0 %v3459
  %4961 = vmatprep.subr.bf16.mxu0 %v3464
  %4962 = vmatpush1.bf16.msra.mxu0 %v3463
  %4963 = vmatprep.subr.bf16.mxu0 %v3468
  %4964 = vmatpush1.bf16.msra.mxu0 %v3467
  %4965 = vmatprep.mubr.bf16.mxu0 %v883
  %4966 = vmatmul.mubr.bf16.gmra.mrb[0].mxu0 %v882
  %v4967 = vpop.f32.mrb[0].mxu0
  %v4968 = vadd.f32 %v4927, %v4967
  %v4969 = vpop.f32.mrb[0].mxu0
  %v4970 = vadd.f32 %v4929, %v4969
  %v4971 = vpop.f32.mrb[0].mxu0
  %v4972 = vpop.f32.mrb[0].mxu0
  %4973 = vdwg.mxu0
  %4974 = vmatprep.subr.bf16.mxu0 %v3472
  %4975 = vmatpush1.bf16.msra.mxu0 %v3471
  %4976 = vmatprep.subr.bf16.mxu0 %v3476
  %4977 = vmatpush1.bf16.msra.mxu0 %v3475
  %4978 = vmatprep.subr.bf16.mxu0 %v3480
  %4979 = vmatpush1.bf16.msra.mxu0 %v3479
  %4980 = vmatprep.subr.bf16.mxu0 %v3484
  %4981 = vmatpush1.bf16.msra.mxu0 %v3483
  %4982 = vmatprep.subr.bf16.mxu0 %v3488
  %4983 = vmatpush1.bf16.msra.mxu0 %v3487
  %4984 = vmatprep.subr.bf16.mxu0 %v3492
  %4985 = vmatpush1.bf16.msra.mxu0 %v3491
  %4986 = vmatprep.subr.bf16.mxu0 %v3496
  %4987 = vmatpush1.bf16.msra.mxu0 %v3495
  %4988 = vmatprep.subr.bf16.mxu0 %v3500
  %4989 = vmatpush1.bf16.msra.mxu0 %v3499
  %4990 = vmatprep.subr.bf16.mxu0 %v3504
  %4991 = vmatpush1.bf16.msra.mxu0 %v3503
  %4992 = vmatprep.subr.bf16.mxu0 %v3508
  %4993 = vmatpush1.bf16.msra.mxu0 %v3507
  %4994 = vmatprep.subr.bf16.mxu0 %v3512
  %4995 = vmatpush1.bf16.msra.mxu0 %v3511
  %4996 = vmatprep.subr.bf16.mxu0 %v3516
  %4997 = vmatpush1.bf16.msra.mxu0 %v3515
  %4998 = vmatprep.subr.bf16.mxu0 %v3520
  %4999 = vmatpush1.bf16.msra.mxu0 %v3519
  %5000 = vmatprep.subr.bf16.mxu0 %v3524
  %5001 = vmatpush1.bf16.msra.mxu0 %v3523
  %5002 = vmatprep.subr.bf16.mxu0 %v3528
  %5003 = vmatpush1.bf16.msra.mxu0 %v3527
  %5004 = vmatprep.subr.bf16.mxu0 %v3532
  %5005 = vmatpush1.bf16.msra.mxu0 %v3531
  %5006 = vmatprep.mubr.bf16.mxu0 %v885
  %5007 = vmatmul.mubr.bf16.gmra.mrb[0].mxu0 %v884
  %v5008 = vpop.f32.mrb[0].mxu0
  %v5009 = vadd.f32 %v4968, %v5008
  %v5010 = vpop.f32.mrb[0].mxu0
  %v5011 = vadd.f32 %v4970, %v5010
  %v5012 = vpop.f32.mrb[0].mxu0
  %v5013 = vpop.f32.mrb[0].mxu0
  %5014 = vdwg.mxu0
  %5015 = vmatprep.subr.bf16.mxu0 %v3536
  %5016 = vmatpush1.bf16.msra.mxu0 %v3535
  %5017 = vmatprep.subr.bf16.mxu0 %v3540
  %5018 = vmatpush1.bf16.msra.mxu0 %v3539
  %5019 = vmatprep.subr.bf16.mxu0 %v3544
  %5020 = vmatpush1.bf16.msra.mxu0 %v3543
  %5021 = vmatprep.subr.bf16.mxu0 %v3548
  %5022 = vmatpush1.bf16.msra.mxu0 %v3547
  %5023 = vmatprep.subr.bf16.mxu0 %v3552
  %5024 = vmatpush1.bf16.msra.mxu0 %v3551
  %5025 = vmatprep.subr.bf16.mxu0 %v3556
  %5026 = vmatpush1.bf16.msra.mxu0 %v3555
  %5027 = vmatprep.subr.bf16.mxu0 %v3560
  %5028 = vmatpush1.bf16.msra.mxu0 %v3559
  %5029 = vmatprep.subr.bf16.mxu0 %v3564
  %5030 = vmatpush1.bf16.msra.mxu0 %v3563
  %5031 = vmatprep.subr.bf16.mxu0 %v3568
  %5032 = vmatpush1.bf16.msra.mxu0 %v3567
  %5033 = vmatprep.subr.bf16.mxu0 %v3572
  %5034 = vmatpush1.bf16.msra.mxu0 %v3571
  %5035 = vmatprep.subr.bf16.mxu0 %v3576
  %5036 = vmatpush1.bf16.msra.mxu0 %v3575
  %5037 = vmatprep.subr.bf16.mxu0 %v3580
  %5038 = vmatpush1.bf16.msra.mxu0 %v3579
  %5039 = vmatprep.subr.bf16.mxu0 %v3584
  %5040 = vmatpush1.bf16.msra.mxu0 %v3583
  %5041 = vmatprep.subr.bf16.mxu0 %v3588
  %5042 = vmatpush1.bf16.msra.mxu0 %v3587
  %5043 = vmatprep.subr.bf16.mxu0 %v3592
  %5044 = vmatpush1.bf16.msra.mxu0 %v3591
  %5045 = vmatprep.subr.bf16.mxu0 %v3596
  %5046 = vmatpush1.bf16.msra.mxu0 %v3595
  %5047 = vmatprep.mubr.bf16.mxu0 %v887
  %5048 = vmatmul.mubr.bf16.gmra.mrb[0].mxu0 %v886
  %v5049 = vpop.f32.mrb[0].mxu0
  %v5050 = vadd.f32 %v5009, %v5049
  %v5051 = vpop.f32.mrb[0].mxu0
  %v5052 = vadd.f32 %v5011, %v5051
  %v5053 = vpop.f32.mrb[0].mxu0
  %v5054 = vpop.f32.mrb[0].mxu0
  %5055 = vdwg.mxu0
  %5056 = vmatprep.subr.bf16.mxu0 %v3600
  %5057 = vmatpush1.bf16.msra.mxu0 %v3599
  %5058 = vmatprep.subr.bf16.mxu0 %v3604
  %5059 = vmatpush1.bf16.msra.mxu0 %v3603
  %5060 = vmatprep.subr.bf16.mxu0 %v3608
  %5061 = vmatpush1.bf16.msra.mxu0 %v3607
  %5062 = vmatprep.subr.bf16.mxu0 %v3612
  %5063 = vmatpush1.bf16.msra.mxu0 %v3611
  %5064 = vmatprep.subr.bf16.mxu0 %v3616
  %5065 = vmatpush1.bf16.msra.mxu0 %v3615
  %5066 = vmatprep.subr.bf16.mxu0 %v3620
  %5067 = vmatpush1.bf16.msra.mxu0 %v3619
  %5068 = vmatprep.subr.bf16.mxu0 %v3624
  %5069 = vmatpush1.bf16.msra.mxu0 %v3623
  %5070 = vmatprep.subr.bf16.mxu0 %v3628
  %5071 = vmatpush1.bf16.msra.mxu0 %v3627
  %5072 = vmatprep.subr.bf16.mxu0 %v3632
  %5073 = vmatpush1.bf16.msra.mxu0 %v3631
  %5074 = vmatprep.subr.bf16.mxu0 %v3636
  %5075 = vmatpush1.bf16.msra.mxu0 %v3635
  %5076 = vmatprep.subr.bf16.mxu0 %v3640
  %5077 = vmatpush1.bf16.msra.mxu0 %v3639
  %5078 = vmatprep.subr.bf16.mxu0 %v3644
  %5079 = vmatpush1.bf16.msra.mxu0 %v3643
  %5080 = vmatprep.subr.bf16.mxu0 %v3648
  %5081 = vmatpush1.bf16.msra.mxu0 %v3647
  %5082 = vmatprep.subr.bf16.mxu0 %v3652
  %5083 = vmatpush1.bf16.msra.mxu0 %v3651
  %5084 = vmatprep.subr.bf16.mxu0 %v3656
  %5085 = vmatpush1.bf16.msra.mxu0 %v3655
  %5086 = vmatprep.subr.bf16.mxu0 %v3660
  %5087 = vmatpush1.bf16.msra.mxu0 %v3659
  %5088 = vmatprep.mubr.bf16.mxu0 %v889
  %5089 = vmatmul.mubr.bf16.gmra.mrb[0].mxu0 %v888
  %v5090 = vpop.f32.mrb[0].mxu0
  %v5091 = vadd.f32 %v5050, %v5090
  %v5092 = vpop.f32.mrb[0].mxu0
  %v5093 = vadd.f32 %v5052, %v5092
  %v5094 = vpop.f32.mrb[0].mxu0
  %v5095 = vpop.f32.mrb[0].mxu0
  %5096 = vdwg.mxu0
  %5097 = vmatprep.subr.bf16.mxu0 %v3664
  %5098 = vmatpush1.bf16.msra.mxu0 %v3663
  %5099 = vmatprep.subr.bf16.mxu0 %v3668
  %5100 = vmatpush1.bf16.msra.mxu0 %v3667
  %5101 = vmatprep.subr.bf16.mxu0 %v3672
  %5102 = vmatpush1.bf16.msra.mxu0 %v3671
  %5103 = vmatprep.subr.bf16.mxu0 %v3676
  %5104 = vmatpush1.bf16.msra.mxu0 %v3675
  %5105 = vmatprep.subr.bf16.mxu0 %v3680
  %5106 = vmatpush1.bf16.msra.mxu0 %v3679
  %5107 = vmatprep.subr.bf16.mxu0 %v3684
  %5108 = vmatpush1.bf16.msra.mxu0 %v3683
  %5109 = vmatprep.subr.bf16.mxu0 %v3688
  %5110 = vmatpush1.bf16.msra.mxu0 %v3687
  %5111 = vmatprep.subr.bf16.mxu0 %v3692
  %5112 = vmatpush1.bf16.msra.mxu0 %v3691
  %5113 = vmatprep.subr.bf16.mxu0 %v3696
  %5114 = vmatpush1.bf16.msra.mxu0 %v3695
  %5115 = vmatprep.subr.bf16.mxu0 %v3700
  %5116 = vmatpush1.bf16.msra.mxu0 %v3699
  %5117 = vmatprep.subr.bf16.mxu0 %v3704
  %5118 = vmatpush1.bf16.msra.mxu0 %v3703
  %5119 = vmatprep.subr.bf16.mxu0 %v3708
  %5120 = vmatpush1.bf16.msra.mxu0 %v3707
  %5121 = vmatprep.subr.bf16.mxu0 %v3712
  %5122 = vmatpush1.bf16.msra.mxu0 %v3711
  %5123 = vmatprep.subr.bf16.mxu0 %v3716
  %5124 = vmatpush1.bf16.msra.mxu0 %v3715
  %5125 = vmatprep.subr.bf16.mxu0 %v3720
  %5126 = vmatpush1.bf16.msra.mxu0 %v3719
  %5127 = vmatprep.subr.bf16.mxu0 %v3724
  %5128 = vmatpush1.bf16.msra.mxu0 %v3723
  %5129 = vmatprep.mubr.bf16.mxu0 %v891
  %5130 = vmatmul.mubr.bf16.gmra.mrb[0].mxu0 %v890
  %v5131 = vpop.f32.mrb[0].mxu0
  %v5132 = vadd.f32 %v5091, %v5131
  %v5133 = vpop.f32.mrb[0].mxu0
  %v5134 = vadd.f32 %v5093, %v5133
  %v5135 = vpop.f32.mrb[0].mxu0
  %v5136 = vpop.f32.mrb[0].mxu0
  %5137 = vdwg.mxu0
  %5138 = vmatprep.subr.bf16.mxu0 %v3728
  %5139 = vmatpush1.bf16.msra.mxu0 %v3727
  %5140 = vmatprep.subr.bf16.mxu0 %v3732
  %5141 = vmatpush1.bf16.msra.mxu0 %v3731
  %5142 = vmatprep.subr.bf16.mxu0 %v3736
  %5143 = vmatpush1.bf16.msra.mxu0 %v3735
  %5144 = vmatprep.subr.bf16.mxu0 %v3740
  %5145 = vmatpush1.bf16.msra.mxu0 %v3739
  %5146 = vmatprep.subr.bf16.mxu0 %v3744
  %5147 = vmatpush1.bf16.msra.mxu0 %v3743
  %5148 = vmatprep.subr.bf16.mxu0 %v3748
  %5149 = vmatpush1.bf16.msra.mxu0 %v3747
  %5150 = vmatprep.subr.bf16.mxu0 %v3752
  %5151 = vmatpush1.bf16.msra.mxu0 %v3751
  %5152 = vmatprep.subr.bf16.mxu0 %v3756
  %5153 = vmatpush1.bf16.msra.mxu0 %v3755
  %5154 = vmatprep.subr.bf16.mxu0 %v3760
  %5155 = vmatpush1.bf16.msra.mxu0 %v3759
  %5156 = vmatprep.subr.bf16.mxu0 %v3764
  %5157 = vmatpush1.bf16.msra.mxu0 %v3763
  %5158 = vmatprep.subr.bf16.mxu0 %v3768
  %5159 = vmatpush1.bf16.msra.mxu0 %v3767
  %5160 = vmatprep.subr.bf16.mxu0 %v3772
  %5161 = vmatpush1.bf16.msra.mxu0 %v3771
  %5162 = vmatprep.subr.bf16.mxu0 %v3776
  %5163 = vmatpush1.bf16.msra.mxu0 %v3775
  %5164 = vmatprep.subr.bf16.mxu0 %v3780
  %5165 = vmatpush1.bf16.msra.mxu0 %v3779
  %5166 = vmatprep.subr.bf16.mxu0 %v3784
  %5167 = vmatpush1.bf16.msra.mxu0 %v3783
  %5168 = vmatprep.subr.bf16.mxu0 %v3788
  %5169 = vmatpush1.bf16.msra.mxu0 %v3787
  %5170 = vmatprep.mubr.bf16.mxu0 %v893
  %5171 = vmatmul.mubr.bf16.gmra.mrb[0].mxu0 %v892
  %v5172 = vpop.f32.mrb[0].mxu0
  %v5173 = vadd.f32 %v5132, %v5172
  %v5174 = vpop.f32.mrb[0].mxu0
  %v5175 = vadd.f32 %v5134, %v5174
  %v5176 = vpop.f32.mrb[0].mxu0
  %v5177 = vpop.f32.mrb[0].mxu0
  %5178 = vdwg.mxu0
  %5179 = vmatprep.subr.bf16.mxu0 %v3792
  %5180 = vmatpush1.bf16.msra.mxu0 %v3791
  %5181 = vmatprep.subr.bf16.mxu0 %v3796
  %5182 = vmatpush1.bf16.msra.mxu0 %v3795
  %5183 = vmatprep.subr.bf16.mxu0 %v3800
  %5184 = vmatpush1.bf16.msra.mxu0 %v3799
  %5185 = vmatprep.subr.bf16.mxu0 %v3804
  %5186 = vmatpush1.bf16.msra.mxu0 %v3803
  %5187 = vmatprep.subr.bf16.mxu0 %v3808
  %5188 = vmatpush1.bf16.msra.mxu0 %v3807
  %5189 = vmatprep.subr.bf16.mxu0 %v3812
  %5190 = vmatpush1.bf16.msra.mxu0 %v3811
  %5191 = vmatprep.subr.bf16.mxu0 %v3816
  %5192 = vmatpush1.bf16.msra.mxu0 %v3815
  %5193 = vmatprep.subr.bf16.mxu0 %v3820
  %5194 = vmatpush1.bf16.msra.mxu0 %v3819
  %5195 = vmatprep.subr.bf16.mxu0 %v3824
  %5196 = vmatpush1.bf16.msra.mxu0 %v3823
  %5197 = vmatprep.subr.bf16.mxu0 %v3828
  %5198 = vmatpush1.bf16.msra.mxu0 %v3827
  %5199 = vmatprep.subr.bf16.mxu0 %v3832
  %5200 = vmatpush1.bf16.msra.mxu0 %v3831
  %5201 = vmatprep.subr.bf16.mxu0 %v3836
  %5202 = vmatpush1.bf16.msra.mxu0 %v3835
  %5203 = vmatprep.subr.bf16.mxu0 %v3840
  %5204 = vmatpush1.bf16.msra.mxu0 %v3839
  %5205 = vmatprep.subr.bf16.mxu0 %v3844
  %5206 = vmatpush1.bf16.msra.mxu0 %v3843
  %5207 = vmatprep.subr.bf16.mxu0 %v3848
  %5208 = vmatpush1.bf16.msra.mxu0 %v3847
  %5209 = vmatprep.subr.bf16.mxu0 %v3852
  %5210 = vmatpush1.bf16.msra.mxu0 %v3851
  %5211 = vmatprep.mubr.bf16.mxu0 %v895
  %5212 = vmatmul.mubr.bf16.gmra.mrb[0].mxu0 %v894
  %v5213 = vpop.f32.mrb[0].mxu0
  %v5214 = vadd.f32 %v5173, %v5213
  %v5215 = vpop.f32.mrb[0].mxu0
  %v5216 = vadd.f32 %v5175, %v5215
  %v5217 = vpop.f32.mrb[0].mxu0
  %v5218 = vpop.f32.mrb[0].mxu0
  %5219 = vdwg.mxu0
  %5220 = vmatprep.subr.bf16.mxu0 %v3856
  %5221 = vmatpush1.bf16.msra.mxu0 %v3855
  %5222 = vmatprep.subr.bf16.mxu0 %v3860
  %5223 = vmatpush1.bf16.msra.mxu0 %v3859
  %5224 = vmatprep.subr.bf16.mxu0 %v3864
  %5225 = vmatpush1.bf16.msra.mxu0 %v3863
  %5226 = vmatprep.subr.bf16.mxu0 %v3868
  %5227 = vmatpush1.bf16.msra.mxu0 %v3867
  %5228 = vmatprep.subr.bf16.mxu0 %v3872
  %5229 = vmatpush1.bf16.msra.mxu0 %v3871
  %5230 = vmatprep.subr.bf16.mxu0 %v3876
  %5231 = vmatpush1.bf16.msra.mxu0 %v3875
  %5232 = vmatprep.subr.bf16.mxu0 %v3880
  %5233 = vmatpush1.bf16.msra.mxu0 %v3879
  %5234 = vmatprep.subr.bf16.mxu0 %v3884
  %5235 = vmatpush1.bf16.msra.mxu0 %v3883
  %5236 = vmatprep.subr.bf16.mxu0 %v3888
  %5237 = vmatpush1.bf16.msra.mxu0 %v3887
  %5238 = vmatprep.subr.bf16.mxu0 %v3892
  %5239 = vmatpush1.bf16.msra.mxu0 %v3891
  %5240 = vmatprep.subr.bf16.mxu0 %v3896
  %5241 = vmatpush1.bf16.msra.mxu0 %v3895
  %5242 = vmatprep.subr.bf16.mxu0 %v3900
  %5243 = vmatpush1.bf16.msra.mxu0 %v3899
  %5244 = vmatprep.subr.bf16.mxu0 %v3904
  %5245 = vmatpush1.bf16.msra.mxu0 %v3903
  %5246 = vmatprep.subr.bf16.mxu0 %v3908
  %5247 = vmatpush1.bf16.msra.mxu0 %v3907
  %5248 = vmatprep.subr.bf16.mxu0 %v3912
  %5249 = vmatpush1.bf16.msra.mxu0 %v3911
  %5250 = vmatprep.subr.bf16.mxu0 %v3916
  %5251 = vmatpush1.bf16.msra.mxu0 %v3915
  %5252 = vmatprep.mubr.bf16.mxu0 %v897
  %5253 = vmatmul.mubr.bf16.gmra.mrb[0].mxu0 %v896
  %v5254 = vpop.f32.mrb[0].mxu0
  %v5255 = vadd.f32 %v5214, %v5254
  %v5256 = vpop.f32.mrb[0].mxu0
  %v5257 = vadd.f32 %v5216, %v5256
  %v5258 = vpop.f32.mrb[0].mxu0
  %v5259 = vpop.f32.mrb[0].mxu0
  %5260 = vdwg.mxu0
  %5261 = vmatprep.subr.bf16.mxu0 %v3920
  %5262 = vmatpush1.bf16.msra.mxu0 %v3919
  %5263 = vmatprep.subr.bf16.mxu0 %v3924
  %5264 = vmatpush1.bf16.msra.mxu0 %v3923
  %5265 = vmatprep.subr.bf16.mxu0 %v3928
  %5266 = vmatpush1.bf16.msra.mxu0 %v3927
  %5267 = vmatprep.subr.bf16.mxu0 %v3932
  %5268 = vmatpush1.bf16.msra.mxu0 %v3931
  %5269 = vmatprep.subr.bf16.mxu0 %v3936
  %5270 = vmatpush1.bf16.msra.mxu0 %v3935
  %5271 = vmatprep.subr.bf16.mxu0 %v3940
  %5272 = vmatpush1.bf16.msra.mxu0 %v3939
  %5273 = vmatprep.subr.bf16.mxu0 %v3944
  %5274 = vmatpush1.bf16.msra.mxu0 %v3943
  %5275 = vmatprep.subr.bf16.mxu0 %v3948
  %5276 = vmatpush1.bf16.msra.mxu0 %v3947
  %5277 = vmatprep.subr.bf16.mxu0 %v3952
  %5278 = vmatpush1.bf16.msra.mxu0 %v3951
  %5279 = vmatprep.subr.bf16.mxu0 %v3956
  %5280 = vmatpush1.bf16.msra.mxu0 %v3955
  %5281 = vmatprep.subr.bf16.mxu0 %v3960
  %5282 = vmatpush1.bf16.msra.mxu0 %v3959
  %5283 = vmatprep.subr.bf16.mxu0 %v3964
  %5284 = vmatpush1.bf16.msra.mxu0 %v3963
  %5285 = vmatprep.subr.bf16.mxu0 %v3968
  %5286 = vmatpush1.bf16.msra.mxu0 %v3967
  %5287 = vmatprep.subr.bf16.mxu0 %v3972
  %5288 = vmatpush1.bf16.msra.mxu0 %v3971
  %5289 = vmatprep.subr.bf16.mxu0 %v3976
  %5290 = vmatpush1.bf16.msra.mxu0 %v3975
  %5291 = vmatprep.subr.bf16.mxu0 %v3980
  %5292 = vmatpush1.bf16.msra.mxu0 %v3979
  %5293 = vmatprep.mubr.bf16.mxu0 %v899
  %5294 = vmatmul.mubr.bf16.gmra.mrb[0].mxu0 %v898
  %v5295 = vpop.f32.mrb[0].mxu0
  %v5296 = vadd.f32 %v5255, %v5295
  %v5297 = vpop.f32.mrb[0].mxu0
  %v5298 = vadd.f32 %v5257, %v5297
  %v5299 = vpop.f32.mrb[0].mxu0
  %v5300 = vpop.f32.mrb[0].mxu0
  %5301 = vdwg.mxu0
  %5302 = vmatprep.subr.bf16.mxu0 %v3984
  %5303 = vmatpush1.bf16.msra.mxu0 %v3983
  %5304 = vmatprep.subr.bf16.mxu0 %v3988
  %5305 = vmatpush1.bf16.msra.mxu0 %v3987
  %5306 = vmatprep.subr.bf16.mxu0 %v3992
  %5307 = vmatpush1.bf16.msra.mxu0 %v3991
  %5308 = vmatprep.subr.bf16.mxu0 %v3996
  %5309 = vmatpush1.bf16.msra.mxu0 %v3995
  %5310 = vmatprep.subr.bf16.mxu0 %v4000
  %5311 = vmatpush1.bf16.msra.mxu0 %v3999
  %5312 = vmatprep.subr.bf16.mxu0 %v4004
  %5313 = vmatpush1.bf16.msra.mxu0 %v4003
  %5314 = vmatprep.subr.bf16.mxu0 %v4008
  %5315 = vmatpush1.bf16.msra.mxu0 %v4007
  %5316 = vmatprep.subr.bf16.mxu0 %v4012
  %5317 = vmatpush1.bf16.msra.mxu0 %v4011
  %5318 = vmatprep.subr.bf16.mxu0 %v4016
  %5319 = vmatpush1.bf16.msra.mxu0 %v4015
  %5320 = vmatprep.subr.bf16.mxu0 %v4020
  %5321 = vmatpush1.bf16.msra.mxu0 %v4019
  %5322 = vmatprep.subr.bf16.mxu0 %v4024
  %5323 = vmatpush1.bf16.msra.mxu0 %v4023
  %5324 = vmatprep.subr.bf16.mxu0 %v4028
  %5325 = vmatpush1.bf16.msra.mxu0 %v4027
  %5326 = vmatprep.subr.bf16.mxu0 %v4032
  %5327 = vmatpush1.bf16.msra.mxu0 %v4031
  %5328 = vmatprep.subr.bf16.mxu0 %v4036
  %5329 = vmatpush1.bf16.msra.mxu0 %v4035
  %5330 = vmatprep.subr.bf16.mxu0 %v4040
  %5331 = vmatpush1.bf16.msra.mxu0 %v4039
  %5332 = vmatprep.subr.bf16.mxu0 %v4044
  %5333 = vmatpush1.bf16.msra.mxu0 %v4043
  %5334 = vmatprep.mubr.bf16.mxu0 %v901
  %5335 = vmatmul.mubr.bf16.gmra.mrb[0].mxu0 %v900
  %v5336 = vpop.f32.mrb[0].mxu0
  %v5337 = vadd.f32 %v5296, %v5336
  %v5338 = vpop.f32.mrb[0].mxu0
  %v5339 = vadd.f32 %v5298, %v5338
  %v5340 = vpop.f32.mrb[0].mxu0
  %v5341 = vpop.f32.mrb[0].mxu0
  %5342 = vdwg.mxu0
  %5343 = vmatprep.subr.bf16.mxu0 %v4048
  %5344 = vmatpush1.bf16.msra.mxu0 %v4047
  %5345 = vmatprep.subr.bf16.mxu0 %v4052
  %5346 = vmatpush1.bf16.msra.mxu0 %v4051
  %5347 = vmatprep.subr.bf16.mxu0 %v4056
  %5348 = vmatpush1.bf16.msra.mxu0 %v4055
  %5349 = vmatprep.subr.bf16.mxu0 %v4060
  %5350 = vmatpush1.bf16.msra.mxu0 %v4059
  %5351 = vmatprep.subr.bf16.mxu0 0
  %5352 = vmatpush1.bf16.msra.mxu0 0
  %5353 = vmatprep.subr.bf16.mxu0 0
  %5354 = vmatpush1.bf16.msra.mxu0 0
  %5355 = vmatprep.subr.bf16.mxu0 0
  %5356 = vmatpush1.bf16.msra.mxu0 0
  %5357 = vmatprep.subr.bf16.mxu0 0
  %5358 = vmatpush1.bf16.msra.mxu0 0
  %5359 = vmatprep.subr.bf16.mxu0 0
  %5360 = vmatpush1.bf16.msra.mxu0 0
  %5361 = vmatprep.subr.bf16.mxu0 0
  %5362 = vmatpush1.bf16.msra.mxu0 0
  %5363 = vmatprep.subr.bf16.mxu0 0
  %5364 = vmatpush1.bf16.msra.mxu0 0
  %5365 = vmatprep.subr.bf16.mxu0 0
  %5366 = vmatpush1.bf16.msra.mxu0 0
  %5367 = vmatprep.subr.bf16.mxu0 0
  %5368 = vmatpush1.bf16.msra.mxu0 0
  %5369 = vmatprep.subr.bf16.mxu0 0
  %5370 = vmatpush1.bf16.msra.mxu0 0
  %5371 = vmatprep.subr.bf16.mxu0 0
  %5372 = vmatpush1.bf16.msra.mxu0 0
  %5373 = vmatprep.subr.bf16.mxu0 0
  %5374 = vmatpush1.bf16.msra.mxu0 0
  %5375 = vmatprep.mubr.bf16.mxu0 0
  %5376 = vmatmul.mubr.bf16.gmra.mrb[0].mxu0 %v4849
  %v5377 = vpop.f32.mrb[0].mxu0
  %v5378 = vadd.f32 %v5337, %v5377
  %v5379 = vpop.f32.mrb[0].mxu0
  %v5380 = vadd.f32 %v5339, %v5379
  %v5381 = vpop.f32.mrb[0].mxu0
  %v5382 = vpop.f32.mrb[0].mxu0
  %5383 = vdwg.mxu0
  %5384 = vmatprep.subr.bf16.mxu0 %v3282
  %5385 = vmatpush1.bf16.msra.mxu0 %v3281
  %5386 = vmatprep.subr.bf16.mxu0 %v3286
  %5387 = vmatpush1.bf16.msra.mxu0 %v3285
  %5388 = vmatprep.subr.bf16.mxu0 %v3290
  %5389 = vmatpush1.bf16.msra.mxu0 %v3289
  %5390 = vmatprep.subr.bf16.mxu0 %v3294
  %5391 = vmatpush1.bf16.msra.mxu0 %v3293
  %5392 = vmatprep.subr.bf16.mxu0 %v3298
  %5393 = vmatpush1.bf16.msra.mxu0 %v3297
  %5394 = vmatprep.subr.bf16.mxu0 %v3302
  %5395 = vmatpush1.bf16.msra.mxu0 %v3301
  %5396 = vmatprep.subr.bf16.mxu0 %v3306
  %5397 = vmatpush1.bf16.msra.mxu0 %v3305
  %5398 = vmatprep.subr.bf16.mxu0 %v3310
  %5399 = vmatpush1.bf16.msra.mxu0 %v3309
  %5400 = vmatprep.subr.bf16.mxu0 %v3314
  %5401 = vmatpush1.bf16.msra.mxu0 %v3313
  %5402 = vmatprep.subr.bf16.mxu0 %v3318
  %5403 = vmatpush1.bf16.msra.mxu0 %v3317
  %5404 = vmatprep.subr.bf16.mxu0 %v3322
  %5405 = vmatpush1.bf16.msra.mxu0 %v3321
  %5406 = vmatprep.subr.bf16.mxu0 %v3326
  %5407 = vmatpush1.bf16.msra.mxu0 %v3325
  %5408 = vmatprep.subr.bf16.mxu0 %v3330
  %5409 = vmatpush1.bf16.msra.mxu0 %v3329
  %5410 = vmatprep.subr.bf16.mxu0 %v3334
  %5411 = vmatpush1.bf16.msra.mxu0 %v3333
  %5412 = vmatprep.subr.bf16.mxu0 %v3338
  %5413 = vmatpush1.bf16.msra.mxu0 %v3337
  %5414 = vmatprep.subr.bf16.mxu0 %v3342
  %5415 = vmatpush1.bf16.msra.mxu0 %v3341
  %5416 = vmatprep.mubr.bf16.mxu0 %v879
  %5417 = vmatmul.mubr.bf16.gmra.mrb[0].mxu0 %v878
  %v5418 = vpop.f32.mrb[0].mxu0
  %v5419 = vadd.f32 %v831, %v5418
  %v5420 = vpop.f32.mrb[0].mxu0
  %v5421 = vadd.f32 %v835, %v5420
  %v5422 = vpop.f32.mrb[0].mxu0
  %v5423 = vpop.f32.mrb[0].mxu0
  %5424 = vdwg.mxu0
  %5425 = vmatprep.subr.bf16.mxu0 %v3346
  %5426 = vmatpush1.bf16.msra.mxu0 %v3345
  %5427 = vmatprep.subr.bf16.mxu0 %v3350
  %5428 = vmatpush1.bf16.msra.mxu0 %v3349
  %5429 = vmatprep.subr.bf16.mxu0 %v3354
  %5430 = vmatpush1.bf16.msra.mxu0 %v3353
  %5431 = vmatprep.subr.bf16.mxu0 %v3358
  %5432 = vmatpush1.bf16.msra.mxu0 %v3357
  %5433 = vmatprep.subr.bf16.mxu0 %v3362
  %5434 = vmatpush1.bf16.msra.mxu0 %v3361
  %5435 = vmatprep.subr.bf16.mxu0 %v3366
  %5436 = vmatpush1.bf16.msra.mxu0 %v3365
  %5437 = vmatprep.subr.bf16.mxu0 %v3370
  %5438 = vmatpush1.bf16.msra.mxu0 %v3369
  %5439 = vmatprep.subr.bf16.mxu0 %v3374
  %5440 = vmatpush1.bf16.msra.mxu0 %v3373
  %5441 = vmatprep.subr.bf16.mxu0 %v3378
  %5442 = vmatpush1.bf16.msra.mxu0 %v3377
  %5443 = vmatprep.subr.bf16.mxu0 %v3382
  %5444 = vmatpush1.bf16.msra.mxu0 %v3381
  %5445 = vmatprep.subr.bf16.mxu0 %v3386
  %5446 = vmatpush1.bf16.msra.mxu0 %v3385
  %5447 = vmatprep.subr.bf16.mxu0 %v3390
  %5448 = vmatpush1.bf16.msra.mxu0 %v3389
  %5449 = vmatprep.subr.bf16.mxu0 %v3394
  %5450 = vmatpush1.bf16.msra.mxu0 %v3393
  %5451 = vmatprep.subr.bf16.mxu0 %v3398
  %5452 = vmatpush1.bf16.msra.mxu0 %v3397
  %5453 = vmatprep.subr.bf16.mxu0 %v3402
  %5454 = vmatpush1.bf16.msra.mxu0 %v3401
  %5455 = vmatprep.subr.bf16.mxu0 %v3406
  %5456 = vmatpush1.bf16.msra.mxu0 %v3405
  %5457 = vmatprep.mubr.bf16.mxu0 %v881
  %5458 = vmatmul.mubr.bf16.gmra.mrb[0].mxu0 %v880
  %v5459 = vpop.f32.mrb[0].mxu0
  %v5460 = vadd.f32 %v5419, %v5459
  %v5461 = vpop.f32.mrb[0].mxu0
  %v5462 = vadd.f32 %v5421, %v5461
  %v5463 = vpop.f32.mrb[0].mxu0
  %v5464 = vpop.f32.mrb[0].mxu0
  %5465 = vdwg.mxu0
  %5466 = vmatprep.subr.bf16.mxu0 %v3410
  %5467 = vmatpush1.bf16.msra.mxu0 %v3409
  %5468 = vmatprep.subr.bf16.mxu0 %v3414
  %5469 = vmatpush1.bf16.msra.mxu0 %v3413
  %5470 = vmatprep.subr.bf16.mxu0 %v3418
  %5471 = vmatpush1.bf16.msra.mxu0 %v3417
  %5472 = vmatprep.subr.bf16.mxu0 %v3422
  %5473 = vmatpush1.bf16.msra.mxu0 %v3421
  %5474 = vmatprep.subr.bf16.mxu0 %v3426
  %5475 = vmatpush1.bf16.msra.mxu0 %v3425
  %5476 = vmatprep.subr.bf16.mxu0 %v3430
  %5477 = vmatpush1.bf16.msra.mxu0 %v3429
  %5478 = vmatprep.subr.bf16.mxu0 %v3434
  %5479 = vmatpush1.bf16.msra.mxu0 %v3433
  %5480 = vmatprep.subr.bf16.mxu0 %v3438
  %5481 = vmatpush1.bf16.msra.mxu0 %v3437
  %5482 = vmatprep.subr.bf16.mxu0 %v3442
  %5483 = vmatpush1.bf16.msra.mxu0 %v3441
  %5484 = vmatprep.subr.bf16.mxu0 %v3446
  %5485 = vmatpush1.bf16.msra.mxu0 %v3445
  %5486 = vmatprep.subr.bf16.mxu0 %v3450
  %5487 = vmatpush1.bf16.msra.mxu0 %v3449
  %5488 = vmatprep.subr.bf16.mxu0 %v3454
  %5489 = vmatpush1.bf16.msra.mxu0 %v3453
  %5490 = vmatprep.subr.bf16.mxu0 %v3458
  %5491 = vmatpush1.bf16.msra.mxu0 %v3457
  %5492 = vmatprep.subr.bf16.mxu0 %v3462
  %5493 = vmatpush1.bf16.msra.mxu0 %v3461
  %5494 = vmatprep.subr.bf16.mxu0 %v3466
  %5495 = vmatpush1.bf16.msra.mxu0 %v3465
  %5496 = vmatprep.subr.bf16.mxu0 %v3470
  %5497 = vmatpush1.bf16.msra.mxu0 %v3469
  %5498 = vmatprep.mubr.bf16.mxu0 %v883
  %5499 = vmatmul.mubr.bf16.gmra.mrb[0].mxu0 %v882
  %v5500 = vpop.f32.mrb[0].mxu0
  %v5501 = vadd.f32 %v5460, %v5500
  %v5502 = vpop.f32.mrb[0].mxu0
  %v5503 = vadd.f32 %v5462, %v5502
  %v5504 = vpop.f32.mrb[0].mxu0
  %v5505 = vpop.f32.mrb[0].mxu0
  %5506 = vdwg.mxu0
  %5507 = vmatprep.subr.bf16.mxu0 %v3474
  %5508 = vmatpush1.bf16.msra.mxu0 %v3473
  %5509 = vmatprep.subr.bf16.mxu0 %v3478
  %5510 = vmatpush1.bf16.msra.mxu0 %v3477
  %5511 = vmatprep.subr.bf16.mxu0 %v3482
  %5512 = vmatpush1.bf16.msra.mxu0 %v3481
  %5513 = vmatprep.subr.bf16.mxu0 %v3486
  %5514 = vmatpush1.bf16.msra.mxu0 %v3485
  %5515 = vmatprep.subr.bf16.mxu0 %v3490
  %5516 = vmatpush1.bf16.msra.mxu0 %v3489
  %5517 = vmatprep.subr.bf16.mxu0 %v3494
  %5518 = vmatpush1.bf16.msra.mxu0 %v3493
  %5519 = vmatprep.subr.bf16.mxu0 %v3498
  %5520 = vmatpush1.bf16.msra.mxu0 %v3497
  %5521 = vmatprep.subr.bf16.mxu0 %v3502
  %5522 = vmatpush1.bf16.msra.mxu0 %v3501
  %5523 = vmatprep.subr.bf16.mxu0 %v3506
  %5524 = vmatpush1.bf16.msra.mxu0 %v3505
  %5525 = vmatprep.subr.bf16.mxu0 %v3510
  %5526 = vmatpush1.bf16.msra.mxu0 %v3509
  %5527 = vmatprep.subr.bf16.mxu0 %v3514
  %5528 = vmatpush1.bf16.msra.mxu0 %v3513
  %5529 = vmatprep.subr.bf16.mxu0 %v3518
  %5530 = vmatpush1.bf16.msra.mxu0 %v3517
  %5531 = vmatprep.subr.bf16.mxu0 %v3522
  %5532 = vmatpush1.bf16.msra.mxu0 %v3521
  %5533 = vmatprep.subr.bf16.mxu0 %v3526
  %5534 = vmatpush1.bf16.msra.mxu0 %v3525
  %5535 = vmatprep.subr.bf16.mxu0 %v3530
  %5536 = vmatpush1.bf16.msra.mxu0 %v3529
  %5537 = vmatprep.subr.bf16.mxu0 %v3534
  %5538 = vmatpush1.bf16.msra.mxu0 %v3533
  %5539 = vmatprep.mubr.bf16.mxu0 %v885
  %5540 = vmatmul.mubr.bf16.gmra.mrb[0].mxu0 %v884
  %v5541 = vpop.f32.mrb[0].mxu0
  %v5542 = vadd.f32 %v5501, %v5541
  %v5543 = vpop.f32.mrb[0].mxu0
  %v5544 = vadd.f32 %v5503, %v5543
  %v5545 = vpop.f32.mrb[0].mxu0
  %v5546 = vpop.f32.mrb[0].mxu0
  %5547 = vdwg.mxu0
  %5548 = vmatprep.subr.bf16.mxu0 %v3538
  %5549 = vmatpush1.bf16.msra.mxu0 %v3537
  %5550 = vmatprep.subr.bf16.mxu0 %v3542
  %5551 = vmatpush1.bf16.msra.mxu0 %v3541
  %5552 = vmatprep.subr.bf16.mxu0 %v3546
  %5553 = vmatpush1.bf16.msra.mxu0 %v3545
  %5554 = vmatprep.subr.bf16.mxu0 %v3550
  %5555 = vmatpush1.bf16.msra.mxu0 %v3549
  %5556 = vmatprep.subr.bf16.mxu0 %v3554
  %5557 = vmatpush1.bf16.msra.mxu0 %v3553
  %5558 = vmatprep.subr.bf16.mxu0 %v3558
  %5559 = vmatpush1.bf16.msra.mxu0 %v3557
  %5560 = vmatprep.subr.bf16.mxu0 %v3562
  %5561 = vmatpush1.bf16.msra.mxu0 %v3561
  %5562 = vmatprep.subr.bf16.mxu0 %v3566
  %5563 = vmatpush1.bf16.msra.mxu0 %v3565
  %5564 = vmatprep.subr.bf16.mxu0 %v3570
  %5565 = vmatpush1.bf16.msra.mxu0 %v3569
  %5566 = vmatprep.subr.bf16.mxu0 %v3574
  %5567 = vmatpush1.bf16.msra.mxu0 %v3573
  %5568 = vmatprep.subr.bf16.mxu0 %v3578
  %5569 = vmatpush1.bf16.msra.mxu0 %v3577
  %5570 = vmatprep.subr.bf16.mxu0 %v3582
  %5571 = vmatpush1.bf16.msra.mxu0 %v3581
  %5572 = vmatprep.subr.bf16.mxu0 %v3586
  %5573 = vmatpush1.bf16.msra.mxu0 %v3585
  %5574 = vmatprep.subr.bf16.mxu0 %v3590
  %5575 = vmatpush1.bf16.msra.mxu0 %v3589
  %5576 = vmatprep.subr.bf16.mxu0 %v3594
  %5577 = vmatpush1.bf16.msra.mxu0 %v3593
  %5578 = vmatprep.subr.bf16.mxu0 %v3598
  %5579 = vmatpush1.bf16.msra.mxu0 %v3597
  %5580 = vmatprep.mubr.bf16.mxu0 %v887
  %5581 = vmatmul.mubr.bf16.gmra.mrb[0].mxu0 %v886
  %v5582 = vpop.f32.mrb[0].mxu0
  %v5583 = vadd.f32 %v5542, %v5582
  %v5584 = vpop.f32.mrb[0].mxu0
  %v5585 = vadd.f32 %v5544, %v5584
  %v5586 = vpop.f32.mrb[0].mxu0
  %v5587 = vpop.f32.mrb[0].mxu0
  %5588 = vdwg.mxu0
  %5589 = vmatprep.subr.bf16.mxu0 %v3602
  %5590 = vmatpush1.bf16.msra.mxu0 %v3601
  %5591 = vmatprep.subr.bf16.mxu0 %v3606
  %5592 = vmatpush1.bf16.msra.mxu0 %v3605
  %5593 = vmatprep.subr.bf16.mxu0 %v3610
  %5594 = vmatpush1.bf16.msra.mxu0 %v3609
  %5595 = vmatprep.subr.bf16.mxu0 %v3614
  %5596 = vmatpush1.bf16.msra.mxu0 %v3613
  %5597 = vmatprep.subr.bf16.mxu0 %v3618
  %5598 = vmatpush1.bf16.msra.mxu0 %v3617
  %5599 = vmatprep.subr.bf16.mxu0 %v3622
  %5600 = vmatpush1.bf16.msra.mxu0 %v3621
  %5601 = vmatprep.subr.bf16.mxu0 %v3626
  %5602 = vmatpush1.bf16.msra.mxu0 %v3625
  %5603 = vmatprep.subr.bf16.mxu0 %v3630
  %5604 = vmatpush1.bf16.msra.mxu0 %v3629
  %5605 = vmatprep.subr.bf16.mxu0 %v3634
  %5606 = vmatpush1.bf16.msra.mxu0 %v3633
  %5607 = vmatprep.subr.bf16.mxu0 %v3638
  %5608 = vmatpush1.bf16.msra.mxu0 %v3637
  %5609 = vmatprep.subr.bf16.mxu0 %v3642
  %5610 = vmatpush1.bf16.msra.mxu0 %v3641
  %5611 = vmatprep.subr.bf16.mxu0 %v3646
  %5612 = vmatpush1.bf16.msra.mxu0 %v3645
  %5613 = vmatprep.subr.bf16.mxu0 %v3650
  %5614 = vmatpush1.bf16.msra.mxu0 %v3649
  %5615 = vmatprep.subr.bf16.mxu0 %v3654
  %5616 = vmatpush1.bf16.msra.mxu0 %v3653
  %5617 = vmatprep.subr.bf16.mxu0 %v3658
  %5618 = vmatpush1.bf16.msra.mxu0 %v3657
  %5619 = vmatprep.subr.bf16.mxu0 %v3662
  %5620 = vmatpush1.bf16.msra.mxu0 %v3661
  %5621 = vmatprep.mubr.bf16.mxu0 %v889
  %5622 = vmatmul.mubr.bf16.gmra.mrb[0].mxu0 %v888
  %v5623 = vpop.f32.mrb[0].mxu0
  %v5624 = vadd.f32 %v5583, %v5623
  %v5625 = vpop.f32.mrb[0].mxu0
  %v5626 = vadd.f32 %v5585, %v5625
  %v5627 = vpop.f32.mrb[0].mxu0
  %v5628 = vpop.f32.mrb[0].mxu0
  %5629 = vdwg.mxu0
  %5630 = vmatprep.subr.bf16.mxu0 %v3666
  %5631 = vmatpush1.bf16.msra.mxu0 %v3665
  %5632 = vmatprep.subr.bf16.mxu0 %v3670
  %5633 = vmatpush1.bf16.msra.mxu0 %v3669
  %5634 = vmatprep.subr.bf16.mxu0 %v3674
  %5635 = vmatpush1.bf16.msra.mxu0 %v3673
  %5636 = vmatprep.subr.bf16.mxu0 %v3678
  %5637 = vmatpush1.bf16.msra.mxu0 %v3677
  %5638 = vmatprep.subr.bf16.mxu0 %v3682
  %5639 = vmatpush1.bf16.msra.mxu0 %v3681
  %5640 = vmatprep.subr.bf16.mxu0 %v3686
  %5641 = vmatpush1.bf16.msra.mxu0 %v3685
  %5642 = vmatprep.subr.bf16.mxu0 %v3690
  %5643 = vmatpush1.bf16.msra.mxu0 %v3689
  %5644 = vmatprep.subr.bf16.mxu0 %v3694
  %5645 = vmatpush1.bf16.msra.mxu0 %v3693
  %5646 = vmatprep.subr.bf16.mxu0 %v3698
  %5647 = vmatpush1.bf16.msra.mxu0 %v3697
  %5648 = vmatprep.subr.bf16.mxu0 %v3702
  %5649 = vmatpush1.bf16.msra.mxu0 %v3701
  %5650 = vmatprep.subr.bf16.mxu0 %v3706
  %5651 = vmatpush1.bf16.msra.mxu0 %v3705
  %5652 = vmatprep.subr.bf16.mxu0 %v3710
  %5653 = vmatpush1.bf16.msra.mxu0 %v3709
  %5654 = vmatprep.subr.bf16.mxu0 %v3714
  %5655 = vmatpush1.bf16.msra.mxu0 %v3713
  %5656 = vmatprep.subr.bf16.mxu0 %v3718
  %5657 = vmatpush1.bf16.msra.mxu0 %v3717
  %5658 = vmatprep.subr.bf16.mxu0 %v3722
  %5659 = vmatpush1.bf16.msra.mxu0 %v3721
  %5660 = vmatprep.subr.bf16.mxu0 %v3726
  %5661 = vmatpush1.bf16.msra.mxu0 %v3725
  %5662 = vmatprep.mubr.bf16.mxu0 %v891
  %5663 = vmatmul.mubr.bf16.gmra.mrb[0].mxu0 %v890
  %v5664 = vpop.f32.mrb[0].mxu0
  %v5665 = vadd.f32 %v5624, %v5664
  %v5666 = vpop.f32.mrb[0].mxu0
  %v5667 = vadd.f32 %v5626, %v5666
  %v5668 = vpop.f32.mrb[0].mxu0
  %v5669 = vpop.f32.mrb[0].mxu0
  %5670 = vdwg.mxu0
  %5671 = vmatprep.subr.bf16.mxu0 %v3730
  %5672 = vmatpush1.bf16.msra.mxu0 %v3729
  %5673 = vmatprep.subr.bf16.mxu0 %v3734
  %5674 = vmatpush1.bf16.msra.mxu0 %v3733
  %5675 = vmatprep.subr.bf16.mxu0 %v3738
  %5676 = vmatpush1.bf16.msra.mxu0 %v3737
  %5677 = vmatprep.subr.bf16.mxu0 %v3742
  %5678 = vmatpush1.bf16.msra.mxu0 %v3741
  %5679 = vmatprep.subr.bf16.mxu0 %v3746
  %5680 = vmatpush1.bf16.msra.mxu0 %v3745
  %5681 = vmatprep.subr.bf16.mxu0 %v3750
  %5682 = vmatpush1.bf16.msra.mxu0 %v3749
  %5683 = vmatprep.subr.bf16.mxu0 %v3754
  %5684 = vmatpush1.bf16.msra.mxu0 %v3753
  %5685 = vmatprep.subr.bf16.mxu0 %v3758
  %5686 = vmatpush1.bf16.msra.mxu0 %v3757
  %5687 = vmatprep.subr.bf16.mxu0 %v3762
  %5688 = vmatpush1.bf16.msra.mxu0 %v3761
  %5689 = vmatprep.subr.bf16.mxu0 %v3766
  %5690 = vmatpush1.bf16.msra.mxu0 %v3765
  %5691 = vmatprep.subr.bf16.mxu0 %v3770
  %5692 = vmatpush1.bf16.msra.mxu0 %v3769
  %5693 = vmatprep.subr.bf16.mxu0 %v3774
  %5694 = vmatpush1.bf16.msra.mxu0 %v3773
  %5695 = vmatprep.subr.bf16.mxu0 %v3778
  %5696 = vmatpush1.bf16.msra.mxu0 %v3777
  %5697 = vmatprep.subr.bf16.mxu0 %v3782
  %5698 = vmatpush1.bf16.msra.mxu0 %v3781
  %5699 = vmatprep.subr.bf16.mxu0 %v3786
  %5700 = vmatpush1.bf16.msra.mxu0 %v3785
  %5701 = vmatprep.subr.bf16.mxu0 %v3790
  %5702 = vmatpush1.bf16.msra.mxu0 %v3789
  %5703 = vmatprep.mubr.bf16.mxu0 %v893
  %5704 = vmatmul.mubr.bf16.gmra.mrb[0].mxu0 %v892
  %v5705 = vpop.f32.mrb[0].mxu0
  %v5706 = vadd.f32 %v5665, %v5705
  %v5707 = vpop.f32.mrb[0].mxu0
  %v5708 = vadd.f32 %v5667, %v5707
  %v5709 = vpop.f32.mrb[0].mxu0
  %v5710 = vpop.f32.mrb[0].mxu0
  %5711 = vdwg.mxu0
  %5712 = vmatprep.subr.bf16.mxu0 %v3794
  %5713 = vmatpush1.bf16.msra.mxu0 %v3793
  %5714 = vmatprep.subr.bf16.mxu0 %v3798
  %5715 = vmatpush1.bf16.msra.mxu0 %v3797
  %5716 = vmatprep.subr.bf16.mxu0 %v3802
  %5717 = vmatpush1.bf16.msra.mxu0 %v3801
  %5718 = vmatprep.subr.bf16.mxu0 %v3806
  %5719 = vmatpush1.bf16.msra.mxu0 %v3805
  %5720 = vmatprep.subr.bf16.mxu0 %v3810
  %5721 = vmatpush1.bf16.msra.mxu0 %v3809
  %5722 = vmatprep.subr.bf16.mxu0 %v3814
  %5723 = vmatpush1.bf16.msra.mxu0 %v3813
  %5724 = vmatprep.subr.bf16.mxu0 %v3818
  %5725 = vmatpush1.bf16.msra.mxu0 %v3817
  %5726 = vmatprep.subr.bf16.mxu0 %v3822
  %5727 = vmatpush1.bf16.msra.mxu0 %v3821
  %5728 = vmatprep.subr.bf16.mxu0 %v3826
  %5729 = vmatpush1.bf16.msra.mxu0 %v3825
  %5730 = vmatprep.subr.bf16.mxu0 %v3830
  %5731 = vmatpush1.bf16.msra.mxu0 %v3829
  %5732 = vmatprep.subr.bf16.mxu0 %v3834
  %5733 = vmatpush1.bf16.msra.mxu0 %v3833
  %5734 = vmatprep.subr.bf16.mxu0 %v3838
  %5735 = vmatpush1.bf16.msra.mxu0 %v3837
  %5736 = vmatprep.subr.bf16.mxu0 %v3842
  %5737 = vmatpush1.bf16.msra.mxu0 %v3841
  %5738 = vmatprep.subr.bf16.mxu0 %v3846
  %5739 = vmatpush1.bf16.msra.mxu0 %v3845
  %5740 = vmatprep.subr.bf16.mxu0 %v3850
  %5741 = vmatpush1.bf16.msra.mxu0 %v3849
  %5742 = vmatprep.subr.bf16.mxu0 %v3854
  %5743 = vmatpush1.bf16.msra.mxu0 %v3853
  %5744 = vmatprep.mubr.bf16.mxu0 %v895
  %5745 = vmatmul.mubr.bf16.gmra.mrb[0].mxu0 %v894
  %v5746 = vpop.f32.mrb[0].mxu0
  %v5747 = vadd.f32 %v5706, %v5746
  %v5748 = vpop.f32.mrb[0].mxu0
  %v5749 = vadd.f32 %v5708, %v5748
  %v5750 = vpop.f32.mrb[0].mxu0
  %v5751 = vpop.f32.mrb[0].mxu0
  %5752 = vdwg.mxu0
  %5753 = vmatprep.subr.bf16.mxu0 %v3858
  %5754 = vmatpush1.bf16.msra.mxu0 %v3857
  %5755 = vmatprep.subr.bf16.mxu0 %v3862
  %5756 = vmatpush1.bf16.msra.mxu0 %v3861
  %5757 = vmatprep.subr.bf16.mxu0 %v3866
  %5758 = vmatpush1.bf16.msra.mxu0 %v3865
  %5759 = vmatprep.subr.bf16.mxu0 %v3870
  %5760 = vmatpush1.bf16.msra.mxu0 %v3869
  %5761 = vmatprep.subr.bf16.mxu0 %v3874
  %5762 = vmatpush1.bf16.msra.mxu0 %v3873
  %5763 = vmatprep.subr.bf16.mxu0 %v3878
  %5764 = vmatpush1.bf16.msra.mxu0 %v3877
  %5765 = vmatprep.subr.bf16.mxu0 %v3882
  %5766 = vmatpush1.bf16.msra.mxu0 %v3881
  %5767 = vmatprep.subr.bf16.mxu0 %v3886
  %5768 = vmatpush1.bf16.msra.mxu0 %v3885
  %5769 = vmatprep.subr.bf16.mxu0 %v3890
  %5770 = vmatpush1.bf16.msra.mxu0 %v3889
  %5771 = vmatprep.subr.bf16.mxu0 %v3894
  %5772 = vmatpush1.bf16.msra.mxu0 %v3893
  %5773 = vmatprep.subr.bf16.mxu0 %v3898
  %5774 = vmatpush1.bf16.msra.mxu0 %v3897
  %5775 = vmatprep.subr.bf16.mxu0 %v3902
  %5776 = vmatpush1.bf16.msra.mxu0 %v3901
  %5777 = vmatprep.subr.bf16.mxu0 %v3906
  %5778 = vmatpush1.bf16.msra.mxu0 %v3905
  %5779 = vmatprep.subr.bf16.mxu0 %v3910
  %5780 = vmatpush1.bf16.msra.mxu0 %v3909
  %5781 = vmatprep.subr.bf16.mxu0 %v3914
  %5782 = vmatpush1.bf16.msra.mxu0 %v3913
  %5783 = vmatprep.subr.bf16.mxu0 %v3918
  %5784 = vmatpush1.bf16.msra.mxu0 %v3917
  %5785 = vmatprep.mubr.bf16.mxu0 %v897
  %5786 = vmatmul.mubr.bf16.gmra.mrb[0].mxu0 %v896
  %v5787 = vpop.f32.mrb[0].mxu0
  %v5788 = vadd.f32 %v5747, %v5787
  %v5789 = vpop.f32.mrb[0].mxu0
  %v5790 = vadd.f32 %v5749, %v5789
  %v5791 = vpop.f32.mrb[0].mxu0
  %v5792 = vpop.f32.mrb[0].mxu0
  %5793 = vdwg.mxu0
  %5794 = vmatprep.subr.bf16.mxu0 %v3922
  %5795 = vmatpush1.bf16.msra.mxu0 %v3921
  %5796 = vmatprep.subr.bf16.mxu0 %v3926
  %5797 = vmatpush1.bf16.msra.mxu0 %v3925
  %5798 = vmatprep.subr.bf16.mxu0 %v3930
  %5799 = vmatpush1.bf16.msra.mxu0 %v3929
  %5800 = vmatprep.subr.bf16.mxu0 %v3934
  %5801 = vmatpush1.bf16.msra.mxu0 %v3933
  %5802 = vmatprep.subr.bf16.mxu0 %v3938
  %5803 = vmatpush1.bf16.msra.mxu0 %v3937
  %5804 = vmatprep.subr.bf16.mxu0 %v3942
  %5805 = vmatpush1.bf16.msra.mxu0 %v3941
  %5806 = vmatprep.subr.bf16.mxu0 %v3946
  %5807 = vmatpush1.bf16.msra.mxu0 %v3945
  %5808 = vmatprep.subr.bf16.mxu0 %v3950
  %5809 = vmatpush1.bf16.msra.mxu0 %v3949
  %5810 = vmatprep.subr.bf16.mxu0 %v3954
  %5811 = vmatpush1.bf16.msra.mxu0 %v3953
  %5812 = vmatprep.subr.bf16.mxu0 %v3958
  %5813 = vmatpush1.bf16.msra.mxu0 %v3957
  %5814 = vmatprep.subr.bf16.mxu0 %v3962
  %5815 = vmatpush1.bf16.msra.mxu0 %v3961
  %5816 = vmatprep.subr.bf16.mxu0 %v3966
  %5817 = vmatpush1.bf16.msra.mxu0 %v3965
  %5818 = vmatprep.subr.bf16.mxu0 %v3970
  %5819 = vmatpush1.bf16.msra.mxu0 %v3969
  %5820 = vmatprep.subr.bf16.mxu0 %v3974
  %5821 = vmatpush1.bf16.msra.mxu0 %v3973
  %5822 = vmatprep.subr.bf16.mxu0 %v3978
  %5823 = vmatpush1.bf16.msra.mxu0 %v3977
  %5824 = vmatprep.subr.bf16.mxu0 %v3982
  %5825 = vmatpush1.bf16.msra.mxu0 %v3981
  %5826 = vmatprep.mubr.bf16.mxu0 %v899
  %5827 = vmatmul.mubr.bf16.gmra.mrb[0].mxu0 %v898
  %v5828 = vpop.f32.mrb[0].mxu0
  %v5829 = vadd.f32 %v5788, %v5828
  %v5830 = vpop.f32.mrb[0].mxu0
  %v5831 = vadd.f32 %v5790, %v5830
  %v5832 = vpop.f32.mrb[0].mxu0
  %v5833 = vpop.f32.mrb[0].mxu0
  %5834 = vdwg.mxu0
  %5835 = vmatprep.subr.bf16.mxu0 %v3986
  %5836 = vmatpush1.bf16.msra.mxu0 %v3985
  %5837 = vmatprep.subr.bf16.mxu0 %v3990
  %5838 = vmatpush1.bf16.msra.mxu0 %v3989
  %5839 = vmatprep.subr.bf16.mxu0 %v3994
  %5840 = vmatpush1.bf16.msra.mxu0 %v3993
  %5841 = vmatprep.subr.bf16.mxu0 %v3998
  %5842 = vmatpush1.bf16.msra.mxu0 %v3997
  %5843 = vmatprep.subr.bf16.mxu0 %v4002
  %5844 = vmatpush1.bf16.msra.mxu0 %v4001
  %5845 = vmatprep.subr.bf16.mxu0 %v4006
  %5846 = vmatpush1.bf16.msra.mxu0 %v4005
  %5847 = vmatprep.subr.bf16.mxu0 %v4010
  %5848 = vmatpush1.bf16.msra.mxu0 %v4009
  %5849 = vmatprep.subr.bf16.mxu0 %v4014
  %5850 = vmatpush1.bf16.msra.mxu0 %v4013
  %5851 = vmatprep.subr.bf16.mxu0 %v4018
  %5852 = vmatpush1.bf16.msra.mxu0 %v4017
  %5853 = vmatprep.subr.bf16.mxu0 %v4022
  %5854 = vmatpush1.bf16.msra.mxu0 %v4021
  %5855 = vmatprep.subr.bf16.mxu0 %v4026
  %5856 = vmatpush1.bf16.msra.mxu0 %v4025
  %5857 = vmatprep.subr.bf16.mxu0 %v4030
  %5858 = vmatpush1.bf16.msra.mxu0 %v4029
  %5859 = vmatprep.subr.bf16.mxu0 %v4034
  %5860 = vmatpush1.bf16.msra.mxu0 %v4033
  %5861 = vmatprep.subr.bf16.mxu0 %v4038
  %5862 = vmatpush1.bf16.msra.mxu0 %v4037
  %5863 = vmatprep.subr.bf16.mxu0 %v4042
  %5864 = vmatpush1.bf16.msra.mxu0 %v4041
  %5865 = vmatprep.subr.bf16.mxu0 %v4046
  %5866 = vmatpush1.bf16.msra.mxu0 %v4045
  %5867 = vmatprep.mubr.bf16.mxu0 %v901
  %5868 = vmatmul.mubr.bf16.gmra.mrb[0].mxu0 %v900
  %v5869 = vpop.f32.mrb[0].mxu0
  %v5870 = vadd.f32 %v5829, %v5869
  %v5871 = vpop.f32.mrb[0].mxu0
  %v5872 = vadd.f32 %v5831, %v5871
  %v5873 = vpop.f32.mrb[0].mxu0
  %v5874 = vpop.f32.mrb[0].mxu0
  %5875 = vdwg.mxu0
  %5876 = vmatprep.subr.bf16.mxu0 %v4050
  %5877 = vmatpush1.bf16.msra.mxu0 %v4049
  %5878 = vmatprep.subr.bf16.mxu0 %v4054
  %5879 = vmatpush1.bf16.msra.mxu0 %v4053
  %5880 = vmatprep.subr.bf16.mxu0 %v4058
  %5881 = vmatpush1.bf16.msra.mxu0 %v4057
  %5882 = vmatprep.subr.bf16.mxu0 %v4062
  %5883 = vmatpush1.bf16.msra.mxu0 %v4061
  %5884 = vmatprep.subr.bf16.mxu0 0
  %5885 = vmatpush1.bf16.msra.mxu0 0
  %5886 = vmatprep.subr.bf16.mxu0 0
  %5887 = vmatpush1.bf16.msra.mxu0 0
  %5888 = vmatprep.subr.bf16.mxu0 0
  %5889 = vmatpush1.bf16.msra.mxu0 0
  %5890 = vmatprep.subr.bf16.mxu0 0
  %5891 = vmatpush1.bf16.msra.mxu0 0
  %5892 = vmatprep.subr.bf16.mxu0 0
  %5893 = vmatpush1.bf16.msra.mxu0 0
  %5894 = vmatprep.subr.bf16.mxu0 0
  %5895 = vmatpush1.bf16.msra.mxu0 0
  %5896 = vmatprep.subr.bf16.mxu0 0
  %5897 = vmatpush1.bf16.msra.mxu0 0
  %5898 = vmatprep.subr.bf16.mxu0 0
  %5899 = vmatpush1.bf16.msra.mxu0 0
  %5900 = vmatprep.subr.bf16.mxu0 0
  %5901 = vmatpush1.bf16.msra.mxu0 0
  %5902 = vmatprep.subr.bf16.mxu0 0
  %5903 = vmatpush1.bf16.msra.mxu0 0
  %5904 = vmatprep.subr.bf16.mxu0 0
  %5905 = vmatpush1.bf16.msra.mxu0 0
  %5906 = vmatprep.subr.bf16.mxu0 0
  %5907 = vmatpush1.bf16.msra.mxu0 0
  %5908 = vmatprep.mubr.bf16.mxu0 0
  %5909 = vmatmul.mubr.bf16.gmra.mrb[0].mxu0 %v4849
  %v5910 = vpop.f32.mrb[0].mxu0
  %v5911 = vadd.f32 %v5870, %v5910
  %v5912 = vpop.f32.mrb[0].mxu0
  %v5913 = vadd.f32 %v5872, %v5912
  %v5914 = vpop.f32.mrb[0].mxu0
  %v5915 = vpop.f32.mrb[0].mxu0
  %5916 = vdwg.mxu0
  %v5917 = vmax.f32 %v5378, 0.0
  %v5918 = vmax.f32 %v5380, 0.0
  %v5919 = vmax.f32 %v5911, 0.0
  %v5920 = vmax.f32 %v5913, 0.0
  %v5921 = vpack.c.bf16 %v5917, %v5917
  %v5922 = vpack.c.bf16 %v5918, %v5918
  %v5923 = vpack.c.bf16 %v5919, %v5919
  %v5924 = vpack.c.bf16 %v5920, %v5920
  %v5925 = vld [vmem:[%s3] sm:$0xf]
  %v5926 = vld [vmem:[%s3 + $0x4] sm:$0xf]
  %v5927 = vld [vmem:[%s3 + $0x8] sm:$0xf]
  %v5928 = vld [vmem:[%s3 + $0xc] sm:$0xf]
  %v5929 = vld [vmem:[%s3 + $0x10] sm:$0xf]
  %v5930 = vld [vmem:[%s3 + $0x14] sm:$0xf]
  %v5931 = vld [vmem:[%s3 + $0x18] sm:$0xf]
  %v5932 = vld [vmem:[%s3 + $0x1c] sm:$0xf]
  %v5933 = vld [vmem:[%s3 + $0x20] sm:$0xf]
  %v5934 = vld [vmem:[%s3 + $0x24] sm:$0xf]
  %v5935 = vld [vmem:[%s3 + $0x28] sm:$0xf]
  %v5936 = vld [vmem:[%s3 + $0x2c] sm:$0xf]
  %v5937 = vld [vmem:[%s3 + $0x30] sm:$0xf]
  %v5938 = vld [vmem:[%s3 + $0x34] sm:$0xf]
  %v5939 = vld [vmem:[%s3 + $0x38] sm:$0xf]
  %v5940 = vld [vmem:[%s3 + $0x3c] sm:$0xf]
  %v5941 = vld [vmem:[%s3 + $0x40] sm:$0xf]
  %v5942 = vld [vmem:[%s3 + $0x44] sm:$0xf]
  %v5943 = vld [vmem:[%s3 + $0x48] sm:$0xf]
  %v5944 = vld [vmem:[%s3 + $0x4c] sm:$0xf]
  %v5945 = vld [vmem:[%s3 + $0x50] sm:$0xf]
  %v5946 = vld [vmem:[%s3 + $0x54] sm:$0xf]
  %v5947 = vld [vmem:[%s3 + $0x58] sm:$0xf]
  %v5948 = vld [vmem:[%s3 + $0x5c] sm:$0xf]
  %v5949 = vld [vmem:[%s3 + $0x60] sm:$0xf]
  %v5950 = vld [vmem:[%s3 + $0x64] sm:$0xf]
  %v5951 = vld [vmem:[%s3 + $0x68] sm:$0xf]
  %v5952 = vld [vmem:[%s3 + $0x6c] sm:$0xf]
  %v5953 = vld [vmem:[%s3 + $0x70] sm:$0xf]
  %v5954 = vld [vmem:[%s3 + $0x74] sm:$0xf]
  %v5955 = vld [vmem:[%s3 + $0x78] sm:$0xf]
  %v5956 = vld [vmem:[%s3 + $0x7c] sm:$0xf]
  %v5957 = vld [vmem:[%s3 + $0x80] sm:$0xf]
  %v5958 = vld [vmem:[%s3 + $0x84] sm:$0xf]
  %v5959 = vld [vmem:[%s3 + $0x88] sm:$0xf]
  %v5960 = vld [vmem:[%s3 + $0x8c] sm:$0xf]
  %v5961 = vld [vmem:[%s3 + $0x90] sm:$0xf]
  %v5962 = vld [vmem:[%s3 + $0x94] sm:$0xf]
  %v5963 = vld [vmem:[%s3 + $0x98] sm:$0xf]
  %v5964 = vld [vmem:[%s3 + $0x9c] sm:$0xf]
  %v5965 = vld [vmem:[%s3 + $0xa0] sm:$0xf]
  %v5966 = vld [vmem:[%s3 + $0xa4] sm:$0xf]
  %v5967 = vld [vmem:[%s3 + $0xa8] sm:$0xf]
  %v5968 = vld [vmem:[%s3 + $0xac] sm:$0xf]
  %v5969 = vld [vmem:[%s3 + $0xb0] sm:$0xf]
  %v5970 = vld [vmem:[%s3 + $0xb4] sm:$0xf]
  %v5971 = vld [vmem:[%s3 + $0xb8] sm:$0xf]
  %v5972 = vld [vmem:[%s3 + $0xbc] sm:$0xf]
  %v5973 = vld [vmem:[%s3 + $0xc0] sm:$0xf]
  %v5974 = vld [vmem:[%s3 + $0xc4] sm:$0xf]
  %v5975 = vld [vmem:[%s3 + $0xc8] sm:$0xf]
  %v5976 = vld [vmem:[%s3 + $0xcc] sm:$0xf]
  %v5977 = vld [vmem:[%s3 + $0xd0] sm:$0xf]
  %v5978 = vld [vmem:[%s3 + $0xd4] sm:$0xf]
  %v5979 = vld [vmem:[%s3 + $0xd8] sm:$0xf]
  %v5980 = vld [vmem:[%s3 + $0xdc] sm:$0xf]
  %v5981 = vld [vmem:[%s3 + $0xe0] sm:$0xf]
  %v5982 = vld [vmem:[%s3 + $0xe4] sm:$0xf]
  %v5983 = vld [vmem:[%s3 + $0xe8] sm:$0xf]
  %v5984 = vld [vmem:[%s3 + $0xec] sm:$0xf]
  %v5985 = vld [vmem:[%s3 + $0xf0] sm:$0xf]
  %v5986 = vld [vmem:[%s3 + $0xf4] sm:$0xf]
  %v5987 = vld [vmem:[%s3 + $0xf8] sm:$0xf]
  %v5988 = vld [vmem:[%s3 + $0xfc] sm:$0xf]
  %v5989 = vld [vmem:[%s4] sm:$0x1]
  %v5991 = vlaneseq
  %v5992 = vshrl.u32 %v5991, 7
  %v5993 = vsub.s32 0, %v5992
  %v5994 = vrot.slane %v5989, %v5993
  %v6060 = vunpack.c.l.b16 %v5925
  %v6061 = vunpack.c.l.b16 %v5926
  %v6062 = vunpack.c.l.b16 %v5927
  %v6063 = vunpack.c.l.b16 %v5928
  %v6064 = vunpack.c.l.b16 %v5929
  %v6065 = vunpack.c.l.b16 %v5930
  %v6066 = vunpack.c.l.b16 %v5931
  %v6067 = vunpack.c.l.b16 %v5932
  %v6068 = vunpack.c.l.b16 %v5933
  %v6069 = vunpack.c.l.b16 %v5934
  %v6070 = vunpack.c.l.b16 %v5935
  %v6071 = vunpack.c.l.b16 %v5936
  %v6072 = vunpack.c.l.b16 %v5937
  %v6073 = vunpack.c.l.b16 %v5938
  %v6074 = vunpack.c.l.b16 %v5939
  %v6075 = vunpack.c.l.b16 %v5940
  %v6076 = vunpack.c.l.b16 %v5941
  %v6077 = vunpack.c.l.b16 %v5942
  %v6078 = vunpack.c.l.b16 %v5943
  %v6079 = vunpack.c.l.b16 %v5944
  %v6080 = vunpack.c.l.b16 %v5945
  %v6081 = vunpack.c.l.b16 %v5946
  %v6082 = vunpack.c.l.b16 %v5947
  %v6083 = vunpack.c.l.b16 %v5948
  %v6084 = vunpack.c.l.b16 %v5949
  %v6085 = vunpack.c.l.b16 %v5950
  %v6086 = vunpack.c.l.b16 %v5951
  %v6087 = vunpack.c.l.b16 %v5952
  %v6088 = vunpack.c.l.b16 %v5953
  %v6089 = vunpack.c.l.b16 %v5954
  %v6090 = vunpack.c.l.b16 %v5955
  %v6091 = vunpack.c.l.b16 %v5956
  %v6092 = vunpack.c.l.b16 %v5957
  %v6093 = vunpack.c.l.b16 %v5958
  %v6094 = vunpack.c.l.b16 %v5959
  %v6095 = vunpack.c.l.b16 %v5960
  %v6096 = vunpack.c.l.b16 %v5961
  %v6097 = vunpack.c.l.b16 %v5962
  %v6098 = vunpack.c.l.b16 %v5963
  %v6099 = vunpack.c.l.b16 %v5964
  %v6100 = vunpack.c.l.b16 %v5965
  %v6101 = vunpack.c.l.b16 %v5966
  %v6102 = vunpack.c.l.b16 %v5967
  %v6103 = vunpack.c.l.b16 %v5968
  %v6104 = vunpack.c.l.b16 %v5969
  %v6105 = vunpack.c.l.b16 %v5970
  %v6106 = vunpack.c.l.b16 %v5971
  %v6107 = vunpack.c.l.b16 %v5972
  %v6108 = vunpack.c.l.b16 %v5973
  %v6109 = vunpack.c.l.b16 %v5974
  %v6110 = vunpack.c.l.b16 %v5975
  %v6111 = vunpack.c.l.b16 %v5976
  %v6112 = vunpack.c.l.b16 %v5977
  %v6113 = vunpack.c.l.b16 %v5978
  %v6114 = vunpack.c.l.b16 %v5979
  %v6115 = vunpack.c.l.b16 %v5980
  %v6116 = vunpack.c.l.b16 %v5981
  %v6117 = vunpack.c.l.b16 %v5982
  %v6118 = vunpack.c.l.b16 %v5983
  %v6119 = vunpack.c.l.b16 %v5984
  %v6120 = vunpack.c.l.b16 %v5985
  %v6121 = vunpack.c.l.b16 %v5986
  %v6122 = vunpack.c.l.b16 %v5987
  %v6123 = vunpack.c.l.b16 %v5988
  %v6124 = vpack.c.b16 %v6061, %v6060
  %v6125 = vpack.c.b16 %v6063, %v6062
  %v6126 = vpack.c.b16 %v6065, %v6064
  %v6127 = vpack.c.b16 %v6067, %v6066
  %v6128 = vpack.c.b16 %v6069, %v6068
  %v6129 = vpack.c.b16 %v6071, %v6070
  %v6130 = vpack.c.b16 %v6073, %v6072
  %v6131 = vpack.c.b16 %v6075, %v6074
  %v6132 = vpack.c.b16 %v6077, %v6076
  %v6133 = vpack.c.b16 %v6079, %v6078
  %v6134 = vpack.c.b16 %v6081, %v6080
  %v6135 = vpack.c.b16 %v6083, %v6082
  %v6136 = vpack.c.b16 %v6085, %v6084
  %v6137 = vpack.c.b16 %v6087, %v6086
  %v6138 = vpack.c.b16 %v6089, %v6088
  %v6139 = vpack.c.b16 %v6091, %v6090
  %v6140 = vpack.c.b16 %v6093, %v6092
  %v6141 = vpack.c.b16 %v6095, %v6094
  %v6142 = vpack.c.b16 %v6097, %v6096
  %v6143 = vpack.c.b16 %v6099, %v6098
  %v6144 = vpack.c.b16 %v6101, %v6100
  %v6145 = vpack.c.b16 %v6103, %v6102
  %v6146 = vpack.c.b16 %v6105, %v6104
  %v6147 = vpack.c.b16 %v6107, %v6106
  %v6148 = vpack.c.b16 %v6109, %v6108
  %v6149 = vpack.c.b16 %v6111, %v6110
  %v6150 = vpack.c.b16 %v6113, %v6112
  %v6151 = vpack.c.b16 %v6115, %v6114
  %v6152 = vpack.c.b16 %v6117, %v6116
  %v6153 = vpack.c.b16 %v6119, %v6118
  %v6154 = vpack.c.b16 %v6121, %v6120
  %v6155 = vpack.c.b16 %v6123, %v6122
  %6188 = vmatprep.subr.bf16.mxu0 0
  %6189 = vmatpush1.bf16.msra.mxu0 %v6124
  %6190 = vmatprep.subr.bf16.mxu0 0
  %6191 = vmatpush1.bf16.msra.mxu0 %v6125
  %6192 = vmatprep.subr.bf16.mxu0 0
  %6193 = vmatpush1.bf16.msra.mxu0 %v6126
  %6194 = vmatprep.subr.bf16.mxu0 0
  %6195 = vmatpush1.bf16.msra.mxu0 %v6127
  %6196 = vmatprep.subr.bf16.mxu0 0
  %6197 = vmatpush1.bf16.msra.mxu0 %v6128
  %6198 = vmatprep.subr.bf16.mxu0 0
  %6199 = vmatpush1.bf16.msra.mxu0 %v6129
  %6200 = vmatprep.subr.bf16.mxu0 0
  %6201 = vmatpush1.bf16.msra.mxu0 %v6130
  %6202 = vmatprep.subr.bf16.mxu0 0
  %6203 = vmatpush1.bf16.msra.mxu0 %v6131
  %6204 = vmatprep.subr.bf16.mxu0 0
  %6205 = vmatpush1.bf16.msra.mxu0 %v6132
  %6206 = vmatprep.subr.bf16.mxu0 0
  %6207 = vmatpush1.bf16.msra.mxu0 %v6133
  %6208 = vmatprep.subr.bf16.mxu0 0
  %6209 = vmatpush1.bf16.msra.mxu0 %v6134
  %6210 = vmatprep.subr.bf16.mxu0 0
  %6211 = vmatpush1.bf16.msra.mxu0 %v6135
  %6212 = vmatprep.subr.bf16.mxu0 0
  %6213 = vmatpush1.bf16.msra.mxu0 %v6136
  %6214 = vmatprep.subr.bf16.mxu0 0
  %6215 = vmatpush1.bf16.msra.mxu0 %v6137
  %6216 = vmatprep.subr.bf16.mxu0 0
  %6217 = vmatpush1.bf16.msra.mxu0 %v6138
  %6218 = vmatprep.subr.bf16.mxu0 0
  %6219 = vmatpush1.bf16.msra.mxu0 %v6139
  %6220 = vmatprep.mubr.bf16.mxu0 %v5922
  %6221 = vmatmul.mubr.bf16.gmra.mrb[0].mxu0 %v5921
  %v6222 = vpop.f32.mrb[0].mxu0
  %v6223 = vadd.f32 %v5994, %v6222
  %v6224 = vpop.f32.mrb[0].mxu0
  %v6225 = vpop.f32.mrb[0].mxu0
  %v6226 = vpop.f32.mrb[0].mxu0
  %6227 = vdwg.mxu0
  %6228 = vmatprep.subr.bf16.mxu0 0
  %6229 = vmatpush1.bf16.msra.mxu0 %v6140
  %6230 = vmatprep.subr.bf16.mxu0 0
  %6231 = vmatpush1.bf16.msra.mxu0 %v6141
  %6232 = vmatprep.subr.bf16.mxu0 0
  %6233 = vmatpush1.bf16.msra.mxu0 %v6142
  %6234 = vmatprep.subr.bf16.mxu0 0
  %6235 = vmatpush1.bf16.msra.mxu0 %v6143
  %6236 = vmatprep.subr.bf16.mxu0 0
  %6237 = vmatpush1.bf16.msra.mxu0 %v6144
  %6238 = vmatprep.subr.bf16.mxu0 0
  %6239 = vmatpush1.bf16.msra.mxu0 %v6145
  %6240 = vmatprep.subr.bf16.mxu0 0
  %6241 = vmatpush1.bf16.msra.mxu0 %v6146
  %6242 = vmatprep.subr.bf16.mxu0 0
  %6243 = vmatpush1.bf16.msra.mxu0 %v6147
  %6244 = vmatprep.subr.bf16.mxu0 0
  %6245 = vmatpush1.bf16.msra.mxu0 %v6148
  %6246 = vmatprep.subr.bf16.mxu0 0
  %6247 = vmatpush1.bf16.msra.mxu0 %v6149
  %6248 = vmatprep.subr.bf16.mxu0 0
  %6249 = vmatpush1.bf16.msra.mxu0 %v6150
  %6250 = vmatprep.subr.bf16.mxu0 0
  %6251 = vmatpush1.bf16.msra.mxu0 %v6151
  %6252 = vmatprep.subr.bf16.mxu0 0
  %6253 = vmatpush1.bf16.msra.mxu0 %v6152
  %6254 = vmatprep.subr.bf16.mxu0 0
  %6255 = vmatpush1.bf16.msra.mxu0 %v6153
  %6256 = vmatprep.subr.bf16.mxu0 0
  %6257 = vmatpush1.bf16.msra.mxu0 %v6154
  %6258 = vmatprep.subr.bf16.mxu0 0
  %6259 = vmatpush1.bf16.msra.mxu0 %v6155
  %6260 = vmatprep.mubr.bf16.mxu0 %v5924
  %6261 = vmatmul.mubr.bf16.gmra.mrb[0].mxu0 %v5923
  %v6262 = vpop.f32.mrb[0].mxu0
  %v6263 = vadd.f32 %v6223, %v6262
  %v6264 = vpop.f32.mrb[0].mxu0
  %v6265 = vpop.f32.mrb[0].mxu0
  %v6266 = vpop.f32.mrb[0].mxu0
  %6267 = vdwg.mxu0
  %6268 = vst [vmem:[%s5] sm:$0xff] %v6263
  // Predicated region
  $region22: #{dcqn_forward.7} parent=0 // pred_check
    _
  $region23: #{dcqn_forward.7} parent=0 // pred_check_branch
    %6270 = sbr.rel (0) target = $region25
  $region24: #{dcqn_forward.7} parent=0 // pred_region
    _
  $region25: #{dcqn_forward.7} parent=0 // pred_fallthru
    _
  // Predicated region
  $region26: #{dcqn_forward.7} parent=0 // pred_check
    _
  $region27: #{dcqn_forward.7} parent=0 // pred_check_branch
    %6272 = sbr.rel (0) target = $region29
  $region28: #{dcqn_forward.7} parent=0 // pred_region
    _
  $region29: #{dcqn_forward.7} parent=0 // pred_fallthru
    _

</llo_original>
